<compile_context>
chip_gen: v7x
topology: tpu7x:2x2x1
jax: 0.10.0
libtpu: 0.0.40
codegen_flags: <defaults>
</compile_context>

<pallas_src>
import functools

import jax
import jax.numpy as jnp
from jax.experimental import pallas as pl
from jax.experimental.pallas import tpu as pltpu


# ---------------------------------------------------------------------------
# math helpers (all f32)
# ---------------------------------------------------------------------------
def _layer_norm(x, g, b, eps=1e-5):
    mu = jnp.mean(x, axis=-1, keepdims=True)
    xc = x - mu
    var = jnp.mean(xc * xc, axis=-1, keepdims=True)
    return xc * jax.lax.rsqrt(var + eps) * g + b


def _erf(x):
    # Abramowitz & Stegun 7.1.26 (max abs err ~1.5e-7); only exp/mul/add/select,
    # which all have guaranteed Mosaic lowerings (EUP/VPU slots).
    a1, a2, a3, a4, a5 = (0.254829592, -0.284496736, 1.421413741,
                          -1.453152027, 1.061405429)
    p = 0.3275911
    ax = jnp.abs(x)
    t = 1.0 / (1.0 + p * ax)
    poly = ((((a5 * t + a4) * t + a3) * t + a2) * t + a1) * t
    y = 1.0 - poly * jnp.exp(-ax * ax)
    return jnp.where(x >= 0, y, -y)


def _gelu_exact(x):
    # nn.GELU() default == exact (erf) GELU.
    return 0.5 * x * (1.0 + _erf(x * 0.7071067811865476))


# ---------------------------------------------------------------------------
# Pallas kernel: one row-block (batch_block * T rows) per grid step
# ---------------------------------------------------------------------------
def decoder_block_kernel(
    x_ref, mask_ref,
    g0_ref, b0_ref, g1_ref, b1_ref, g2_ref, b2_ref,   # LayerNorm params (1, E)
    w_qkv_ref, w_ao_ref,                              # self-attn (no bias)
    w_cqkv_ref, b_cqkv_ref, w_co_ref, b_co_ref,       # fused cross-attn
    w_m1_ref, b_m1_ref, w_m2_ref, b_m2_ref,           # MLP
    o_ref,
    attn_ref,                                         # (rows, E) f32 scratch
    *, batch_block, seq, heads, head_dim, compute_dtype, exact_softmax,
):
    E = heads * head_dim
    dt = compute_dtype
    x = x_ref[...].astype(jnp.float32)                # (rows, E)
    mask = mask_ref[...]                              # (T, T) additive bias

    def mha(q, k, v, msk):
        # q, k, v: (rows, E) f32.  Per (batch, head): pure 2D MXU calls on
        # static lane/sublane sub-slices; PV result written straight into the
        # (rows, E) scratch (no transposes, no concat relayouts).
        scale = 1.0 / (head_dim ** 0.5)
        nt_dims = (((1,), (1,)), ((), ()))            # q . k^T without transpose
        for b in range(batch_block):
            r0 = b * seq
            for h in range(heads):
                c0 = h * head_dim
                qh = q[r0:r0 + seq, c0:c0 + head_dim].astype(dt)
                kh = k[r0:r0 + seq, c0:c0 + head_dim].astype(dt)
                vh = v[r0:r0 + seq, c0:c0 + head_dim].astype(dt)
                s = jax.lax.dot_general(qh, kh, nt_dims,
                                        preferred_element_type=jnp.float32)
                s = s * scale
                if msk is not None:
                    s = s + msk
                s = s - jnp.max(s, axis=-1, keepdims=True)
                p = jnp.exp(s)
                denom = jnp.sum(p, axis=-1, keepdims=True)
                if exact_softmax:                     # exact f32 validation path
                    p = p / denom
                else:                                 # EUP slot, ~free
                    p = p * pl.reciprocal(denom, approx=True)
                attn_ref[r0:r0 + seq, c0:c0 + head_dim] = jnp.dot(
                    p.astype(dt), vh, preferred_element_type=jnp.float32)
        return attn_ref[...]

    # --- self-attention: x = x + MHA(LN0(x), mask) @ W_o ---
    h = _layer_norm(x, g0_ref[...], b0_ref[...])
    qkv = jnp.dot(h.astype(dt), w_qkv_ref[...],
                  preferred_element_type=jnp.float32)                 # (rows, 3E)
    attn = mha(qkv[:, :E], qkv[:, E:2 * E], qkv[:, 2 * E:], mask)
    x = x + jnp.dot(attn.astype(dt), w_ao_ref[...],
                    preferred_element_type=jnp.float32)

    # --- "cross"-attention: q, k, v all from LN1(x); mask=None (as in reference) ---
    h = _layer_norm(x, g1_ref[...], b1_ref[...])
    qkv = jnp.dot(h.astype(dt), w_cqkv_ref[...],
                  preferred_element_type=jnp.float32) + b_cqkv_ref[...]
    attn = mha(qkv[:, :E], qkv[:, E:2 * E], qkv[:, 2 * E:], None)
    x = x + jnp.dot(attn.astype(dt), w_co_ref[...],
                    preferred_element_type=jnp.float32) + b_co_ref[...]

    # --- MLP: x = x + GELU(LN2(x) @ W1 + b1) @ W2 + b2 ---
    h = _layer_norm(x, g2_ref[...], b2_ref[...])
    hmid = jnp.dot(h.astype(dt), w_m1_ref[...],
                   preferred_element_type=jnp.float32) + b_m1_ref[...]
    hmid = _gelu_exact(hmid)
    x = x + jnp.dot(hmid.astype(dt), w_m2_ref[...],
                    preferred_element_type=jnp.float32) + b_m2_ref[...]

    o_ref[...] = x.astype(o_ref.dtype)


# ---------------------------------------------------------------------------
# wrapper
# ---------------------------------------------------------------------------
def _invariant_spec(arr, single_buffer):
    # Grid-invariant 2D operand: full block, constant index map.  Buffered(1)
    # disables the (pointless) double buffering and halves its VMEM footprint.
    if single_buffer:
        return pl.BlockSpec(arr.shape, lambda i: (0, 0),
                            pipeline_mode=pl.Buffered(1))
    return pl.BlockSpec(arr.shape, lambda i: (0, 0))


def _pick_batch_block(B, T, target_rows=512):
    bb = max(1, min(B, max(1, target_rows // max(T, 1))))
    while B % bb:
        bb -= 1
    return bb


def _vmem_limit_bytes(rows_blk, T, E, heads, weights, mask, single_buffer):
    mult = 1 if single_buffer else 2
    wbytes = mult * sum(int(w.size) * jnp.dtype(w.dtype).itemsize for w in weights)
    wbytes += mult * int(mask.size) * jnp.dtype(mask.dtype).itemsize
    io = 2 * 2 * rows_blk * E * 4                 # x / out blocks, double-buffered
    inter = 2 * rows_blk * 3 * E * (4 + 2)        # qkv & hmid (f32 + compute copy)
    inter += 6 * rows_blk * E * 4                 # attn scratch, LN temps, residuals
    inter += 2 * heads * T * T * 4                # per-head score/prob tiles
    est = wbytes + io + inter + (4 << 20)         # fixed compiler headroom
    try:
        phys = int(pltpu.get_tpu_info().vmem_capacity_bytes)
    except Exception:
        phys = 64 * 1024 * 1024                   # conservative (v7x) fallback
    cap = int(phys * 0.85)                        # leave semaphore/compiler headroom
    return max(min(est, cap), min(32 * 1024 * 1024, cap))


def transformer_decoder_block(x, y, mask, params, *, heads,
                              compute_dtype=jnp.bfloat16,
                              single_buffer_weights=True,
                              batch_block=None):
    """x: (B,T,E); y: (B,S,E) [never read by the reference]; mask: (T,T) float."""
    del y  # unused by the PyTorch reference -> not passed to pallas_call (no DMA)
    B, T, E = x.shape
    head_dim = E // heads
    cd = compute_dtype

    if batch_block is None:
        batch_block = _pick_batch_block(B, T)
    rows_blk = batch_block * T
    grid = (B // batch_block,)
    # TODO(synk): on v7x (2 TCs) with grid==(1,), split the row-block axis in
    #             two parallel steps once rows_blk is large enough to keep
    #             MXU row utilization high on both cores.

    # Host-side fusion of the cross-attention q/k/v projections (one MXU pass).
    w_cqkv = jnp.concatenate([params["w_cq"], params["w_ck"], params["w_cv"]], axis=1)
    b_cqkv = jnp.concatenate([params["b_cq"], params["b_ck"], params["b_cv"]], axis=1)

    weights = [
        params["ln0_g"], params["ln0_b"],
        params["ln1_g"], params["ln1_b"],
        params["ln2_g"], params["ln2_b"],
        params["w_qkv"].astype(cd), params["w_ao"].astype(cd),
        w_cqkv.astype(cd), b_cqkv,
        params["w_co"].astype(cd), params["b_co"],
        params["w_m1"].astype(cd), params["b_m1"],
        params["w_m2"].astype(cd), params["b_m2"],
    ]

    x2d = x.reshape(B * T, E)   # fold batch into the matmul M dimension

    in_specs = [pl.BlockSpec((rows_blk, E), lambda i: (i, 0)),
                _invariant_spec(mask, single_buffer_weights)]
    in_specs += [_invariant_spec(w, single_buffer_weights) for w in weights]

    kernel = functools.partial(
        decoder_block_kernel,
        batch_block=batch_block, seq=T, heads=heads, head_dim=head_dim,
        compute_dtype=cd, exact_softmax=(cd == jnp.float32))

    out2d = pl.pallas_call(
        kernel,
        out_shape=jax.ShapeDtypeStruct((B * T, E), x.dtype),
        grid=grid,
        in_specs=in_specs,
        out_specs=pl.BlockSpec((rows_blk, E), lambda i: (i, 0)),
        scratch_shapes=[pltpu.VMEM((rows_blk, E), jnp.float32)],
        compiler_params=pltpu.CompilerParams(
            dimension_semantics=("parallel",),
            vmem_limit_bytes=_vmem_limit_bytes(
                rows_blk, T, E, heads, weights, mask, single_buffer_weights)),
    )(x2d, mask, *weights)
    return out2d.reshape(B, T, E)


# ---------------------------------------------------------------------------
# deterministic parameters + pure-JAX (f32) reference
# ---------------------------------------------------------------------------
def init_params(key, E):
    keys = iter(jax.random.split(key, 32))

    def w(shape, scale=0.05):
        return jax.random.normal(next(keys), shape, jnp.float32) * scale

    p = {}
    for i in range(3):
        p[f"ln{i}_g"] = 1.0 + w((1, E))
        p[f"ln{i}_b"] = w((1, E))
    p["w_qkv"] = w((E, 3 * E))              # Attention.linears[0] (bias=False)
    p["w_ao"] = w((E, E))                   # Attention.linears[1] (bias=False)
    for name in ("cq", "ck", "cv", "co"):   # CrossAttention.linears[0..3]
        p[f"w_{name}"] = w((E, E))
        p[f"b_{name}"] = w((1, E))
    p["w_m1"] = w((E, 3 * E)); p["b_m1"] = w((1, 3 * E))   # MLP
    p["w_m2"] = w((3 * E, E)); p["b_m2"] = w((1, E))
    return p


def reference(x, y, mask, p, *, heads):
    del y  # unused in the PyTorch reference as well
    E = x.shape[-1]
    hd = E // heads

    def mha(q, k, v, m):
        T = q.shape[0]
        qh = q.reshape(T, heads, hd).transpose(1, 0, 2)
        kh = k.reshape(T, heads, hd).transpose(1, 0, 2)
        vh = v.reshape(T, heads, hd).transpose(1, 0, 2)
        s = jnp.einsum("htd,hsd->hts", qh, kh) / (hd ** 0.5)
        if m is not None:
            s = s + m[None]
        pr = jax.nn.softmax(s, axis=-1)
        o = jnp.einsum("hts,hsd->htd", pr, vh)
        return o.transpose(1, 0, 2).reshape(T, E)

    def one(xb):
        h = _layer_norm(xb, p["ln0_g"], p["ln0_b"])
        qkv = h @ p["w_qkv"]
        xb = xb + mha(qkv[:, :E], qkv[:, E:2 * E], qkv[:, 2 * E:], mask) @ p["w_ao"]

        h = _layer_norm(xb, p["ln1_g"], p["ln1_b"])
        q = h @ p["w_cq"] + p["b_cq"]
        k = h @ p["w_ck"] + p["b_ck"]
        v = h @ p["w_cv"] + p["b_cv"]
        xb = xb + mha(q, k, v, None) @ p["w_co"] + p["b_co"]

        h = _layer_norm(xb, p["ln2_g"], p["ln2_b"])
        mid = jax.nn.gelu(h @ p["w_m1"] + p["b_m1"], approximate=False)
        return xb + mid @ p["w_m2"] + p["b_m2"]

    return jax.vmap(one)(x)


if __name__ == "__main__":
    # Lane-dense E (multiple of 128); B*T = 16 rows = one bf16 sublane tile.
    B, T, S, E, HEADS = 2, 8, 16, 128, 4
    key = jax.random.PRNGKey(0)
    kx, ky, kp = jax.random.split(key, 3)

    x = jax.random.normal(kx, (B, T, E), jnp.float32)
    y = jax.random.normal(ky, (B, S, E), jnp.float32)
    # Additive float causal mask (PyTorch SDPA float-mask semantics); -1e9 is
    # safe here because every row has at least one unmasked position.
    mask = jnp.where(jnp.tril(jnp.ones((T, T), dtype=bool)),
                     0.0, -1e9).astype(jnp.float32)
    params = init_params(kp, E)

    ref = reference(x, y, mask, params, heads=HEADS)

    # f32 compute path (exact softmax divide): validates the math.
    single_buffer = True
    try:
        out_f32 = jax.block_until_ready(
            transformer_decoder_block(x, y, mask, params, heads=HEADS,
                                      compute_dtype=jnp.float32,
                                      single_buffer_weights=True))
    except Exception:
        # pl.Buffered(1) single-buffering is a newer pipeline feature; fall
        # back to default double buffering if this jax/Mosaic rejects it.
        single_buffer = False
        out_f32 = jax.block_until_ready(
            transformer_decoder_block(x, y, mask, params, heads=HEADS,
                                      compute_dtype=jnp.float32,
                                      single_buffer_weights=False))

    assert out_f32.shape == (B, T, E)
    err_f32 = float(jnp.max(jnp.abs(out_f32 - ref)))
    assert err_f32 < 5e-3, f"f32 path max abs error {err_f32}"

    # bf16-matmul path (default; MXU-native) — f32 accumulation throughout.
    out_bf16 = jax.block_until_ready(
        transformer_decoder_block(x, y, mask, params, heads=HEADS,
                                  compute_dtype=jnp.bfloat16,
                                  single_buffer_weights=single_buffer))
    assert out_bf16.shape == (B, T, E)
    err_bf16 = float(jnp.max(jnp.abs(out_bf16 - ref)))
    assert err_bf16 < 1e-1, f"bf16 path max abs error {err_bf16}"

    print("KERNEL_OK")
</pallas_src>

<mosaic_0001>
module attributes {stable_mosaic.version = 11 : i64} {
  func.func @decoder_block_kernel(%arg0: i32, %arg1: memref<16x128xf32, #tpu.memory_space<vmem>>, %arg2: memref<8x8xf32, #tpu.memory_space<vmem>>, %arg3: memref<1x128xf32, #tpu.memory_space<vmem>>, %arg4: memref<1x128xf32, #tpu.memory_space<vmem>>, %arg5: memref<1x128xf32, #tpu.memory_space<vmem>>, %arg6: memref<1x128xf32, #tpu.memory_space<vmem>>, %arg7: memref<1x128xf32, #tpu.memory_space<vmem>>, %arg8: memref<1x128xf32, #tpu.memory_space<vmem>>, %arg9: memref<128x384xf32, #tpu.memory_space<vmem>>, %arg10: memref<128x128xf32, #tpu.memory_space<vmem>>, %arg11: memref<128x384xf32, #tpu.memory_space<vmem>>, %arg12: memref<1x384xf32, #tpu.memory_space<vmem>>, %arg13: memref<128x128xf32, #tpu.memory_space<vmem>>, %arg14: memref<1x128xf32, #tpu.memory_space<vmem>>, %arg15: memref<128x384xf32, #tpu.memory_space<vmem>>, %arg16: memref<1x384xf32, #tpu.memory_space<vmem>>, %arg17: memref<384x128xf32, #tpu.memory_space<vmem>>, %arg18: memref<1x128xf32, #tpu.memory_space<vmem>>, %arg19: memref<16x128xf32, #tpu.memory_space<vmem>>, %arg20: memref<16x128xf32, #tpu.memory_space<vmem>>) attributes {dimension_semantics = [#tpu.dimension_semantics<parallel>], iteration_bounds = array<i64: 1>, scalar_prefetch = 0 : i64, scratch_operands = 1 : i64, tpu.core_type = #tpu.core_type<tc>, window_params = [{transform_indices = @transform_0, window_bounds = array<i64: 16, 128>}, {pipeline_mode = #tpu.pipeline_mode<synchronous>, transform_indices = @transform_1, window_bounds = array<i64: 8, 8>}, {pipeline_mode = #tpu.pipeline_mode<synchronous>, transform_indices = @transform_2, window_bounds = array<i64: 1, 128>}, {pipeline_mode = #tpu.pipeline_mode<synchronous>, transform_indices = @transform_3, window_bounds = array<i64: 1, 128>}, {pipeline_mode = #tpu.pipeline_mode<synchronous>, transform_indices = @transform_4, window_bounds = array<i64: 1, 128>}, {pipeline_mode = #tpu.pipeline_mode<synchronous>, transform_indices = @transform_5, window_bounds = array<i64: 1, 128>}, {pipeline_mode = #tpu.pipeline_mode<synchronous>, transform_indices = @transform_6, window_bounds = array<i64: 1, 128>}, {pipeline_mode = #tpu.pipeline_mode<synchronous>, transform_indices = @transform_7, window_bounds = array<i64: 1, 128>}, {pipeline_mode = #tpu.pipeline_mode<synchronous>, transform_indices = @transform_8, window_bounds = array<i64: 128, 384>}, {pipeline_mode = #tpu.pipeline_mode<synchronous>, transform_indices = @transform_9, window_bounds = array<i64: 128, 128>}, {pipeline_mode = #tpu.pipeline_mode<synchronous>, transform_indices = @transform_10, window_bounds = array<i64: 128, 384>}, {pipeline_mode = #tpu.pipeline_mode<synchronous>, transform_indices = @transform_11, window_bounds = array<i64: 1, 384>}, {pipeline_mode = #tpu.pipeline_mode<synchronous>, transform_indices = @transform_12, window_bounds = array<i64: 128, 128>}, {pipeline_mode = #tpu.pipeline_mode<synchronous>, transform_indices = @transform_13, window_bounds = array<i64: 1, 128>}, {pipeline_mode = #tpu.pipeline_mode<synchronous>, transform_indices = @transform_14, window_bounds = array<i64: 128, 384>}, {pipeline_mode = #tpu.pipeline_mode<synchronous>, transform_indices = @transform_15, window_bounds = array<i64: 1, 384>}, {pipeline_mode = #tpu.pipeline_mode<synchronous>, transform_indices = @transform_16, window_bounds = array<i64: 384, 128>}, {pipeline_mode = #tpu.pipeline_mode<synchronous>, transform_indices = @transform_17, window_bounds = array<i64: 1, 128>}, {transform_indices = @transform_18, window_bounds = array<i64: 16, 128>}]} {
    %c0 = arith.constant 0 : index
    %c0_0 = arith.constant 0 : index
    %0 = vector.load %arg1[%c0, %c0_0] : memref<16x128xf32, #tpu.memory_space<vmem>>, vector<16x128xf32>
    %c0_1 = arith.constant 0 : index
    %c0_2 = arith.constant 0 : index
    %1 = vector.load %arg2[%c0_1, %c0_2] : memref<8x8xf32, #tpu.memory_space<vmem>>, vector<8x8xf32>
    %c0_3 = arith.constant 0 : index
    %c0_4 = arith.constant 0 : index
    %2 = vector.load %arg3[%c0_3, %c0_4] : memref<1x128xf32, #tpu.memory_space<vmem>>, vector<1x128xf32>
    %c0_5 = arith.constant 0 : index
    %c0_6 = arith.constant 0 : index
    %3 = vector.load %arg4[%c0_5, %c0_6] : memref<1x128xf32, #tpu.memory_space<vmem>>, vector<1x128xf32>
    %cst = arith.constant dense<0.000000e+00> : vector<16xf32>
    %4 = vector.multi_reduction <add>, %0, %cst [1] : vector<16x128xf32> to vector<16xf32>
    %5 = vector.shape_cast %4 : vector<16xf32> to vector<16x1xf32>
    %cst_7 = arith.constant 1.280000e+02 : f32
    %6 = vector.broadcast %cst_7 : f32 to vector<16x1xf32>
    %7 = arith.divf %5, %6 : vector<16x1xf32>
    %8 = vector.broadcast %7 : vector<16x1xf32> to vector<16x128xf32>
    %9 = arith.subf %0, %8 : vector<16x128xf32>
    %10 = arith.mulf %9, %9 : vector<16x128xf32>
    %cst_8 = arith.constant dense<0.000000e+00> : vector<16xf32>
    %11 = vector.multi_reduction <add>, %10, %cst_8 [1] : vector<16x128xf32> to vector<16xf32>
    %12 = vector.shape_cast %11 : vector<16xf32> to vector<16x1xf32>
    %cst_9 = arith.constant 1.280000e+02 : f32
    %13 = vector.broadcast %cst_9 : f32 to vector<16x1xf32>
    %14 = arith.divf %12, %13 : vector<16x1xf32>
    %cst_10 = arith.constant 9.99999974E-6 : f32
    %15 = vector.broadcast %cst_10 : f32 to vector<16x1xf32>
    %16 = arith.addf %14, %15 : vector<16x1xf32>
    %17 = math.rsqrt %16 : vector<16x1xf32>
    %18 = vector.broadcast %17 : vector<16x1xf32> to vector<16x128xf32>
    %19 = arith.mulf %9, %18 : vector<16x128xf32>
    %20 = vector.broadcast %2 : vector<1x128xf32> to vector<16x128xf32>
    %21 = arith.mulf %19, %20 : vector<16x128xf32>
    %22 = vector.broadcast %3 : vector<1x128xf32> to vector<16x128xf32>
    %23 = arith.addf %21, %22 : vector<16x128xf32>
    %c0_11 = arith.constant 0 : index
    %c0_12 = arith.constant 0 : index
    %24 = vector.load %arg9[%c0_11, %c0_12] : memref<128x384xf32, #tpu.memory_space<vmem>>, vector<128x384xf32>
    %cst_13 = arith.constant dense<0.000000e+00> : vector<16x384xf32>
    %25 = tpu.matmul %23, %24, %cst_13 {dimension_numbers = #tpu.dot_dimension_numbers<[1], [0], [0], [1], [0, 0, 1, 1], [], []>} : vector<16x128xf32>, vector<128x384xf32>, vector<16x384xf32> -> vector<16x384xf32>
    %26 = vector.extract_strided_slice %25 {offsets = [0, 0], sizes = [16, 128], strides = [1, 1]} : vector<16x384xf32> to vector<16x128xf32>
    %27 = vector.extract_strided_slice %25 {offsets = [0, 128], sizes = [16, 128], strides = [1, 1]} : vector<16x384xf32> to vector<16x128xf32>
    %28 = vector.extract_strided_slice %25 {offsets = [0, 256], sizes = [16, 128], strides = [1, 1]} : vector<16x384xf32> to vector<16x128xf32>
    %29 = vector.extract_strided_slice %26 {offsets = [0, 0], sizes = [8, 32], strides = [1, 1]} : vector<16x128xf32> to vector<8x32xf32>
    %30 = vector.extract_strided_slice %27 {offsets = [0, 0], sizes = [8, 32], strides = [1, 1]} : vector<16x128xf32> to vector<8x32xf32>
    %31 = vector.extract_strided_slice %28 {offsets = [0, 0], sizes = [8, 32], strides = [1, 1]} : vector<16x128xf32> to vector<8x32xf32>
    %cst_14 = arith.constant dense<0.000000e+00> : vector<8x8xf32>
    %32 = tpu.matmul %29, %30, %cst_14 {dimension_numbers = #tpu.dot_dimension_numbers<[1], [1], [0], [0], [0, 0, 1, 0], [], []>} : vector<8x32xf32>, vector<8x32xf32>, vector<8x8xf32> -> vector<8x8xf32>
    %cst_15 = arith.constant 0.176776692 : f32
    %33 = vector.broadcast %cst_15 : f32 to vector<8x8xf32>
    %34 = arith.mulf %32, %33 : vector<8x8xf32>
    %35 = arith.addf %34, %1 : vector<8x8xf32>
    %cst_16 = arith.constant dense<0xFF800000> : vector<8xf32>
    %36 = vector.multi_reduction <maximumf>, %35, %cst_16 [1] : vector<8x8xf32> to vector<8xf32>
    %37 = vector.shape_cast %36 : vector<8xf32> to vector<8x1xf32>
    %38 = vector.broadcast %37 : vector<8x1xf32> to vector<8x8xf32>
    %39 = arith.subf %35, %38 : vector<8x8xf32>
    %40 = math.exp %39 : vector<8x8xf32>
    %cst_17 = arith.constant dense<0.000000e+00> : vector<8xf32>
    %41 = vector.multi_reduction <add>, %40, %cst_17 [1] : vector<8x8xf32> to vector<8xf32>
    %42 = vector.shape_cast %41 : vector<8xf32> to vector<8x1xf32>
    %43 = vector.broadcast %42 : vector<8x1xf32> to vector<8x8xf32>
    %44 = arith.divf %40, %43 : vector<8x8xf32>
    %cst_18 = arith.constant dense<0.000000e+00> : vector<8x32xf32>
    %45 = tpu.matmul %44, %31, %cst_18 {dimension_numbers = #tpu.dot_dimension_numbers<[1], [0], [0], [1], [0, 0, 1, 1], [], []>} : vector<8x8xf32>, vector<8x32xf32>, vector<8x32xf32> -> vector<8x32xf32>
    %c0_19 = arith.constant 0 : index
    %c0_20 = arith.constant 0 : index
    %46 = vector.load %arg20[%c0_19, %c0_20] : memref<16x128xf32, #tpu.memory_space<vmem>>, vector<8x32xf32>
    tpu.vector_store %arg20[%c0_19, %c0_20], %45 {strides = array<i32>} : memref<16x128xf32, #tpu.memory_space<vmem>>, vector<8x32xf32>,
    %47 = vector.extract_strided_slice %26 {offsets = [0, 32], sizes = [8, 32], strides = [1, 1]} : vector<16x128xf32> to vector<8x32xf32>
    %48 = vector.extract_strided_slice %27 {offsets = [0, 32], sizes = [8, 32], strides = [1, 1]} : vector<16x128xf32> to vector<8x32xf32>
    %49 = vector.extract_strided_slice %28 {offsets = [0, 32], sizes = [8, 32], strides = [1, 1]} : vector<16x128xf32> to vector<8x32xf32>
    %cst_21 = arith.constant dense<0.000000e+00> : vector<8x8xf32>
    %50 = tpu.matmul %47, %48, %cst_21 {dimension_numbers = #tpu.dot_dimension_numbers<[1], [1], [0], [0], [0, 0, 1, 0], [], []>} : vector<8x32xf32>, vector<8x32xf32>, vector<8x8xf32> -> vector<8x8xf32>
    %cst_22 = arith.constant 0.176776692 : f32
    %51 = vector.broadcast %cst_22 : f32 to vector<8x8xf32>
    %52 = arith.mulf %50, %51 : vector<8x8xf32>
    %53 = arith.addf %52, %1 : vector<8x8xf32>
    %cst_23 = arith.constant dense<0xFF800000> : vector<8xf32>
    %54 = vector.multi_reduction <maximumf>, %53, %cst_23 [1] : vector<8x8xf32> to vector<8xf32>
    %55 = vector.shape_cast %54 : vector<8xf32> to vector<8x1xf32>
    %56 = vector.broadcast %55 : vector<8x1xf32> to vector<8x8xf32>
    %57 = arith.subf %53, %56 : vector<8x8xf32>
    %58 = math.exp %57 : vector<8x8xf32>
    %cst_24 = arith.constant dense<0.000000e+00> : vector<8xf32>
    %59 = vector.multi_reduction <add>, %58, %cst_24 [1] : vector<8x8xf32> to vector<8xf32>
    %60 = vector.shape_cast %59 : vector<8xf32> to vector<8x1xf32>
    %61 = vector.broadcast %60 : vector<8x1xf32> to vector<8x8xf32>
    %62 = arith.divf %58, %61 : vector<8x8xf32>
    %cst_25 = arith.constant dense<0.000000e+00> : vector<8x32xf32>
    %63 = tpu.matmul %62, %49, %cst_25 {dimension_numbers = #tpu.dot_dimension_numbers<[1], [0], [0], [1], [0, 0, 1, 1], [], []>} : vector<8x8xf32>, vector<8x32xf32>, vector<8x32xf32> -> vector<8x32xf32>
    %c0_26 = arith.constant 0 : index
    %c32 = arith.constant 32 : index
    %64 = vector.load %arg20[%c0_26, %c32] : memref<16x128xf32, #tpu.memory_space<vmem>>, vector<8x32xf32>
    tpu.vector_store %arg20[%c0_26, %c32], %63 {strides = array<i32>} : memref<16x128xf32, #tpu.memory_space<vmem>>, vector<8x32xf32>,
    %65 = vector.extract_strided_slice %26 {offsets = [0, 64], sizes = [8, 32], strides = [1, 1]} : vector<16x128xf32> to vector<8x32xf32>
    %66 = vector.extract_strided_slice %27 {offsets = [0, 64], sizes = [8, 32], strides = [1, 1]} : vector<16x128xf32> to vector<8x32xf32>
    %67 = vector.extract_strided_slice %28 {offsets = [0, 64], sizes = [8, 32], strides = [1, 1]} : vector<16x128xf32> to vector<8x32xf32>
    %cst_27 = arith.constant dense<0.000000e+00> : vector<8x8xf32>
    %68 = tpu.matmul %65, %66, %cst_27 {dimension_numbers = #tpu.dot_dimension_numbers<[1], [1], [0], [0], [0, 0, 1, 0], [], []>} : vector<8x32xf32>, vector<8x32xf32>, vector<8x8xf32> -> vector<8x8xf32>
    %cst_28 = arith.constant 0.176776692 : f32
    %69 = vector.broadcast %cst_28 : f32 to vector<8x8xf32>
    %70 = arith.mulf %68, %69 : vector<8x8xf32>
    %71 = arith.addf %70, %1 : vector<8x8xf32>
    %cst_29 = arith.constant dense<0xFF800000> : vector<8xf32>
    %72 = vector.multi_reduction <maximumf>, %71, %cst_29 [1] : vector<8x8xf32> to vector<8xf32>
    %73 = vector.shape_cast %72 : vector<8xf32> to vector<8x1xf32>
    %74 = vector.broadcast %73 : vector<8x1xf32> to vector<8x8xf32>
    %75 = arith.subf %71, %74 : vector<8x8xf32>
    %76 = math.exp %75 : vector<8x8xf32>
    %cst_30 = arith.constant dense<0.000000e+00> : vector<8xf32>
    %77 = vector.multi_reduction <add>, %76, %cst_30 [1] : vector<8x8xf32> to vector<8xf32>
    %78 = vector.shape_cast %77 : vector<8xf32> to vector<8x1xf32>
    %79 = vector.broadcast %78 : vector<8x1xf32> to vector<8x8xf32>
    %80 = arith.divf %76, %79 : vector<8x8xf32>
    %cst_31 = arith.constant dense<0.000000e+00> : vector<8x32xf32>
    %81 = tpu.matmul %80, %67, %cst_31 {dimension_numbers = #tpu.dot_dimension_numbers<[1], [0], [0], [1], [0, 0, 1, 1], [], []>} : vector<8x8xf32>, vector<8x32xf32>, vector<8x32xf32> -> vector<8x32xf32>
    %c0_32 = arith.constant 0 : index
    %c64 = arith.constant 64 : index
    %82 = vector.load %arg20[%c0_32, %c64] : memref<16x128xf32, #tpu.memory_space<vmem>>, vector<8x32xf32>
    tpu.vector_store %arg20[%c0_32, %c64], %81 {strides = array<i32>} : memref<16x128xf32, #tpu.memory_space<vmem>>, vector<8x32xf32>,
    %83 = vector.extract_strided_slice %26 {offsets = [0, 96], sizes = [8, 32], strides = [1, 1]} : vector<16x128xf32> to vector<8x32xf32>
    %84 = vector.extract_strided_slice %27 {offsets = [0, 96], sizes = [8, 32], strides = [1, 1]} : vector<16x128xf32> to vector<8x32xf32>
    %85 = vector.extract_strided_slice %28 {offsets = [0, 96], sizes = [8, 32], strides = [1, 1]} : vector<16x128xf32> to vector<8x32xf32>
    %cst_33 = arith.constant dense<0.000000e+00> : vector<8x8xf32>
    %86 = tpu.matmul %83, %84, %cst_33 {dimension_numbers = #tpu.dot_dimension_numbers<[1], [1], [0], [0], [0, 0, 1, 0], [], []>} : vector<8x32xf32>, vector<8x32xf32>, vector<8x8xf32> -> vector<8x8xf32>
    %cst_34 = arith.constant 0.176776692 : f32
    %87 = vector.broadcast %cst_34 : f32 to vector<8x8xf32>
    %88 = arith.mulf %86, %87 : vector<8x8xf32>
    %89 = arith.addf %88, %1 : vector<8x8xf32>
    %cst_35 = arith.constant dense<0xFF800000> : vector<8xf32>
    %90 = vector.multi_reduction <maximumf>, %89, %cst_35 [1] : vector<8x8xf32> to vector<8xf32>
    %91 = vector.shape_cast %90 : vector<8xf32> to vector<8x1xf32>
    %92 = vector.broadcast %91 : vector<8x1xf32> to vector<8x8xf32>
    %93 = arith.subf %89, %92 : vector<8x8xf32>
    %94 = math.exp %93 : vector<8x8xf32>
    %cst_36 = arith.constant dense<0.000000e+00> : vector<8xf32>
    %95 = vector.multi_reduction <add>, %94, %cst_36 [1] : vector<8x8xf32> to vector<8xf32>
    %96 = vector.shape_cast %95 : vector<8xf32> to vector<8x1xf32>
    %97 = vector.broadcast %96 : vector<8x1xf32> to vector<8x8xf32>
    %98 = arith.divf %94, %97 : vector<8x8xf32>
    %cst_37 = arith.constant dense<0.000000e+00> : vector<8x32xf32>
    %99 = tpu.matmul %98, %85, %cst_37 {dimension_numbers = #tpu.dot_dimension_numbers<[1], [0], [0], [1], [0, 0, 1, 1], [], []>} : vector<8x8xf32>, vector<8x32xf32>, vector<8x32xf32> -> vector<8x32xf32>
    %c0_38 = arith.constant 0 : index
    %c96 = arith.constant 96 : index
    %100 = vector.load %arg20[%c0_38, %c96] : memref<16x128xf32, #tpu.memory_space<vmem>>, vector<8x32xf32>
    tpu.vector_store %arg20[%c0_38, %c96], %99 {strides = array<i32>} : memref<16x128xf32, #tpu.memory_space<vmem>>, vector<8x32xf32>,
    %101 = vector.extract_strided_slice %26 {offsets = [8, 0], sizes = [8, 32], strides = [1, 1]} : vector<16x128xf32> to vector<8x32xf32>
    %102 = vector.extract_strided_slice %27 {offsets = [8, 0], sizes = [8, 32], strides = [1, 1]} : vector<16x128xf32> to vector<8x32xf32>
    %103 = vector.extract_strided_slice %28 {offsets = [8, 0], sizes = [8, 32], strides = [1, 1]} : vector<16x128xf32> to vector<8x32xf32>
    %cst_39 = arith.constant dense<0.000000e+00> : vector<8x8xf32>
    %104 = tpu.matmul %101, %102, %cst_39 {dimension_numbers = #tpu.dot_dimension_numbers<[1], [1], [0], [0], [0, 0, 1, 0], [], []>} : vector<8x32xf32>, vector<8x32xf32>, vector<8x8xf32> -> vector<8x8xf32>
    %cst_40 = arith.constant 0.176776692 : f32
    %105 = vector.broadcast %cst_40 : f32 to vector<8x8xf32>
    %106 = arith.mulf %104, %105 : vector<8x8xf32>
    %107 = arith.addf %106, %1 : vector<8x8xf32>
    %cst_41 = arith.constant dense<0xFF800000> : vector<8xf32>
    %108 = vector.multi_reduction <maximumf>, %107, %cst_41 [1] : vector<8x8xf32> to vector<8xf32>
    %109 = vector.shape_cast %108 : vector<8xf32> to vector<8x1xf32>
    %110 = vector.broadcast %109 : vector<8x1xf32> to vector<8x8xf32>
    %111 = arith.subf %107, %110 : vector<8x8xf32>
    %112 = math.exp %111 : vector<8x8xf32>
    %cst_42 = arith.constant dense<0.000000e+00> : vector<8xf32>
    %113 = vector.multi_reduction <add>, %112, %cst_42 [1] : vector<8x8xf32> to vector<8xf32>
    %114 = vector.shape_cast %113 : vector<8xf32> to vector<8x1xf32>
    %115 = vector.broadcast %114 : vector<8x1xf32> to vector<8x8xf32>
    %116 = arith.divf %112, %115 : vector<8x8xf32>
    %cst_43 = arith.constant dense<0.000000e+00> : vector<8x32xf32>
    %117 = tpu.matmul %116, %103, %cst_43 {dimension_numbers = #tpu.dot_dimension_numbers<[1], [0], [0], [1], [0, 0, 1, 1], [], []>} : vector<8x8xf32>, vector<8x32xf32>, vector<8x32xf32> -> vector<8x32xf32>
    %c8 = arith.constant 8 : index
    %c0_44 = arith.constant 0 : index
    %118 = vector.load %arg20[%c8, %c0_44] : memref<16x128xf32, #tpu.memory_space<vmem>>, vector<8x32xf32>
    tpu.vector_store %arg20[%c8, %c0_44], %117 {strides = array<i32>} : memref<16x128xf32, #tpu.memory_space<vmem>>, vector<8x32xf32>,
    %119 = vector.extract_strided_slice %26 {offsets = [8, 32], sizes = [8, 32], strides = [1, 1]} : vector<16x128xf32> to vector<8x32xf32>
    %120 = vector.extract_strided_slice %27 {offsets = [8, 32], sizes = [8, 32], strides = [1, 1]} : vector<16x128xf32> to vector<8x32xf32>
    %121 = vector.extract_strided_slice %28 {offsets = [8, 32], sizes = [8, 32], strides = [1, 1]} : vector<16x128xf32> to vector<8x32xf32>
    %cst_45 = arith.constant dense<0.000000e+00> : vector<8x8xf32>
    %122 = tpu.matmul %119, %120, %cst_45 {dimension_numbers = #tpu.dot_dimension_numbers<[1], [1], [0], [0], [0, 0, 1, 0], [], []>} : vector<8x32xf32>, vector<8x32xf32>, vector<8x8xf32> -> vector<8x8xf32>
    %cst_46 = arith.constant 0.176776692 : f32
    %123 = vector.broadcast %cst_46 : f32 to vector<8x8xf32>
    %124 = arith.mulf %122, %123 : vector<8x8xf32>
    %125 = arith.addf %124, %1 : vector<8x8xf32>
    %cst_47 = arith.constant dense<0xFF800000> : vector<8xf32>
    %126 = vector.multi_reduction <maximumf>, %125, %cst_47 [1] : vector<8x8xf32> to vector<8xf32>
    %127 = vector.shape_cast %126 : vector<8xf32> to vector<8x1xf32>
    %128 = vector.broadcast %127 : vector<8x1xf32> to vector<8x8xf32>
    %129 = arith.subf %125, %128 : vector<8x8xf32>
    %130 = math.exp %129 : vector<8x8xf32>
    %cst_48 = arith.constant dense<0.000000e+00> : vector<8xf32>
    %131 = vector.multi_reduction <add>, %130, %cst_48 [1] : vector<8x8xf32> to vector<8xf32>
    %132 = vector.shape_cast %131 : vector<8xf32> to vector<8x1xf32>
    %133 = vector.broadcast %132 : vector<8x1xf32> to vector<8x8xf32>
    %134 = arith.divf %130, %133 : vector<8x8xf32>
    %cst_49 = arith.constant dense<0.000000e+00> : vector<8x32xf32>
    %135 = tpu.matmul %134, %121, %cst_49 {dimension_numbers = #tpu.dot_dimension_numbers<[1], [0], [0], [1], [0, 0, 1, 1], [], []>} : vector<8x8xf32>, vector<8x32xf32>, vector<8x32xf32> -> vector<8x32xf32>
    %c8_50 = arith.constant 8 : index
    %c32_51 = arith.constant 32 : index
    %136 = vector.load %arg20[%c8_50, %c32_51] : memref<16x128xf32, #tpu.memory_space<vmem>>, vector<8x32xf32>
    tpu.vector_store %arg20[%c8_50, %c32_51], %135 {strides = array<i32>} : memref<16x128xf32, #tpu.memory_space<vmem>>, vector<8x32xf32>,
    %137 = vector.extract_strided_slice %26 {offsets = [8, 64], sizes = [8, 32], strides = [1, 1]} : vector<16x128xf32> to vector<8x32xf32>
    %138 = vector.extract_strided_slice %27 {offsets = [8, 64], sizes = [8, 32], strides = [1, 1]} : vector<16x128xf32> to vector<8x32xf32>
    %139 = vector.extract_strided_slice %28 {offsets = [8, 64], sizes = [8, 32], strides = [1, 1]} : vector<16x128xf32> to vector<8x32xf32>
    %cst_52 = arith.constant dense<0.000000e+00> : vector<8x8xf32>
    %140 = tpu.matmul %137, %138, %cst_52 {dimension_numbers = #tpu.dot_dimension_numbers<[1], [1], [0], [0], [0, 0, 1, 0], [], []>} : vector<8x32xf32>, vector<8x32xf32>, vector<8x8xf32> -> vector<8x8xf32>
    %cst_53 = arith.constant 0.176776692 : f32
    %141 = vector.broadcast %cst_53 : f32 to vector<8x8xf32>
    %142 = arith.mulf %140, %141 : vector<8x8xf32>
    %143 = arith.addf %142, %1 : vector<8x8xf32>
    %cst_54 = arith.constant dense<0xFF800000> : vector<8xf32>
    %144 = vector.multi_reduction <maximumf>, %143, %cst_54 [1] : vector<8x8xf32> to vector<8xf32>
    %145 = vector.shape_cast %144 : vector<8xf32> to vector<8x1xf32>
    %146 = vector.broadcast %145 : vector<8x1xf32> to vector<8x8xf32>
    %147 = arith.subf %143, %146 : vector<8x8xf32>
    %148 = math.exp %147 : vector<8x8xf32>
    %cst_55 = arith.constant dense<0.000000e+00> : vector<8xf32>
    %149 = vector.multi_reduction <add>, %148, %cst_55 [1] : vector<8x8xf32> to vector<8xf32>
    %150 = vector.shape_cast %149 : vector<8xf32> to vector<8x1xf32>
    %151 = vector.broadcast %150 : vector<8x1xf32> to vector<8x8xf32>
    %152 = arith.divf %148, %151 : vector<8x8xf32>
    %cst_56 = arith.constant dense<0.000000e+00> : vector<8x32xf32>
    %153 = tpu.matmul %152, %139, %cst_56 {dimension_numbers = #tpu.dot_dimension_numbers<[1], [0], [0], [1], [0, 0, 1, 1], [], []>} : vector<8x8xf32>, vector<8x32xf32>, vector<8x32xf32> -> vector<8x32xf32>
    %c8_57 = arith.constant 8 : index
    %c64_58 = arith.constant 64 : index
    %154 = vector.load %arg20[%c8_57, %c64_58] : memref<16x128xf32, #tpu.memory_space<vmem>>, vector<8x32xf32>
    tpu.vector_store %arg20[%c8_57, %c64_58], %153 {strides = array<i32>} : memref<16x128xf32, #tpu.memory_space<vmem>>, vector<8x32xf32>,
    %155 = vector.extract_strided_slice %26 {offsets = [8, 96], sizes = [8, 32], strides = [1, 1]} : vector<16x128xf32> to vector<8x32xf32>
    %156 = vector.extract_strided_slice %27 {offsets = [8, 96], sizes = [8, 32], strides = [1, 1]} : vector<16x128xf32> to vector<8x32xf32>
    %157 = vector.extract_strided_slice %28 {offsets = [8, 96], sizes = [8, 32], strides = [1, 1]} : vector<16x128xf32> to vector<8x32xf32>
    %cst_59 = arith.constant dense<0.000000e+00> : vector<8x8xf32>
    %158 = tpu.matmul %155, %156, %cst_59 {dimension_numbers = #tpu.dot_dimension_numbers<[1], [1], [0], [0], [0, 0, 1, 0], [], []>} : vector<8x32xf32>, vector<8x32xf32>, vector<8x8xf32> -> vector<8x8xf32>
    %cst_60 = arith.constant 0.176776692 : f32
    %159 = vector.broadcast %cst_60 : f32 to vector<8x8xf32>
    %160 = arith.mulf %158, %159 : vector<8x8xf32>
    %161 = arith.addf %160, %1 : vector<8x8xf32>
    %cst_61 = arith.constant dense<0xFF800000> : vector<8xf32>
    %162 = vector.multi_reduction <maximumf>, %161, %cst_61 [1] : vector<8x8xf32> to vector<8xf32>
    %163 = vector.shape_cast %162 : vector<8xf32> to vector<8x1xf32>
    %164 = vector.broadcast %163 : vector<8x1xf32> to vector<8x8xf32>
    %165 = arith.subf %161, %164 : vector<8x8xf32>
    %166 = math.exp %165 : vector<8x8xf32>
    %cst_62 = arith.constant dense<0.000000e+00> : vector<8xf32>
    %167 = vector.multi_reduction <add>, %166, %cst_62 [1] : vector<8x8xf32> to vector<8xf32>
    %168 = vector.shape_cast %167 : vector<8xf32> to vector<8x1xf32>
    %169 = vector.broadcast %168 : vector<8x1xf32> to vector<8x8xf32>
    %170 = arith.divf %166, %169 : vector<8x8xf32>
    %cst_63 = arith.constant dense<0.000000e+00> : vector<8x32xf32>
    %171 = tpu.matmul %170, %157, %cst_63 {dimension_numbers = #tpu.dot_dimension_numbers<[1], [0], [0], [1], [0, 0, 1, 1], [], []>} : vector<8x8xf32>, vector<8x32xf32>, vector<8x32xf32> -> vector<8x32xf32>
    %c8_64 = arith.constant 8 : index
    %c96_65 = arith.constant 96 : index
    %172 = vector.load %arg20[%c8_64, %c96_65] : memref<16x128xf32, #tpu.memory_space<vmem>>, vector<8x32xf32>
    tpu.vector_store %arg20[%c8_64, %c96_65], %171 {strides = array<i32>} : memref<16x128xf32, #tpu.memory_space<vmem>>, vector<8x32xf32>,
    %c0_66 = arith.constant 0 : index
    %c0_67 = arith.constant 0 : index
    %173 = vector.load %arg20[%c0_66, %c0_67] : memref<16x128xf32, #tpu.memory_space<vmem>>, vector<16x128xf32>
    %c0_68 = arith.constant 0 : index
    %c0_69 = arith.constant 0 : index
    %174 = vector.load %arg10[%c0_68, %c0_69] : memref<128x128xf32, #tpu.memory_space<vmem>>, vector<128x128xf32>
    %cst_70 = arith.constant dense<0.000000e+00> : vector<16x128xf32>
    %175 = tpu.matmul %173, %174, %cst_70 {dimension_numbers = #tpu.dot_dimension_numbers<[1], [0], [0], [1], [0, 0, 1, 1], [], []>} : vector<16x128xf32>, vector<128x128xf32>, vector<16x128xf32> -> vector<16x128xf32>
    %176 = arith.addf %0, %175 : vector<16x128xf32>
    %c0_71 = arith.constant 0 : index
    %c0_72 = arith.constant 0 : index
    %177 = vector.load %arg5[%c0_71, %c0_72] : memref<1x128xf32, #tpu.memory_space<vmem>>, vector<1x128xf32>
    %c0_73 = arith.constant 0 : index
    %c0_74 = arith.constant 0 : index
    %178 = vector.load %arg6[%c0_73, %c0_74] : memref<1x128xf32, #tpu.memory_space<vmem>>, vector<1x128xf32>
    %cst_75 = arith.constant dense<0.000000e+00> : vector<16xf32>
    %179 = vector.multi_reduction <add>, %176, %cst_75 [1] : vector<16x128xf32> to vector<16xf32>
    %180 = vector.shape_cast %179 : vector<16xf32> to vector<16x1xf32>
    %cst_76 = arith.constant 1.280000e+02 : f32
    %181 = vector.broadcast %cst_76 : f32 to vector<16x1xf32>
    %182 = arith.divf %180, %181 : vector<16x1xf32>
    %183 = vector.broadcast %182 : vector<16x1xf32> to vector<16x128xf32>
    %184 = arith.subf %176, %183 : vector<16x128xf32>
    %185 = arith.mulf %184, %184 : vector<16x128xf32>
    %cst_77 = arith.constant dense<0.000000e+00> : vector<16xf32>
    %186 = vector.multi_reduction <add>, %185, %cst_77 [1] : vector<16x128xf32> to vector<16xf32>
    %187 = vector.shape_cast %186 : vector<16xf32> to vector<16x1xf32>
    %cst_78 = arith.constant 1.280000e+02 : f32
    %188 = vector.broadcast %cst_78 : f32 to vector<16x1xf32>
    %189 = arith.divf %187, %188 : vector<16x1xf32>
    %cst_79 = arith.constant 9.99999974E-6 : f32
    %190 = vector.broadcast %cst_79 : f32 to vector<16x1xf32>
    %191 = arith.addf %189, %190 : vector<16x1xf32>
    %192 = math.rsqrt %191 : vector<16x1xf32>
    %193 = vector.broadcast %192 : vector<16x1xf32> to vector<16x128xf32>
    %194 = arith.mulf %184, %193 : vector<16x128xf32>
    %195 = vector.broadcast %177 : vector<1x128xf32> to vector<16x128xf32>
    %196 = arith.mulf %194, %195 : vector<16x128xf32>
    %197 = vector.broadcast %178 : vector<1x128xf32> to vector<16x128xf32>
    %198 = arith.addf %196, %197 : vector<16x128xf32>
    %c0_80 = arith.constant 0 : index
    %c0_81 = arith.constant 0 : index
    %199 = vector.load %arg11[%c0_80, %c0_81] : memref<128x384xf32, #tpu.memory_space<vmem>>, vector<128x384xf32>
    %cst_82 = arith.constant dense<0.000000e+00> : vector<16x384xf32>
    %200 = tpu.matmul %198, %199, %cst_82 {dimension_numbers = #tpu.dot_dimension_numbers<[1], [0], [0], [1], [0, 0, 1, 1], [], []>} : vector<16x128xf32>, vector<128x384xf32>, vector<16x384xf32> -> vector<16x384xf32>
    %c0_83 = arith.constant 0 : index
    %c0_84 = arith.constant 0 : index
    %201 = vector.load %arg12[%c0_83, %c0_84] : memref<1x384xf32, #tpu.memory_space<vmem>>, vector<1x384xf32>
    %202 = vector.broadcast %201 : vector<1x384xf32> to vector<16x384xf32>
    %203 = arith.addf %200, %202 : vector<16x384xf32>
    %204 = vector.extract_strided_slice %203 {offsets = [0, 0], sizes = [16, 128], strides = [1, 1]} : vector<16x384xf32> to vector<16x128xf32>
    %205 = vector.extract_strided_slice %203 {offsets = [0, 128], sizes = [16, 128], strides = [1, 1]} : vector<16x384xf32> to vector<16x128xf32>
    %206 = vector.extract_strided_slice %203 {offsets = [0, 256], sizes = [16, 128], strides = [1, 1]} : vector<16x384xf32> to vector<16x128xf32>
    %207 = vector.extract_strided_slice %204 {offsets = [0, 0], sizes = [8, 32], strides = [1, 1]} : vector<16x128xf32> to vector<8x32xf32>
    %208 = vector.extract_strided_slice %205 {offsets = [0, 0], sizes = [8, 32], strides = [1, 1]} : vector<16x128xf32> to vector<8x32xf32>
    %209 = vector.extract_strided_slice %206 {offsets = [0, 0], sizes = [8, 32], strides = [1, 1]} : vector<16x128xf32> to vector<8x32xf32>
    %cst_85 = arith.constant dense<0.000000e+00> : vector<8x8xf32>
    %210 = tpu.matmul %207, %208, %cst_85 {dimension_numbers = #tpu.dot_dimension_numbers<[1], [1], [0], [0], [0, 0, 1, 0], [], []>} : vector<8x32xf32>, vector<8x32xf32>, vector<8x8xf32> -> vector<8x8xf32>
    %cst_86 = arith.constant 0.176776692 : f32
    %211 = vector.broadcast %cst_86 : f32 to vector<8x8xf32>
    %212 = arith.mulf %210, %211 : vector<8x8xf32>
    %cst_87 = arith.constant dense<0xFF800000> : vector<8xf32>
    %213 = vector.multi_reduction <maximumf>, %212, %cst_87 [1] : vector<8x8xf32> to vector<8xf32>
    %214 = vector.shape_cast %213 : vector<8xf32> to vector<8x1xf32>
    %215 = vector.broadcast %214 : vector<8x1xf32> to vector<8x8xf32>
    %216 = arith.subf %212, %215 : vector<8x8xf32>
    %217 = math.exp %216 : vector<8x8xf32>
    %cst_88 = arith.constant dense<0.000000e+00> : vector<8xf32>
    %218 = vector.multi_reduction <add>, %217, %cst_88 [1] : vector<8x8xf32> to vector<8xf32>
    %219 = vector.shape_cast %218 : vector<8xf32> to vector<8x1xf32>
    %220 = vector.broadcast %219 : vector<8x1xf32> to vector<8x8xf32>
    %221 = arith.divf %217, %220 : vector<8x8xf32>
    %cst_89 = arith.constant dense<0.000000e+00> : vector<8x32xf32>
    %222 = tpu.matmul %221, %209, %cst_89 {dimension_numbers = #tpu.dot_dimension_numbers<[1], [0], [0], [1], [0, 0, 1, 1], [], []>} : vector<8x8xf32>, vector<8x32xf32>, vector<8x32xf32> -> vector<8x32xf32>
    %c0_90 = arith.constant 0 : index
    %c0_91 = arith.constant 0 : index
    %223 = vector.load %arg20[%c0_90, %c0_91] : memref<16x128xf32, #tpu.memory_space<vmem>>, vector<8x32xf32>
    tpu.vector_store %arg20[%c0_90, %c0_91], %222 {strides = array<i32>} : memref<16x128xf32, #tpu.memory_space<vmem>>, vector<8x32xf32>,
    %224 = vector.extract_strided_slice %204 {offsets = [0, 32], sizes = [8, 32], strides = [1, 1]} : vector<16x128xf32> to vector<8x32xf32>
    %225 = vector.extract_strided_slice %205 {offsets = [0, 32], sizes = [8, 32], strides = [1, 1]} : vector<16x128xf32> to vector<8x32xf32>
    %226 = vector.extract_strided_slice %206 {offsets = [0, 32], sizes = [8, 32], strides = [1, 1]} : vector<16x128xf32> to vector<8x32xf32>
    %cst_92 = arith.constant dense<0.000000e+00> : vector<8x8xf32>
    %227 = tpu.matmul %224, %225, %cst_92 {dimension_numbers = #tpu.dot_dimension_numbers<[1], [1], [0], [0], [0, 0, 1, 0], [], []>} : vector<8x32xf32>, vector<8x32xf32>, vector<8x8xf32> -> vector<8x8xf32>
    %cst_93 = arith.constant 0.176776692 : f32
    %228 = vector.broadcast %cst_93 : f32 to vector<8x8xf32>
    %229 = arith.mulf %227, %228 : vector<8x8xf32>
    %cst_94 = arith.constant dense<0xFF800000> : vector<8xf32>
    %230 = vector.multi_reduction <maximumf>, %229, %cst_94 [1] : vector<8x8xf32> to vector<8xf32>
    %231 = vector.shape_cast %230 : vector<8xf32> to vector<8x1xf32>
    %232 = vector.broadcast %231 : vector<8x1xf32> to vector<8x8xf32>
    %233 = arith.subf %229, %232 : vector<8x8xf32>
    %234 = math.exp %233 : vector<8x8xf32>
    %cst_95 = arith.constant dense<0.000000e+00> : vector<8xf32>
    %235 = vector.multi_reduction <add>, %234, %cst_95 [1] : vector<8x8xf32> to vector<8xf32>
    %236 = vector.shape_cast %235 : vector<8xf32> to vector<8x1xf32>
    %237 = vector.broadcast %236 : vector<8x1xf32> to vector<8x8xf32>
    %238 = arith.divf %234, %237 : vector<8x8xf32>
    %cst_96 = arith.constant dense<0.000000e+00> : vector<8x32xf32>
    %239 = tpu.matmul %238, %226, %cst_96 {dimension_numbers = #tpu.dot_dimension_numbers<[1], [0], [0], [1], [0, 0, 1, 1], [], []>} : vector<8x8xf32>, vector<8x32xf32>, vector<8x32xf32> -> vector<8x32xf32>
    %c0_97 = arith.constant 0 : index
    %c32_98 = arith.constant 32 : index
    %240 = vector.load %arg20[%c0_97, %c32_98] : memref<16x128xf32, #tpu.memory_space<vmem>>, vector<8x32xf32>
    tpu.vector_store %arg20[%c0_97, %c32_98], %239 {strides = array<i32>} : memref<16x128xf32, #tpu.memory_space<vmem>>, vector<8x32xf32>,
    %241 = vector.extract_strided_slice %204 {offsets = [0, 64], sizes = [8, 32], strides = [1, 1]} : vector<16x128xf32> to vector<8x32xf32>
    %242 = vector.extract_strided_slice %205 {offsets = [0, 64], sizes = [8, 32], strides = [1, 1]} : vector<16x128xf32> to vector<8x32xf32>
    %243 = vector.extract_strided_slice %206 {offsets = [0, 64], sizes = [8, 32], strides = [1, 1]} : vector<16x128xf32> to vector<8x32xf32>
    %cst_99 = arith.constant dense<0.000000e+00> : vector<8x8xf32>
    %244 = tpu.matmul %241, %242, %cst_99 {dimension_numbers = #tpu.dot_dimension_numbers<[1], [1], [0], [0], [0, 0, 1, 0], [], []>} : vector<8x32xf32>, vector<8x32xf32>, vector<8x8xf32> -> vector<8x8xf32>
    %cst_100 = arith.constant 0.176776692 : f32
    %245 = vector.broadcast %cst_100 : f32 to vector<8x8xf32>
    %246 = arith.mulf %244, %245 : vector<8x8xf32>
    %cst_101 = arith.constant dense<0xFF800000> : vector<8xf32>
    %247 = vector.multi_reduction <maximumf>, %246, %cst_101 [1] : vector<8x8xf32> to vector<8xf32>
    %248 = vector.shape_cast %247 : vector<8xf32> to vector<8x1xf32>
    %249 = vector.broadcast %248 : vector<8x1xf32> to vector<8x8xf32>
    %250 = arith.subf %246, %249 : vector<8x8xf32>
    %251 = math.exp %250 : vector<8x8xf32>
    %cst_102 = arith.constant dense<0.000000e+00> : vector<8xf32>
    %252 = vector.multi_reduction <add>, %251, %cst_102 [1] : vector<8x8xf32> to vector<8xf32>
    %253 = vector.shape_cast %252 : vector<8xf32> to vector<8x1xf32>
    %254 = vector.broadcast %253 : vector<8x1xf32> to vector<8x8xf32>
    %255 = arith.divf %251, %254 : vector<8x8xf32>
    %cst_103 = arith.constant dense<0.000000e+00> : vector<8x32xf32>
    %256 = tpu.matmul %255, %243, %cst_103 {dimension_numbers = #tpu.dot_dimension_numbers<[1], [0], [0], [1], [0, 0, 1, 1], [], []>} : vector<8x8xf32>, vector<8x32xf32>, vector<8x32xf32> -> vector<8x32xf32>
    %c0_104 = arith.constant 0 : index
    %c64_105 = arith.constant 64 : index
    %257 = vector.load %arg20[%c0_104, %c64_105] : memref<16x128xf32, #tpu.memory_space<vmem>>, vector<8x32xf32>
    tpu.vector_store %arg20[%c0_104, %c64_105], %256 {strides = array<i32>} : memref<16x128xf32, #tpu.memory_space<vmem>>, vector<8x32xf32>,
    %258 = vector.extract_strided_slice %204 {offsets = [0, 96], sizes = [8, 32], strides = [1, 1]} : vector<16x128xf32> to vector<8x32xf32>
    %259 = vector.extract_strided_slice %205 {offsets = [0, 96], sizes = [8, 32], strides = [1, 1]} : vector<16x128xf32> to vector<8x32xf32>
    %260 = vector.extract_strided_slice %206 {offsets = [0, 96], sizes = [8, 32], strides = [1, 1]} : vector<16x128xf32> to vector<8x32xf32>
    %cst_106 = arith.constant dense<0.000000e+00> : vector<8x8xf32>
    %261 = tpu.matmul %258, %259, %cst_106 {dimension_numbers = #tpu.dot_dimension_numbers<[1], [1], [0], [0], [0, 0, 1, 0], [], []>} : vector<8x32xf32>, vector<8x32xf32>, vector<8x8xf32> -> vector<8x8xf32>
    %cst_107 = arith.constant 0.176776692 : f32
    %262 = vector.broadcast %cst_107 : f32 to vector<8x8xf32>
    %263 = arith.mulf %261, %262 : vector<8x8xf32>
    %cst_108 = arith.constant dense<0xFF800000> : vector<8xf32>
    %264 = vector.multi_reduction <maximumf>, %263, %cst_108 [1] : vector<8x8xf32> to vector<8xf32>
    %265 = vector.shape_cast %264 : vector<8xf32> to vector<8x1xf32>
    %266 = vector.broadcast %265 : vector<8x1xf32> to vector<8x8xf32>
    %267 = arith.subf %263, %266 : vector<8x8xf32>
    %268 = math.exp %267 : vector<8x8xf32>
    %cst_109 = arith.constant dense<0.000000e+00> : vector<8xf32>
    %269 = vector.multi_reduction <add>, %268, %cst_109 [1] : vector<8x8xf32> to vector<8xf32>
    %270 = vector.shape_cast %269 : vector<8xf32> to vector<8x1xf32>
    %271 = vector.broadcast %270 : vector<8x1xf32> to vector<8x8xf32>
    %272 = arith.divf %268, %271 : vector<8x8xf32>
    %cst_110 = arith.constant dense<0.000000e+00> : vector<8x32xf32>
    %273 = tpu.matmul %272, %260, %cst_110 {dimension_numbers = #tpu.dot_dimension_numbers<[1], [0], [0], [1], [0, 0, 1, 1], [], []>} : vector<8x8xf32>, vector<8x32xf32>, vector<8x32xf32> -> vector<8x32xf32>
    %c0_111 = arith.constant 0 : index
    %c96_112 = arith.constant 96 : index
    %274 = vector.load %arg20[%c0_111, %c96_112] : memref<16x128xf32, #tpu.memory_space<vmem>>, vector<8x32xf32>
    tpu.vector_store %arg20[%c0_111, %c96_112], %273 {strides = array<i32>} : memref<16x128xf32, #tpu.memory_space<vmem>>, vector<8x32xf32>,
    %275 = vector.extract_strided_slice %204 {offsets = [8, 0], sizes = [8, 32], strides = [1, 1]} : vector<16x128xf32> to vector<8x32xf32>
    %276 = vector.extract_strided_slice %205 {offsets = [8, 0], sizes = [8, 32], strides = [1, 1]} : vector<16x128xf32> to vector<8x32xf32>
    %277 = vector.extract_strided_slice %206 {offsets = [8, 0], sizes = [8, 32], strides = [1, 1]} : vector<16x128xf32> to vector<8x32xf32>
    %cst_113 = arith.constant dense<0.000000e+00> : vector<8x8xf32>
    %278 = tpu.matmul %275, %276, %cst_113 {dimension_numbers = #tpu.dot_dimension_numbers<[1], [1], [0], [0], [0, 0, 1, 0], [], []>} : vector<8x32xf32>, vector<8x32xf32>, vector<8x8xf32> -> vector<8x8xf32>
    %cst_114 = arith.constant 0.176776692 : f32
    %279 = vector.broadcast %cst_114 : f32 to vector<8x8xf32>
    %280 = arith.mulf %278, %279 : vector<8x8xf32>
    %cst_115 = arith.constant dense<0xFF800000> : vector<8xf32>
    %281 = vector.multi_reduction <maximumf>, %280, %cst_115 [1] : vector<8x8xf32> to vector<8xf32>
    %282 = vector.shape_cast %281 : vector<8xf32> to vector<8x1xf32>
    %283 = vector.broadcast %282 : vector<8x1xf32> to vector<8x8xf32>
    %284 = arith.subf %280, %283 : vector<8x8xf32>
    %285 = math.exp %284 : vector<8x8xf32>
    %cst_116 = arith.constant dense<0.000000e+00> : vector<8xf32>
    %286 = vector.multi_reduction <add>, %285, %cst_116 [1] : vector<8x8xf32> to vector<8xf32>
    %287 = vector.shape_cast %286 : vector<8xf32> to vector<8x1xf32>
    %288 = vector.broadcast %287 : vector<8x1xf32> to vector<8x8xf32>
    %289 = arith.divf %285, %288 : vector<8x8xf32>
    %cst_117 = arith.constant dense<0.000000e+00> : vector<8x32xf32>
    %290 = tpu.matmul %289, %277, %cst_117 {dimension_numbers = #tpu.dot_dimension_numbers<[1], [0], [0], [1], [0, 0, 1, 1], [], []>} : vector<8x8xf32>, vector<8x32xf32>, vector<8x32xf32> -> vector<8x32xf32>
    %c8_118 = arith.constant 8 : index
    %c0_119 = arith.constant 0 : index
    %291 = vector.load %arg20[%c8_118, %c0_119] : memref<16x128xf32, #tpu.memory_space<vmem>>, vector<8x32xf32>
    tpu.vector_store %arg20[%c8_118, %c0_119], %290 {strides = array<i32>} : memref<16x128xf32, #tpu.memory_space<vmem>>, vector<8x32xf32>,
    %292 = vector.extract_strided_slice %204 {offsets = [8, 32], sizes = [8, 32], strides = [1, 1]} : vector<16x128xf32> to vector<8x32xf32>
    %293 = vector.extract_strided_slice %205 {offsets = [8, 32], sizes = [8, 32], strides = [1, 1]} : vector<16x128xf32> to vector<8x32xf32>
    %294 = vector.extract_strided_slice %206 {offsets = [8, 32], sizes = [8, 32], strides = [1, 1]} : vector<16x128xf32> to vector<8x32xf32>
    %cst_120 = arith.constant dense<0.000000e+00> : vector<8x8xf32>
    %295 = tpu.matmul %292, %293, %cst_120 {dimension_numbers = #tpu.dot_dimension_numbers<[1], [1], [0], [0], [0, 0, 1, 0], [], []>} : vector<8x32xf32>, vector<8x32xf32>, vector<8x8xf32> -> vector<8x8xf32>
    %cst_121 = arith.constant 0.176776692 : f32
    %296 = vector.broadcast %cst_121 : f32 to vector<8x8xf32>
    %297 = arith.mulf %295, %296 : vector<8x8xf32>
    %cst_122 = arith.constant dense<0xFF800000> : vector<8xf32>
    %298 = vector.multi_reduction <maximumf>, %297, %cst_122 [1] : vector<8x8xf32> to vector<8xf32>
    %299 = vector.shape_cast %298 : vector<8xf32> to vector<8x1xf32>
    %300 = vector.broadcast %299 : vector<8x1xf32> to vector<8x8xf32>
    %301 = arith.subf %297, %300 : vector<8x8xf32>
    %302 = math.exp %301 : vector<8x8xf32>
    %cst_123 = arith.constant dense<0.000000e+00> : vector<8xf32>
    %303 = vector.multi_reduction <add>, %302, %cst_123 [1] : vector<8x8xf32> to vector<8xf32>
    %304 = vector.shape_cast %303 : vector<8xf32> to vector<8x1xf32>
    %305 = vector.broadcast %304 : vector<8x1xf32> to vector<8x8xf32>
    %306 = arith.divf %302, %305 : vector<8x8xf32>
    %cst_124 = arith.constant dense<0.000000e+00> : vector<8x32xf32>
    %307 = tpu.matmul %306, %294, %cst_124 {dimension_numbers = #tpu.dot_dimension_numbers<[1], [0], [0], [1], [0, 0, 1, 1], [], []>} : vector<8x8xf32>, vector<8x32xf32>, vector<8x32xf32> -> vector<8x32xf32>
    %c8_125 = arith.constant 8 : index
    %c32_126 = arith.constant 32 : index
    %308 = vector.load %arg20[%c8_125, %c32_126] : memref<16x128xf32, #tpu.memory_space<vmem>>, vector<8x32xf32>
    tpu.vector_store %arg20[%c8_125, %c32_126], %307 {strides = array<i32>} : memref<16x128xf32, #tpu.memory_space<vmem>>, vector<8x32xf32>,
    %309 = vector.extract_strided_slice %204 {offsets = [8, 64], sizes = [8, 32], strides = [1, 1]} : vector<16x128xf32> to vector<8x32xf32>
    %310 = vector.extract_strided_slice %205 {offsets = [8, 64], sizes = [8, 32], strides = [1, 1]} : vector<16x128xf32> to vector<8x32xf32>
    %311 = vector.extract_strided_slice %206 {offsets = [8, 64], sizes = [8, 32], strides = [1, 1]} : vector<16x128xf32> to vector<8x32xf32>
    %cst_127 = arith.constant dense<0.000000e+00> : vector<8x8xf32>
    %312 = tpu.matmul %309, %310, %cst_127 {dimension_numbers = #tpu.dot_dimension_numbers<[1], [1], [0], [0], [0, 0, 1, 0], [], []>} : vector<8x32xf32>, vector<8x32xf32>, vector<8x8xf32> -> vector<8x8xf32>
    %cst_128 = arith.constant 0.176776692 : f32
    %313 = vector.broadcast %cst_128 : f32 to vector<8x8xf32>
    %314 = arith.mulf %312, %313 : vector<8x8xf32>
    %cst_129 = arith.constant dense<0xFF800000> : vector<8xf32>
    %315 = vector.multi_reduction <maximumf>, %314, %cst_129 [1] : vector<8x8xf32> to vector<8xf32>
    %316 = vector.shape_cast %315 : vector<8xf32> to vector<8x1xf32>
    %317 = vector.broadcast %316 : vector<8x1xf32> to vector<8x8xf32>
    %318 = arith.subf %314, %317 : vector<8x8xf32>
    %319 = math.exp %318 : vector<8x8xf32>
    %cst_130 = arith.constant dense<0.000000e+00> : vector<8xf32>
    %320 = vector.multi_reduction <add>, %319, %cst_130 [1] : vector<8x8xf32> to vector<8xf32>
    %321 = vector.shape_cast %320 : vector<8xf32> to vector<8x1xf32>
    %322 = vector.broadcast %321 : vector<8x1xf32> to vector<8x8xf32>
    %323 = arith.divf %319, %322 : vector<8x8xf32>
    %cst_131 = arith.constant dense<0.000000e+00> : vector<8x32xf32>
    %324 = tpu.matmul %323, %311, %cst_131 {dimension_numbers = #tpu.dot_dimension_numbers<[1], [0], [0], [1], [0, 0, 1, 1], [], []>} : vector<8x8xf32>, vector<8x32xf32>, vector<8x32xf32> -> vector<8x32xf32>
    %c8_132 = arith.constant 8 : index
    %c64_133 = arith.constant 64 : index
    %325 = vector.load %arg20[%c8_132, %c64_133] : memref<16x128xf32, #tpu.memory_space<vmem>>, vector<8x32xf32>
    tpu.vector_store %arg20[%c8_132, %c64_133], %324 {strides = array<i32>} : memref<16x128xf32, #tpu.memory_space<vmem>>, vector<8x32xf32>,
    %326 = vector.extract_strided_slice %204 {offsets = [8, 96], sizes = [8, 32], strides = [1, 1]} : vector<16x128xf32> to vector<8x32xf32>
    %327 = vector.extract_strided_slice %205 {offsets = [8, 96], sizes = [8, 32], strides = [1, 1]} : vector<16x128xf32> to vector<8x32xf32>
    %328 = vector.extract_strided_slice %206 {offsets = [8, 96], sizes = [8, 32], strides = [1, 1]} : vector<16x128xf32> to vector<8x32xf32>
    %cst_134 = arith.constant dense<0.000000e+00> : vector<8x8xf32>
    %329 = tpu.matmul %326, %327, %cst_134 {dimension_numbers = #tpu.dot_dimension_numbers<[1], [1], [0], [0], [0, 0, 1, 0], [], []>} : vector<8x32xf32>, vector<8x32xf32>, vector<8x8xf32> -> vector<8x8xf32>
    %cst_135 = arith.constant 0.176776692 : f32
    %330 = vector.broadcast %cst_135 : f32 to vector<8x8xf32>
    %331 = arith.mulf %329, %330 : vector<8x8xf32>
    %cst_136 = arith.constant dense<0xFF800000> : vector<8xf32>
    %332 = vector.multi_reduction <maximumf>, %331, %cst_136 [1] : vector<8x8xf32> to vector<8xf32>
    %333 = vector.shape_cast %332 : vector<8xf32> to vector<8x1xf32>
    %334 = vector.broadcast %333 : vector<8x1xf32> to vector<8x8xf32>
    %335 = arith.subf %331, %334 : vector<8x8xf32>
    %336 = math.exp %335 : vector<8x8xf32>
    %cst_137 = arith.constant dense<0.000000e+00> : vector<8xf32>
    %337 = vector.multi_reduction <add>, %336, %cst_137 [1] : vector<8x8xf32> to vector<8xf32>
    %338 = vector.shape_cast %337 : vector<8xf32> to vector<8x1xf32>
    %339 = vector.broadcast %338 : vector<8x1xf32> to vector<8x8xf32>
    %340 = arith.divf %336, %339 : vector<8x8xf32>
    %cst_138 = arith.constant dense<0.000000e+00> : vector<8x32xf32>
    %341 = tpu.matmul %340, %328, %cst_138 {dimension_numbers = #tpu.dot_dimension_numbers<[1], [0], [0], [1], [0, 0, 1, 1], [], []>} : vector<8x8xf32>, vector<8x32xf32>, vector<8x32xf32> -> vector<8x32xf32>
    %c8_139 = arith.constant 8 : index
    %c96_140 = arith.constant 96 : index
    %342 = vector.load %arg20[%c8_139, %c96_140] : memref<16x128xf32, #tpu.memory_space<vmem>>, vector<8x32xf32>
    tpu.vector_store %arg20[%c8_139, %c96_140], %341 {strides = array<i32>} : memref<16x128xf32, #tpu.memory_space<vmem>>, vector<8x32xf32>,
    %c0_141 = arith.constant 0 : index
    %c0_142 = arith.constant 0 : index
    %343 = vector.load %arg20[%c0_141, %c0_142] : memref<16x128xf32, #tpu.memory_space<vmem>>, vector<16x128xf32>
    %c0_143 = arith.constant 0 : index
    %c0_144 = arith.constant 0 : index
    %344 = vector.load %arg13[%c0_143, %c0_144] : memref<128x128xf32, #tpu.memory_space<vmem>>, vector<128x128xf32>
    %cst_145 = arith.constant dense<0.000000e+00> : vector<16x128xf32>
    %345 = tpu.matmul %343, %344, %cst_145 {dimension_numbers = #tpu.dot_dimension_numbers<[1], [0], [0], [1], [0, 0, 1, 1], [], []>} : vector<16x128xf32>, vector<128x128xf32>, vector<16x128xf32> -> vector<16x128xf32>
    %346 = arith.addf %176, %345 : vector<16x128xf32>
    %c0_146 = arith.constant 0 : index
    %c0_147 = arith.constant 0 : index
    %347 = vector.load %arg14[%c0_146, %c0_147] : memref<1x128xf32, #tpu.memory_space<vmem>>, vector<1x128xf32>
    %348 = vector.broadcast %347 : vector<1x128xf32> to vector<16x128xf32>
    %349 = arith.addf %346, %348 : vector<16x128xf32>
    %c0_148 = arith.constant 0 : index
    %c0_149 = arith.constant 0 : index
    %350 = vector.load %arg7[%c0_148, %c0_149] : memref<1x128xf32, #tpu.memory_space<vmem>>, vector<1x128xf32>
    %c0_150 = arith.constant 0 : index
    %c0_151 = arith.constant 0 : index
    %351 = vector.load %arg8[%c0_150, %c0_151] : memref<1x128xf32, #tpu.memory_space<vmem>>, vector<1x128xf32>
    %cst_152 = arith.constant dense<0.000000e+00> : vector<16xf32>
    %352 = vector.multi_reduction <add>, %349, %cst_152 [1] : vector<16x128xf32> to vector<16xf32>
    %353 = vector.shape_cast %352 : vector<16xf32> to vector<16x1xf32>
    %cst_153 = arith.constant 1.280000e+02 : f32
    %354 = vector.broadcast %cst_153 : f32 to vector<16x1xf32>
    %355 = arith.divf %353, %354 : vector<16x1xf32>
    %356 = vector.broadcast %355 : vector<16x1xf32> to vector<16x128xf32>
    %357 = arith.subf %349, %356 : vector<16x128xf32>
    %358 = arith.mulf %357, %357 : vector<16x128xf32>
    %cst_154 = arith.constant dense<0.000000e+00> : vector<16xf32>
    %359 = vector.multi_reduction <add>, %358, %cst_154 [1] : vector<16x128xf32> to vector<16xf32>
    %360 = vector.shape_cast %359 : vector<16xf32> to vector<16x1xf32>
    %cst_155 = arith.constant 1.280000e+02 : f32
    %361 = vector.broadcast %cst_155 : f32 to vector<16x1xf32>
    %362 = arith.divf %360, %361 : vector<16x1xf32>
    %cst_156 = arith.constant 9.99999974E-6 : f32
    %363 = vector.broadcast %cst_156 : f32 to vector<16x1xf32>
    %364 = arith.addf %362, %363 : vector<16x1xf32>
    %365 = math.rsqrt %364 : vector<16x1xf32>
    %366 = vector.broadcast %365 : vector<16x1xf32> to vector<16x128xf32>
    %367 = arith.mulf %357, %366 : vector<16x128xf32>
    %368 = vector.broadcast %350 : vector<1x128xf32> to vector<16x128xf32>
    %369 = arith.mulf %367, %368 : vector<16x128xf32>
    %370 = vector.broadcast %351 : vector<1x128xf32> to vector<16x128xf32>
    %371 = arith.addf %369, %370 : vector<16x128xf32>
    %c0_157 = arith.constant 0 : index
    %c0_158 = arith.constant 0 : index
    %372 = vector.load %arg15[%c0_157, %c0_158] : memref<128x384xf32, #tpu.memory_space<vmem>>, vector<128x384xf32>
    %cst_159 = arith.constant dense<0.000000e+00> : vector<16x384xf32>
    %373 = tpu.matmul %371, %372, %cst_159 {dimension_numbers = #tpu.dot_dimension_numbers<[1], [0], [0], [1], [0, 0, 1, 1], [], []>} : vector<16x128xf32>, vector<128x384xf32>, vector<16x384xf32> -> vector<16x384xf32>
    %c0_160 = arith.constant 0 : index
    %c0_161 = arith.constant 0 : index
    %374 = vector.load %arg16[%c0_160, %c0_161] : memref<1x384xf32, #tpu.memory_space<vmem>>, vector<1x384xf32>
    %375 = vector.broadcast %374 : vector<1x384xf32> to vector<16x384xf32>
    %376 = arith.addf %373, %375 : vector<16x384xf32>
    %cst_162 = arith.constant 5.000000e-01 : f32
    %377 = vector.broadcast %cst_162 : f32 to vector<16x384xf32>
    %378 = arith.mulf %377, %376 : vector<16x384xf32>
    %cst_163 = arith.constant 0.707106769 : f32
    %379 = vector.broadcast %cst_163 : f32 to vector<16x384xf32>
    %380 = arith.mulf %376, %379 : vector<16x384xf32>
    %381 = math.absf %380 : vector<16x384xf32>
    %cst_164 = arith.constant 0.327591091 : f32
    %382 = vector.broadcast %cst_164 : f32 to vector<16x384xf32>
    %383 = arith.mulf %382, %381 : vector<16x384xf32>
    %cst_165 = arith.constant 1.000000e+00 : f32
    %384 = vector.broadcast %cst_165 : f32 to vector<16x384xf32>
    %385 = arith.addf %384, %383 : vector<16x384xf32>
    %cst_166 = arith.constant 1.000000e+00 : f32
    %386 = vector.broadcast %cst_166 : f32 to vector<16x384xf32>
    %387 = arith.divf %386, %385 : vector<16x384xf32>
    %cst_167 = arith.constant 1.06140542 : f32
    %388 = vector.broadcast %cst_167 : f32 to vector<16x384xf32>
    %389 = arith.mulf %388, %387 : vector<16x384xf32>
    %cst_168 = arith.constant -1.45315206 : f32
    %390 = vector.broadcast %cst_168 : f32 to vector<16x384xf32>
    %391 = arith.addf %389, %390 : vector<16x384xf32>
    %392 = arith.mulf %391, %387 : vector<16x384xf32>
    %cst_169 = arith.constant 1.42141378 : f32
    %393 = vector.broadcast %cst_169 : f32 to vector<16x384xf32>
    %394 = arith.addf %392, %393 : vector<16x384xf32>
    %395 = arith.mulf %394, %387 : vector<16x384xf32>
    %cst_170 = arith.constant -0.284496725 : f32
    %396 = vector.broadcast %cst_170 : f32 to vector<16x384xf32>
    %397 = arith.addf %395, %396 : vector<16x384xf32>
    %398 = arith.mulf %397, %387 : vector<16x384xf32>
    %cst_171 = arith.constant 0.254829586 : f32
    %399 = vector.broadcast %cst_171 : f32 to vector<16x384xf32>
    %400 = arith.addf %398, %399 : vector<16x384xf32>
    %401 = arith.mulf %400, %387 : vector<16x384xf32>
    %cst_172 = arith.constant 0.000000e+00 : f32
    %402 = vector.broadcast %cst_172 : f32 to vector<16x384xf32>
    %403 = arith.subf %402, %381 : vector<16x384xf32>
    %404 = arith.mulf %403, %381 : vector<16x384xf32>
    %405 = math.exp %404 : vector<16x384xf32>
    %406 = arith.mulf %401, %405 : vector<16x384xf32>
    %cst_173 = arith.constant 1.000000e+00 : f32
    %407 = vector.broadcast %cst_173 : f32 to vector<16x384xf32>
    %408 = arith.subf %407, %406 : vector<16x384xf32>
    %cst_174 = arith.constant 0.000000e+00 : f32
    %409 = vector.broadcast %cst_174 : f32 to vector<16x384xf32>
    %410 = arith.cmpf oge, %380, %409 : vector<16x384xf32>
    %cst_175 = arith.constant 0.000000e+00 : f32
    %411 = vector.broadcast %cst_175 : f32 to vector<16x384xf32>
    %412 = arith.subf %411, %408 : vector<16x384xf32>
    %413 = arith.select %410, %408, %412 : vector<16x384xi1>, vector<16x384xf32>
    %cst_176 = arith.constant 1.000000e+00 : f32
    %414 = vector.broadcast %cst_176 : f32 to vector<16x384xf32>
    %415 = arith.addf %414, %413 : vector<16x384xf32>
    %416 = arith.mulf %378, %415 : vector<16x384xf32>
    %c0_177 = arith.constant 0 : index
    %c0_178 = arith.constant 0 : index
    %417 = vector.load %arg17[%c0_177, %c0_178] : memref<384x128xf32, #tpu.memory_space<vmem>>, vector<384x128xf32>
    %cst_179 = arith.constant dense<0.000000e+00> : vector<16x128xf32>
    %418 = tpu.matmul %416, %417, %cst_179 {dimension_numbers = #tpu.dot_dimension_numbers<[1], [0], [0], [1], [0, 0, 1, 1], [], []>} : vector<16x384xf32>, vector<384x128xf32>, vector<16x128xf32> -> vector<16x128xf32>
    %419 = arith.addf %349, %418 : vector<16x128xf32>
    %c0_180 = arith.constant 0 : index
    %c0_181 = arith.constant 0 : index
    %420 = vector.load %arg18[%c0_180, %c0_181] : memref<1x128xf32, #tpu.memory_space<vmem>>, vector<1x128xf32>
    %421 = vector.broadcast %420 : vector<1x128xf32> to vector<16x128xf32>
    %422 = arith.addf %419, %421 : vector<16x128xf32>
    %c0_182 = arith.constant 0 : index
    %c0_183 = arith.constant 0 : index
    %423 = vector.load %arg19[%c0_182, %c0_183] : memref<16x128xf32, #tpu.memory_space<vmem>>, vector<16x128xf32>
    tpu.vector_store %arg19[%c0_182, %c0_183], %422 {strides = array<i32>} : memref<16x128xf32, #tpu.memory_space<vmem>>, vector<16x128xf32>,
    return
  }
  func.func @transform_0(%arg0: i32) -> (i32, i32) {
    %c0_i32 = arith.constant 0 : i32
    %c0_i32_0 = arith.constant 0 : i32
    return %arg0, %c0_i32 : i32, i32
  }
  func.func @transform_1(%arg0: i32) -> (i32, i32) {
    %c0_i32 = arith.constant 0 : i32
    %c0_i32_0 = arith.constant 0 : i32
    %c0_i32_1 = arith.constant 0 : i32
    return %c0_i32, %c0_i32_0 : i32, i32
  }
  func.func @transform_2(%arg0: i32) -> (i32, i32) {
    %c0_i32 = arith.constant 0 : i32
    %c0_i32_0 = arith.constant 0 : i32
    %c0_i32_1 = arith.constant 0 : i32
    return %c0_i32, %c0_i32_0 : i32, i32
  }
  func.func @transform_3(%arg0: i32) -> (i32, i32) {
    %c0_i32 = arith.constant 0 : i32
    %c0_i32_0 = arith.constant 0 : i32
    %c0_i32_1 = arith.constant 0 : i32
    return %c0_i32, %c0_i32_0 : i32, i32
  }
  func.func @transform_4(%arg0: i32) -> (i32, i32) {
    %c0_i32 = arith.constant 0 : i32
    %c0_i32_0 = arith.constant 0 : i32
    %c0_i32_1 = arith.constant 0 : i32
    return %c0_i32, %c0_i32_0 : i32, i32
  }
  func.func @transform_5(%arg0: i32) -> (i32, i32) {
    %c0_i32 = arith.constant 0 : i32
    %c0_i32_0 = arith.constant 0 : i32
    %c0_i32_1 = arith.constant 0 : i32
    return %c0_i32, %c0_i32_0 : i32, i32
  }
  func.func @transform_6(%arg0: i32) -> (i32, i32) {
    %c0_i32 = arith.constant 0 : i32
    %c0_i32_0 = arith.constant 0 : i32
    %c0_i32_1 = arith.constant 0 : i32
    return %c0_i32, %c0_i32_0 : i32, i32
  }
  func.func @transform_7(%arg0: i32) -> (i32, i32) {
    %c0_i32 = arith.constant 0 : i32
    %c0_i32_0 = arith.constant 0 : i32
    %c0_i32_1 = arith.constant 0 : i32
    return %c0_i32, %c0_i32_0 : i32, i32
  }
  func.func @transform_8(%arg0: i32) -> (i32, i32) {
    %c0_i32 = arith.constant 0 : i32
    %c0_i32_0 = arith.constant 0 : i32
    %c0_i32_1 = arith.constant 0 : i32
    return %c0_i32, %c0_i32_0 : i32, i32
  }
  func.func @transform_9(%arg0: i32) -> (i32, i32) {
    %c0_i32 = arith.constant 0 : i32
    %c0_i32_0 = arith.constant 0 : i32
    %c0_i32_1 = arith.constant 0 : i32
    return %c0_i32, %c0_i32_0 : i32, i32
  }
  func.func @transform_10(%arg0: i32) -> (i32, i32) {
    %c0_i32 = arith.constant 0 : i32
    %c0_i32_0 = arith.constant 0 : i32
    %c0_i32_1 = arith.constant 0 : i32
    return %c0_i32, %c0_i32_0 : i32, i32
  }
  func.func @transform_11(%arg0: i32) -> (i32, i32) {
    %c0_i32 = arith.constant 0 : i32
    %c0_i32_0 = arith.constant 0 : i32
    %c0_i32_1 = arith.constant 0 : i32
    return %c0_i32, %c0_i32_0 : i32, i32
  }
  func.func @transform_12(%arg0: i32) -> (i32, i32) {
    %c0_i32 = arith.constant 0 : i32
    %c0_i32_0 = arith.constant 0 : i32
    %c0_i32_1 = arith.constant 0 : i32
    return %c0_i32, %c0_i32_0 : i32, i32
  }
  func.func @transform_13(%arg0: i32) -> (i32, i32) {
    %c0_i32 = arith.constant 0 : i32
    %c0_i32_0 = arith.constant 0 : i32
    %c0_i32_1 = arith.constant 0 : i32
    return %c0_i32, %c0_i32_0 : i32, i32
  }
  func.func @transform_14(%arg0: i32) -> (i32, i32) {
    %c0_i32 = arith.constant 0 : i32
    %c0_i32_0 = arith.constant 0 : i32
    %c0_i32_1 = arith.constant 0 : i32
    return %c0_i32, %c0_i32_0 : i32, i32
  }
  func.func @transform_15(%arg0: i32) -> (i32, i32) {
    %c0_i32 = arith.constant 0 : i32
    %c0_i32_0 = arith.constant 0 : i32
    %c0_i32_1 = arith.constant 0 : i32
    return %c0_i32, %c0_i32_0 : i32, i32
  }
  func.func @transform_16(%arg0: i32) -> (i32, i32) {
    %c0_i32 = arith.constant 0 : i32
    %c0_i32_0 = arith.constant 0 : i32
    %c0_i32_1 = arith.constant 0 : i32
    return %c0_i32, %c0_i32_0 : i32, i32
  }
  func.func @transform_17(%arg0: i32) -> (i32, i32) {
    %c0_i32 = arith.constant 0 : i32
    %c0_i32_0 = arith.constant 0 : i32
    %c0_i32_1 = arith.constant 0 : i32
    return %c0_i32, %c0_i32_0 : i32, i32
  }
  func.func @transform_18(%arg0: i32) -> (i32, i32) {
    %c0_i32 = arith.constant 0 : i32
    %c0_i32_0 = arith.constant 0 : i32
    return %arg0, %c0_i32 : i32, i32
  }
}

module attributes {stable_mosaic.version = 11 : i64} {
  func.func @decoder_block_kernel(%arg0: i32, %arg1: memref<16x128xf32, #tpu.memory_space<vmem>>, %arg2: memref<8x8xf32, #tpu.memory_space<vmem>>, %arg3: memref<1x128xf32, #tpu.memory_space<vmem>>, %arg4: memref<1x128xf32, #tpu.memory_space<vmem>>, %arg5: memref<1x128xf32, #tpu.memory_space<vmem>>, %arg6: memref<1x128xf32, #tpu.memory_space<vmem>>, %arg7: memref<1x128xf32, #tpu.memory_space<vmem>>, %arg8: memref<1x128xf32, #tpu.memory_space<vmem>>, %arg9: memref<128x384xf32, #tpu.memory_space<vmem>>, %arg10: memref<128x128xf32, #tpu.memory_space<vmem>>, %arg11: memref<128x384xf32, #tpu.memory_space<vmem>>, %arg12: memref<1x384xf32, #tpu.memory_space<vmem>>, %arg13: memref<128x128xf32, #tpu.memory_space<vmem>>, %arg14: memref<1x128xf32, #tpu.memory_space<vmem>>, %arg15: memref<128x384xf32, #tpu.memory_space<vmem>>, %arg16: memref<1x384xf32, #tpu.memory_space<vmem>>, %arg17: memref<384x128xf32, #tpu.memory_space<vmem>>, %arg18: memref<1x128xf32, #tpu.memory_space<vmem>>, %arg19: memref<16x128xf32, #tpu.memory_space<vmem>>, %arg20: memref<16x128xf32, #tpu.memory_space<vmem>>) attributes {dimension_semantics = [#tpu.dimension_semantics<parallel>], iteration_bounds = array<i64: 1>, scalar_prefetch = 0 : i64, scratch_operands = 1 : i64, tpu.core_type = #tpu.core_type<tc>, window_params = [{transform_indices = @transform_0, window_bounds = array<i64: 16, 128>}, {pipeline_mode = #tpu.pipeline_mode<synchronous>, transform_indices = @transform_1, window_bounds = array<i64: 8, 8>}, {pipeline_mode = #tpu.pipeline_mode<synchronous>, transform_indices = @transform_2, window_bounds = array<i64: 1, 128>}, {pipeline_mode = #tpu.pipeline_mode<synchronous>, transform_indices = @transform_3, window_bounds = array<i64: 1, 128>}, {pipeline_mode = #tpu.pipeline_mode<synchronous>, transform_indices = @transform_4, window_bounds = array<i64: 1, 128>}, {pipeline_mode = #tpu.pipeline_mode<synchronous>, transform_indices = @transform_5, window_bounds = array<i64: 1, 128>}, {pipeline_mode = #tpu.pipeline_mode<synchronous>, transform_indices = @transform_6, window_bounds = array<i64: 1, 128>}, {pipeline_mode = #tpu.pipeline_mode<synchronous>, transform_indices = @transform_7, window_bounds = array<i64: 1, 128>}, {pipeline_mode = #tpu.pipeline_mode<synchronous>, transform_indices = @transform_8, window_bounds = array<i64: 128, 384>}, {pipeline_mode = #tpu.pipeline_mode<synchronous>, transform_indices = @transform_9, window_bounds = array<i64: 128, 128>}, {pipeline_mode = #tpu.pipeline_mode<synchronous>, transform_indices = @transform_10, window_bounds = array<i64: 128, 384>}, {pipeline_mode = #tpu.pipeline_mode<synchronous>, transform_indices = @transform_11, window_bounds = array<i64: 1, 384>}, {pipeline_mode = #tpu.pipeline_mode<synchronous>, transform_indices = @transform_12, window_bounds = array<i64: 128, 128>}, {pipeline_mode = #tpu.pipeline_mode<synchronous>, transform_indices = @transform_13, window_bounds = array<i64: 1, 128>}, {pipeline_mode = #tpu.pipeline_mode<synchronous>, transform_indices = @transform_14, window_bounds = array<i64: 128, 384>}, {pipeline_mode = #tpu.pipeline_mode<synchronous>, transform_indices = @transform_15, window_bounds = array<i64: 1, 384>}, {pipeline_mode = #tpu.pipeline_mode<synchronous>, transform_indices = @transform_16, window_bounds = array<i64: 384, 128>}, {pipeline_mode = #tpu.pipeline_mode<synchronous>, transform_indices = @transform_17, window_bounds = array<i64: 1, 128>}, {transform_indices = @transform_18, window_bounds = array<i64: 16, 128>}]} {
    %c0 = arith.constant 0 : index
    %c0_0 = arith.constant 0 : index
    %0 = vector.load %arg1[%c0, %c0_0] : memref<16x128xf32, #tpu.memory_space<vmem>>, vector<16x128xf32>
    %c0_1 = arith.constant 0 : index
    %c0_2 = arith.constant 0 : index
    %1 = vector.load %arg2[%c0_1, %c0_2] : memref<8x8xf32, #tpu.memory_space<vmem>>, vector<8x8xf32>
    %c0_3 = arith.constant 0 : index
    %c0_4 = arith.constant 0 : index
    %2 = vector.load %arg3[%c0_3, %c0_4] : memref<1x128xf32, #tpu.memory_space<vmem>>, vector<1x128xf32>
    %c0_5 = arith.constant 0 : index
    %c0_6 = arith.constant 0 : index
    %3 = vector.load %arg4[%c0_5, %c0_6] : memref<1x128xf32, #tpu.memory_space<vmem>>, vector<1x128xf32>
    %cst = arith.constant dense<0.000000e+00> : vector<16xf32>
    %4 = vector.multi_reduction <add>, %0, %cst [1] : vector<16x128xf32> to vector<16xf32>
    %5 = vector.shape_cast %4 : vector<16xf32> to vector<16x1xf32>
    %cst_7 = arith.constant 1.280000e+02 : f32
    %6 = vector.broadcast %cst_7 : f32 to vector<16x1xf32>
    %7 = arith.divf %5, %6 : vector<16x1xf32>
    %8 = vector.broadcast %7 : vector<16x1xf32> to vector<16x128xf32>
    %9 = arith.subf %0, %8 : vector<16x128xf32>
    %10 = arith.mulf %9, %9 : vector<16x128xf32>
    %cst_8 = arith.constant dense<0.000000e+00> : vector<16xf32>
    %11 = vector.multi_reduction <add>, %10, %cst_8 [1] : vector<16x128xf32> to vector<16xf32>
    %12 = vector.shape_cast %11 : vector<16xf32> to vector<16x1xf32>
    %cst_9 = arith.constant 1.280000e+02 : f32
    %13 = vector.broadcast %cst_9 : f32 to vector<16x1xf32>
    %14 = arith.divf %12, %13 : vector<16x1xf32>
    %cst_10 = arith.constant 9.99999974E-6 : f32
    %15 = vector.broadcast %cst_10 : f32 to vector<16x1xf32>
    %16 = arith.addf %14, %15 : vector<16x1xf32>
    %17 = math.rsqrt %16 : vector<16x1xf32>
    %18 = vector.broadcast %17 : vector<16x1xf32> to vector<16x128xf32>
    %19 = arith.mulf %9, %18 : vector<16x128xf32>
    %20 = vector.broadcast %2 : vector<1x128xf32> to vector<16x128xf32>
    %21 = arith.mulf %19, %20 : vector<16x128xf32>
    %22 = vector.broadcast %3 : vector<1x128xf32> to vector<16x128xf32>
    %23 = arith.addf %21, %22 : vector<16x128xf32>
    %c0_11 = arith.constant 0 : index
    %c0_12 = arith.constant 0 : index
    %24 = vector.load %arg9[%c0_11, %c0_12] : memref<128x384xf32, #tpu.memory_space<vmem>>, vector<128x384xf32>
    %cst_13 = arith.constant dense<0.000000e+00> : vector<16x384xf32>
    %25 = tpu.matmul %23, %24, %cst_13 {dimension_numbers = #tpu.dot_dimension_numbers<[1], [0], [0], [1], [0, 0, 1, 1], [], []>} : vector<16x128xf32>, vector<128x384xf32>, vector<16x384xf32> -> vector<16x384xf32>
    %26 = vector.extract_strided_slice %25 {offsets = [0, 0], sizes = [16, 128], strides = [1, 1]} : vector<16x384xf32> to vector<16x128xf32>
    %27 = vector.extract_strided_slice %25 {offsets = [0, 128], sizes = [16, 128], strides = [1, 1]} : vector<16x384xf32> to vector<16x128xf32>
    %28 = vector.extract_strided_slice %25 {offsets = [0, 256], sizes = [16, 128], strides = [1, 1]} : vector<16x384xf32> to vector<16x128xf32>
    %29 = vector.extract_strided_slice %26 {offsets = [0, 0], sizes = [8, 32], strides = [1, 1]} : vector<16x128xf32> to vector<8x32xf32>
    %30 = vector.extract_strided_slice %27 {offsets = [0, 0], sizes = [8, 32], strides = [1, 1]} : vector<16x128xf32> to vector<8x32xf32>
    %31 = vector.extract_strided_slice %28 {offsets = [0, 0], sizes = [8, 32], strides = [1, 1]} : vector<16x128xf32> to vector<8x32xf32>
    %cst_14 = arith.constant dense<0.000000e+00> : vector<8x8xf32>
    %32 = tpu.matmul %29, %30, %cst_14 {dimension_numbers = #tpu.dot_dimension_numbers<[1], [1], [0], [0], [0, 0, 1, 0], [], []>} : vector<8x32xf32>, vector<8x32xf32>, vector<8x8xf32> -> vector<8x8xf32>
    %cst_15 = arith.constant 0.176776692 : f32
    %33 = vector.broadcast %cst_15 : f32 to vector<8x8xf32>
    %34 = arith.mulf %32, %33 : vector<8x8xf32>
    %35 = arith.addf %34, %1 : vector<8x8xf32>
    %cst_16 = arith.constant dense<0xFF800000> : vector<8xf32>
    %36 = vector.multi_reduction <maximumf>, %35, %cst_16 [1] : vector<8x8xf32> to vector<8xf32>
    %37 = vector.shape_cast %36 : vector<8xf32> to vector<8x1xf32>
    %38 = vector.broadcast %37 : vector<8x1xf32> to vector<8x8xf32>
    %39 = arith.subf %35, %38 : vector<8x8xf32>
    %40 = math.exp %39 : vector<8x8xf32>
    %cst_17 = arith.constant dense<0.000000e+00> : vector<8xf32>
    %41 = vector.multi_reduction <add>, %40, %cst_17 [1] : vector<8x8xf32> to vector<8xf32>
    %42 = vector.shape_cast %41 : vector<8xf32> to vector<8x1xf32>
    %43 = vector.broadcast %42 : vector<8x1xf32> to vector<8x8xf32>
    %44 = arith.divf %40, %43 : vector<8x8xf32>
    %cst_18 = arith.constant dense<0.000000e+00> : vector<8x32xf32>
    %45 = tpu.matmul %44, %31, %cst_18 {dimension_numbers = #tpu.dot_dimension_numbers<[1], [0], [0], [1], [0, 0, 1, 1], [], []>} : vector<8x8xf32>, vector<8x32xf32>, vector<8x32xf32> -> vector<8x32xf32>
    %c0_19 = arith.constant 0 : index
    %c0_20 = arith.constant 0 : index
    %46 = vector.load %arg20[%c0_19, %c0_20] : memref<16x128xf32, #tpu.memory_space<vmem>>, vector<8x32xf32>
    tpu.vector_store %arg20[%c0_19, %c0_20], %45 {strides = array<i32>} : memref<16x128xf32, #tpu.memory_space<vmem>>, vector<8x32xf32>,
    %47 = vector.extract_strided_slice %26 {offsets = [0, 32], sizes = [8, 32], strides = [1, 1]} : vector<16x128xf32> to vector<8x32xf32>
    %48 = vector.extract_strided_slice %27 {offsets = [0, 32], sizes = [8, 32], strides = [1, 1]} : vector<16x128xf32> to vector<8x32xf32>
    %49 = vector.extract_strided_slice %28 {offsets = [0, 32], sizes = [8, 32], strides = [1, 1]} : vector<16x128xf32> to vector<8x32xf32>
    %cst_21 = arith.constant dense<0.000000e+00> : vector<8x8xf32>
    %50 = tpu.matmul %47, %48, %cst_21 {dimension_numbers = #tpu.dot_dimension_numbers<[1], [1], [0], [0], [0, 0, 1, 0], [], []>} : vector<8x32xf32>, vector<8x32xf32>, vector<8x8xf32> -> vector<8x8xf32>
    %cst_22 = arith.constant 0.176776692 : f32
    %51 = vector.broadcast %cst_22 : f32 to vector<8x8xf32>
    %52 = arith.mulf %50, %51 : vector<8x8xf32>
    %53 = arith.addf %52, %1 : vector<8x8xf32>
    %cst_23 = arith.constant dense<0xFF800000> : vector<8xf32>
    %54 = vector.multi_reduction <maximumf>, %53, %cst_23 [1] : vector<8x8xf32> to vector<8xf32>
    %55 = vector.shape_cast %54 : vector<8xf32> to vector<8x1xf32>
    %56 = vector.broadcast %55 : vector<8x1xf32> to vector<8x8xf32>
    %57 = arith.subf %53, %56 : vector<8x8xf32>
    %58 = math.exp %57 : vector<8x8xf32>
    %cst_24 = arith.constant dense<0.000000e+00> : vector<8xf32>
    %59 = vector.multi_reduction <add>, %58, %cst_24 [1] : vector<8x8xf32> to vector<8xf32>
    %60 = vector.shape_cast %59 : vector<8xf32> to vector<8x1xf32>
    %61 = vector.broadcast %60 : vector<8x1xf32> to vector<8x8xf32>
    %62 = arith.divf %58, %61 : vector<8x8xf32>
    %cst_25 = arith.constant dense<0.000000e+00> : vector<8x32xf32>
    %63 = tpu.matmul %62, %49, %cst_25 {dimension_numbers = #tpu.dot_dimension_numbers<[1], [0], [0], [1], [0, 0, 1, 1], [], []>} : vector<8x8xf32>, vector<8x32xf32>, vector<8x32xf32> -> vector<8x32xf32>
    %c0_26 = arith.constant 0 : index
    %c32 = arith.constant 32 : index
    %64 = vector.load %arg20[%c0_26, %c32] : memref<16x128xf32, #tpu.memory_space<vmem>>, vector<8x32xf32>
    tpu.vector_store %arg20[%c0_26, %c32], %63 {strides = array<i32>} : memref<16x128xf32, #tpu.memory_space<vmem>>, vector<8x32xf32>,
    %65 = vector.extract_strided_slice %26 {offsets = [0, 64], sizes = [8, 32], strides = [1, 1]} : vector<16x128xf32> to vector<8x32xf32>
    %66 = vector.extract_strided_slice %27 {offsets = [0, 64], sizes = [8, 32], strides = [1, 1]} : vector<16x128xf32> to vector<8x32xf32>
    %67 = vector.extract_strided_slice %28 {offsets = [0, 64], sizes = [8, 32], strides = [1, 1]} : vector<16x128xf32> to vector<8x32xf32>
    %cst_27 = arith.constant dense<0.000000e+00> : vector<8x8xf32>
    %68 = tpu.matmul %65, %66, %cst_27 {dimension_numbers = #tpu.dot_dimension_numbers<[1], [1], [0], [0], [0, 0, 1, 0], [], []>} : vector<8x32xf32>, vector<8x32xf32>, vector<8x8xf32> -> vector<8x8xf32>
    %cst_28 = arith.constant 0.176776692 : f32
    %69 = vector.broadcast %cst_28 : f32 to vector<8x8xf32>
    %70 = arith.mulf %68, %69 : vector<8x8xf32>
    %71 = arith.addf %70, %1 : vector<8x8xf32>
    %cst_29 = arith.constant dense<0xFF800000> : vector<8xf32>
    %72 = vector.multi_reduction <maximumf>, %71, %cst_29 [1] : vector<8x8xf32> to vector<8xf32>
    %73 = vector.shape_cast %72 : vector<8xf32> to vector<8x1xf32>
    %74 = vector.broadcast %73 : vector<8x1xf32> to vector<8x8xf32>
    %75 = arith.subf %71, %74 : vector<8x8xf32>
    %76 = math.exp %75 : vector<8x8xf32>
    %cst_30 = arith.constant dense<0.000000e+00> : vector<8xf32>
    %77 = vector.multi_reduction <add>, %76, %cst_30 [1] : vector<8x8xf32> to vector<8xf32>
    %78 = vector.shape_cast %77 : vector<8xf32> to vector<8x1xf32>
    %79 = vector.broadcast %78 : vector<8x1xf32> to vector<8x8xf32>
    %80 = arith.divf %76, %79 : vector<8x8xf32>
    %cst_31 = arith.constant dense<0.000000e+00> : vector<8x32xf32>
    %81 = tpu.matmul %80, %67, %cst_31 {dimension_numbers = #tpu.dot_dimension_numbers<[1], [0], [0], [1], [0, 0, 1, 1], [], []>} : vector<8x8xf32>, vector<8x32xf32>, vector<8x32xf32> -> vector<8x32xf32>
    %c0_32 = arith.constant 0 : index
    %c64 = arith.constant 64 : index
    %82 = vector.load %arg20[%c0_32, %c64] : memref<16x128xf32, #tpu.memory_space<vmem>>, vector<8x32xf32>
    tpu.vector_store %arg20[%c0_32, %c64], %81 {strides = array<i32>} : memref<16x128xf32, #tpu.memory_space<vmem>>, vector<8x32xf32>,
    %83 = vector.extract_strided_slice %26 {offsets = [0, 96], sizes = [8, 32], strides = [1, 1]} : vector<16x128xf32> to vector<8x32xf32>
    %84 = vector.extract_strided_slice %27 {offsets = [0, 96], sizes = [8, 32], strides = [1, 1]} : vector<16x128xf32> to vector<8x32xf32>
    %85 = vector.extract_strided_slice %28 {offsets = [0, 96], sizes = [8, 32], strides = [1, 1]} : vector<16x128xf32> to vector<8x32xf32>
    %cst_33 = arith.constant dense<0.000000e+00> : vector<8x8xf32>
    %86 = tpu.matmul %83, %84, %cst_33 {dimension_numbers = #tpu.dot_dimension_numbers<[1], [1], [0], [0], [0, 0, 1, 0], [], []>} : vector<8x32xf32>, vector<8x32xf32>, vector<8x8xf32> -> vector<8x8xf32>
    %cst_34 = arith.constant 0.176776692 : f32
    %87 = vector.broadcast %cst_34 : f32 to vector<8x8xf32>
    %88 = arith.mulf %86, %87 : vector<8x8xf32>
    %89 = arith.addf %88, %1 : vector<8x8xf32>
    %cst_35 = arith.constant dense<0xFF800000> : vector<8xf32>
    %90 = vector.multi_reduction <maximumf>, %89, %cst_35 [1] : vector<8x8xf32> to vector<8xf32>
    %91 = vector.shape_cast %90 : vector<8xf32> to vector<8x1xf32>
    %92 = vector.broadcast %91 : vector<8x1xf32> to vector<8x8xf32>
    %93 = arith.subf %89, %92 : vector<8x8xf32>
    %94 = math.exp %93 : vector<8x8xf32>
    %cst_36 = arith.constant dense<0.000000e+00> : vector<8xf32>
    %95 = vector.multi_reduction <add>, %94, %cst_36 [1] : vector<8x8xf32> to vector<8xf32>
    %96 = vector.shape_cast %95 : vector<8xf32> to vector<8x1xf32>
    %97 = vector.broadcast %96 : vector<8x1xf32> to vector<8x8xf32>
    %98 = arith.divf %94, %97 : vector<8x8xf32>
    %cst_37 = arith.constant dense<0.000000e+00> : vector<8x32xf32>
    %99 = tpu.matmul %98, %85, %cst_37 {dimension_numbers = #tpu.dot_dimension_numbers<[1], [0], [0], [1], [0, 0, 1, 1], [], []>} : vector<8x8xf32>, vector<8x32xf32>, vector<8x32xf32> -> vector<8x32xf32>
    %c0_38 = arith.constant 0 : index
    %c96 = arith.constant 96 : index
    %100 = vector.load %arg20[%c0_38, %c96] : memref<16x128xf32, #tpu.memory_space<vmem>>, vector<8x32xf32>
    tpu.vector_store %arg20[%c0_38, %c96], %99 {strides = array<i32>} : memref<16x128xf32, #tpu.memory_space<vmem>>, vector<8x32xf32>,
    %101 = vector.extract_strided_slice %26 {offsets = [8, 0], sizes = [8, 32], strides = [1, 1]} : vector<16x128xf32> to vector<8x32xf32>
    %102 = vector.extract_strided_slice %27 {offsets = [8, 0], sizes = [8, 32], strides = [1, 1]} : vector<16x128xf32> to vector<8x32xf32>
    %103 = vector.extract_strided_slice %28 {offsets = [8, 0], sizes = [8, 32], strides = [1, 1]} : vector<16x128xf32> to vector<8x32xf32>
    %cst_39 = arith.constant dense<0.000000e+00> : vector<8x8xf32>
    %104 = tpu.matmul %101, %102, %cst_39 {dimension_numbers = #tpu.dot_dimension_numbers<[1], [1], [0], [0], [0, 0, 1, 0], [], []>} : vector<8x32xf32>, vector<8x32xf32>, vector<8x8xf32> -> vector<8x8xf32>
    %cst_40 = arith.constant 0.176776692 : f32
    %105 = vector.broadcast %cst_40 : f32 to vector<8x8xf32>
    %106 = arith.mulf %104, %105 : vector<8x8xf32>
    %107 = arith.addf %106, %1 : vector<8x8xf32>
    %cst_41 = arith.constant dense<0xFF800000> : vector<8xf32>
    %108 = vector.multi_reduction <maximumf>, %107, %cst_41 [1] : vector<8x8xf32> to vector<8xf32>
    %109 = vector.shape_cast %108 : vector<8xf32> to vector<8x1xf32>
    %110 = vector.broadcast %109 : vector<8x1xf32> to vector<8x8xf32>
    %111 = arith.subf %107, %110 : vector<8x8xf32>
    %112 = math.exp %111 : vector<8x8xf32>
    %cst_42 = arith.constant dense<0.000000e+00> : vector<8xf32>
    %113 = vector.multi_reduction <add>, %112, %cst_42 [1] : vector<8x8xf32> to vector<8xf32>
    %114 = vector.shape_cast %113 : vector<8xf32> to vector<8x1xf32>
    %115 = vector.broadcast %114 : vector<8x1xf32> to vector<8x8xf32>
    %116 = arith.divf %112, %115 : vector<8x8xf32>
    %cst_43 = arith.constant dense<0.000000e+00> : vector<8x32xf32>
    %117 = tpu.matmul %116, %103, %cst_43 {dimension_numbers = #tpu.dot_dimension_numbers<[1], [0], [0], [1], [0, 0, 1, 1], [], []>} : vector<8x8xf32>, vector<8x32xf32>, vector<8x32xf32> -> vector<8x32xf32>
    %c8 = arith.constant 8 : index
    %c0_44 = arith.constant 0 : index
    %118 = vector.load %arg20[%c8, %c0_44] : memref<16x128xf32, #tpu.memory_space<vmem>>, vector<8x32xf32>
    tpu.vector_store %arg20[%c8, %c0_44], %117 {strides = array<i32>} : memref<16x128xf32, #tpu.memory_space<vmem>>, vector<8x32xf32>,
    %119 = vector.extract_strided_slice %26 {offsets = [8, 32], sizes = [8, 32], strides = [1, 1]} : vector<16x128xf32> to vector<8x32xf32>
    %120 = vector.extract_strided_slice %27 {offsets = [8, 32], sizes = [8, 32], strides = [1, 1]} : vector<16x128xf32> to vector<8x32xf32>
    %121 = vector.extract_strided_slice %28 {offsets = [8, 32], sizes = [8, 32], strides = [1, 1]} : vector<16x128xf32> to vector<8x32xf32>
    %cst_45 = arith.constant dense<0.000000e+00> : vector<8x8xf32>
    %122 = tpu.matmul %119, %120, %cst_45 {dimension_numbers = #tpu.dot_dimension_numbers<[1], [1], [0], [0], [0, 0, 1, 0], [], []>} : vector<8x32xf32>, vector<8x32xf32>, vector<8x8xf32> -> vector<8x8xf32>
    %cst_46 = arith.constant 0.176776692 : f32
    %123 = vector.broadcast %cst_46 : f32 to vector<8x8xf32>
    %124 = arith.mulf %122, %123 : vector<8x8xf32>
    %125 = arith.addf %124, %1 : vector<8x8xf32>
    %cst_47 = arith.constant dense<0xFF800000> : vector<8xf32>
    %126 = vector.multi_reduction <maximumf>, %125, %cst_47 [1] : vector<8x8xf32> to vector<8xf32>
    %127 = vector.shape_cast %126 : vector<8xf32> to vector<8x1xf32>
    %128 = vector.broadcast %127 : vector<8x1xf32> to vector<8x8xf32>
    %129 = arith.subf %125, %128 : vector<8x8xf32>
    %130 = math.exp %129 : vector<8x8xf32>
    %cst_48 = arith.constant dense<0.000000e+00> : vector<8xf32>
    %131 = vector.multi_reduction <add>, %130, %cst_48 [1] : vector<8x8xf32> to vector<8xf32>
    %132 = vector.shape_cast %131 : vector<8xf32> to vector<8x1xf32>
    %133 = vector.broadcast %132 : vector<8x1xf32> to vector<8x8xf32>
    %134 = arith.divf %130, %133 : vector<8x8xf32>
    %cst_49 = arith.constant dense<0.000000e+00> : vector<8x32xf32>
    %135 = tpu.matmul %134, %121, %cst_49 {dimension_numbers = #tpu.dot_dimension_numbers<[1], [0], [0], [1], [0, 0, 1, 1], [], []>} : vector<8x8xf32>, vector<8x32xf32>, vector<8x32xf32> -> vector<8x32xf32>
    %c8_50 = arith.constant 8 : index
    %c32_51 = arith.constant 32 : index
    %136 = vector.load %arg20[%c8_50, %c32_51] : memref<16x128xf32, #tpu.memory_space<vmem>>, vector<8x32xf32>
    tpu.vector_store %arg20[%c8_50, %c32_51], %135 {strides = array<i32>} : memref<16x128xf32, #tpu.memory_space<vmem>>, vector<8x32xf32>,
    %137 = vector.extract_strided_slice %26 {offsets = [8, 64], sizes = [8, 32], strides = [1, 1]} : vector<16x128xf32> to vector<8x32xf32>
    %138 = vector.extract_strided_slice %27 {offsets = [8, 64], sizes = [8, 32], strides = [1, 1]} : vector<16x128xf32> to vector<8x32xf32>
    %139 = vector.extract_strided_slice %28 {offsets = [8, 64], sizes = [8, 32], strides = [1, 1]} : vector<16x128xf32> to vector<8x32xf32>
    %cst_52 = arith.constant dense<0.000000e+00> : vector<8x8xf32>
    %140 = tpu.matmul %137, %138, %cst_52 {dimension_numbers = #tpu.dot_dimension_numbers<[1], [1], [0], [0], [0, 0, 1, 0], [], []>} : vector<8x32xf32>, vector<8x32xf32>, vector<8x8xf32> -> vector<8x8xf32>
    %cst_53 = arith.constant 0.176776692 : f32
    %141 = vector.broadcast %cst_53 : f32 to vector<8x8xf32>
    %142 = arith.mulf %140, %141 : vector<8x8xf32>
    %143 = arith.addf %142, %1 : vector<8x8xf32>
    %cst_54 = arith.constant dense<0xFF800000> : vector<8xf32>
    %144 = vector.multi_reduction <maximumf>, %143, %cst_54 [1] : vector<8x8xf32> to vector<8xf32>
    %145 = vector.shape_cast %144 : vector<8xf32> to vector<8x1xf32>
    %146 = vector.broadcast %145 : vector<8x1xf32> to vector<8x8xf32>
    %147 = arith.subf %143, %146 : vector<8x8xf32>
    %148 = math.exp %147 : vector<8x8xf32>
    %cst_55 = arith.constant dense<0.000000e+00> : vector<8xf32>
    %149 = vector.multi_reduction <add>, %148, %cst_55 [1] : vector<8x8xf32> to vector<8xf32>
    %150 = vector.shape_cast %149 : vector<8xf32> to vector<8x1xf32>
    %151 = vector.broadcast %150 : vector<8x1xf32> to vector<8x8xf32>
    %152 = arith.divf %148, %151 : vector<8x8xf32>
    %cst_56 = arith.constant dense<0.000000e+00> : vector<8x32xf32>
    %153 = tpu.matmul %152, %139, %cst_56 {dimension_numbers = #tpu.dot_dimension_numbers<[1], [0], [0], [1], [0, 0, 1, 1], [], []>} : vector<8x8xf32>, vector<8x32xf32>, vector<8x32xf32> -> vector<8x32xf32>
    %c8_57 = arith.constant 8 : index
    %c64_58 = arith.constant 64 : index
    %154 = vector.load %arg20[%c8_57, %c64_58] : memref<16x128xf32, #tpu.memory_space<vmem>>, vector<8x32xf32>
    tpu.vector_store %arg20[%c8_57, %c64_58], %153 {strides = array<i32>} : memref<16x128xf32, #tpu.memory_space<vmem>>, vector<8x32xf32>,
    %155 = vector.extract_strided_slice %26 {offsets = [8, 96], sizes = [8, 32], strides = [1, 1]} : vector<16x128xf32> to vector<8x32xf32>
    %156 = vector.extract_strided_slice %27 {offsets = [8, 96], sizes = [8, 32], strides = [1, 1]} : vector<16x128xf32> to vector<8x32xf32>
    %157 = vector.extract_strided_slice %28 {offsets = [8, 96], sizes = [8, 32], strides = [1, 1]} : vector<16x128xf32> to vector<8x32xf32>
    %cst_59 = arith.constant dense<0.000000e+00> : vector<8x8xf32>
    %158 = tpu.matmul %155, %156, %cst_59 {dimension_numbers = #tpu.dot_dimension_numbers<[1], [1], [0], [0], [0, 0, 1, 0], [], []>} : vector<8x32xf32>, vector<8x32xf32>, vector<8x8xf32> -> vector<8x8xf32>
    %cst_60 = arith.constant 0.176776692 : f32
    %159 = vector.broadcast %cst_60 : f32 to vector<8x8xf32>
    %160 = arith.mulf %158, %159 : vector<8x8xf32>
    %161 = arith.addf %160, %1 : vector<8x8xf32>
    %cst_61 = arith.constant dense<0xFF800000> : vector<8xf32>
    %162 = vector.multi_reduction <maximumf>, %161, %cst_61 [1] : vector<8x8xf32> to vector<8xf32>
    %163 = vector.shape_cast %162 : vector<8xf32> to vector<8x1xf32>
    %164 = vector.broadcast %163 : vector<8x1xf32> to vector<8x8xf32>
    %165 = arith.subf %161, %164 : vector<8x8xf32>
    %166 = math.exp %165 : vector<8x8xf32>
    %cst_62 = arith.constant dense<0.000000e+00> : vector<8xf32>
    %167 = vector.multi_reduction <add>, %166, %cst_62 [1] : vector<8x8xf32> to vector<8xf32>
    %168 = vector.shape_cast %167 : vector<8xf32> to vector<8x1xf32>
    %169 = vector.broadcast %168 : vector<8x1xf32> to vector<8x8xf32>
    %170 = arith.divf %166, %169 : vector<8x8xf32>
    %cst_63 = arith.constant dense<0.000000e+00> : vector<8x32xf32>
    %171 = tpu.matmul %170, %157, %cst_63 {dimension_numbers = #tpu.dot_dimension_numbers<[1], [0], [0], [1], [0, 0, 1, 1], [], []>} : vector<8x8xf32>, vector<8x32xf32>, vector<8x32xf32> -> vector<8x32xf32>
    %c8_64 = arith.constant 8 : index
    %c96_65 = arith.constant 96 : index
    %172 = vector.load %arg20[%c8_64, %c96_65] : memref<16x128xf32, #tpu.memory_space<vmem>>, vector<8x32xf32>
    tpu.vector_store %arg20[%c8_64, %c96_65], %171 {strides = array<i32>} : memref<16x128xf32, #tpu.memory_space<vmem>>, vector<8x32xf32>,
    %c0_66 = arith.constant 0 : index
    %c0_67 = arith.constant 0 : index
    %173 = vector.load %arg20[%c0_66, %c0_67] : memref<16x128xf32, #tpu.memory_space<vmem>>, vector<16x128xf32>
    %c0_68 = arith.constant 0 : index
    %c0_69 = arith.constant 0 : index
    %174 = vector.load %arg10[%c0_68, %c0_69] : memref<128x128xf32, #tpu.memory_space<vmem>>, vector<128x128xf32>
    %cst_70 = arith.constant dense<0.000000e+00> : vector<16x128xf32>
    %175 = tpu.matmul %173, %174, %cst_70 {dimension_numbers = #tpu.dot_dimension_numbers<[1], [0], [0], [1], [0, 0, 1, 1], [], []>} : vector<16x128xf32>, vector<128x128xf32>, vector<16x128xf32> -> vector<16x128xf32>
    %176 = arith.addf %0, %175 : vector<16x128xf32>
    %c0_71 = arith.constant 0 : index
    %c0_72 = arith.constant 0 : index
    %177 = vector.load %arg5[%c0_71, %c0_72] : memref<1x128xf32, #tpu.memory_space<vmem>>, vector<1x128xf32>
    %c0_73 = arith.constant 0 : index
    %c0_74 = arith.constant 0 : index
    %178 = vector.load %arg6[%c0_73, %c0_74] : memref<1x128xf32, #tpu.memory_space<vmem>>, vector<1x128xf32>
    %cst_75 = arith.constant dense<0.000000e+00> : vector<16xf32>
    %179 = vector.multi_reduction <add>, %176, %cst_75 [1] : vector<16x128xf32> to vector<16xf32>
    %180 = vector.shape_cast %179 : vector<16xf32> to vector<16x1xf32>
    %cst_76 = arith.constant 1.280000e+02 : f32
    %181 = vector.broadcast %cst_76 : f32 to vector<16x1xf32>
    %182 = arith.divf %180, %181 : vector<16x1xf32>
    %183 = vector.broadcast %182 : vector<16x1xf32> to vector<16x128xf32>
    %184 = arith.subf %176, %183 : vector<16x128xf32>
    %185 = arith.mulf %184, %184 : vector<16x128xf32>
    %cst_77 = arith.constant dense<0.000000e+00> : vector<16xf32>
    %186 = vector.multi_reduction <add>, %185, %cst_77 [1] : vector<16x128xf32> to vector<16xf32>
    %187 = vector.shape_cast %186 : vector<16xf32> to vector<16x1xf32>
    %cst_78 = arith.constant 1.280000e+02 : f32
    %188 = vector.broadcast %cst_78 : f32 to vector<16x1xf32>
    %189 = arith.divf %187, %188 : vector<16x1xf32>
    %cst_79 = arith.constant 9.99999974E-6 : f32
    %190 = vector.broadcast %cst_79 : f32 to vector<16x1xf32>
    %191 = arith.addf %189, %190 : vector<16x1xf32>
    %192 = math.rsqrt %191 : vector<16x1xf32>
    %193 = vector.broadcast %192 : vector<16x1xf32> to vector<16x128xf32>
    %194 = arith.mulf %184, %193 : vector<16x128xf32>
    %195 = vector.broadcast %177 : vector<1x128xf32> to vector<16x128xf32>
    %196 = arith.mulf %194, %195 : vector<16x128xf32>
    %197 = vector.broadcast %178 : vector<1x128xf32> to vector<16x128xf32>
    %198 = arith.addf %196, %197 : vector<16x128xf32>
    %c0_80 = arith.constant 0 : index
    %c0_81 = arith.constant 0 : index
    %199 = vector.load %arg11[%c0_80, %c0_81] : memref<128x384xf32, #tpu.memory_space<vmem>>, vector<128x384xf32>
    %cst_82 = arith.constant dense<0.000000e+00> : vector<16x384xf32>
    %200 = tpu.matmul %198, %199, %cst_82 {dimension_numbers = #tpu.dot_dimension_numbers<[1], [0], [0], [1], [0, 0, 1, 1], [], []>} : vector<16x128xf32>, vector<128x384xf32>, vector<16x384xf32> -> vector<16x384xf32>
    %c0_83 = arith.constant 0 : index
    %c0_84 = arith.constant 0 : index
    %201 = vector.load %arg12[%c0_83, %c0_84] : memref<1x384xf32, #tpu.memory_space<vmem>>, vector<1x384xf32>
    %202 = vector.broadcast %201 : vector<1x384xf32> to vector<16x384xf32>
    %203 = arith.addf %200, %202 : vector<16x384xf32>
    %204 = vector.extract_strided_slice %203 {offsets = [0, 0], sizes = [16, 128], strides = [1, 1]} : vector<16x384xf32> to vector<16x128xf32>
    %205 = vector.extract_strided_slice %203 {offsets = [0, 128], sizes = [16, 128], strides = [1, 1]} : vector<16x384xf32> to vector<16x128xf32>
    %206 = vector.extract_strided_slice %203 {offsets = [0, 256], sizes = [16, 128], strides = [1, 1]} : vector<16x384xf32> to vector<16x128xf32>
    %207 = vector.extract_strided_slice %204 {offsets = [0, 0], sizes = [8, 32], strides = [1, 1]} : vector<16x128xf32> to vector<8x32xf32>
    %208 = vector.extract_strided_slice %205 {offsets = [0, 0], sizes = [8, 32], strides = [1, 1]} : vector<16x128xf32> to vector<8x32xf32>
    %209 = vector.extract_strided_slice %206 {offsets = [0, 0], sizes = [8, 32], strides = [1, 1]} : vector<16x128xf32> to vector<8x32xf32>
    %cst_85 = arith.constant dense<0.000000e+00> : vector<8x8xf32>
    %210 = tpu.matmul %207, %208, %cst_85 {dimension_numbers = #tpu.dot_dimension_numbers<[1], [1], [0], [0], [0, 0, 1, 0], [], []>} : vector<8x32xf32>, vector<8x32xf32>, vector<8x8xf32> -> vector<8x8xf32>
    %cst_86 = arith.constant 0.176776692 : f32
    %211 = vector.broadcast %cst_86 : f32 to vector<8x8xf32>
    %212 = arith.mulf %210, %211 : vector<8x8xf32>
    %cst_87 = arith.constant dense<0xFF800000> : vector<8xf32>
    %213 = vector.multi_reduction <maximumf>, %212, %cst_87 [1] : vector<8x8xf32> to vector<8xf32>
    %214 = vector.shape_cast %213 : vector<8xf32> to vector<8x1xf32>
    %215 = vector.broadcast %214 : vector<8x1xf32> to vector<8x8xf32>
    %216 = arith.subf %212, %215 : vector<8x8xf32>
    %217 = math.exp %216 : vector<8x8xf32>
    %cst_88 = arith.constant dense<0.000000e+00> : vector<8xf32>
    %218 = vector.multi_reduction <add>, %217, %cst_88 [1] : vector<8x8xf32> to vector<8xf32>
    %219 = vector.shape_cast %218 : vector<8xf32> to vector<8x1xf32>
    %220 = vector.broadcast %219 : vector<8x1xf32> to vector<8x8xf32>
    %221 = arith.divf %217, %220 : vector<8x8xf32>
    %cst_89 = arith.constant dense<0.000000e+00> : vector<8x32xf32>
    %222 = tpu.matmul %221, %209, %cst_89 {dimension_numbers = #tpu.dot_dimension_numbers<[1], [0], [0], [1], [0, 0, 1, 1], [], []>} : vector<8x8xf32>, vector<8x32xf32>, vector<8x32xf32> -> vector<8x32xf32>
    %c0_90 = arith.constant 0 : index
    %c0_91 = arith.constant 0 : index
    %223 = vector.load %arg20[%c0_90, %c0_91] : memref<16x128xf32, #tpu.memory_space<vmem>>, vector<8x32xf32>
    tpu.vector_store %arg20[%c0_90, %c0_91], %222 {strides = array<i32>} : memref<16x128xf32, #tpu.memory_space<vmem>>, vector<8x32xf32>,
    %224 = vector.extract_strided_slice %204 {offsets = [0, 32], sizes = [8, 32], strides = [1, 1]} : vector<16x128xf32> to vector<8x32xf32>
    %225 = vector.extract_strided_slice %205 {offsets = [0, 32], sizes = [8, 32], strides = [1, 1]} : vector<16x128xf32> to vector<8x32xf32>
    %226 = vector.extract_strided_slice %206 {offsets = [0, 32], sizes = [8, 32], strides = [1, 1]} : vector<16x128xf32> to vector<8x32xf32>
    %cst_92 = arith.constant dense<0.000000e+00> : vector<8x8xf32>
    %227 = tpu.matmul %224, %225, %cst_92 {dimension_numbers = #tpu.dot_dimension_numbers<[1], [1], [0], [0], [0, 0, 1, 0], [], []>} : vector<8x32xf32>, vector<8x32xf32>, vector<8x8xf32> -> vector<8x8xf32>
    %cst_93 = arith.constant 0.176776692 : f32
    %228 = vector.broadcast %cst_93 : f32 to vector<8x8xf32>
    %229 = arith.mulf %227, %228 : vector<8x8xf32>
    %cst_94 = arith.constant dense<0xFF800000> : vector<8xf32>
    %230 = vector.multi_reduction <maximumf>, %229, %cst_94 [1] : vector<8x8xf32> to vector<8xf32>
    %231 = vector.shape_cast %230 : vector<8xf32> to vector<8x1xf32>
    %232 = vector.broadcast %231 : vector<8x1xf32> to vector<8x8xf32>
    %233 = arith.subf %229, %232 : vector<8x8xf32>
    %234 = math.exp %233 : vector<8x8xf32>
    %cst_95 = arith.constant dense<0.000000e+00> : vector<8xf32>
    %235 = vector.multi_reduction <add>, %234, %cst_95 [1] : vector<8x8xf32> to vector<8xf32>
    %236 = vector.shape_cast %235 : vector<8xf32> to vector<8x1xf32>
    %237 = vector.broadcast %236 : vector<8x1xf32> to vector<8x8xf32>
    %238 = arith.divf %234, %237 : vector<8x8xf32>
    %cst_96 = arith.constant dense<0.000000e+00> : vector<8x32xf32>
    %239 = tpu.matmul %238, %226, %cst_96 {dimension_numbers = #tpu.dot_dimension_numbers<[1], [0], [0], [1], [0, 0, 1, 1], [], []>} : vector<8x8xf32>, vector<8x32xf32>, vector<8x32xf32> -> vector<8x32xf32>
    %c0_97 = arith.constant 0 : index
    %c32_98 = arith.constant 32 : index
    %240 = vector.load %arg20[%c0_97, %c32_98] : memref<16x128xf32, #tpu.memory_space<vmem>>, vector<8x32xf32>
    tpu.vector_store %arg20[%c0_97, %c32_98], %239 {strides = array<i32>} : memref<16x128xf32, #tpu.memory_space<vmem>>, vector<8x32xf32>,
    %241 = vector.extract_strided_slice %204 {offsets = [0, 64], sizes = [8, 32], strides = [1, 1]} : vector<16x128xf32> to vector<8x32xf32>
    %242 = vector.extract_strided_slice %205 {offsets = [0, 64], sizes = [8, 32], strides = [1, 1]} : vector<16x128xf32> to vector<8x32xf32>
    %243 = vector.extract_strided_slice %206 {offsets = [0, 64], sizes = [8, 32], strides = [1, 1]} : vector<16x128xf32> to vector<8x32xf32>
    %cst_99 = arith.constant dense<0.000000e+00> : vector<8x8xf32>
    %244 = tpu.matmul %241, %242, %cst_99 {dimension_numbers = #tpu.dot_dimension_numbers<[1], [1], [0], [0], [0, 0, 1, 0], [], []>} : vector<8x32xf32>, vector<8x32xf32>, vector<8x8xf32> -> vector<8x8xf32>
    %cst_100 = arith.constant 0.176776692 : f32
    %245 = vector.broadcast %cst_100 : f32 to vector<8x8xf32>
    %246 = arith.mulf %244, %245 : vector<8x8xf32>
    %cst_101 = arith.constant dense<0xFF800000> : vector<8xf32>
    %247 = vector.multi_reduction <maximumf>, %246, %cst_101 [1] : vector<8x8xf32> to vector<8xf32>
    %248 = vector.shape_cast %247 : vector<8xf32> to vector<8x1xf32>
    %249 = vector.broadcast %248 : vector<8x1xf32> to vector<8x8xf32>
    %250 = arith.subf %246, %249 : vector<8x8xf32>
    %251 = math.exp %250 : vector<8x8xf32>
    %cst_102 = arith.constant dense<0.000000e+00> : vector<8xf32>
    %252 = vector.multi_reduction <add>, %251, %cst_102 [1] : vector<8x8xf32> to vector<8xf32>
    %253 = vector.shape_cast %252 : vector<8xf32> to vector<8x1xf32>
    %254 = vector.broadcast %253 : vector<8x1xf32> to vector<8x8xf32>
    %255 = arith.divf %251, %254 : vector<8x8xf32>
    %cst_103 = arith.constant dense<0.000000e+00> : vector<8x32xf32>
    %256 = tpu.matmul %255, %243, %cst_103 {dimension_numbers = #tpu.dot_dimension_numbers<[1], [0], [0], [1], [0, 0, 1, 1], [], []>} : vector<8x8xf32>, vector<8x32xf32>, vector<8x32xf32> -> vector<8x32xf32>
    %c0_104 = arith.constant 0 : index
    %c64_105 = arith.constant 64 : index
    %257 = vector.load %arg20[%c0_104, %c64_105] : memref<16x128xf32, #tpu.memory_space<vmem>>, vector<8x32xf32>
    tpu.vector_store %arg20[%c0_104, %c64_105], %256 {strides = array<i32>} : memref<16x128xf32, #tpu.memory_space<vmem>>, vector<8x32xf32>,
    %258 = vector.extract_strided_slice %204 {offsets = [0, 96], sizes = [8, 32], strides = [1, 1]} : vector<16x128xf32> to vector<8x32xf32>
    %259 = vector.extract_strided_slice %205 {offsets = [0, 96], sizes = [8, 32], strides = [1, 1]} : vector<16x128xf32> to vector<8x32xf32>
    %260 = vector.extract_strided_slice %206 {offsets = [0, 96], sizes = [8, 32], strides = [1, 1]} : vector<16x128xf32> to vector<8x32xf32>
    %cst_106 = arith.constant dense<0.000000e+00> : vector<8x8xf32>
    %261 = tpu.matmul %258, %259, %cst_106 {dimension_numbers = #tpu.dot_dimension_numbers<[1], [1], [0], [0], [0, 0, 1, 0], [], []>} : vector<8x32xf32>, vector<8x32xf32>, vector<8x8xf32> -> vector<8x8xf32>
    %cst_107 = arith.constant 0.176776692 : f32
    %262 = vector.broadcast %cst_107 : f32 to vector<8x8xf32>
    %263 = arith.mulf %261, %262 : vector<8x8xf32>
    %cst_108 = arith.constant dense<0xFF800000> : vector<8xf32>
    %264 = vector.multi_reduction <maximumf>, %263, %cst_108 [1] : vector<8x8xf32> to vector<8xf32>
    %265 = vector.shape_cast %264 : vector<8xf32> to vector<8x1xf32>
    %266 = vector.broadcast %265 : vector<8x1xf32> to vector<8x8xf32>
    %267 = arith.subf %263, %266 : vector<8x8xf32>
    %268 = math.exp %267 : vector<8x8xf32>
    %cst_109 = arith.constant dense<0.000000e+00> : vector<8xf32>
    %269 = vector.multi_reduction <add>, %268, %cst_109 [1] : vector<8x8xf32> to vector<8xf32>
    %270 = vector.shape_cast %269 : vector<8xf32> to vector<8x1xf32>
    %271 = vector.broadcast %270 : vector<8x1xf32> to vector<8x8xf32>
    %272 = arith.divf %268, %271 : vector<8x8xf32>
    %cst_110 = arith.constant dense<0.000000e+00> : vector<8x32xf32>
    %273 = tpu.matmul %272, %260, %cst_110 {dimension_numbers = #tpu.dot_dimension_numbers<[1], [0], [0], [1], [0, 0, 1, 1], [], []>} : vector<8x8xf32>, vector<8x32xf32>, vector<8x32xf32> -> vector<8x32xf32>
    %c0_111 = arith.constant 0 : index
    %c96_112 = arith.constant 96 : index
    %274 = vector.load %arg20[%c0_111, %c96_112] : memref<16x128xf32, #tpu.memory_space<vmem>>, vector<8x32xf32>
    tpu.vector_store %arg20[%c0_111, %c96_112], %273 {strides = array<i32>} : memref<16x128xf32, #tpu.memory_space<vmem>>, vector<8x32xf32>,
    %275 = vector.extract_strided_slice %204 {offsets = [8, 0], sizes = [8, 32], strides = [1, 1]} : vector<16x128xf32> to vector<8x32xf32>
    %276 = vector.extract_strided_slice %205 {offsets = [8, 0], sizes = [8, 32], strides = [1, 1]} : vector<16x128xf32> to vector<8x32xf32>
    %277 = vector.extract_strided_slice %206 {offsets = [8, 0], sizes = [8, 32], strides = [1, 1]} : vector<16x128xf32> to vector<8x32xf32>
    %cst_113 = arith.constant dense<0.000000e+00> : vector<8x8xf32>
    %278 = tpu.matmul %275, %276, %cst_113 {dimension_numbers = #tpu.dot_dimension_numbers<[1], [1], [0], [0], [0, 0, 1, 0], [], []>} : vector<8x32xf32>, vector<8x32xf32>, vector<8x8xf32> -> vector<8x8xf32>
    %cst_114 = arith.constant 0.176776692 : f32
    %279 = vector.broadcast %cst_114 : f32 to vector<8x8xf32>
    %280 = arith.mulf %278, %279 : vector<8x8xf32>
    %cst_115 = arith.constant dense<0xFF800000> : vector<8xf32>
    %281 = vector.multi_reduction <maximumf>, %280, %cst_115 [1] : vector<8x8xf32> to vector<8xf32>
    %282 = vector.shape_cast %281 : vector<8xf32> to vector<8x1xf32>
    %283 = vector.broadcast %282 : vector<8x1xf32> to vector<8x8xf32>
    %284 = arith.subf %280, %283 : vector<8x8xf32>
    %285 = math.exp %284 : vector<8x8xf32>
    %cst_116 = arith.constant dense<0.000000e+00> : vector<8xf32>
    %286 = vector.multi_reduction <add>, %285, %cst_116 [1] : vector<8x8xf32> to vector<8xf32>
    %287 = vector.shape_cast %286 : vector<8xf32> to vector<8x1xf32>
    %288 = vector.broadcast %287 : vector<8x1xf32> to vector<8x8xf32>
    %289 = arith.divf %285, %288 : vector<8x8xf32>
    %cst_117 = arith.constant dense<0.000000e+00> : vector<8x32xf32>
    %290 = tpu.matmul %289, %277, %cst_117 {dimension_numbers = #tpu.dot_dimension_numbers<[1], [0], [0], [1], [0, 0, 1, 1], [], []>} : vector<8x8xf32>, vector<8x32xf32>, vector<8x32xf32> -> vector<8x32xf32>
    %c8_118 = arith.constant 8 : index
    %c0_119 = arith.constant 0 : index
    %291 = vector.load %arg20[%c8_118, %c0_119] : memref<16x128xf32, #tpu.memory_space<vmem>>, vector<8x32xf32>
    tpu.vector_store %arg20[%c8_118, %c0_119], %290 {strides = array<i32>} : memref<16x128xf32, #tpu.memory_space<vmem>>, vector<8x32xf32>,
    %292 = vector.extract_strided_slice %204 {offsets = [8, 32], sizes = [8, 32], strides = [1, 1]} : vector<16x128xf32> to vector<8x32xf32>
    %293 = vector.extract_strided_slice %205 {offsets = [8, 32], sizes = [8, 32], strides = [1, 1]} : vector<16x128xf32> to vector<8x32xf32>
    %294 = vector.extract_strided_slice %206 {offsets = [8, 32], sizes = [8, 32], strides = [1, 1]} : vector<16x128xf32> to vector<8x32xf32>
    %cst_120 = arith.constant dense<0.000000e+00> : vector<8x8xf32>
    %295 = tpu.matmul %292, %293, %cst_120 {dimension_numbers = #tpu.dot_dimension_numbers<[1], [1], [0], [0], [0, 0, 1, 0], [], []>} : vector<8x32xf32>, vector<8x32xf32>, vector<8x8xf32> -> vector<8x8xf32>
    %cst_121 = arith.constant 0.176776692 : f32
    %296 = vector.broadcast %cst_121 : f32 to vector<8x8xf32>
    %297 = arith.mulf %295, %296 : vector<8x8xf32>
    %cst_122 = arith.constant dense<0xFF800000> : vector<8xf32>
    %298 = vector.multi_reduction <maximumf>, %297, %cst_122 [1] : vector<8x8xf32> to vector<8xf32>
    %299 = vector.shape_cast %298 : vector<8xf32> to vector<8x1xf32>
    %300 = vector.broadcast %299 : vector<8x1xf32> to vector<8x8xf32>
    %301 = arith.subf %297, %300 : vector<8x8xf32>
    %302 = math.exp %301 : vector<8x8xf32>
    %cst_123 = arith.constant dense<0.000000e+00> : vector<8xf32>
    %303 = vector.multi_reduction <add>, %302, %cst_123 [1] : vector<8x8xf32> to vector<8xf32>
    %304 = vector.shape_cast %303 : vector<8xf32> to vector<8x1xf32>
    %305 = vector.broadcast %304 : vector<8x1xf32> to vector<8x8xf32>
    %306 = arith.divf %302, %305 : vector<8x8xf32>
    %cst_124 = arith.constant dense<0.000000e+00> : vector<8x32xf32>
    %307 = tpu.matmul %306, %294, %cst_124 {dimension_numbers = #tpu.dot_dimension_numbers<[1], [0], [0], [1], [0, 0, 1, 1], [], []>} : vector<8x8xf32>, vector<8x32xf32>, vector<8x32xf32> -> vector<8x32xf32>
    %c8_125 = arith.constant 8 : index
    %c32_126 = arith.constant 32 : index
    %308 = vector.load %arg20[%c8_125, %c32_126] : memref<16x128xf32, #tpu.memory_space<vmem>>, vector<8x32xf32>
    tpu.vector_store %arg20[%c8_125, %c32_126], %307 {strides = array<i32>} : memref<16x128xf32, #tpu.memory_space<vmem>>, vector<8x32xf32>,
    %309 = vector.extract_strided_slice %204 {offsets = [8, 64], sizes = [8, 32], strides = [1, 1]} : vector<16x128xf32> to vector<8x32xf32>
    %310 = vector.extract_strided_slice %205 {offsets = [8, 64], sizes = [8, 32], strides = [1, 1]} : vector<16x128xf32> to vector<8x32xf32>
    %311 = vector.extract_strided_slice %206 {offsets = [8, 64], sizes = [8, 32], strides = [1, 1]} : vector<16x128xf32> to vector<8x32xf32>
    %cst_127 = arith.constant dense<0.000000e+00> : vector<8x8xf32>
    %312 = tpu.matmul %309, %310, %cst_127 {dimension_numbers = #tpu.dot_dimension_numbers<[1], [1], [0], [0], [0, 0, 1, 0], [], []>} : vector<8x32xf32>, vector<8x32xf32>, vector<8x8xf32> -> vector<8x8xf32>
    %cst_128 = arith.constant 0.176776692 : f32
    %313 = vector.broadcast %cst_128 : f32 to vector<8x8xf32>
    %314 = arith.mulf %312, %313 : vector<8x8xf32>
    %cst_129 = arith.constant dense<0xFF800000> : vector<8xf32>
    %315 = vector.multi_reduction <maximumf>, %314, %cst_129 [1] : vector<8x8xf32> to vector<8xf32>
    %316 = vector.shape_cast %315 : vector<8xf32> to vector<8x1xf32>
    %317 = vector.broadcast %316 : vector<8x1xf32> to vector<8x8xf32>
    %318 = arith.subf %314, %317 : vector<8x8xf32>
    %319 = math.exp %318 : vector<8x8xf32>
    %cst_130 = arith.constant dense<0.000000e+00> : vector<8xf32>
    %320 = vector.multi_reduction <add>, %319, %cst_130 [1] : vector<8x8xf32> to vector<8xf32>
    %321 = vector.shape_cast %320 : vector<8xf32> to vector<8x1xf32>
    %322 = vector.broadcast %321 : vector<8x1xf32> to vector<8x8xf32>
    %323 = arith.divf %319, %322 : vector<8x8xf32>
    %cst_131 = arith.constant dense<0.000000e+00> : vector<8x32xf32>
    %324 = tpu.matmul %323, %311, %cst_131 {dimension_numbers = #tpu.dot_dimension_numbers<[1], [0], [0], [1], [0, 0, 1, 1], [], []>} : vector<8x8xf32>, vector<8x32xf32>, vector<8x32xf32> -> vector<8x32xf32>
    %c8_132 = arith.constant 8 : index
    %c64_133 = arith.constant 64 : index
    %325 = vector.load %arg20[%c8_132, %c64_133] : memref<16x128xf32, #tpu.memory_space<vmem>>, vector<8x32xf32>
    tpu.vector_store %arg20[%c8_132, %c64_133], %324 {strides = array<i32>} : memref<16x128xf32, #tpu.memory_space<vmem>>, vector<8x32xf32>,
    %326 = vector.extract_strided_slice %204 {offsets = [8, 96], sizes = [8, 32], strides = [1, 1]} : vector<16x128xf32> to vector<8x32xf32>
    %327 = vector.extract_strided_slice %205 {offsets = [8, 96], sizes = [8, 32], strides = [1, 1]} : vector<16x128xf32> to vector<8x32xf32>
    %328 = vector.extract_strided_slice %206 {offsets = [8, 96], sizes = [8, 32], strides = [1, 1]} : vector<16x128xf32> to vector<8x32xf32>
    %cst_134 = arith.constant dense<0.000000e+00> : vector<8x8xf32>
    %329 = tpu.matmul %326, %327, %cst_134 {dimension_numbers = #tpu.dot_dimension_numbers<[1], [1], [0], [0], [0, 0, 1, 0], [], []>} : vector<8x32xf32>, vector<8x32xf32>, vector<8x8xf32> -> vector<8x8xf32>
    %cst_135 = arith.constant 0.176776692 : f32
    %330 = vector.broadcast %cst_135 : f32 to vector<8x8xf32>
    %331 = arith.mulf %329, %330 : vector<8x8xf32>
    %cst_136 = arith.constant dense<0xFF800000> : vector<8xf32>
    %332 = vector.multi_reduction <maximumf>, %331, %cst_136 [1] : vector<8x8xf32> to vector<8xf32>
    %333 = vector.shape_cast %332 : vector<8xf32> to vector<8x1xf32>
    %334 = vector.broadcast %333 : vector<8x1xf32> to vector<8x8xf32>
    %335 = arith.subf %331, %334 : vector<8x8xf32>
    %336 = math.exp %335 : vector<8x8xf32>
    %cst_137 = arith.constant dense<0.000000e+00> : vector<8xf32>
    %337 = vector.multi_reduction <add>, %336, %cst_137 [1] : vector<8x8xf32> to vector<8xf32>
    %338 = vector.shape_cast %337 : vector<8xf32> to vector<8x1xf32>
    %339 = vector.broadcast %338 : vector<8x1xf32> to vector<8x8xf32>
    %340 = arith.divf %336, %339 : vector<8x8xf32>
    %cst_138 = arith.constant dense<0.000000e+00> : vector<8x32xf32>
    %341 = tpu.matmul %340, %328, %cst_138 {dimension_numbers = #tpu.dot_dimension_numbers<[1], [0], [0], [1], [0, 0, 1, 1], [], []>} : vector<8x8xf32>, vector<8x32xf32>, vector<8x32xf32> -> vector<8x32xf32>
    %c8_139 = arith.constant 8 : index
    %c96_140 = arith.constant 96 : index
    %342 = vector.load %arg20[%c8_139, %c96_140] : memref<16x128xf32, #tpu.memory_space<vmem>>, vector<8x32xf32>
    tpu.vector_store %arg20[%c8_139, %c96_140], %341 {strides = array<i32>} : memref<16x128xf32, #tpu.memory_space<vmem>>, vector<8x32xf32>,
    %c0_141 = arith.constant 0 : index
    %c0_142 = arith.constant 0 : index
    %343 = vector.load %arg20[%c0_141, %c0_142] : memref<16x128xf32, #tpu.memory_space<vmem>>, vector<16x128xf32>
    %c0_143 = arith.constant 0 : index
    %c0_144 = arith.constant 0 : index
    %344 = vector.load %arg13[%c0_143, %c0_144] : memref<128x128xf32, #tpu.memory_space<vmem>>, vector<128x128xf32>
    %cst_145 = arith.constant dense<0.000000e+00> : vector<16x128xf32>
    %345 = tpu.matmul %343, %344, %cst_145 {dimension_numbers = #tpu.dot_dimension_numbers<[1], [0], [0], [1], [0, 0, 1, 1], [], []>} : vector<16x128xf32>, vector<128x128xf32>, vector<16x128xf32> -> vector<16x128xf32>
    %346 = arith.addf %176, %345 : vector<16x128xf32>
    %c0_146 = arith.constant 0 : index
    %c0_147 = arith.constant 0 : index
    %347 = vector.load %arg14[%c0_146, %c0_147] : memref<1x128xf32, #tpu.memory_space<vmem>>, vector<1x128xf32>
    %348 = vector.broadcast %347 : vector<1x128xf32> to vector<16x128xf32>
    %349 = arith.addf %346, %348 : vector<16x128xf32>
    %c0_148 = arith.constant 0 : index
    %c0_149 = arith.constant 0 : index
    %350 = vector.load %arg7[%c0_148, %c0_149] : memref<1x128xf32, #tpu.memory_space<vmem>>, vector<1x128xf32>
    %c0_150 = arith.constant 0 : index
    %c0_151 = arith.constant 0 : index
    %351 = vector.load %arg8[%c0_150, %c0_151] : memref<1x128xf32, #tpu.memory_space<vmem>>, vector<1x128xf32>
    %cst_152 = arith.constant dense<0.000000e+00> : vector<16xf32>
    %352 = vector.multi_reduction <add>, %349, %cst_152 [1] : vector<16x128xf32> to vector<16xf32>
    %353 = vector.shape_cast %352 : vector<16xf32> to vector<16x1xf32>
    %cst_153 = arith.constant 1.280000e+02 : f32
    %354 = vector.broadcast %cst_153 : f32 to vector<16x1xf32>
    %355 = arith.divf %353, %354 : vector<16x1xf32>
    %356 = vector.broadcast %355 : vector<16x1xf32> to vector<16x128xf32>
    %357 = arith.subf %349, %356 : vector<16x128xf32>
    %358 = arith.mulf %357, %357 : vector<16x128xf32>
    %cst_154 = arith.constant dense<0.000000e+00> : vector<16xf32>
    %359 = vector.multi_reduction <add>, %358, %cst_154 [1] : vector<16x128xf32> to vector<16xf32>
    %360 = vector.shape_cast %359 : vector<16xf32> to vector<16x1xf32>
    %cst_155 = arith.constant 1.280000e+02 : f32
    %361 = vector.broadcast %cst_155 : f32 to vector<16x1xf32>
    %362 = arith.divf %360, %361 : vector<16x1xf32>
    %cst_156 = arith.constant 9.99999974E-6 : f32
    %363 = vector.broadcast %cst_156 : f32 to vector<16x1xf32>
    %364 = arith.addf %362, %363 : vector<16x1xf32>
    %365 = math.rsqrt %364 : vector<16x1xf32>
    %366 = vector.broadcast %365 : vector<16x1xf32> to vector<16x128xf32>
    %367 = arith.mulf %357, %366 : vector<16x128xf32>
    %368 = vector.broadcast %350 : vector<1x128xf32> to vector<16x128xf32>
    %369 = arith.mulf %367, %368 : vector<16x128xf32>
    %370 = vector.broadcast %351 : vector<1x128xf32> to vector<16x128xf32>
    %371 = arith.addf %369, %370 : vector<16x128xf32>
    %c0_157 = arith.constant 0 : index
    %c0_158 = arith.constant 0 : index
    %372 = vector.load %arg15[%c0_157, %c0_158] : memref<128x384xf32, #tpu.memory_space<vmem>>, vector<128x384xf32>
    %cst_159 = arith.constant dense<0.000000e+00> : vector<16x384xf32>
    %373 = tpu.matmul %371, %372, %cst_159 {dimension_numbers = #tpu.dot_dimension_numbers<[1], [0], [0], [1], [0, 0, 1, 1], [], []>} : vector<16x128xf32>, vector<128x384xf32>, vector<16x384xf32> -> vector<16x384xf32>
    %c0_160 = arith.constant 0 : index
    %c0_161 = arith.constant 0 : index
    %374 = vector.load %arg16[%c0_160, %c0_161] : memref<1x384xf32, #tpu.memory_space<vmem>>, vector<1x384xf32>
    %375 = vector.broadcast %374 : vector<1x384xf32> to vector<16x384xf32>
    %376 = arith.addf %373, %375 : vector<16x384xf32>
    %cst_162 = arith.constant 5.000000e-01 : f32
    %377 = vector.broadcast %cst_162 : f32 to vector<16x384xf32>
    %378 = arith.mulf %377, %376 : vector<16x384xf32>
    %cst_163 = arith.constant 0.707106769 : f32
    %379 = vector.broadcast %cst_163 : f32 to vector<16x384xf32>
    %380 = arith.mulf %376, %379 : vector<16x384xf32>
    %381 = math.absf %380 : vector<16x384xf32>
    %cst_164 = arith.constant 0.327591091 : f32
    %382 = vector.broadcast %cst_164 : f32 to vector<16x384xf32>
    %383 = arith.mulf %382, %381 : vector<16x384xf32>
    %cst_165 = arith.constant 1.000000e+00 : f32
    %384 = vector.broadcast %cst_165 : f32 to vector<16x384xf32>
    %385 = arith.addf %384, %383 : vector<16x384xf32>
    %cst_166 = arith.constant 1.000000e+00 : f32
    %386 = vector.broadcast %cst_166 : f32 to vector<16x384xf32>
    %387 = arith.divf %386, %385 : vector<16x384xf32>
    %cst_167 = arith.constant 1.06140542 : f32
    %388 = vector.broadcast %cst_167 : f32 to vector<16x384xf32>
    %389 = arith.mulf %388, %387 : vector<16x384xf32>
    %cst_168 = arith.constant -1.45315206 : f32
    %390 = vector.broadcast %cst_168 : f32 to vector<16x384xf32>
    %391 = arith.addf %389, %390 : vector<16x384xf32>
    %392 = arith.mulf %391, %387 : vector<16x384xf32>
    %cst_169 = arith.constant 1.42141378 : f32
    %393 = vector.broadcast %cst_169 : f32 to vector<16x384xf32>
    %394 = arith.addf %392, %393 : vector<16x384xf32>
    %395 = arith.mulf %394, %387 : vector<16x384xf32>
    %cst_170 = arith.constant -0.284496725 : f32
    %396 = vector.broadcast %cst_170 : f32 to vector<16x384xf32>
    %397 = arith.addf %395, %396 : vector<16x384xf32>
    %398 = arith.mulf %397, %387 : vector<16x384xf32>
    %cst_171 = arith.constant 0.254829586 : f32
    %399 = vector.broadcast %cst_171 : f32 to vector<16x384xf32>
    %400 = arith.addf %398, %399 : vector<16x384xf32>
    %401 = arith.mulf %400, %387 : vector<16x384xf32>
    %cst_172 = arith.constant 0.000000e+00 : f32
    %402 = vector.broadcast %cst_172 : f32 to vector<16x384xf32>
    %403 = arith.subf %402, %381 : vector<16x384xf32>
    %404 = arith.mulf %403, %381 : vector<16x384xf32>
    %405 = math.exp %404 : vector<16x384xf32>
    %406 = arith.mulf %401, %405 : vector<16x384xf32>
    %cst_173 = arith.constant 1.000000e+00 : f32
    %407 = vector.broadcast %cst_173 : f32 to vector<16x384xf32>
    %408 = arith.subf %407, %406 : vector<16x384xf32>
    %cst_174 = arith.constant 0.000000e+00 : f32
    %409 = vector.broadcast %cst_174 : f32 to vector<16x384xf32>
    %410 = arith.cmpf oge, %380, %409 : vector<16x384xf32>
    %cst_175 = arith.constant 0.000000e+00 : f32
    %411 = vector.broadcast %cst_175 : f32 to vector<16x384xf32>
    %412 = arith.subf %411, %408 : vector<16x384xf32>
    %413 = arith.select %410, %408, %412 : vector<16x384xi1>, vector<16x384xf32>
    %cst_176 = arith.constant 1.000000e+00 : f32
    %414 = vector.broadcast %cst_176 : f32 to vector<16x384xf32>
    %415 = arith.addf %414, %413 : vector<16x384xf32>
    %416 = arith.mulf %378, %415 : vector<16x384xf32>
    %c0_177 = arith.constant 0 : index
    %c0_178 = arith.constant 0 : index
    %417 = vector.load %arg17[%c0_177, %c0_178] : memref<384x128xf32, #tpu.memory_space<vmem>>, vector<384x128xf32>
    %cst_179 = arith.constant dense<0.000000e+00> : vector<16x128xf32>
    %418 = tpu.matmul %416, %417, %cst_179 {dimension_numbers = #tpu.dot_dimension_numbers<[1], [0], [0], [1], [0, 0, 1, 1], [], []>} : vector<16x384xf32>, vector<384x128xf32>, vector<16x128xf32> -> vector<16x128xf32>
    %419 = arith.addf %349, %418 : vector<16x128xf32>
    %c0_180 = arith.constant 0 : index
    %c0_181 = arith.constant 0 : index
    %420 = vector.load %arg18[%c0_180, %c0_181] : memref<1x128xf32, #tpu.memory_space<vmem>>, vector<1x128xf32>
    %421 = vector.broadcast %420 : vector<1x128xf32> to vector<16x128xf32>
    %422 = arith.addf %419, %421 : vector<16x128xf32>
    %c0_182 = arith.constant 0 : index
    %c0_183 = arith.constant 0 : index
    %423 = vector.load %arg19[%c0_182, %c0_183] : memref<16x128xf32, #tpu.memory_space<vmem>>, vector<16x128xf32>
    tpu.vector_store %arg19[%c0_182, %c0_183], %422 {strides = array<i32>} : memref<16x128xf32, #tpu.memory_space<vmem>>, vector<16x128xf32>,
    return
  }
  func.func @transform_0(%arg0: i32) -> (i32, i32) {
    %c0_i32 = arith.constant 0 : i32
    %c0_i32_0 = arith.constant 0 : i32
    return %arg0, %c0_i32 : i32, i32
  }
  func.func @transform_1(%arg0: i32) -> (i32, i32) {
    %c0_i32 = arith.constant 0 : i32
    %c0_i32_0 = arith.constant 0 : i32
    %c0_i32_1 = arith.constant 0 : i32
    return %c0_i32, %c0_i32_0 : i32, i32
  }
  func.func @transform_2(%arg0: i32) -> (i32, i32) {
    %c0_i32 = arith.constant 0 : i32
    %c0_i32_0 = arith.constant 0 : i32
    %c0_i32_1 = arith.constant 0 : i32
    return %c0_i32, %c0_i32_0 : i32, i32
  }
  func.func @transform_3(%arg0: i32) -> (i32, i32) {
    %c0_i32 = arith.constant 0 : i32
    %c0_i32_0 = arith.constant 0 : i32
    %c0_i32_1 = arith.constant 0 : i32
    return %c0_i32, %c0_i32_0 : i32, i32
  }
  func.func @transform_4(%arg0: i32) -> (i32, i32) {
    %c0_i32 = arith.constant 0 : i32
    %c0_i32_0 = arith.constant 0 : i32
    %c0_i32_1 = arith.constant 0 : i32
    return %c0_i32, %c0_i32_0 : i32, i32
  }
  func.func @transform_5(%arg0: i32) -> (i32, i32) {
    %c0_i32 = arith.constant 0 : i32
    %c0_i32_0 = arith.constant 0 : i32
    %c0_i32_1 = arith.constant 0 : i32
    return %c0_i32, %c0_i32_0 : i32, i32
  }
  func.func @transform_6(%arg0: i32) -> (i32, i32) {
    %c0_i32 = arith.constant 0 : i32
    %c0_i32_0 = arith.constant 0 : i32
    %c0_i32_1 = arith.constant 0 : i32
    return %c0_i32, %c0_i32_0 : i32, i32
  }
  func.func @transform_7(%arg0: i32) -> (i32, i32) {
    %c0_i32 = arith.constant 0 : i32
    %c0_i32_0 = arith.constant 0 : i32
    %c0_i32_1 = arith.constant 0 : i32
    return %c0_i32, %c0_i32_0 : i32, i32
  }
  func.func @transform_8(%arg0: i32) -> (i32, i32) {
    %c0_i32 = arith.constant 0 : i32
    %c0_i32_0 = arith.constant 0 : i32
    %c0_i32_1 = arith.constant 0 : i32
    return %c0_i32, %c0_i32_0 : i32, i32
  }
  func.func @transform_9(%arg0: i32) -> (i32, i32) {
    %c0_i32 = arith.constant 0 : i32
    %c0_i32_0 = arith.constant 0 : i32
    %c0_i32_1 = arith.constant 0 : i32
    return %c0_i32, %c0_i32_0 : i32, i32
  }
  func.func @transform_10(%arg0: i32) -> (i32, i32) {
    %c0_i32 = arith.constant 0 : i32
    %c0_i32_0 = arith.constant 0 : i32
    %c0_i32_1 = arith.constant 0 : i32
    return %c0_i32, %c0_i32_0 : i32, i32
  }
  func.func @transform_11(%arg0: i32) -> (i32, i32) {
    %c0_i32 = arith.constant 0 : i32
    %c0_i32_0 = arith.constant 0 : i32
    %c0_i32_1 = arith.constant 0 : i32
    return %c0_i32, %c0_i32_0 : i32, i32
  }
  func.func @transform_12(%arg0: i32) -> (i32, i32) {
    %c0_i32 = arith.constant 0 : i32
    %c0_i32_0 = arith.constant 0 : i32
    %c0_i32_1 = arith.constant 0 : i32
    return %c0_i32, %c0_i32_0 : i32, i32
  }
  func.func @transform_13(%arg0: i32) -> (i32, i32) {
    %c0_i32 = arith.constant 0 : i32
    %c0_i32_0 = arith.constant 0 : i32
    %c0_i32_1 = arith.constant 0 : i32
    return %c0_i32, %c0_i32_0 : i32, i32
  }
  func.func @transform_14(%arg0: i32) -> (i32, i32) {
    %c0_i32 = arith.constant 0 : i32
    %c0_i32_0 = arith.constant 0 : i32
    %c0_i32_1 = arith.constant 0 : i32
    return %c0_i32, %c0_i32_0 : i32, i32
  }
  func.func @transform_15(%arg0: i32) -> (i32, i32) {
    %c0_i32 = arith.constant 0 : i32
    %c0_i32_0 = arith.constant 0 : i32
    %c0_i32_1 = arith.constant 0 : i32
    return %c0_i32, %c0_i32_0 : i32, i32
  }
  func.func @transform_16(%arg0: i32) -> (i32, i32) {
    %c0_i32 = arith.constant 0 : i32
    %c0_i32_0 = arith.constant 0 : i32
    %c0_i32_1 = arith.constant 0 : i32
    return %c0_i32, %c0_i32_0 : i32, i32
  }
  func.func @transform_17(%arg0: i32) -> (i32, i32) {
    %c0_i32 = arith.constant 0 : i32
    %c0_i32_0 = arith.constant 0 : i32
    %c0_i32_1 = arith.constant 0 : i32
    return %c0_i32, %c0_i32_0 : i32, i32
  }
  func.func @transform_18(%arg0: i32) -> (i32, i32) {
    %c0_i32 = arith.constant 0 : i32
    %c0_i32_0 = arith.constant 0 : i32
    return %arg0, %c0_i32 : i32, i32
  }
}

</mosaic_0001>

<llo_original>
// kernel: tpu_custom_call.1
$region0: #{tpu_custom_call.1}
  #allocation0 [shape = 'u32[]', space=smem, size = 0x4, offset = 0x4, fixed_abs, tag = 'smem constant byte address 0x4 - core index']
  #allocation1 [shape = 'u32[144,128]{1,0:T(1,128)}', space=vmem, size = 0x12000, scoped, tag = 'internal scratch']
  #allocation2 [shape = 'f32[16,128]{1,0:T(8,128)}', space=vmem, size = 0x2000, scoped, tag = 'scratch operand']
  %s0 = inlined_call_operand.hbm [shape: f32[16,128], index: 0, kind: input, shape index: {}]
  %s1 = inlined_call_operand.hbm [shape: f32[8,8], index: 1, kind: input, shape index: {}]
  %s2 = inlined_call_operand.vmem [shape: f32[1,128], index: 2, kind: input, shape index: {}]
  %s3 = inlined_call_operand.vmem [shape: f32[1,128], index: 3, kind: input, shape index: {}]
  %s4 = inlined_call_operand.vmem [shape: f32[1,128], index: 4, kind: input, shape index: {}]
  %s5 = inlined_call_operand.vmem [shape: f32[1,128], index: 5, kind: input, shape index: {}]
  %s6 = inlined_call_operand.vmem [shape: f32[1,128], index: 6, kind: input, shape index: {}]
  %s7 = inlined_call_operand.vmem [shape: f32[1,128], index: 7, kind: input, shape index: {}]
  %s8 = inlined_call_operand.hbm [shape: f32[128,384], index: 8, kind: input, shape index: {}]
  %s9 = inlined_call_operand.hbm [shape: f32[128,128], index: 9, kind: input, shape index: {}]
  %s10 = inlined_call_operand.hbm [shape: f32[128,384], index: 10, kind: input, shape index: {}]
  %s11 = inlined_call_operand.vmem [shape: f32[1,384], index: 11, kind: input, shape index: {}]
  %s12 = inlined_call_operand.hbm [shape: f32[128,128], index: 12, kind: input, shape index: {}]
  %s13 = inlined_call_operand.vmem [shape: f32[1,128], index: 13, kind: input, shape index: {}]
  %s14 = inlined_call_operand.hbm [shape: f32[128,384], index: 14, kind: input, shape index: {}]
  %s15 = inlined_call_operand.vmem [shape: f32[1,384], index: 15, kind: input, shape index: {}]
  %s16 = inlined_call_operand.hbm [shape: f32[384,128], index: 16, kind: input, shape index: {}]
  %s17 = inlined_call_operand.vmem [shape: f32[1,128], index: 17, kind: input, shape index: {}]
  %s18 = inlined_call_operand.hbm [shape: f32[16,128], index: 18, kind: output, shape index: {}]
  %s19 = sld [smem:[#allocation0]]
  $region114: #{tpu_custom_call.1} parent=0
    _
  %s21 = ssub.s32 1, %s19
  %s22 = scalar_select 0, %s21, %s19
  $region1: #{tpu_custom_call.1} parent=0
    #allocation3 [shape = 'u8[8192]{0}', space=vmem, size = 0x2000, scoped, tag = 'input window, operand 0, single buffered']
    #allocation4 [shape = 's32[1]{0}', space=sflag, size = 0x4, scoped, tag = 'scoped memory for tpu_custom_call.1']
    #allocation5 [shape = 's32[1]{0}', space=sflag, size = 0x4, scoped, tag = 'scoped memory for tpu_custom_call.1']
    #allocation6 [shape = 'u8[4096]{0}', space=vmem, size = 0x1000, scoped, tag = 'input window, operand 1, single buffered']
    #allocation7 [shape = 's32[1]{0}', space=sflag, size = 0x4, scoped, tag = 'scoped memory for tpu_custom_call.1']
    #allocation8 [shape = 'u8[196608]{0}', space=vmem, size = 0x30000, scoped, tag = 'input window, operand 8, single buffered']
    #allocation9 [shape = 'u8[65536]{0}', space=vmem, size = 0x10000, scoped, tag = 'input window, operand 9, single buffered']
    #allocation10 [shape = 's32[1]{0}', space=sflag, size = 0x4, scoped, tag = 'scoped memory for tpu_custom_call.1']
    #allocation11 [shape = 'u8[196608]{0}', space=vmem, size = 0x30000, scoped, tag = 'input window, operand 10, single buffered']
    #allocation12 [shape = 'u8[65536]{0}', space=vmem, size = 0x10000, scoped, tag = 'input window, operand 12, single buffered']
    #allocation13 [shape = 's32[1]{0}', space=sflag, size = 0x4, scoped, tag = 'scoped memory for tpu_custom_call.1']
    #allocation14 [shape = 'u8[196608]{0}', space=vmem, size = 0x30000, scoped, tag = 'input window, operand 14, single buffered']
    #allocation15 [shape = 'u8[196608]{0}', space=vmem, size = 0x30000, scoped, tag = 'input window, operand 16, single buffered']
    #allocation16 [shape = 's32[1]{0}', space=sflag, size = 0x4, scoped, tag = 'scoped memory for tpu_custom_call.1']
    #allocation17 [shape = 'u8[8192]{0}', space=vmem, size = 0x2000, scoped, tag = 'output window, operand 0, single buffered']
    %23 = vsyncpa [#allocation4], 0
    %24 = vsyncpa [#allocation7], 0
    %25 = vsyncpa [#allocation10], 0
    %26 = vsyncpa [#allocation13], 0
    %27 = vsyncpa [#allocation16], 0
    %28 = vsyncpa [#allocation5], 0
    // Predicated region
    $region2: #{tpu_custom_call.1} parent=1 // pred_check
      _
    $region3: #{tpu_custom_call.1} parent=1 // pred_check_branch
      %30 = sbr.rel (0) target = $region5
    $region4: #{tpu_custom_call.1} parent=1 // pred_region
      %s32 = ssub.s32 256, 256
      %33 = vsyncadd [#allocation4], %s32
      %s34 = sshll.u32 [#allocation3], 4
      %s35 = int_to_ptr.vmem [resolvable:$true] %s34
      %40 = dma.hbm_to_vmem [thread:$0]  %s0, 256, %s35, [#allocation4], 128, 128, 8
    $region5: #{tpu_custom_call.1} parent=1 // pred_fallthru
      _
    // Predicated region
    $region6: #{tpu_custom_call.1} parent=1 // pred_check
      _
    $region7: #{tpu_custom_call.1} parent=1 // pred_check_branch
      %42 = sbr.rel (0) target = $region9
    $region8: #{tpu_custom_call.1} parent=1 // pred_region
      %s44 = ssub.s32 128, 128
      %45 = vsyncadd [#allocation7], %s44
      %s47 = sshll.u32 [#allocation6], 4
      %s48 = int_to_ptr.vmem [resolvable:$true] %s47
      %50 = dma.hbm_to_vmem [thread:$0]  %s1, 128, %s48, [#allocation7]
    $region9: #{tpu_custom_call.1} parent=1 // pred_fallthru
      _
    // Predicated region
    $region10: #{tpu_custom_call.1} parent=1 // pred_check
      _
    $region11: #{tpu_custom_call.1} parent=1 // pred_check_branch
      %52 = sbr.rel (0) target = $region13
    $region12: #{tpu_custom_call.1} parent=1 // pred_region
      _
    $region13: #{tpu_custom_call.1} parent=1 // pred_fallthru
      _
    // Predicated region
    $region14: #{tpu_custom_call.1} parent=1 // pred_check
      _
    $region15: #{tpu_custom_call.1} parent=1 // pred_check_branch
      %54 = sbr.rel (0) target = $region17
    $region16: #{tpu_custom_call.1} parent=1 // pred_region
      _
    $region17: #{tpu_custom_call.1} parent=1 // pred_fallthru
      _
    // Predicated region
    $region18: #{tpu_custom_call.1} parent=1 // pred_check
      _
    $region19: #{tpu_custom_call.1} parent=1 // pred_check_branch
      %56 = sbr.rel (0) target = $region21
    $region20: #{tpu_custom_call.1} parent=1 // pred_region
      _
    $region21: #{tpu_custom_call.1} parent=1 // pred_fallthru
      _
    // Predicated region
    $region22: #{tpu_custom_call.1} parent=1 // pred_check
      _
    $region23: #{tpu_custom_call.1} parent=1 // pred_check_branch
      %58 = sbr.rel (0) target = $region25
    $region24: #{tpu_custom_call.1} parent=1 // pred_region
      _
    $region25: #{tpu_custom_call.1} parent=1 // pred_fallthru
      _
    // Predicated region
    $region26: #{tpu_custom_call.1} parent=1 // pred_check
      _
    $region27: #{tpu_custom_call.1} parent=1 // pred_check_branch
      %60 = sbr.rel (0) target = $region29
    $region28: #{tpu_custom_call.1} parent=1 // pred_region
      _
    $region29: #{tpu_custom_call.1} parent=1 // pred_fallthru
      _
    // Predicated region
    $region30: #{tpu_custom_call.1} parent=1 // pred_check
      _
    $region31: #{tpu_custom_call.1} parent=1 // pred_check_branch
      %62 = sbr.rel (0) target = $region33
    $region32: #{tpu_custom_call.1} parent=1 // pred_region
      _
    $region33: #{tpu_custom_call.1} parent=1 // pred_fallthru
      _
    // Predicated region
    $region34: #{tpu_custom_call.1} parent=1 // pred_check
      _
    $region35: #{tpu_custom_call.1} parent=1 // pred_check_branch
      %64 = sbr.rel (0) target = $region37
    $region36: #{tpu_custom_call.1} parent=1 // pred_region
      %s66 = ssub.s32 6144, 6144
      %67 = vsyncadd [#allocation7], %s66
      %s68 = sshll.u32 [#allocation8], 4
      %s69 = int_to_ptr.vmem [resolvable:$true] %s68
      %74 = dma.hbm_to_vmem [thread:$0]  %s8, 6144, %s69, [#allocation7], 384, 384, 24
    $region37: #{tpu_custom_call.1} parent=1 // pred_fallthru
      _
    // Predicated region
    $region38: #{tpu_custom_call.1} parent=1 // pred_check
      _
    $region39: #{tpu_custom_call.1} parent=1 // pred_check_branch
      %76 = sbr.rel (0) target = $region41
    $region40: #{tpu_custom_call.1} parent=1 // pred_region
      %s78 = ssub.s32 2048, 2048
      %79 = vsyncadd [#allocation10], %s78
      %s80 = sshll.u32 [#allocation9], 4
      %s81 = int_to_ptr.vmem [resolvable:$true] %s80
      %86 = dma.hbm_to_vmem [thread:$0]  %s9, 2048, %s81, [#allocation10], 128, 128, 8
    $region41: #{tpu_custom_call.1} parent=1 // pred_fallthru
      _
    // Predicated region
    $region42: #{tpu_custom_call.1} parent=1 // pred_check
      _
    $region43: #{tpu_custom_call.1} parent=1 // pred_check_branch
      %88 = sbr.rel (0) target = $region45
    $region44: #{tpu_custom_call.1} parent=1 // pred_region
      %s90 = ssub.s32 6144, 6144
      %91 = vsyncadd [#allocation10], %s90
      %s92 = sshll.u32 [#allocation11], 4
      %s93 = int_to_ptr.vmem [resolvable:$true] %s92
      %98 = dma.hbm_to_vmem [thread:$0]  %s10, 6144, %s93, [#allocation10], 384, 384, 24
    $region45: #{tpu_custom_call.1} parent=1 // pred_fallthru
      _
    // Predicated region
    $region46: #{tpu_custom_call.1} parent=1 // pred_check
      _
    $region47: #{tpu_custom_call.1} parent=1 // pred_check_branch
      %100 = sbr.rel (0) target = $region49
    $region48: #{tpu_custom_call.1} parent=1 // pred_region
      _
    $region49: #{tpu_custom_call.1} parent=1 // pred_fallthru
      _
    // Predicated region
    $region50: #{tpu_custom_call.1} parent=1 // pred_check
      _
    $region51: #{tpu_custom_call.1} parent=1 // pred_check_branch
      %102 = sbr.rel (0) target = $region53
    $region52: #{tpu_custom_call.1} parent=1 // pred_region
      %s104 = ssub.s32 2048, 2048
      %105 = vsyncadd [#allocation13], %s104
      %s106 = sshll.u32 [#allocation12], 4
      %s107 = int_to_ptr.vmem [resolvable:$true] %s106
      %112 = dma.hbm_to_vmem [thread:$0]  %s12, 2048, %s107, [#allocation13], 128, 128, 8
    $region53: #{tpu_custom_call.1} parent=1 // pred_fallthru
      _
    // Predicated region
    $region54: #{tpu_custom_call.1} parent=1 // pred_check
      _
    $region55: #{tpu_custom_call.1} parent=1 // pred_check_branch
      %114 = sbr.rel (0) target = $region57
    $region56: #{tpu_custom_call.1} parent=1 // pred_region
      _
    $region57: #{tpu_custom_call.1} parent=1 // pred_fallthru
      _
    // Predicated region
    $region58: #{tpu_custom_call.1} parent=1 // pred_check
      _
    $region59: #{tpu_custom_call.1} parent=1 // pred_check_branch
      %116 = sbr.rel (0) target = $region61
    $region60: #{tpu_custom_call.1} parent=1 // pred_region
      %s118 = ssub.s32 6144, 6144
      %119 = vsyncadd [#allocation13], %s118
      %s120 = sshll.u32 [#allocation14], 4
      %s121 = int_to_ptr.vmem [resolvable:$true] %s120
      %126 = dma.hbm_to_vmem [thread:$0]  %s14, 6144, %s121, [#allocation13], 384, 384, 24
    $region61: #{tpu_custom_call.1} parent=1 // pred_fallthru
      _
    // Predicated region
    $region62: #{tpu_custom_call.1} parent=1 // pred_check
      _
    $region63: #{tpu_custom_call.1} parent=1 // pred_check_branch
      %128 = sbr.rel (0) target = $region65
    $region64: #{tpu_custom_call.1} parent=1 // pred_region
      _
    $region65: #{tpu_custom_call.1} parent=1 // pred_fallthru
      _
    // Predicated region
    $region66: #{tpu_custom_call.1} parent=1 // pred_check
      _
    $region67: #{tpu_custom_call.1} parent=1 // pred_check_branch
      %130 = sbr.rel (0) target = $region69
    $region68: #{tpu_custom_call.1} parent=1 // pred_region
      %s132 = ssub.s32 6144, 6144
      %133 = vsyncadd [#allocation16], %s132
      %s134 = sshll.u32 [#allocation15], 4
      %s135 = int_to_ptr.vmem [resolvable:$true] %s134
      %140 = dma.hbm_to_vmem [thread:$0]  %s16, 6144, %s135, [#allocation16], 128, 128, 8
    $region69: #{tpu_custom_call.1} parent=1 // pred_fallthru
      _
    // Predicated region
    $region70: #{tpu_custom_call.1} parent=1 // pred_check
      _
    $region71: #{tpu_custom_call.1} parent=1 // pred_check_branch
      %142 = sbr.rel (0) target = $region73
    $region72: #{tpu_custom_call.1} parent=1 // pred_region
      _
    $region73: #{tpu_custom_call.1} parent=1 // pred_fallthru
      _
    // Predicated region
    $region74: #{tpu_custom_call.1} parent=1 // pred_check
      _
    $region75: #{tpu_custom_call.1} parent=1 // pred_check_branch
      %144 = sbr.rel (0) target = $region77
    $region76: #{tpu_custom_call.1} parent=1 // pred_region
      %145 = dma.done [#allocation4], 256
    $region77: #{tpu_custom_call.1} parent=1 // pred_fallthru
      _
    // Predicated region
    $region78: #{tpu_custom_call.1} parent=1 // pred_check
      _
    $region79: #{tpu_custom_call.1} parent=1 // pred_check_branch
      %147 = sbr.rel (0) target = $region81
    $region80: #{tpu_custom_call.1} parent=1 // pred_region
      %148 = dma.done [#allocation7], 128
    $region81: #{tpu_custom_call.1} parent=1 // pred_fallthru
      _
    // Predicated region
    $region82: #{tpu_custom_call.1} parent=1 // pred_check
      _
    $region83: #{tpu_custom_call.1} parent=1 // pred_check_branch
      %150 = sbr.rel (0) target = $region85
    $region84: #{tpu_custom_call.1} parent=1 // pred_region
      %151 = dma.done [#allocation7], 6144
    $region85: #{tpu_custom_call.1} parent=1 // pred_fallthru
      _
    // Predicated region
    $region86: #{tpu_custom_call.1} parent=1 // pred_check
      _
    $region87: #{tpu_custom_call.1} parent=1 // pred_check_branch
      %153 = sbr.rel (0) target = $region89
    $region88: #{tpu_custom_call.1} parent=1 // pred_region
      %154 = dma.done [#allocation10], 2048
    $region89: #{tpu_custom_call.1} parent=1 // pred_fallthru
      _
    // Predicated region
    $region90: #{tpu_custom_call.1} parent=1 // pred_check
      _
    $region91: #{tpu_custom_call.1} parent=1 // pred_check_branch
      %156 = sbr.rel (0) target = $region93
    $region92: #{tpu_custom_call.1} parent=1 // pred_region
      %157 = dma.done [#allocation10], 6144
    $region93: #{tpu_custom_call.1} parent=1 // pred_fallthru
      _
    // Predicated region
    $region94: #{tpu_custom_call.1} parent=1 // pred_check
      _
    $region95: #{tpu_custom_call.1} parent=1 // pred_check_branch
      %159 = sbr.rel (0) target = $region97
    $region96: #{tpu_custom_call.1} parent=1 // pred_region
      %160 = dma.done [#allocation13], 2048
    $region97: #{tpu_custom_call.1} parent=1 // pred_fallthru
      _
    // Predicated region
    $region98: #{tpu_custom_call.1} parent=1 // pred_check
      _
    $region99: #{tpu_custom_call.1} parent=1 // pred_check_branch
      %162 = sbr.rel (0) target = $region101
    $region100: #{tpu_custom_call.1} parent=1 // pred_region
      %163 = dma.done [#allocation13], 6144
    $region101: #{tpu_custom_call.1} parent=1 // pred_fallthru
      _
    // Predicated region
    $region102: #{tpu_custom_call.1} parent=1 // pred_check
      _
    $region103: #{tpu_custom_call.1} parent=1 // pred_check_branch
      %165 = sbr.rel (0) target = $region105
    $region104: #{tpu_custom_call.1} parent=1 // pred_region
      %166 = dma.done [#allocation16], 6144
    $region105: #{tpu_custom_call.1} parent=1 // pred_fallthru
      _
    %v167 = vld [vmem:[#allocation3] sm:$0xff]
    %v168 = vld [vmem:[#allocation3 + $0x8] sm:$0xff]
    %v169 = vld [vmem:[#allocation6] sm:$0xff]
    %v170 = vld [vmem:[%s2] sm:$0x1]
    %v171 = vld [vmem:[%s3] sm:$0x1]
    %172 = vadd.xlane.f32.xlu0 %v167
    %v173 = vpop.xlane.xlu0 %172
    %174 = vadd.xlane.f32.xlu0 %v168
    %v175 = vpop.xlane.xlu0 %174
    %v176 = vrcp.pop 128.0
    %v177 = vmul.f32 %v173, %v176
    %v178 = vmul.f32 %v175, %v176
    %v179 = vsub.f32 %v167, %v177
    %v180 = vsub.f32 %v168, %v178
    %v181 = vmul.f32 %v179, %v179
    %v182 = vmul.f32 %v180, %v180
    %183 = vadd.xlane.f32.xlu0 %v181
    %v184 = vpop.xlane.xlu0 %183
    %185 = vadd.xlane.f32.xlu0 %v182
    %v186 = vpop.xlane.xlu0 %185
    %v187 = vmul.f32 %v184, %v176
    %v188 = vmul.f32 %v186, %v176
    %v189 = vadd.f32 %v187, 1e-05
    %v190 = vadd.f32 %v188, 1e-05
    %v191 = vrsqrt.pop %v189
    %v192 = vrsqrt.pop %v190
    %v193 = vmul.f32 %v179, %v191
    %v194 = vmul.f32 %v180, %v192
    %v196 = vlaneseq
    %v197 = vshrl.u32 %v196, 7
    %v198 = vsub.s32 0, %v197
    %v199 = vrot.slane %v170, %v198
    %v201 = vmul.f32 %v193, %v199
    %v202 = vmul.f32 %v194, %v199
    %v204 = vlaneseq
    %v205 = vshrl.u32 %v204, 7
    %v206 = vsub.s32 0, %v205
    %v207 = vrot.slane %v171, %v206
    %v209 = vadd.f32 %v201, %v207
    %v210 = vadd.f32 %v202, %v207
    %v211 = vld [vmem:[#allocation8] sm:$0xff]
    %v212 = vld [vmem:[#allocation8 + $0x8] sm:$0xff]
    %v213 = vld [vmem:[#allocation8 + $0x10] sm:$0xff]
    %v214 = vld [vmem:[#allocation8 + $0x18] sm:$0xff]
    %v215 = vld [vmem:[#allocation8 + $0x20] sm:$0xff]
    %v216 = vld [vmem:[#allocation8 + $0x28] sm:$0xff]
    %v217 = vld [vmem:[#allocation8 + $0x30] sm:$0xff]
    %v218 = vld [vmem:[#allocation8 + $0x38] sm:$0xff]
    %v219 = vld [vmem:[#allocation8 + $0x40] sm:$0xff]
    %v220 = vld [vmem:[#allocation8 + $0x48] sm:$0xff]
    %v221 = vld [vmem:[#allocation8 + $0x50] sm:$0xff]
    %v222 = vld [vmem:[#allocation8 + $0x58] sm:$0xff]
    %v223 = vld [vmem:[#allocation8 + $0x60] sm:$0xff]
    %v224 = vld [vmem:[#allocation8 + $0x68] sm:$0xff]
    %v225 = vld [vmem:[#allocation8 + $0x70] sm:$0xff]
    %v226 = vld [vmem:[#allocation8 + $0x78] sm:$0xff]
    %v227 = vld [vmem:[#allocation8 + $0x80] sm:$0xff]
    %v228 = vld [vmem:[#allocation8 + $0x88] sm:$0xff]
    %v229 = vld [vmem:[#allocation8 + $0x90] sm:$0xff]
    %v230 = vld [vmem:[#allocation8 + $0x98] sm:$0xff]
    %v231 = vld [vmem:[#allocation8 + $0xa0] sm:$0xff]
    %v232 = vld [vmem:[#allocation8 + $0xa8] sm:$0xff]
    %v233 = vld [vmem:[#allocation8 + $0xb0] sm:$0xff]
    %v234 = vld [vmem:[#allocation8 + $0xb8] sm:$0xff]
    %v235 = vld [vmem:[#allocation8 + $0xc0] sm:$0xff]
    %v236 = vld [vmem:[#allocation8 + $0xc8] sm:$0xff]
    %v237 = vld [vmem:[#allocation8 + $0xd0] sm:$0xff]
    %v238 = vld [vmem:[#allocation8 + $0xd8] sm:$0xff]
    %v239 = vld [vmem:[#allocation8 + $0xe0] sm:$0xff]
    %v240 = vld [vmem:[#allocation8 + $0xe8] sm:$0xff]
    %v241 = vld [vmem:[#allocation8 + $0xf0] sm:$0xff]
    %v242 = vld [vmem:[#allocation8 + $0xf8] sm:$0xff]
    %v243 = vld [vmem:[#allocation8 + $0x100] sm:$0xff]
    %v244 = vld [vmem:[#allocation8 + $0x108] sm:$0xff]
    %v245 = vld [vmem:[#allocation8 + $0x110] sm:$0xff]
    %v246 = vld [vmem:[#allocation8 + $0x118] sm:$0xff]
    %v247 = vld [vmem:[#allocation8 + $0x120] sm:$0xff]
    %v248 = vld [vmem:[#allocation8 + $0x128] sm:$0xff]
    %v249 = vld [vmem:[#allocation8 + $0x130] sm:$0xff]
    %v250 = vld [vmem:[#allocation8 + $0x138] sm:$0xff]
    %v251 = vld [vmem:[#allocation8 + $0x140] sm:$0xff]
    %v252 = vld [vmem:[#allocation8 + $0x148] sm:$0xff]
    %v253 = vld [vmem:[#allocation8 + $0x150] sm:$0xff]
    %v254 = vld [vmem:[#allocation8 + $0x158] sm:$0xff]
    %v255 = vld [vmem:[#allocation8 + $0x160] sm:$0xff]
    %v256 = vld [vmem:[#allocation8 + $0x168] sm:$0xff]
    %v257 = vld [vmem:[#allocation8 + $0x170] sm:$0xff]
    %v258 = vld [vmem:[#allocation8 + $0x178] sm:$0xff]
    %259 = vmatprep.subr.mxu0 %v212
    %260 = vmatpush1.msra.mxu0 %v211
    %261 = vmatprep.subr.mxu0 %v215
    %262 = vmatpush1.msra.mxu0 %v214
    %263 = vmatprep.subr.mxu0 %v218
    %264 = vmatpush1.msra.mxu0 %v217
    %265 = vmatprep.subr.mxu0 %v221
    %266 = vmatpush1.msra.mxu0 %v220
    %267 = vmatprep.subr.mxu0 %v224
    %268 = vmatpush1.msra.mxu0 %v223
    %269 = vmatprep.subr.mxu0 %v227
    %270 = vmatpush1.msra.mxu0 %v226
    %271 = vmatprep.subr.mxu0 %v230
    %272 = vmatpush1.msra.mxu0 %v229
    %273 = vmatprep.subr.mxu0 %v233
    %274 = vmatpush1.msra.mxu0 %v232
    %275 = vmatprep.subr.mxu0 %v236
    %276 = vmatpush1.msra.mxu0 %v235
    %277 = vmatprep.subr.mxu0 %v239
    %278 = vmatpush1.msra.mxu0 %v238
    %279 = vmatprep.subr.mxu0 %v242
    %280 = vmatpush1.msra.mxu0 %v241
    %281 = vmatprep.subr.mxu0 %v245
    %282 = vmatpush1.msra.mxu0 %v244
    %283 = vmatprep.subr.mxu0 %v248
    %284 = vmatpush1.msra.mxu0 %v247
    %285 = vmatprep.subr.mxu0 %v251
    %286 = vmatpush1.msra.mxu0 %v250
    %287 = vmatprep.subr.mxu0 %v254
    %288 = vmatpush1.msra.mxu0 %v253
    %289 = vmatprep.subr.mxu0 %v257
    %290 = vmatpush1.msra.mxu0 %v256
    %291 = vmatprep.subr.mxu0 0.0
    %292 = vmatpush1.msra.mxu0 0.0
    %293 = vmatprep.subr.mxu0 0.0
    %294 = vmatpush1.msra.mxu0 0.0
    %295 = vmatprep.subr.mxu0 0.0
    %296 = vmatpush1.msra.mxu0 0.0
    %297 = vmatprep.subr.mxu0 0.0
    %298 = vmatpush1.msra.mxu0 0.0
    %299 = vmatprep.subr.mxu0 0.0
    %300 = vmatpush1.msra.mxu0 0.0
    %301 = vmatprep.subr.mxu0 0.0
    %302 = vmatpush1.msra.mxu0 0.0
    %303 = vmatprep.subr.mxu0 0.0
    %304 = vmatpush1.msra.mxu0 0.0
    %305 = vmatprep.subr.mxu0 0.0
    %306 = vmatpush1.msra.mxu0 0.0
    %307 = vmatprep.subr.mxu0 0.0
    %308 = vmatpush1.msra.mxu0 0.0
    %309 = vmatprep.subr.mxu0 0.0
    %310 = vmatpush1.msra.mxu0 0.0
    %311 = vmatprep.subr.mxu0 0.0
    %312 = vmatpush1.msra.mxu0 0.0
    %313 = vmatprep.subr.mxu0 0.0
    %314 = vmatpush1.msra.mxu0 0.0
    %315 = vmatprep.subr.mxu0 0.0
    %316 = vmatpush1.msra.mxu0 0.0
    %317 = vmatprep.subr.mxu0 0.0
    %318 = vmatpush1.msra.mxu0 0.0
    %319 = vmatprep.subr.mxu0 0.0
    %320 = vmatpush1.msra.mxu0 0.0
    %321 = vmatprep.subr.mxu0 0.0
    %322 = vmatpush1.msra.mxu0 0.0
    %323 = vmatprep.mubr.f32.mxu0 0.0
    %324 = vmatmul.mubr.f32.gmra.mrb[0].mxu0 %v209
    %v325 = vpop.f32.mrb[0].mxu0
    %v326 = vadd.f32 0.0, %v325
    %v327 = vpop.f32.mrb[0].mxu0
    %v328 = vadd.f32 0.0, %v327
    %329 = vmatprep.mubr.f32.mxu0 0.0
    %330 = vmatmul.mubr.f32.gmra.mrb[0].mxu0 %v210
    %v331 = vpop.f32.mrb[0].mxu0
    %v332 = vadd.f32 0.0, %v331
    %v333 = vpop.f32.mrb[0].mxu0
    %v334 = vadd.f32 0.0, %v333
    %335 = vdwg.mxu0
    %336 = vmatprep.subr.mxu0 0.0
    %337 = vmatpush1.msra.mxu0 %v213
    %338 = vmatprep.subr.mxu0 0.0
    %339 = vmatpush1.msra.mxu0 %v216
    %340 = vmatprep.subr.mxu0 0.0
    %341 = vmatpush1.msra.mxu0 %v219
    %342 = vmatprep.subr.mxu0 0.0
    %343 = vmatpush1.msra.mxu0 %v222
    %344 = vmatprep.subr.mxu0 0.0
    %345 = vmatpush1.msra.mxu0 %v225
    %346 = vmatprep.subr.mxu0 0.0
    %347 = vmatpush1.msra.mxu0 %v228
    %348 = vmatprep.subr.mxu0 0.0
    %349 = vmatpush1.msra.mxu0 %v231
    %350 = vmatprep.subr.mxu0 0.0
    %351 = vmatpush1.msra.mxu0 %v234
    %352 = vmatprep.subr.mxu0 0.0
    %353 = vmatpush1.msra.mxu0 %v237
    %354 = vmatprep.subr.mxu0 0.0
    %355 = vmatpush1.msra.mxu0 %v240
    %356 = vmatprep.subr.mxu0 0.0
    %357 = vmatpush1.msra.mxu0 %v243
    %358 = vmatprep.subr.mxu0 0.0
    %359 = vmatpush1.msra.mxu0 %v246
    %360 = vmatprep.subr.mxu0 0.0
    %361 = vmatpush1.msra.mxu0 %v249
    %362 = vmatprep.subr.mxu0 0.0
    %363 = vmatpush1.msra.mxu0 %v252
    %364 = vmatprep.subr.mxu0 0.0
    %365 = vmatpush1.msra.mxu0 %v255
    %366 = vmatprep.subr.mxu0 0.0
    %367 = vmatpush1.msra.mxu0 %v258
    %368 = vmatprep.subr.mxu0 0.0
    %369 = vmatpush1.msra.mxu0 0.0
    %370 = vmatprep.subr.mxu0 0.0
    %371 = vmatpush1.msra.mxu0 0.0
    %372 = vmatprep.subr.mxu0 0.0
    %373 = vmatpush1.msra.mxu0 0.0
    %374 = vmatprep.subr.mxu0 0.0
    %375 = vmatpush1.msra.mxu0 0.0
    %376 = vmatprep.subr.mxu0 0.0
    %377 = vmatpush1.msra.mxu0 0.0
    %378 = vmatprep.subr.mxu0 0.0
    %379 = vmatpush1.msra.mxu0 0.0
    %380 = vmatprep.subr.mxu0 0.0
    %381 = vmatpush1.msra.mxu0 0.0
    %382 = vmatprep.subr.mxu0 0.0
    %383 = vmatpush1.msra.mxu0 0.0
    %384 = vmatprep.subr.mxu0 0.0
    %385 = vmatpush1.msra.mxu0 0.0
    %386 = vmatprep.subr.mxu0 0.0
    %387 = vmatpush1.msra.mxu0 0.0
    %388 = vmatprep.subr.mxu0 0.0
    %389 = vmatpush1.msra.mxu0 0.0
    %390 = vmatprep.subr.mxu0 0.0
    %391 = vmatpush1.msra.mxu0 0.0
    %392 = vmatprep.subr.mxu0 0.0
    %393 = vmatpush1.msra.mxu0 0.0
    %394 = vmatprep.subr.mxu0 0.0
    %395 = vmatpush1.msra.mxu0 0.0
    %396 = vmatprep.subr.mxu0 0.0
    %397 = vmatpush1.msra.mxu0 0.0
    %398 = vmatprep.subr.mxu0 0.0
    %399 = vmatpush1.msra.mxu0 0.0
    %400 = vmatprep.mubr.f32.mxu0 0.0
    %401 = vmatmul.mubr.f32.gmra.mrb[0].mxu0 %v209
    %v402 = vpop.f32.mrb[0].mxu0
    %v403 = vadd.f32 0.0, %v402
    %v404 = vpop.f32.mrb[0].mxu0
    %405 = vmatprep.mubr.f32.mxu0 0.0
    %406 = vmatmul.mubr.f32.gmra.mrb[0].mxu0 %v210
    %v407 = vpop.f32.mrb[0].mxu0
    %v408 = vadd.f32 0.0, %v407
    %v409 = vpop.f32.mrb[0].mxu0
    %410 = vdwg.mxu0
    %vm411 = vcmask 261120
    %v413 = vsel %vm411, %v326, 0
    %v416 = vsel %vm411, %v328, 0
    %418 = vmatprep.subr.mxu0 0.0
    %419 = vmatpush1.xpose.msra.mxu0 %v416
    %420 = vmatprep.subr.mxu0 0.0
    %421 = vmatpush1.xpose.msra.mxu0 0.0
    %422 = vmatprep.subr.mxu0 0.0
    %423 = vmatpush1.xpose.msra.mxu0 0.0
    %424 = vmatprep.subr.mxu0 0.0
    %425 = vmatpush1.xpose.msra.mxu0 0.0
    %426 = vmatprep.subr.mxu0 0.0
    %427 = vmatpush1.xpose.msra.mxu0 0.0
    %428 = vmatprep.subr.mxu0 0.0
    %429 = vmatpush1.xpose.msra.mxu0 0.0
    %430 = vmatprep.subr.mxu0 0.0
    %431 = vmatpush1.xpose.msra.mxu0 0.0
    %432 = vmatprep.subr.mxu0 0.0
    %433 = vmatpush1.xpose.msra.mxu0 0.0
    %434 = vmatprep.subr.mxu0 0.0
    %435 = vmatpush1.xpose.msra.mxu0 0.0
    %436 = vmatprep.subr.mxu0 0.0
    %437 = vmatpush1.xpose.msra.mxu0 0.0
    %438 = vmatprep.subr.mxu0 0.0
    %439 = vmatpush1.xpose.msra.mxu0 0.0
    %440 = vmatprep.subr.mxu0 0.0
    %441 = vmatpush1.xpose.msra.mxu0 0.0
    %442 = vmatprep.subr.mxu0 0.0
    %443 = vmatpush1.xpose.msra.mxu0 0.0
    %444 = vmatprep.subr.mxu0 0.0
    %445 = vmatpush1.xpose.msra.mxu0 0.0
    %446 = vmatprep.subr.mxu0 0.0
    %447 = vmatpush1.xpose.msra.mxu0 0.0
    %448 = vmatprep.subr.mxu0 0.0
    %449 = vmatpush1.xpose.msra.mxu0 0.0
    %450 = vmatprep.subr.mxu0 0.0
    %451 = vmatpush1.xpose.msra.mxu0 0.0
    %452 = vmatprep.subr.mxu0 0.0
    %453 = vmatpush1.xpose.msra.mxu0 0.0
    %454 = vmatprep.subr.mxu0 0.0
    %455 = vmatpush1.xpose.msra.mxu0 0.0
    %456 = vmatprep.subr.mxu0 0.0
    %457 = vmatpush1.xpose.msra.mxu0 0.0
    %458 = vmatprep.subr.mxu0 0.0
    %459 = vmatpush1.xpose.msra.mxu0 0.0
    %460 = vmatprep.subr.mxu0 0.0
    %461 = vmatpush1.xpose.msra.mxu0 0.0
    %462 = vmatprep.subr.mxu0 0.0
    %463 = vmatpush1.xpose.msra.mxu0 0.0
    %464 = vmatprep.subr.mxu0 0.0
    %465 = vmatpush1.xpose.msra.mxu0 0.0
    %466 = vmatprep.subr.mxu0 0.0
    %467 = vmatpush1.xpose.msra.mxu0 0.0
    %468 = vmatprep.subr.mxu0 0.0
    %469 = vmatpush1.xpose.msra.mxu0 0.0
    %470 = vmatprep.subr.mxu0 0.0
    %471 = vmatpush1.xpose.msra.mxu0 0.0
    %472 = vmatprep.subr.mxu0 0.0
    %473 = vmatpush1.xpose.msra.mxu0 0.0
    %474 = vmatprep.subr.mxu0 0.0
    %475 = vmatpush1.xpose.msra.mxu0 0.0
    %476 = vmatprep.subr.mxu0 0.0
    %477 = vmatpush1.xpose.msra.mxu0 0.0
    %478 = vmatprep.subr.mxu0 0.0
    %479 = vmatpush1.xpose.msra.mxu0 0.0
    %480 = vmatprep.subr.mxu0 0.0
    %481 = vmatpush1.xpose.msra.mxu0 0.0
    %482 = vmatprep.mubr.f32.mxu0 0.0
    %483 = vmatmul.mubr.f32.gmra.mrb[0].mxu0 %v413
    %v484 = vpop.f32.mrb[0].mxu0
    %v485 = vadd.f32 0.0, %v484
    %v486 = vpop.f32.mrb[0].mxu0
    %487 = vdwg.mxu0
    %v488 = vmul.f32 %v485, 0.17677669
    %v489 = vadd.f32 %v488, %v169
    %vm490 = vcmask 64512
    %v491 = vsel %vm490, %v489, -inf
    %492 = vmax.xlane.f32.xlu0 %v491
    %v493 = vpop.xlane.xlu0 %492
    %v494 = vsub.f32 %v489, %v493
    %v495 = vmul.f32 %v494, 1.442695
    %v496 = vpow.pop %v495
    %v497 = vsel %vm490, %v496, 0.0
    %498 = vadd.xlane.f32.xlu0 %v497
    %v499 = vpop.xlane.xlu0 %498
    %v500 = vrcp.pop %v499
    %v501 = vmul.f32 %v496, %v500
    %v503 = vsel %vm490, %v501, 0
    %505 = vmatprep.subr.mxu0 0.0
    %506 = vmatpush1.msra.mxu0 %v403
    %507 = vmatprep.subr.mxu0 0.0
    %508 = vmatpush1.msra.mxu0 0.0
    %509 = vmatprep.subr.mxu0 0.0
    %510 = vmatpush1.msra.mxu0 0.0
    %511 = vmatprep.subr.mxu0 0.0
    %512 = vmatpush1.msra.mxu0 0.0
    %513 = vmatprep.subr.mxu0 0.0
    %514 = vmatpush1.msra.mxu0 0.0
    %515 = vmatprep.subr.mxu0 0.0
    %516 = vmatpush1.msra.mxu0 0.0
    %517 = vmatprep.subr.mxu0 0.0
    %518 = vmatpush1.msra.mxu0 0.0
    %519 = vmatprep.subr.mxu0 0.0
    %520 = vmatpush1.msra.mxu0 0.0
    %521 = vmatprep.subr.mxu0 0.0
    %522 = vmatpush1.msra.mxu0 0.0
    %523 = vmatprep.subr.mxu0 0.0
    %524 = vmatpush1.msra.mxu0 0.0
    %525 = vmatprep.subr.mxu0 0.0
    %526 = vmatpush1.msra.mxu0 0.0
    %527 = vmatprep.subr.mxu0 0.0
    %528 = vmatpush1.msra.mxu0 0.0
    %529 = vmatprep.subr.mxu0 0.0
    %530 = vmatpush1.msra.mxu0 0.0
    %531 = vmatprep.subr.mxu0 0.0
    %532 = vmatpush1.msra.mxu0 0.0
    %533 = vmatprep.subr.mxu0 0.0
    %534 = vmatpush1.msra.mxu0 0.0
    %535 = vmatprep.subr.mxu0 0.0
    %536 = vmatpush1.msra.mxu0 0.0
    %537 = vmatprep.subr.mxu0 0.0
    %538 = vmatpush1.msra.mxu0 0.0
    %539 = vmatprep.subr.mxu0 0.0
    %540 = vmatpush1.msra.mxu0 0.0
    %541 = vmatprep.subr.mxu0 0.0
    %542 = vmatpush1.msra.mxu0 0.0
    %543 = vmatprep.subr.mxu0 0.0
    %544 = vmatpush1.msra.mxu0 0.0
    %545 = vmatprep.subr.mxu0 0.0
    %546 = vmatpush1.msra.mxu0 0.0
    %547 = vmatprep.subr.mxu0 0.0
    %548 = vmatpush1.msra.mxu0 0.0
    %549 = vmatprep.subr.mxu0 0.0
    %550 = vmatpush1.msra.mxu0 0.0
    %551 = vmatprep.subr.mxu0 0.0
    %552 = vmatpush1.msra.mxu0 0.0
    %553 = vmatprep.subr.mxu0 0.0
    %554 = vmatpush1.msra.mxu0 0.0
    %555 = vmatprep.subr.mxu0 0.0
    %556 = vmatpush1.msra.mxu0 0.0
    %557 = vmatprep.subr.mxu0 0.0
    %558 = vmatpush1.msra.mxu0 0.0
    %559 = vmatprep.subr.mxu0 0.0
    %560 = vmatpush1.msra.mxu0 0.0
    %561 = vmatprep.subr.mxu0 0.0
    %562 = vmatpush1.msra.mxu0 0.0
    %563 = vmatprep.subr.mxu0 0.0
    %564 = vmatpush1.msra.mxu0 0.0
    %565 = vmatprep.subr.mxu0 0.0
    %566 = vmatpush1.msra.mxu0 0.0
    %567 = vmatprep.subr.mxu0 0.0
    %568 = vmatpush1.msra.mxu0 0.0
    %569 = vmatprep.mubr.f32.mxu0 0.0
    %570 = vmatmul.mubr.f32.gmra.mrb[0].mxu0 %v503
    %v571 = vpop.f32.mrb[0].mxu0
    %v572 = vadd.f32 0.0, %v571
    %v573 = vpop.f32.mrb[0].mxu0
    %574 = vdwg.mxu0
    %575 = vst.msk [vmem:[#allocation2] sm:$0xff] %vm411, %v572
    %576 = vrot.lane.b32.xlu0 %v326, 96
    %v577 = vpop.permute.xlu0 %576
    %578 = vrot.lane.b32.xlu0 %v328, 96
    %v579 = vpop.permute.xlu0 %578
    %v580 = vsel %vm411, %v577, 0
    %v582 = vsel %vm411, %v579, 0
    %584 = vmatprep.subr.mxu0 0.0
    %585 = vmatpush1.xpose.msra.mxu0 %v582
    %586 = vmatprep.subr.mxu0 0.0
    %587 = vmatpush1.xpose.msra.mxu0 0.0
    %588 = vmatprep.subr.mxu0 0.0
    %589 = vmatpush1.xpose.msra.mxu0 0.0
    %590 = vmatprep.subr.mxu0 0.0
    %591 = vmatpush1.xpose.msra.mxu0 0.0
    %592 = vmatprep.subr.mxu0 0.0
    %593 = vmatpush1.xpose.msra.mxu0 0.0
    %594 = vmatprep.subr.mxu0 0.0
    %595 = vmatpush1.xpose.msra.mxu0 0.0
    %596 = vmatprep.subr.mxu0 0.0
    %597 = vmatpush1.xpose.msra.mxu0 0.0
    %598 = vmatprep.subr.mxu0 0.0
    %599 = vmatpush1.xpose.msra.mxu0 0.0
    %600 = vmatprep.subr.mxu0 0.0
    %601 = vmatpush1.xpose.msra.mxu0 0.0
    %602 = vmatprep.subr.mxu0 0.0
    %603 = vmatpush1.xpose.msra.mxu0 0.0
    %604 = vmatprep.subr.mxu0 0.0
    %605 = vmatpush1.xpose.msra.mxu0 0.0
    %606 = vmatprep.subr.mxu0 0.0
    %607 = vmatpush1.xpose.msra.mxu0 0.0
    %608 = vmatprep.subr.mxu0 0.0
    %609 = vmatpush1.xpose.msra.mxu0 0.0
    %610 = vmatprep.subr.mxu0 0.0
    %611 = vmatpush1.xpose.msra.mxu0 0.0
    %612 = vmatprep.subr.mxu0 0.0
    %613 = vmatpush1.xpose.msra.mxu0 0.0
    %614 = vmatprep.subr.mxu0 0.0
    %615 = vmatpush1.xpose.msra.mxu0 0.0
    %616 = vmatprep.subr.mxu0 0.0
    %617 = vmatpush1.xpose.msra.mxu0 0.0
    %618 = vmatprep.subr.mxu0 0.0
    %619 = vmatpush1.xpose.msra.mxu0 0.0
    %620 = vmatprep.subr.mxu0 0.0
    %621 = vmatpush1.xpose.msra.mxu0 0.0
    %622 = vmatprep.subr.mxu0 0.0
    %623 = vmatpush1.xpose.msra.mxu0 0.0
    %624 = vmatprep.subr.mxu0 0.0
    %625 = vmatpush1.xpose.msra.mxu0 0.0
    %626 = vmatprep.subr.mxu0 0.0
    %627 = vmatpush1.xpose.msra.mxu0 0.0
    %628 = vmatprep.subr.mxu0 0.0
    %629 = vmatpush1.xpose.msra.mxu0 0.0
    %630 = vmatprep.subr.mxu0 0.0
    %631 = vmatpush1.xpose.msra.mxu0 0.0
    %632 = vmatprep.subr.mxu0 0.0
    %633 = vmatpush1.xpose.msra.mxu0 0.0
    %634 = vmatprep.subr.mxu0 0.0
    %635 = vmatpush1.xpose.msra.mxu0 0.0
    %636 = vmatprep.subr.mxu0 0.0
    %637 = vmatpush1.xpose.msra.mxu0 0.0
    %638 = vmatprep.subr.mxu0 0.0
    %639 = vmatpush1.xpose.msra.mxu0 0.0
    %640 = vmatprep.subr.mxu0 0.0
    %641 = vmatpush1.xpose.msra.mxu0 0.0
    %642 = vmatprep.subr.mxu0 0.0
    %643 = vmatpush1.xpose.msra.mxu0 0.0
    %644 = vmatprep.subr.mxu0 0.0
    %645 = vmatpush1.xpose.msra.mxu0 0.0
    %646 = vmatprep.subr.mxu0 0.0
    %647 = vmatpush1.xpose.msra.mxu0 0.0
    %648 = vmatprep.mubr.f32.mxu0 0.0
    %649 = vmatmul.mubr.f32.gmra.mrb[0].mxu0 %v580
    %v650 = vpop.f32.mrb[0].mxu0
    %v651 = vadd.f32 0.0, %v650
    %v652 = vpop.f32.mrb[0].mxu0
    %653 = vdwg.mxu0
    %v654 = vmul.f32 %v651, 0.17677669
    %v655 = vadd.f32 %v654, %v169
    %v656 = vsel %vm490, %v655, -inf
    %657 = vmax.xlane.f32.xlu0 %v656
    %v658 = vpop.xlane.xlu0 %657
    %v659 = vsub.f32 %v655, %v658
    %v660 = vmul.f32 %v659, 1.442695
    %v661 = vpow.pop %v660
    %v662 = vsel %vm490, %v661, 0.0
    %663 = vadd.xlane.f32.xlu0 %v662
    %v664 = vpop.xlane.xlu0 %663
    %v665 = vrcp.pop %v664
    %v666 = vmul.f32 %v661, %v665
    %668 = vrot.lane.b32.xlu0 %v403, 96
    %v669 = vpop.permute.xlu0 %668
    %v672 = vsel %vm490, %v666, 0
    %674 = vmatprep.subr.mxu0 0.0
    %675 = vmatpush1.msra.mxu0 %v669
    %676 = vmatprep.subr.mxu0 0.0
    %677 = vmatpush1.msra.mxu0 0.0
    %678 = vmatprep.subr.mxu0 0.0
    %679 = vmatpush1.msra.mxu0 0.0
    %680 = vmatprep.subr.mxu0 0.0
    %681 = vmatpush1.msra.mxu0 0.0
    %682 = vmatprep.subr.mxu0 0.0
    %683 = vmatpush1.msra.mxu0 0.0
    %684 = vmatprep.subr.mxu0 0.0
    %685 = vmatpush1.msra.mxu0 0.0
    %686 = vmatprep.subr.mxu0 0.0
    %687 = vmatpush1.msra.mxu0 0.0
    %688 = vmatprep.subr.mxu0 0.0
    %689 = vmatpush1.msra.mxu0 0.0
    %690 = vmatprep.subr.mxu0 0.0
    %691 = vmatpush1.msra.mxu0 0.0
    %692 = vmatprep.subr.mxu0 0.0
    %693 = vmatpush1.msra.mxu0 0.0
    %694 = vmatprep.subr.mxu0 0.0
    %695 = vmatpush1.msra.mxu0 0.0
    %696 = vmatprep.subr.mxu0 0.0
    %697 = vmatpush1.msra.mxu0 0.0
    %698 = vmatprep.subr.mxu0 0.0
    %699 = vmatpush1.msra.mxu0 0.0
    %700 = vmatprep.subr.mxu0 0.0
    %701 = vmatpush1.msra.mxu0 0.0
    %702 = vmatprep.subr.mxu0 0.0
    %703 = vmatpush1.msra.mxu0 0.0
    %704 = vmatprep.subr.mxu0 0.0
    %705 = vmatpush1.msra.mxu0 0.0
    %706 = vmatprep.subr.mxu0 0.0
    %707 = vmatpush1.msra.mxu0 0.0
    %708 = vmatprep.subr.mxu0 0.0
    %709 = vmatpush1.msra.mxu0 0.0
    %710 = vmatprep.subr.mxu0 0.0
    %711 = vmatpush1.msra.mxu0 0.0
    %712 = vmatprep.subr.mxu0 0.0
    %713 = vmatpush1.msra.mxu0 0.0
    %714 = vmatprep.subr.mxu0 0.0
    %715 = vmatpush1.msra.mxu0 0.0
    %716 = vmatprep.subr.mxu0 0.0
    %717 = vmatpush1.msra.mxu0 0.0
    %718 = vmatprep.subr.mxu0 0.0
    %719 = vmatpush1.msra.mxu0 0.0
    %720 = vmatprep.subr.mxu0 0.0
    %721 = vmatpush1.msra.mxu0 0.0
    %722 = vmatprep.subr.mxu0 0.0
    %723 = vmatpush1.msra.mxu0 0.0
    %724 = vmatprep.subr.mxu0 0.0
    %725 = vmatpush1.msra.mxu0 0.0
    %726 = vmatprep.subr.mxu0 0.0
    %727 = vmatpush1.msra.mxu0 0.0
    %728 = vmatprep.subr.mxu0 0.0
    %729 = vmatpush1.msra.mxu0 0.0
    %730 = vmatprep.subr.mxu0 0.0
    %731 = vmatpush1.msra.mxu0 0.0
    %732 = vmatprep.subr.mxu0 0.0
    %733 = vmatpush1.msra.mxu0 0.0
    %734 = vmatprep.subr.mxu0 0.0
    %735 = vmatpush1.msra.mxu0 0.0
    %736 = vmatprep.subr.mxu0 0.0
    %737 = vmatpush1.msra.mxu0 0.0
    %738 = vmatprep.mubr.f32.mxu0 0.0
    %739 = vmatmul.mubr.f32.gmra.mrb[0].mxu0 %v672
    %v740 = vpop.f32.mrb[0].mxu0
    %v741 = vadd.f32 0.0, %v740
    %v742 = vpop.f32.mrb[0].mxu0
    %743 = vdwg.mxu0
    %745 = vrot.lane.b32.xlu0 %v741, 32
    %v746 = vpop.permute.xlu0 %745
    %vm748 = vcmask 523520
    %749 = vst.msk [vmem:[#allocation2] sm:$0xff] %vm748, %v746
    %750 = vrot.lane.b32.xlu0 %v326, 64
    %v751 = vpop.permute.xlu0 %750
    %752 = vrot.lane.b32.xlu0 %v328, 64
    %v753 = vpop.permute.xlu0 %752
    %v754 = vsel %vm411, %v751, 0
    %v756 = vsel %vm411, %v753, 0
    %758 = vmatprep.subr.mxu0 0.0
    %759 = vmatpush1.xpose.msra.mxu0 %v756
    %760 = vmatprep.subr.mxu0 0.0
    %761 = vmatpush1.xpose.msra.mxu0 0.0
    %762 = vmatprep.subr.mxu0 0.0
    %763 = vmatpush1.xpose.msra.mxu0 0.0
    %764 = vmatprep.subr.mxu0 0.0
    %765 = vmatpush1.xpose.msra.mxu0 0.0
    %766 = vmatprep.subr.mxu0 0.0
    %767 = vmatpush1.xpose.msra.mxu0 0.0
    %768 = vmatprep.subr.mxu0 0.0
    %769 = vmatpush1.xpose.msra.mxu0 0.0
    %770 = vmatprep.subr.mxu0 0.0
    %771 = vmatpush1.xpose.msra.mxu0 0.0
    %772 = vmatprep.subr.mxu0 0.0
    %773 = vmatpush1.xpose.msra.mxu0 0.0
    %774 = vmatprep.subr.mxu0 0.0
    %775 = vmatpush1.xpose.msra.mxu0 0.0
    %776 = vmatprep.subr.mxu0 0.0
    %777 = vmatpush1.xpose.msra.mxu0 0.0
    %778 = vmatprep.subr.mxu0 0.0
    %779 = vmatpush1.xpose.msra.mxu0 0.0
    %780 = vmatprep.subr.mxu0 0.0
    %781 = vmatpush1.xpose.msra.mxu0 0.0
    %782 = vmatprep.subr.mxu0 0.0
    %783 = vmatpush1.xpose.msra.mxu0 0.0
    %784 = vmatprep.subr.mxu0 0.0
    %785 = vmatpush1.xpose.msra.mxu0 0.0
    %786 = vmatprep.subr.mxu0 0.0
    %787 = vmatpush1.xpose.msra.mxu0 0.0
    %788 = vmatprep.subr.mxu0 0.0
    %789 = vmatpush1.xpose.msra.mxu0 0.0
    %790 = vmatprep.subr.mxu0 0.0
    %791 = vmatpush1.xpose.msra.mxu0 0.0
    %792 = vmatprep.subr.mxu0 0.0
    %793 = vmatpush1.xpose.msra.mxu0 0.0
    %794 = vmatprep.subr.mxu0 0.0
    %795 = vmatpush1.xpose.msra.mxu0 0.0
    %796 = vmatprep.subr.mxu0 0.0
    %797 = vmatpush1.xpose.msra.mxu0 0.0
    %798 = vmatprep.subr.mxu0 0.0
    %799 = vmatpush1.xpose.msra.mxu0 0.0
    %800 = vmatprep.subr.mxu0 0.0
    %801 = vmatpush1.xpose.msra.mxu0 0.0
    %802 = vmatprep.subr.mxu0 0.0
    %803 = vmatpush1.xpose.msra.mxu0 0.0
    %804 = vmatprep.subr.mxu0 0.0
    %805 = vmatpush1.xpose.msra.mxu0 0.0
    %806 = vmatprep.subr.mxu0 0.0
    %807 = vmatpush1.xpose.msra.mxu0 0.0
    %808 = vmatprep.subr.mxu0 0.0
    %809 = vmatpush1.xpose.msra.mxu0 0.0
    %810 = vmatprep.subr.mxu0 0.0
    %811 = vmatpush1.xpose.msra.mxu0 0.0
    %812 = vmatprep.subr.mxu0 0.0
    %813 = vmatpush1.xpose.msra.mxu0 0.0
    %814 = vmatprep.subr.mxu0 0.0
    %815 = vmatpush1.xpose.msra.mxu0 0.0
    %816 = vmatprep.subr.mxu0 0.0
    %817 = vmatpush1.xpose.msra.mxu0 0.0
    %818 = vmatprep.subr.mxu0 0.0
    %819 = vmatpush1.xpose.msra.mxu0 0.0
    %820 = vmatprep.subr.mxu0 0.0
    %821 = vmatpush1.xpose.msra.mxu0 0.0
    %822 = vmatprep.mubr.f32.mxu0 0.0
    %823 = vmatmul.mubr.f32.gmra.mrb[0].mxu0 %v754
    %v824 = vpop.f32.mrb[0].mxu0
    %v825 = vadd.f32 0.0, %v824
    %v826 = vpop.f32.mrb[0].mxu0
    %827 = vdwg.mxu0
    %v828 = vmul.f32 %v825, 0.17677669
    %v829 = vadd.f32 %v828, %v169
    %v830 = vsel %vm490, %v829, -inf
    %831 = vmax.xlane.f32.xlu0 %v830
    %v832 = vpop.xlane.xlu0 %831
    %v833 = vsub.f32 %v829, %v832
    %v834 = vmul.f32 %v833, 1.442695
    %v835 = vpow.pop %v834
    %v836 = vsel %vm490, %v835, 0.0
    %837 = vadd.xlane.f32.xlu0 %v836
    %v838 = vpop.xlane.xlu0 %837
    %v839 = vrcp.pop %v838
    %v840 = vmul.f32 %v835, %v839
    %841 = vrot.lane.b32.xlu0 %v403, 64
    %v842 = vpop.permute.xlu0 %841
    %v845 = vsel %vm490, %v840, 0
    %847 = vmatprep.subr.mxu0 0.0
    %848 = vmatpush1.msra.mxu0 %v842
    %849 = vmatprep.subr.mxu0 0.0
    %850 = vmatpush1.msra.mxu0 0.0
    %851 = vmatprep.subr.mxu0 0.0
    %852 = vmatpush1.msra.mxu0 0.0
    %853 = vmatprep.subr.mxu0 0.0
    %854 = vmatpush1.msra.mxu0 0.0
    %855 = vmatprep.subr.mxu0 0.0
    %856 = vmatpush1.msra.mxu0 0.0
    %857 = vmatprep.subr.mxu0 0.0
    %858 = vmatpush1.msra.mxu0 0.0
    %859 = vmatprep.subr.mxu0 0.0
    %860 = vmatpush1.msra.mxu0 0.0
    %861 = vmatprep.subr.mxu0 0.0
    %862 = vmatpush1.msra.mxu0 0.0
    %863 = vmatprep.subr.mxu0 0.0
    %864 = vmatpush1.msra.mxu0 0.0
    %865 = vmatprep.subr.mxu0 0.0
    %866 = vmatpush1.msra.mxu0 0.0
    %867 = vmatprep.subr.mxu0 0.0
    %868 = vmatpush1.msra.mxu0 0.0
    %869 = vmatprep.subr.mxu0 0.0
    %870 = vmatpush1.msra.mxu0 0.0
    %871 = vmatprep.subr.mxu0 0.0
    %872 = vmatpush1.msra.mxu0 0.0
    %873 = vmatprep.subr.mxu0 0.0
    %874 = vmatpush1.msra.mxu0 0.0
    %875 = vmatprep.subr.mxu0 0.0
    %876 = vmatpush1.msra.mxu0 0.0
    %877 = vmatprep.subr.mxu0 0.0
    %878 = vmatpush1.msra.mxu0 0.0
    %879 = vmatprep.subr.mxu0 0.0
    %880 = vmatpush1.msra.mxu0 0.0
    %881 = vmatprep.subr.mxu0 0.0
    %882 = vmatpush1.msra.mxu0 0.0
    %883 = vmatprep.subr.mxu0 0.0
    %884 = vmatpush1.msra.mxu0 0.0
    %885 = vmatprep.subr.mxu0 0.0
    %886 = vmatpush1.msra.mxu0 0.0
    %887 = vmatprep.subr.mxu0 0.0
    %888 = vmatpush1.msra.mxu0 0.0
    %889 = vmatprep.subr.mxu0 0.0
    %890 = vmatpush1.msra.mxu0 0.0
    %891 = vmatprep.subr.mxu0 0.0
    %892 = vmatpush1.msra.mxu0 0.0
    %893 = vmatprep.subr.mxu0 0.0
    %894 = vmatpush1.msra.mxu0 0.0
    %895 = vmatprep.subr.mxu0 0.0
    %896 = vmatpush1.msra.mxu0 0.0
    %897 = vmatprep.subr.mxu0 0.0
    %898 = vmatpush1.msra.mxu0 0.0
    %899 = vmatprep.subr.mxu0 0.0
    %900 = vmatpush1.msra.mxu0 0.0
    %901 = vmatprep.subr.mxu0 0.0
    %902 = vmatpush1.msra.mxu0 0.0
    %903 = vmatprep.subr.mxu0 0.0
    %904 = vmatpush1.msra.mxu0 0.0
    %905 = vmatprep.subr.mxu0 0.0
    %906 = vmatpush1.msra.mxu0 0.0
    %907 = vmatprep.subr.mxu0 0.0
    %908 = vmatpush1.msra.mxu0 0.0
    %909 = vmatprep.subr.mxu0 0.0
    %910 = vmatpush1.msra.mxu0 0.0
    %911 = vmatprep.mubr.f32.mxu0 0.0
    %912 = vmatmul.mubr.f32.gmra.mrb[0].mxu0 %v845
    %v913 = vpop.f32.mrb[0].mxu0
    %v914 = vadd.f32 0.0, %v913
    %v915 = vpop.f32.mrb[0].mxu0
    %916 = vdwg.mxu0
    %918 = vrot.lane.b32.xlu0 %v914, 64
    %v919 = vpop.permute.xlu0 %918
    %vm921 = vcmask 785920
    %922 = vst.msk [vmem:[#allocation2] sm:$0xff] %vm921, %v919
    %923 = vrot.lane.b32.xlu0 %v326, 32
    %v924 = vpop.permute.xlu0 %923
    %925 = vrot.lane.b32.xlu0 %v328, 32
    %v926 = vpop.permute.xlu0 %925
    %v927 = vsel %vm411, %v924, 0
    %v929 = vsel %vm411, %v926, 0
    %931 = vmatprep.subr.mxu0 0.0
    %932 = vmatpush1.xpose.msra.mxu0 %v929
    %933 = vmatprep.subr.mxu0 0.0
    %934 = vmatpush1.xpose.msra.mxu0 0.0
    %935 = vmatprep.subr.mxu0 0.0
    %936 = vmatpush1.xpose.msra.mxu0 0.0
    %937 = vmatprep.subr.mxu0 0.0
    %938 = vmatpush1.xpose.msra.mxu0 0.0
    %939 = vmatprep.subr.mxu0 0.0
    %940 = vmatpush1.xpose.msra.mxu0 0.0
    %941 = vmatprep.subr.mxu0 0.0
    %942 = vmatpush1.xpose.msra.mxu0 0.0
    %943 = vmatprep.subr.mxu0 0.0
    %944 = vmatpush1.xpose.msra.mxu0 0.0
    %945 = vmatprep.subr.mxu0 0.0
    %946 = vmatpush1.xpose.msra.mxu0 0.0
    %947 = vmatprep.subr.mxu0 0.0
    %948 = vmatpush1.xpose.msra.mxu0 0.0
    %949 = vmatprep.subr.mxu0 0.0
    %950 = vmatpush1.xpose.msra.mxu0 0.0
    %951 = vmatprep.subr.mxu0 0.0
    %952 = vmatpush1.xpose.msra.mxu0 0.0
    %953 = vmatprep.subr.mxu0 0.0
    %954 = vmatpush1.xpose.msra.mxu0 0.0
    %955 = vmatprep.subr.mxu0 0.0
    %956 = vmatpush1.xpose.msra.mxu0 0.0
    %957 = vmatprep.subr.mxu0 0.0
    %958 = vmatpush1.xpose.msra.mxu0 0.0
    %959 = vmatprep.subr.mxu0 0.0
    %960 = vmatpush1.xpose.msra.mxu0 0.0
    %961 = vmatprep.subr.mxu0 0.0
    %962 = vmatpush1.xpose.msra.mxu0 0.0
    %963 = vmatprep.subr.mxu0 0.0
    %964 = vmatpush1.xpose.msra.mxu0 0.0
    %965 = vmatprep.subr.mxu0 0.0
    %966 = vmatpush1.xpose.msra.mxu0 0.0
    %967 = vmatprep.subr.mxu0 0.0
    %968 = vmatpush1.xpose.msra.mxu0 0.0
    %969 = vmatprep.subr.mxu0 0.0
    %970 = vmatpush1.xpose.msra.mxu0 0.0
    %971 = vmatprep.subr.mxu0 0.0
    %972 = vmatpush1.xpose.msra.mxu0 0.0
    %973 = vmatprep.subr.mxu0 0.0
    %974 = vmatpush1.xpose.msra.mxu0 0.0
    %975 = vmatprep.subr.mxu0 0.0
    %976 = vmatpush1.xpose.msra.mxu0 0.0
    %977 = vmatprep.subr.mxu0 0.0
    %978 = vmatpush1.xpose.msra.mxu0 0.0
    %979 = vmatprep.subr.mxu0 0.0
    %980 = vmatpush1.xpose.msra.mxu0 0.0
    %981 = vmatprep.subr.mxu0 0.0
    %982 = vmatpush1.xpose.msra.mxu0 0.0
    %983 = vmatprep.subr.mxu0 0.0
    %984 = vmatpush1.xpose.msra.mxu0 0.0
    %985 = vmatprep.subr.mxu0 0.0
    %986 = vmatpush1.xpose.msra.mxu0 0.0
    %987 = vmatprep.subr.mxu0 0.0
    %988 = vmatpush1.xpose.msra.mxu0 0.0
    %989 = vmatprep.subr.mxu0 0.0
    %990 = vmatpush1.xpose.msra.mxu0 0.0
    %991 = vmatprep.subr.mxu0 0.0
    %992 = vmatpush1.xpose.msra.mxu0 0.0
    %993 = vmatprep.subr.mxu0 0.0
    %994 = vmatpush1.xpose.msra.mxu0 0.0
    %995 = vmatprep.mubr.f32.mxu0 0.0
    %996 = vmatmul.mubr.f32.gmra.mrb[0].mxu0 %v927
    %v997 = vpop.f32.mrb[0].mxu0
    %v998 = vadd.f32 0.0, %v997
    %v999 = vpop.f32.mrb[0].mxu0
    %1000 = vdwg.mxu0
    %v1001 = vmul.f32 %v998, 0.17677669
    %v1002 = vadd.f32 %v1001, %v169
    %v1003 = vsel %vm490, %v1002, -inf
    %1004 = vmax.xlane.f32.xlu0 %v1003
    %v1005 = vpop.xlane.xlu0 %1004
    %v1006 = vsub.f32 %v1002, %v1005
    %v1007 = vmul.f32 %v1006, 1.442695
    %v1008 = vpow.pop %v1007
    %v1009 = vsel %vm490, %v1008, 0.0
    %1010 = vadd.xlane.f32.xlu0 %v1009
    %v1011 = vpop.xlane.xlu0 %1010
    %v1012 = vrcp.pop %v1011
    %v1013 = vmul.f32 %v1008, %v1012
    %1014 = vrot.lane.b32.xlu0 %v403, 32
    %v1015 = vpop.permute.xlu0 %1014
    %v1018 = vsel %vm490, %v1013, 0
    %1020 = vmatprep.subr.mxu0 0.0
    %1021 = vmatpush1.msra.mxu0 %v1015
    %1022 = vmatprep.subr.mxu0 0.0
    %1023 = vmatpush1.msra.mxu0 0.0
    %1024 = vmatprep.subr.mxu0 0.0
    %1025 = vmatpush1.msra.mxu0 0.0
    %1026 = vmatprep.subr.mxu0 0.0
    %1027 = vmatpush1.msra.mxu0 0.0
    %1028 = vmatprep.subr.mxu0 0.0
    %1029 = vmatpush1.msra.mxu0 0.0
    %1030 = vmatprep.subr.mxu0 0.0
    %1031 = vmatpush1.msra.mxu0 0.0
    %1032 = vmatprep.subr.mxu0 0.0
    %1033 = vmatpush1.msra.mxu0 0.0
    %1034 = vmatprep.subr.mxu0 0.0
    %1035 = vmatpush1.msra.mxu0 0.0
    %1036 = vmatprep.subr.mxu0 0.0
    %1037 = vmatpush1.msra.mxu0 0.0
    %1038 = vmatprep.subr.mxu0 0.0
    %1039 = vmatpush1.msra.mxu0 0.0
    %1040 = vmatprep.subr.mxu0 0.0
    %1041 = vmatpush1.msra.mxu0 0.0
    %1042 = vmatprep.subr.mxu0 0.0
    %1043 = vmatpush1.msra.mxu0 0.0
    %1044 = vmatprep.subr.mxu0 0.0
    %1045 = vmatpush1.msra.mxu0 0.0
    %1046 = vmatprep.subr.mxu0 0.0
    %1047 = vmatpush1.msra.mxu0 0.0
    %1048 = vmatprep.subr.mxu0 0.0
    %1049 = vmatpush1.msra.mxu0 0.0
    %1050 = vmatprep.subr.mxu0 0.0
    %1051 = vmatpush1.msra.mxu0 0.0
    %1052 = vmatprep.subr.mxu0 0.0
    %1053 = vmatpush1.msra.mxu0 0.0
    %1054 = vmatprep.subr.mxu0 0.0
    %1055 = vmatpush1.msra.mxu0 0.0
    %1056 = vmatprep.subr.mxu0 0.0
    %1057 = vmatpush1.msra.mxu0 0.0
    %1058 = vmatprep.subr.mxu0 0.0
    %1059 = vmatpush1.msra.mxu0 0.0
    %1060 = vmatprep.subr.mxu0 0.0
    %1061 = vmatpush1.msra.mxu0 0.0
    %1062 = vmatprep.subr.mxu0 0.0
    %1063 = vmatpush1.msra.mxu0 0.0
    %1064 = vmatprep.subr.mxu0 0.0
    %1065 = vmatpush1.msra.mxu0 0.0
    %1066 = vmatprep.subr.mxu0 0.0
    %1067 = vmatpush1.msra.mxu0 0.0
    %1068 = vmatprep.subr.mxu0 0.0
    %1069 = vmatpush1.msra.mxu0 0.0
    %1070 = vmatprep.subr.mxu0 0.0
    %1071 = vmatpush1.msra.mxu0 0.0
    %1072 = vmatprep.subr.mxu0 0.0
    %1073 = vmatpush1.msra.mxu0 0.0
    %1074 = vmatprep.subr.mxu0 0.0
    %1075 = vmatpush1.msra.mxu0 0.0
    %1076 = vmatprep.subr.mxu0 0.0
    %1077 = vmatpush1.msra.mxu0 0.0
    %1078 = vmatprep.subr.mxu0 0.0
    %1079 = vmatpush1.msra.mxu0 0.0
    %1080 = vmatprep.subr.mxu0 0.0
    %1081 = vmatpush1.msra.mxu0 0.0
    %1082 = vmatprep.subr.mxu0 0.0
    %1083 = vmatpush1.msra.mxu0 0.0
    %1084 = vmatprep.mubr.f32.mxu0 0.0
    %1085 = vmatmul.mubr.f32.gmra.mrb[0].mxu0 %v1018
    %v1086 = vpop.f32.mrb[0].mxu0
    %v1087 = vadd.f32 0.0, %v1086
    %v1088 = vpop.f32.mrb[0].mxu0
    %1089 = vdwg.mxu0
    %1091 = vrot.lane.b32.xlu0 %v1087, 96
    %v1092 = vpop.permute.xlu0 %1091
    %vm1094 = vcmask 1048320
    %1095 = vst.msk [vmem:[#allocation2] sm:$0xff] %vm1094, %v1092
    %v1097 = vsel %vm411, %v332, 0
    %v1100 = vsel %vm411, %v334, 0
    %1102 = vmatprep.subr.mxu0 0.0
    %1103 = vmatpush1.xpose.msra.mxu0 %v1100
    %1104 = vmatprep.subr.mxu0 0.0
    %1105 = vmatpush1.xpose.msra.mxu0 0.0
    %1106 = vmatprep.subr.mxu0 0.0
    %1107 = vmatpush1.xpose.msra.mxu0 0.0
    %1108 = vmatprep.subr.mxu0 0.0
    %1109 = vmatpush1.xpose.msra.mxu0 0.0
    %1110 = vmatprep.subr.mxu0 0.0
    %1111 = vmatpush1.xpose.msra.mxu0 0.0
    %1112 = vmatprep.subr.mxu0 0.0
    %1113 = vmatpush1.xpose.msra.mxu0 0.0
    %1114 = vmatprep.subr.mxu0 0.0
    %1115 = vmatpush1.xpose.msra.mxu0 0.0
    %1116 = vmatprep.subr.mxu0 0.0
    %1117 = vmatpush1.xpose.msra.mxu0 0.0
    %1118 = vmatprep.subr.mxu0 0.0
    %1119 = vmatpush1.xpose.msra.mxu0 0.0
    %1120 = vmatprep.subr.mxu0 0.0
    %1121 = vmatpush1.xpose.msra.mxu0 0.0
    %1122 = vmatprep.subr.mxu0 0.0
    %1123 = vmatpush1.xpose.msra.mxu0 0.0
    %1124 = vmatprep.subr.mxu0 0.0
    %1125 = vmatpush1.xpose.msra.mxu0 0.0
    %1126 = vmatprep.subr.mxu0 0.0
    %1127 = vmatpush1.xpose.msra.mxu0 0.0
    %1128 = vmatprep.subr.mxu0 0.0
    %1129 = vmatpush1.xpose.msra.mxu0 0.0
    %1130 = vmatprep.subr.mxu0 0.0
    %1131 = vmatpush1.xpose.msra.mxu0 0.0
    %1132 = vmatprep.subr.mxu0 0.0
    %1133 = vmatpush1.xpose.msra.mxu0 0.0
    %1134 = vmatprep.subr.mxu0 0.0
    %1135 = vmatpush1.xpose.msra.mxu0 0.0
    %1136 = vmatprep.subr.mxu0 0.0
    %1137 = vmatpush1.xpose.msra.mxu0 0.0
    %1138 = vmatprep.subr.mxu0 0.0
    %1139 = vmatpush1.xpose.msra.mxu0 0.0
    %1140 = vmatprep.subr.mxu0 0.0
    %1141 = vmatpush1.xpose.msra.mxu0 0.0
    %1142 = vmatprep.subr.mxu0 0.0
    %1143 = vmatpush1.xpose.msra.mxu0 0.0
    %1144 = vmatprep.subr.mxu0 0.0
    %1145 = vmatpush1.xpose.msra.mxu0 0.0
    %1146 = vmatprep.subr.mxu0 0.0
    %1147 = vmatpush1.xpose.msra.mxu0 0.0
    %1148 = vmatprep.subr.mxu0 0.0
    %1149 = vmatpush1.xpose.msra.mxu0 0.0
    %1150 = vmatprep.subr.mxu0 0.0
    %1151 = vmatpush1.xpose.msra.mxu0 0.0
    %1152 = vmatprep.subr.mxu0 0.0
    %1153 = vmatpush1.xpose.msra.mxu0 0.0
    %1154 = vmatprep.subr.mxu0 0.0
    %1155 = vmatpush1.xpose.msra.mxu0 0.0
    %1156 = vmatprep.subr.mxu0 0.0
    %1157 = vmatpush1.xpose.msra.mxu0 0.0
    %1158 = vmatprep.subr.mxu0 0.0
    %1159 = vmatpush1.xpose.msra.mxu0 0.0
    %1160 = vmatprep.subr.mxu0 0.0
    %1161 = vmatpush1.xpose.msra.mxu0 0.0
    %1162 = vmatprep.subr.mxu0 0.0
    %1163 = vmatpush1.xpose.msra.mxu0 0.0
    %1164 = vmatprep.subr.mxu0 0.0
    %1165 = vmatpush1.xpose.msra.mxu0 0.0
    %1166 = vmatprep.mubr.f32.mxu0 0.0
    %1167 = vmatmul.mubr.f32.gmra.mrb[0].mxu0 %v1097
    %v1168 = vpop.f32.mrb[0].mxu0
    %v1169 = vadd.f32 0.0, %v1168
    %v1170 = vpop.f32.mrb[0].mxu0
    %1171 = vdwg.mxu0
    %v1172 = vmul.f32 %v1169, 0.17677669
    %v1173 = vadd.f32 %v1172, %v169
    %v1174 = vsel %vm490, %v1173, -inf
    %1175 = vmax.xlane.f32.xlu0 %v1174
    %v1176 = vpop.xlane.xlu0 %1175
    %v1177 = vsub.f32 %v1173, %v1176
    %v1178 = vmul.f32 %v1177, 1.442695
    %v1179 = vpow.pop %v1178
    %v1180 = vsel %vm490, %v1179, 0.0
    %1181 = vadd.xlane.f32.xlu0 %v1180
    %v1182 = vpop.xlane.xlu0 %1181
    %v1183 = vrcp.pop %v1182
    %v1184 = vmul.f32 %v1179, %v1183
    %v1186 = vsel %vm490, %v1184, 0
    %1188 = vmatprep.subr.mxu0 0.0
    %1189 = vmatpush1.msra.mxu0 %v408
    %1190 = vmatprep.subr.mxu0 0.0
    %1191 = vmatpush1.msra.mxu0 0.0
    %1192 = vmatprep.subr.mxu0 0.0
    %1193 = vmatpush1.msra.mxu0 0.0
    %1194 = vmatprep.subr.mxu0 0.0
    %1195 = vmatpush1.msra.mxu0 0.0
    %1196 = vmatprep.subr.mxu0 0.0
    %1197 = vmatpush1.msra.mxu0 0.0
    %1198 = vmatprep.subr.mxu0 0.0
    %1199 = vmatpush1.msra.mxu0 0.0
    %1200 = vmatprep.subr.mxu0 0.0
    %1201 = vmatpush1.msra.mxu0 0.0
    %1202 = vmatprep.subr.mxu0 0.0
    %1203 = vmatpush1.msra.mxu0 0.0
    %1204 = vmatprep.subr.mxu0 0.0
    %1205 = vmatpush1.msra.mxu0 0.0
    %1206 = vmatprep.subr.mxu0 0.0
    %1207 = vmatpush1.msra.mxu0 0.0
    %1208 = vmatprep.subr.mxu0 0.0
    %1209 = vmatpush1.msra.mxu0 0.0
    %1210 = vmatprep.subr.mxu0 0.0
    %1211 = vmatpush1.msra.mxu0 0.0
    %1212 = vmatprep.subr.mxu0 0.0
    %1213 = vmatpush1.msra.mxu0 0.0
    %1214 = vmatprep.subr.mxu0 0.0
    %1215 = vmatpush1.msra.mxu0 0.0
    %1216 = vmatprep.subr.mxu0 0.0
    %1217 = vmatpush1.msra.mxu0 0.0
    %1218 = vmatprep.subr.mxu0 0.0
    %1219 = vmatpush1.msra.mxu0 0.0
    %1220 = vmatprep.subr.mxu0 0.0
    %1221 = vmatpush1.msra.mxu0 0.0
    %1222 = vmatprep.subr.mxu0 0.0
    %1223 = vmatpush1.msra.mxu0 0.0
    %1224 = vmatprep.subr.mxu0 0.0
    %1225 = vmatpush1.msra.mxu0 0.0
    %1226 = vmatprep.subr.mxu0 0.0
    %1227 = vmatpush1.msra.mxu0 0.0
    %1228 = vmatprep.subr.mxu0 0.0
    %1229 = vmatpush1.msra.mxu0 0.0
    %1230 = vmatprep.subr.mxu0 0.0
    %1231 = vmatpush1.msra.mxu0 0.0
    %1232 = vmatprep.subr.mxu0 0.0
    %1233 = vmatpush1.msra.mxu0 0.0
    %1234 = vmatprep.subr.mxu0 0.0
    %1235 = vmatpush1.msra.mxu0 0.0
    %1236 = vmatprep.subr.mxu0 0.0
    %1237 = vmatpush1.msra.mxu0 0.0
    %1238 = vmatprep.subr.mxu0 0.0
    %1239 = vmatpush1.msra.mxu0 0.0
    %1240 = vmatprep.subr.mxu0 0.0
    %1241 = vmatpush1.msra.mxu0 0.0
    %1242 = vmatprep.subr.mxu0 0.0
    %1243 = vmatpush1.msra.mxu0 0.0
    %1244 = vmatprep.subr.mxu0 0.0
    %1245 = vmatpush1.msra.mxu0 0.0
    %1246 = vmatprep.subr.mxu0 0.0
    %1247 = vmatpush1.msra.mxu0 0.0
    %1248 = vmatprep.subr.mxu0 0.0
    %1249 = vmatpush1.msra.mxu0 0.0
    %1250 = vmatprep.subr.mxu0 0.0
    %1251 = vmatpush1.msra.mxu0 0.0
    %1252 = vmatprep.mubr.f32.mxu0 0.0
    %1253 = vmatmul.mubr.f32.gmra.mrb[0].mxu0 %v1186
    %v1254 = vpop.f32.mrb[0].mxu0
    %v1255 = vadd.f32 0.0, %v1254
    %v1256 = vpop.f32.mrb[0].mxu0
    %1257 = vdwg.mxu0
    %1258 = vst.msk [vmem:[#allocation2 + $0x8] sm:$0xff] %vm411, %v1255
    %1259 = vrot.lane.b32.xlu0 %v332, 96
    %v1260 = vpop.permute.xlu0 %1259
    %1261 = vrot.lane.b32.xlu0 %v334, 96
    %v1262 = vpop.permute.xlu0 %1261
    %v1263 = vsel %vm411, %v1260, 0
    %v1265 = vsel %vm411, %v1262, 0
    %1267 = vmatprep.subr.mxu0 0.0
    %1268 = vmatpush1.xpose.msra.mxu0 %v1265
    %1269 = vmatprep.subr.mxu0 0.0
    %1270 = vmatpush1.xpose.msra.mxu0 0.0
    %1271 = vmatprep.subr.mxu0 0.0
    %1272 = vmatpush1.xpose.msra.mxu0 0.0
    %1273 = vmatprep.subr.mxu0 0.0
    %1274 = vmatpush1.xpose.msra.mxu0 0.0
    %1275 = vmatprep.subr.mxu0 0.0
    %1276 = vmatpush1.xpose.msra.mxu0 0.0
    %1277 = vmatprep.subr.mxu0 0.0
    %1278 = vmatpush1.xpose.msra.mxu0 0.0
    %1279 = vmatprep.subr.mxu0 0.0
    %1280 = vmatpush1.xpose.msra.mxu0 0.0
    %1281 = vmatprep.subr.mxu0 0.0
    %1282 = vmatpush1.xpose.msra.mxu0 0.0
    %1283 = vmatprep.subr.mxu0 0.0
    %1284 = vmatpush1.xpose.msra.mxu0 0.0
    %1285 = vmatprep.subr.mxu0 0.0
    %1286 = vmatpush1.xpose.msra.mxu0 0.0
    %1287 = vmatprep.subr.mxu0 0.0
    %1288 = vmatpush1.xpose.msra.mxu0 0.0
    %1289 = vmatprep.subr.mxu0 0.0
    %1290 = vmatpush1.xpose.msra.mxu0 0.0
    %1291 = vmatprep.subr.mxu0 0.0
    %1292 = vmatpush1.xpose.msra.mxu0 0.0
    %1293 = vmatprep.subr.mxu0 0.0
    %1294 = vmatpush1.xpose.msra.mxu0 0.0
    %1295 = vmatprep.subr.mxu0 0.0
    %1296 = vmatpush1.xpose.msra.mxu0 0.0
    %1297 = vmatprep.subr.mxu0 0.0
    %1298 = vmatpush1.xpose.msra.mxu0 0.0
    %1299 = vmatprep.subr.mxu0 0.0
    %1300 = vmatpush1.xpose.msra.mxu0 0.0
    %1301 = vmatprep.subr.mxu0 0.0
    %1302 = vmatpush1.xpose.msra.mxu0 0.0
    %1303 = vmatprep.subr.mxu0 0.0
    %1304 = vmatpush1.xpose.msra.mxu0 0.0
    %1305 = vmatprep.subr.mxu0 0.0
    %1306 = vmatpush1.xpose.msra.mxu0 0.0
    %1307 = vmatprep.subr.mxu0 0.0
    %1308 = vmatpush1.xpose.msra.mxu0 0.0
    %1309 = vmatprep.subr.mxu0 0.0
    %1310 = vmatpush1.xpose.msra.mxu0 0.0
    %1311 = vmatprep.subr.mxu0 0.0
    %1312 = vmatpush1.xpose.msra.mxu0 0.0
    %1313 = vmatprep.subr.mxu0 0.0
    %1314 = vmatpush1.xpose.msra.mxu0 0.0
    %1315 = vmatprep.subr.mxu0 0.0
    %1316 = vmatpush1.xpose.msra.mxu0 0.0
    %1317 = vmatprep.subr.mxu0 0.0
    %1318 = vmatpush1.xpose.msra.mxu0 0.0
    %1319 = vmatprep.subr.mxu0 0.0
    %1320 = vmatpush1.xpose.msra.mxu0 0.0
    %1321 = vmatprep.subr.mxu0 0.0
    %1322 = vmatpush1.xpose.msra.mxu0 0.0
    %1323 = vmatprep.subr.mxu0 0.0
    %1324 = vmatpush1.xpose.msra.mxu0 0.0
    %1325 = vmatprep.subr.mxu0 0.0
    %1326 = vmatpush1.xpose.msra.mxu0 0.0
    %1327 = vmatprep.subr.mxu0 0.0
    %1328 = vmatpush1.xpose.msra.mxu0 0.0
    %1329 = vmatprep.subr.mxu0 0.0
    %1330 = vmatpush1.xpose.msra.mxu0 0.0
    %1331 = vmatprep.mubr.f32.mxu0 0.0
    %1332 = vmatmul.mubr.f32.gmra.mrb[0].mxu0 %v1263
    %v1333 = vpop.f32.mrb[0].mxu0
    %v1334 = vadd.f32 0.0, %v1333
    %v1335 = vpop.f32.mrb[0].mxu0
    %1336 = vdwg.mxu0
    %v1337 = vmul.f32 %v1334, 0.17677669
    %v1338 = vadd.f32 %v1337, %v169
    %v1339 = vsel %vm490, %v1338, -inf
    %1340 = vmax.xlane.f32.xlu0 %v1339
    %v1341 = vpop.xlane.xlu0 %1340
    %v1342 = vsub.f32 %v1338, %v1341
    %v1343 = vmul.f32 %v1342, 1.442695
    %v1344 = vpow.pop %v1343
    %v1345 = vsel %vm490, %v1344, 0.0
    %1346 = vadd.xlane.f32.xlu0 %v1345
    %v1347 = vpop.xlane.xlu0 %1346
    %v1348 = vrcp.pop %v1347
    %v1349 = vmul.f32 %v1344, %v1348
    %1351 = vrot.lane.b32.xlu0 %v408, 96
    %v1352 = vpop.permute.xlu0 %1351
    %v1355 = vsel %vm490, %v1349, 0
    %1357 = vmatprep.subr.mxu0 0.0
    %1358 = vmatpush1.msra.mxu0 %v1352
    %1359 = vmatprep.subr.mxu0 0.0
    %1360 = vmatpush1.msra.mxu0 0.0
    %1361 = vmatprep.subr.mxu0 0.0
    %1362 = vmatpush1.msra.mxu0 0.0
    %1363 = vmatprep.subr.mxu0 0.0
    %1364 = vmatpush1.msra.mxu0 0.0
    %1365 = vmatprep.subr.mxu0 0.0
    %1366 = vmatpush1.msra.mxu0 0.0
    %1367 = vmatprep.subr.mxu0 0.0
    %1368 = vmatpush1.msra.mxu0 0.0
    %1369 = vmatprep.subr.mxu0 0.0
    %1370 = vmatpush1.msra.mxu0 0.0
    %1371 = vmatprep.subr.mxu0 0.0
    %1372 = vmatpush1.msra.mxu0 0.0
    %1373 = vmatprep.subr.mxu0 0.0
    %1374 = vmatpush1.msra.mxu0 0.0
    %1375 = vmatprep.subr.mxu0 0.0
    %1376 = vmatpush1.msra.mxu0 0.0
    %1377 = vmatprep.subr.mxu0 0.0
    %1378 = vmatpush1.msra.mxu0 0.0
    %1379 = vmatprep.subr.mxu0 0.0
    %1380 = vmatpush1.msra.mxu0 0.0
    %1381 = vmatprep.subr.mxu0 0.0
    %1382 = vmatpush1.msra.mxu0 0.0
    %1383 = vmatprep.subr.mxu0 0.0
    %1384 = vmatpush1.msra.mxu0 0.0
    %1385 = vmatprep.subr.mxu0 0.0
    %1386 = vmatpush1.msra.mxu0 0.0
    %1387 = vmatprep.subr.mxu0 0.0
    %1388 = vmatpush1.msra.mxu0 0.0
    %1389 = vmatprep.subr.mxu0 0.0
    %1390 = vmatpush1.msra.mxu0 0.0
    %1391 = vmatprep.subr.mxu0 0.0
    %1392 = vmatpush1.msra.mxu0 0.0
    %1393 = vmatprep.subr.mxu0 0.0
    %1394 = vmatpush1.msra.mxu0 0.0
    %1395 = vmatprep.subr.mxu0 0.0
    %1396 = vmatpush1.msra.mxu0 0.0
    %1397 = vmatprep.subr.mxu0 0.0
    %1398 = vmatpush1.msra.mxu0 0.0
    %1399 = vmatprep.subr.mxu0 0.0
    %1400 = vmatpush1.msra.mxu0 0.0
    %1401 = vmatprep.subr.mxu0 0.0
    %1402 = vmatpush1.msra.mxu0 0.0
    %1403 = vmatprep.subr.mxu0 0.0
    %1404 = vmatpush1.msra.mxu0 0.0
    %1405 = vmatprep.subr.mxu0 0.0
    %1406 = vmatpush1.msra.mxu0 0.0
    %1407 = vmatprep.subr.mxu0 0.0
    %1408 = vmatpush1.msra.mxu0 0.0
    %1409 = vmatprep.subr.mxu0 0.0
    %1410 = vmatpush1.msra.mxu0 0.0
    %1411 = vmatprep.subr.mxu0 0.0
    %1412 = vmatpush1.msra.mxu0 0.0
    %1413 = vmatprep.subr.mxu0 0.0
    %1414 = vmatpush1.msra.mxu0 0.0
    %1415 = vmatprep.subr.mxu0 0.0
    %1416 = vmatpush1.msra.mxu0 0.0
    %1417 = vmatprep.subr.mxu0 0.0
    %1418 = vmatpush1.msra.mxu0 0.0
    %1419 = vmatprep.subr.mxu0 0.0
    %1420 = vmatpush1.msra.mxu0 0.0
    %1421 = vmatprep.mubr.f32.mxu0 0.0
    %1422 = vmatmul.mubr.f32.gmra.mrb[0].mxu0 %v1355
    %v1423 = vpop.f32.mrb[0].mxu0
    %v1424 = vadd.f32 0.0, %v1423
    %v1425 = vpop.f32.mrb[0].mxu0
    %1426 = vdwg.mxu0
    %1428 = vrot.lane.b32.xlu0 %v1424, 32
    %v1429 = vpop.permute.xlu0 %1428
    %1431 = vst.msk [vmem:[#allocation2 + $0x8] sm:$0xff] %vm748, %v1429
    %1432 = vrot.lane.b32.xlu0 %v332, 64
    %v1433 = vpop.permute.xlu0 %1432
    %1434 = vrot.lane.b32.xlu0 %v334, 64
    %v1435 = vpop.permute.xlu0 %1434
    %v1436 = vsel %vm411, %v1433, 0
    %v1438 = vsel %vm411, %v1435, 0
    %1440 = vmatprep.subr.mxu0 0.0
    %1441 = vmatpush1.xpose.msra.mxu0 %v1438
    %1442 = vmatprep.subr.mxu0 0.0
    %1443 = vmatpush1.xpose.msra.mxu0 0.0
    %1444 = vmatprep.subr.mxu0 0.0
    %1445 = vmatpush1.xpose.msra.mxu0 0.0
    %1446 = vmatprep.subr.mxu0 0.0
    %1447 = vmatpush1.xpose.msra.mxu0 0.0
    %1448 = vmatprep.subr.mxu0 0.0
    %1449 = vmatpush1.xpose.msra.mxu0 0.0
    %1450 = vmatprep.subr.mxu0 0.0
    %1451 = vmatpush1.xpose.msra.mxu0 0.0
    %1452 = vmatprep.subr.mxu0 0.0
    %1453 = vmatpush1.xpose.msra.mxu0 0.0
    %1454 = vmatprep.subr.mxu0 0.0
    %1455 = vmatpush1.xpose.msra.mxu0 0.0
    %1456 = vmatprep.subr.mxu0 0.0
    %1457 = vmatpush1.xpose.msra.mxu0 0.0
    %1458 = vmatprep.subr.mxu0 0.0
    %1459 = vmatpush1.xpose.msra.mxu0 0.0
    %1460 = vmatprep.subr.mxu0 0.0
    %1461 = vmatpush1.xpose.msra.mxu0 0.0
    %1462 = vmatprep.subr.mxu0 0.0
    %1463 = vmatpush1.xpose.msra.mxu0 0.0
    %1464 = vmatprep.subr.mxu0 0.0
    %1465 = vmatpush1.xpose.msra.mxu0 0.0
    %1466 = vmatprep.subr.mxu0 0.0
    %1467 = vmatpush1.xpose.msra.mxu0 0.0
    %1468 = vmatprep.subr.mxu0 0.0
    %1469 = vmatpush1.xpose.msra.mxu0 0.0
    %1470 = vmatprep.subr.mxu0 0.0
    %1471 = vmatpush1.xpose.msra.mxu0 0.0
    %1472 = vmatprep.subr.mxu0 0.0
    %1473 = vmatpush1.xpose.msra.mxu0 0.0
    %1474 = vmatprep.subr.mxu0 0.0
    %1475 = vmatpush1.xpose.msra.mxu0 0.0
    %1476 = vmatprep.subr.mxu0 0.0
    %1477 = vmatpush1.xpose.msra.mxu0 0.0
    %1478 = vmatprep.subr.mxu0 0.0
    %1479 = vmatpush1.xpose.msra.mxu0 0.0
    %1480 = vmatprep.subr.mxu0 0.0
    %1481 = vmatpush1.xpose.msra.mxu0 0.0
    %1482 = vmatprep.subr.mxu0 0.0
    %1483 = vmatpush1.xpose.msra.mxu0 0.0
    %1484 = vmatprep.subr.mxu0 0.0
    %1485 = vmatpush1.xpose.msra.mxu0 0.0
    %1486 = vmatprep.subr.mxu0 0.0
    %1487 = vmatpush1.xpose.msra.mxu0 0.0
    %1488 = vmatprep.subr.mxu0 0.0
    %1489 = vmatpush1.xpose.msra.mxu0 0.0
    %1490 = vmatprep.subr.mxu0 0.0
    %1491 = vmatpush1.xpose.msra.mxu0 0.0
    %1492 = vmatprep.subr.mxu0 0.0
    %1493 = vmatpush1.xpose.msra.mxu0 0.0
    %1494 = vmatprep.subr.mxu0 0.0
    %1495 = vmatpush1.xpose.msra.mxu0 0.0
    %1496 = vmatprep.subr.mxu0 0.0
    %1497 = vmatpush1.xpose.msra.mxu0 0.0
    %1498 = vmatprep.subr.mxu0 0.0
    %1499 = vmatpush1.xpose.msra.mxu0 0.0
    %1500 = vmatprep.subr.mxu0 0.0
    %1501 = vmatpush1.xpose.msra.mxu0 0.0
    %1502 = vmatprep.subr.mxu0 0.0
    %1503 = vmatpush1.xpose.msra.mxu0 0.0
    %1504 = vmatprep.mubr.f32.mxu0 0.0
    %1505 = vmatmul.mubr.f32.gmra.mrb[0].mxu0 %v1436
    %v1506 = vpop.f32.mrb[0].mxu0
    %v1507 = vadd.f32 0.0, %v1506
    %v1508 = vpop.f32.mrb[0].mxu0
    %1509 = vdwg.mxu0
    %v1510 = vmul.f32 %v1507, 0.17677669
    %v1511 = vadd.f32 %v1510, %v169
    %v1512 = vsel %vm490, %v1511, -inf
    %1513 = vmax.xlane.f32.xlu0 %v1512
    %v1514 = vpop.xlane.xlu0 %1513
    %v1515 = vsub.f32 %v1511, %v1514
    %v1516 = vmul.f32 %v1515, 1.442695
    %v1517 = vpow.pop %v1516
    %v1518 = vsel %vm490, %v1517, 0.0
    %1519 = vadd.xlane.f32.xlu0 %v1518
    %v1520 = vpop.xlane.xlu0 %1519
    %v1521 = vrcp.pop %v1520
    %v1522 = vmul.f32 %v1517, %v1521
    %1523 = vrot.lane.b32.xlu0 %v408, 64
    %v1524 = vpop.permute.xlu0 %1523
    %v1527 = vsel %vm490, %v1522, 0
    %1529 = vmatprep.subr.mxu0 0.0
    %1530 = vmatpush1.msra.mxu0 %v1524
    %1531 = vmatprep.subr.mxu0 0.0
    %1532 = vmatpush1.msra.mxu0 0.0
    %1533 = vmatprep.subr.mxu0 0.0
    %1534 = vmatpush1.msra.mxu0 0.0
    %1535 = vmatprep.subr.mxu0 0.0
    %1536 = vmatpush1.msra.mxu0 0.0
    %1537 = vmatprep.subr.mxu0 0.0
    %1538 = vmatpush1.msra.mxu0 0.0
    %1539 = vmatprep.subr.mxu0 0.0
    %1540 = vmatpush1.msra.mxu0 0.0
    %1541 = vmatprep.subr.mxu0 0.0
    %1542 = vmatpush1.msra.mxu0 0.0
    %1543 = vmatprep.subr.mxu0 0.0
    %1544 = vmatpush1.msra.mxu0 0.0
    %1545 = vmatprep.subr.mxu0 0.0
    %1546 = vmatpush1.msra.mxu0 0.0
    %1547 = vmatprep.subr.mxu0 0.0
    %1548 = vmatpush1.msra.mxu0 0.0
    %1549 = vmatprep.subr.mxu0 0.0
    %1550 = vmatpush1.msra.mxu0 0.0
    %1551 = vmatprep.subr.mxu0 0.0
    %1552 = vmatpush1.msra.mxu0 0.0
    %1553 = vmatprep.subr.mxu0 0.0
    %1554 = vmatpush1.msra.mxu0 0.0
    %1555 = vmatprep.subr.mxu0 0.0
    %1556 = vmatpush1.msra.mxu0 0.0
    %1557 = vmatprep.subr.mxu0 0.0
    %1558 = vmatpush1.msra.mxu0 0.0
    %1559 = vmatprep.subr.mxu0 0.0
    %1560 = vmatpush1.msra.mxu0 0.0
    %1561 = vmatprep.subr.mxu0 0.0
    %1562 = vmatpush1.msra.mxu0 0.0
    %1563 = vmatprep.subr.mxu0 0.0
    %1564 = vmatpush1.msra.mxu0 0.0
    %1565 = vmatprep.subr.mxu0 0.0
    %1566 = vmatpush1.msra.mxu0 0.0
    %1567 = vmatprep.subr.mxu0 0.0
    %1568 = vmatpush1.msra.mxu0 0.0
    %1569 = vmatprep.subr.mxu0 0.0
    %1570 = vmatpush1.msra.mxu0 0.0
    %1571 = vmatprep.subr.mxu0 0.0
    %1572 = vmatpush1.msra.mxu0 0.0
    %1573 = vmatprep.subr.mxu0 0.0
    %1574 = vmatpush1.msra.mxu0 0.0
    %1575 = vmatprep.subr.mxu0 0.0
    %1576 = vmatpush1.msra.mxu0 0.0
    %1577 = vmatprep.subr.mxu0 0.0
    %1578 = vmatpush1.msra.mxu0 0.0
    %1579 = vmatprep.subr.mxu0 0.0
    %1580 = vmatpush1.msra.mxu0 0.0
    %1581 = vmatprep.subr.mxu0 0.0
    %1582 = vmatpush1.msra.mxu0 0.0
    %1583 = vmatprep.subr.mxu0 0.0
    %1584 = vmatpush1.msra.mxu0 0.0
    %1585 = vmatprep.subr.mxu0 0.0
    %1586 = vmatpush1.msra.mxu0 0.0
    %1587 = vmatprep.subr.mxu0 0.0
    %1588 = vmatpush1.msra.mxu0 0.0
    %1589 = vmatprep.subr.mxu0 0.0
    %1590 = vmatpush1.msra.mxu0 0.0
    %1591 = vmatprep.subr.mxu0 0.0
    %1592 = vmatpush1.msra.mxu0 0.0
    %1593 = vmatprep.mubr.f32.mxu0 0.0
    %1594 = vmatmul.mubr.f32.gmra.mrb[0].mxu0 %v1527
    %v1595 = vpop.f32.mrb[0].mxu0
    %v1596 = vadd.f32 0.0, %v1595
    %v1597 = vpop.f32.mrb[0].mxu0
    %1598 = vdwg.mxu0
    %1600 = vrot.lane.b32.xlu0 %v1596, 64
    %v1601 = vpop.permute.xlu0 %1600
    %1603 = vst.msk [vmem:[#allocation2 + $0x8] sm:$0xff] %vm921, %v1601
    %1604 = vrot.lane.b32.xlu0 %v332, 32
    %v1605 = vpop.permute.xlu0 %1604
    %1606 = vrot.lane.b32.xlu0 %v334, 32
    %v1607 = vpop.permute.xlu0 %1606
    %v1608 = vsel %vm411, %v1605, 0
    %v1610 = vsel %vm411, %v1607, 0
    %1612 = vmatprep.subr.mxu0 0.0
    %1613 = vmatpush1.xpose.msra.mxu0 %v1610
    %1614 = vmatprep.subr.mxu0 0.0
    %1615 = vmatpush1.xpose.msra.mxu0 0.0
    %1616 = vmatprep.subr.mxu0 0.0
    %1617 = vmatpush1.xpose.msra.mxu0 0.0
    %1618 = vmatprep.subr.mxu0 0.0
    %1619 = vmatpush1.xpose.msra.mxu0 0.0
    %1620 = vmatprep.subr.mxu0 0.0
    %1621 = vmatpush1.xpose.msra.mxu0 0.0
    %1622 = vmatprep.subr.mxu0 0.0
    %1623 = vmatpush1.xpose.msra.mxu0 0.0
    %1624 = vmatprep.subr.mxu0 0.0
    %1625 = vmatpush1.xpose.msra.mxu0 0.0
    %1626 = vmatprep.subr.mxu0 0.0
    %1627 = vmatpush1.xpose.msra.mxu0 0.0
    %1628 = vmatprep.subr.mxu0 0.0
    %1629 = vmatpush1.xpose.msra.mxu0 0.0
    %1630 = vmatprep.subr.mxu0 0.0
    %1631 = vmatpush1.xpose.msra.mxu0 0.0
    %1632 = vmatprep.subr.mxu0 0.0
    %1633 = vmatpush1.xpose.msra.mxu0 0.0
    %1634 = vmatprep.subr.mxu0 0.0
    %1635 = vmatpush1.xpose.msra.mxu0 0.0
    %1636 = vmatprep.subr.mxu0 0.0
    %1637 = vmatpush1.xpose.msra.mxu0 0.0
    %1638 = vmatprep.subr.mxu0 0.0
    %1639 = vmatpush1.xpose.msra.mxu0 0.0
    %1640 = vmatprep.subr.mxu0 0.0
    %1641 = vmatpush1.xpose.msra.mxu0 0.0
    %1642 = vmatprep.subr.mxu0 0.0
    %1643 = vmatpush1.xpose.msra.mxu0 0.0
    %1644 = vmatprep.subr.mxu0 0.0
    %1645 = vmatpush1.xpose.msra.mxu0 0.0
    %1646 = vmatprep.subr.mxu0 0.0
    %1647 = vmatpush1.xpose.msra.mxu0 0.0
    %1648 = vmatprep.subr.mxu0 0.0
    %1649 = vmatpush1.xpose.msra.mxu0 0.0
    %1650 = vmatprep.subr.mxu0 0.0
    %1651 = vmatpush1.xpose.msra.mxu0 0.0
    %1652 = vmatprep.subr.mxu0 0.0
    %1653 = vmatpush1.xpose.msra.mxu0 0.0
    %1654 = vmatprep.subr.mxu0 0.0
    %1655 = vmatpush1.xpose.msra.mxu0 0.0
    %1656 = vmatprep.subr.mxu0 0.0
    %1657 = vmatpush1.xpose.msra.mxu0 0.0
    %1658 = vmatprep.subr.mxu0 0.0
    %1659 = vmatpush1.xpose.msra.mxu0 0.0
    %1660 = vmatprep.subr.mxu0 0.0
    %1661 = vmatpush1.xpose.msra.mxu0 0.0
    %1662 = vmatprep.subr.mxu0 0.0
    %1663 = vmatpush1.xpose.msra.mxu0 0.0
    %1664 = vmatprep.subr.mxu0 0.0
    %1665 = vmatpush1.xpose.msra.mxu0 0.0
    %1666 = vmatprep.subr.mxu0 0.0
    %1667 = vmatpush1.xpose.msra.mxu0 0.0
    %1668 = vmatprep.subr.mxu0 0.0
    %1669 = vmatpush1.xpose.msra.mxu0 0.0
    %1670 = vmatprep.subr.mxu0 0.0
    %1671 = vmatpush1.xpose.msra.mxu0 0.0
    %1672 = vmatprep.subr.mxu0 0.0
    %1673 = vmatpush1.xpose.msra.mxu0 0.0
    %1674 = vmatprep.subr.mxu0 0.0
    %1675 = vmatpush1.xpose.msra.mxu0 0.0
    %1676 = vmatprep.mubr.f32.mxu0 0.0
    %1677 = vmatmul.mubr.f32.gmra.mrb[0].mxu0 %v1608
    %v1678 = vpop.f32.mrb[0].mxu0
    %v1679 = vadd.f32 0.0, %v1678
    %v1680 = vpop.f32.mrb[0].mxu0
    %1681 = vdwg.mxu0
    %v1682 = vmul.f32 %v1679, 0.17677669
    %v1683 = vadd.f32 %v1682, %v169
    %v1684 = vsel %vm490, %v1683, -inf
    %1685 = vmax.xlane.f32.xlu0 %v1684
    %v1686 = vpop.xlane.xlu0 %1685
    %v1687 = vsub.f32 %v1683, %v1686
    %v1688 = vmul.f32 %v1687, 1.442695
    %v1689 = vpow.pop %v1688
    %v1690 = vsel %vm490, %v1689, 0.0
    %1691 = vadd.xlane.f32.xlu0 %v1690
    %v1692 = vpop.xlane.xlu0 %1691
    %v1693 = vrcp.pop %v1692
    %v1694 = vmul.f32 %v1689, %v1693
    %1695 = vrot.lane.b32.xlu0 %v408, 32
    %v1696 = vpop.permute.xlu0 %1695
    %v1699 = vsel %vm490, %v1694, 0
    %1701 = vmatprep.subr.mxu0 0.0
    %1702 = vmatpush1.msra.mxu0 %v1696
    %1703 = vmatprep.subr.mxu0 0.0
    %1704 = vmatpush1.msra.mxu0 0.0
    %1705 = vmatprep.subr.mxu0 0.0
    %1706 = vmatpush1.msra.mxu0 0.0
    %1707 = vmatprep.subr.mxu0 0.0
    %1708 = vmatpush1.msra.mxu0 0.0
    %1709 = vmatprep.subr.mxu0 0.0
    %1710 = vmatpush1.msra.mxu0 0.0
    %1711 = vmatprep.subr.mxu0 0.0
    %1712 = vmatpush1.msra.mxu0 0.0
    %1713 = vmatprep.subr.mxu0 0.0
    %1714 = vmatpush1.msra.mxu0 0.0
    %1715 = vmatprep.subr.mxu0 0.0
    %1716 = vmatpush1.msra.mxu0 0.0
    %1717 = vmatprep.subr.mxu0 0.0
    %1718 = vmatpush1.msra.mxu0 0.0
    %1719 = vmatprep.subr.mxu0 0.0
    %1720 = vmatpush1.msra.mxu0 0.0
    %1721 = vmatprep.subr.mxu0 0.0
    %1722 = vmatpush1.msra.mxu0 0.0
    %1723 = vmatprep.subr.mxu0 0.0
    %1724 = vmatpush1.msra.mxu0 0.0
    %1725 = vmatprep.subr.mxu0 0.0
    %1726 = vmatpush1.msra.mxu0 0.0
    %1727 = vmatprep.subr.mxu0 0.0
    %1728 = vmatpush1.msra.mxu0 0.0
    %1729 = vmatprep.subr.mxu0 0.0
    %1730 = vmatpush1.msra.mxu0 0.0
    %1731 = vmatprep.subr.mxu0 0.0
    %1732 = vmatpush1.msra.mxu0 0.0
    %1733 = vmatprep.subr.mxu0 0.0
    %1734 = vmatpush1.msra.mxu0 0.0
    %1735 = vmatprep.subr.mxu0 0.0
    %1736 = vmatpush1.msra.mxu0 0.0
    %1737 = vmatprep.subr.mxu0 0.0
    %1738 = vmatpush1.msra.mxu0 0.0
    %1739 = vmatprep.subr.mxu0 0.0
    %1740 = vmatpush1.msra.mxu0 0.0
    %1741 = vmatprep.subr.mxu0 0.0
    %1742 = vmatpush1.msra.mxu0 0.0
    %1743 = vmatprep.subr.mxu0 0.0
    %1744 = vmatpush1.msra.mxu0 0.0
    %1745 = vmatprep.subr.mxu0 0.0
    %1746 = vmatpush1.msra.mxu0 0.0
    %1747 = vmatprep.subr.mxu0 0.0
    %1748 = vmatpush1.msra.mxu0 0.0
    %1749 = vmatprep.subr.mxu0 0.0
    %1750 = vmatpush1.msra.mxu0 0.0
    %1751 = vmatprep.subr.mxu0 0.0
    %1752 = vmatpush1.msra.mxu0 0.0
    %1753 = vmatprep.subr.mxu0 0.0
    %1754 = vmatpush1.msra.mxu0 0.0
    %1755 = vmatprep.subr.mxu0 0.0
    %1756 = vmatpush1.msra.mxu0 0.0
    %1757 = vmatprep.subr.mxu0 0.0
    %1758 = vmatpush1.msra.mxu0 0.0
    %1759 = vmatprep.subr.mxu0 0.0
    %1760 = vmatpush1.msra.mxu0 0.0
    %1761 = vmatprep.subr.mxu0 0.0
    %1762 = vmatpush1.msra.mxu0 0.0
    %1763 = vmatprep.subr.mxu0 0.0
    %1764 = vmatpush1.msra.mxu0 0.0
    %1765 = vmatprep.mubr.f32.mxu0 0.0
    %1766 = vmatmul.mubr.f32.gmra.mrb[0].mxu0 %v1699
    %v1767 = vpop.f32.mrb[0].mxu0
    %v1768 = vadd.f32 0.0, %v1767
    %v1769 = vpop.f32.mrb[0].mxu0
    %1770 = vdwg.mxu0
    %1772 = vrot.lane.b32.xlu0 %v1768, 96
    %v1773 = vpop.permute.xlu0 %1772
    %1775 = vst.msk [vmem:[#allocation2 + $0x8] sm:$0xff] %vm1094, %v1773
    %v1776 = vld [vmem:[#allocation2] sm:$0xff]
    %v1777 = vld [vmem:[#allocation2 + $0x8] sm:$0xff]
    %v1778 = vld [vmem:[#allocation9] sm:$0xff]
    %v1779 = vld [vmem:[#allocation9 + $0x8] sm:$0xff]
    %v1780 = vld [vmem:[#allocation9 + $0x10] sm:$0xff]
    %v1781 = vld [vmem:[#allocation9 + $0x18] sm:$0xff]
    %v1782 = vld [vmem:[#allocation9 + $0x20] sm:$0xff]
    %v1783 = vld [vmem:[#allocation9 + $0x28] sm:$0xff]
    %v1784 = vld [vmem:[#allocation9 + $0x30] sm:$0xff]
    %v1785 = vld [vmem:[#allocation9 + $0x38] sm:$0xff]
    %v1786 = vld [vmem:[#allocation9 + $0x40] sm:$0xff]
    %v1787 = vld [vmem:[#allocation9 + $0x48] sm:$0xff]
    %v1788 = vld [vmem:[#allocation9 + $0x50] sm:$0xff]
    %v1789 = vld [vmem:[#allocation9 + $0x58] sm:$0xff]
    %v1790 = vld [vmem:[#allocation9 + $0x60] sm:$0xff]
    %v1791 = vld [vmem:[#allocation9 + $0x68] sm:$0xff]
    %v1792 = vld [vmem:[#allocation9 + $0x70] sm:$0xff]
    %v1793 = vld [vmem:[#allocation9 + $0x78] sm:$0xff]
    %1794 = vmatprep.subr.mxu0 0.0
    %1795 = vmatpush1.msra.mxu0 %v1778
    %1796 = vmatprep.subr.mxu0 0.0
    %1797 = vmatpush1.msra.mxu0 %v1779
    %1798 = vmatprep.subr.mxu0 0.0
    %1799 = vmatpush1.msra.mxu0 %v1780
    %1800 = vmatprep.subr.mxu0 0.0
    %1801 = vmatpush1.msra.mxu0 %v1781
    %1802 = vmatprep.subr.mxu0 0.0
    %1803 = vmatpush1.msra.mxu0 %v1782
    %1804 = vmatprep.subr.mxu0 0.0
    %1805 = vmatpush1.msra.mxu0 %v1783
    %1806 = vmatprep.subr.mxu0 0.0
    %1807 = vmatpush1.msra.mxu0 %v1784
    %1808 = vmatprep.subr.mxu0 0.0
    %1809 = vmatpush1.msra.mxu0 %v1785
    %1810 = vmatprep.subr.mxu0 0.0
    %1811 = vmatpush1.msra.mxu0 %v1786
    %1812 = vmatprep.subr.mxu0 0.0
    %1813 = vmatpush1.msra.mxu0 %v1787
    %1814 = vmatprep.subr.mxu0 0.0
    %1815 = vmatpush1.msra.mxu0 %v1788
    %1816 = vmatprep.subr.mxu0 0.0
    %1817 = vmatpush1.msra.mxu0 %v1789
    %1818 = vmatprep.subr.mxu0 0.0
    %1819 = vmatpush1.msra.mxu0 %v1790
    %1820 = vmatprep.subr.mxu0 0.0
    %1821 = vmatpush1.msra.mxu0 %v1791
    %1822 = vmatprep.subr.mxu0 0.0
    %1823 = vmatpush1.msra.mxu0 %v1792
    %1824 = vmatprep.subr.mxu0 0.0
    %1825 = vmatpush1.msra.mxu0 %v1793
    %1826 = vmatprep.subr.mxu0 0.0
    %1827 = vmatpush1.msra.mxu0 0.0
    %1828 = vmatprep.subr.mxu0 0.0
    %1829 = vmatpush1.msra.mxu0 0.0
    %1830 = vmatprep.subr.mxu0 0.0
    %1831 = vmatpush1.msra.mxu0 0.0
    %1832 = vmatprep.subr.mxu0 0.0
    %1833 = vmatpush1.msra.mxu0 0.0
    %1834 = vmatprep.subr.mxu0 0.0
    %1835 = vmatpush1.msra.mxu0 0.0
    %1836 = vmatprep.subr.mxu0 0.0
    %1837 = vmatpush1.msra.mxu0 0.0
    %1838 = vmatprep.subr.mxu0 0.0
    %1839 = vmatpush1.msra.mxu0 0.0
    %1840 = vmatprep.subr.mxu0 0.0
    %1841 = vmatpush1.msra.mxu0 0.0
    %1842 = vmatprep.subr.mxu0 0.0
    %1843 = vmatpush1.msra.mxu0 0.0
    %1844 = vmatprep.subr.mxu0 0.0
    %1845 = vmatpush1.msra.mxu0 0.0
    %1846 = vmatprep.subr.mxu0 0.0
    %1847 = vmatpush1.msra.mxu0 0.0
    %1848 = vmatprep.subr.mxu0 0.0
    %1849 = vmatpush1.msra.mxu0 0.0
    %1850 = vmatprep.subr.mxu0 0.0
    %1851 = vmatpush1.msra.mxu0 0.0
    %1852 = vmatprep.subr.mxu0 0.0
    %1853 = vmatpush1.msra.mxu0 0.0
    %1854 = vmatprep.subr.mxu0 0.0
    %1855 = vmatpush1.msra.mxu0 0.0
    %1856 = vmatprep.subr.mxu0 0.0
    %1857 = vmatpush1.msra.mxu0 0.0
    %1858 = vmatprep.mubr.f32.mxu0 0.0
    %1859 = vmatmul.mubr.f32.gmra.mrb[0].mxu0 %v1776
    %v1860 = vpop.f32.mrb[0].mxu0
    %v1861 = vadd.f32 0.0, %v1860
    %v1862 = vpop.f32.mrb[0].mxu0
    %1863 = vmatprep.mubr.f32.mxu0 0.0
    %1864 = vmatmul.mubr.f32.gmra.mrb[0].mxu0 %v1777
    %v1865 = vpop.f32.mrb[0].mxu0
    %v1866 = vadd.f32 0.0, %v1865
    %v1867 = vpop.f32.mrb[0].mxu0
    %1868 = vdwg.mxu0
    %v1869 = vadd.f32 %v167, %v1861
    %v1870 = vadd.f32 %v168, %v1866
    %v1871 = vld [vmem:[%s4] sm:$0x1]
    %v1872 = vld [vmem:[%s5] sm:$0x1]
    %1873 = vadd.xlane.f32.xlu0 %v1869
    %v1874 = vpop.xlane.xlu0 %1873
    %1875 = vadd.xlane.f32.xlu0 %v1870
    %v1876 = vpop.xlane.xlu0 %1875
    %v1877 = vmul.f32 %v1874, %v176
    %v1878 = vmul.f32 %v1876, %v176
    %v1879 = vsub.f32 %v1869, %v1877
    %v1880 = vsub.f32 %v1870, %v1878
    %v1881 = vmul.f32 %v1879, %v1879
    %v1882 = vmul.f32 %v1880, %v1880
    %1883 = vadd.xlane.f32.xlu0 %v1881
    %v1884 = vpop.xlane.xlu0 %1883
    %1885 = vadd.xlane.f32.xlu0 %v1882
    %v1886 = vpop.xlane.xlu0 %1885
    %v1887 = vmul.f32 %v1884, %v176
    %v1888 = vmul.f32 %v1886, %v176
    %v1889 = vadd.f32 %v1887, 1e-05
    %v1890 = vadd.f32 %v1888, 1e-05
    %v1891 = vrsqrt.pop %v1889
    %v1892 = vrsqrt.pop %v1890
    %v1893 = vmul.f32 %v1879, %v1891
    %v1894 = vmul.f32 %v1880, %v1892
    %v1896 = vlaneseq
    %v1897 = vshrl.u32 %v1896, 7
    %v1898 = vsub.s32 0, %v1897
    %v1899 = vrot.slane %v1871, %v1898
    %v1901 = vmul.f32 %v1893, %v1899
    %v1902 = vmul.f32 %v1894, %v1899
    %v1904 = vlaneseq
    %v1905 = vshrl.u32 %v1904, 7
    %v1906 = vsub.s32 0, %v1905
    %v1907 = vrot.slane %v1872, %v1906
    %v1909 = vadd.f32 %v1901, %v1907
    %v1910 = vadd.f32 %v1902, %v1907
    %v1911 = vld [vmem:[#allocation11] sm:$0xff]
    %v1912 = vld [vmem:[#allocation11 + $0x8] sm:$0xff]
    %v1913 = vld [vmem:[#allocation11 + $0x10] sm:$0xff]
    %v1914 = vld [vmem:[#allocation11 + $0x18] sm:$0xff]
    %v1915 = vld [vmem:[#allocation11 + $0x20] sm:$0xff]
    %v1916 = vld [vmem:[#allocation11 + $0x28] sm:$0xff]
    %v1917 = vld [vmem:[#allocation11 + $0x30] sm:$0xff]
    %v1918 = vld [vmem:[#allocation11 + $0x38] sm:$0xff]
    %v1919 = vld [vmem:[#allocation11 + $0x40] sm:$0xff]
    %v1920 = vld [vmem:[#allocation11 + $0x48] sm:$0xff]
    %v1921 = vld [vmem:[#allocation11 + $0x50] sm:$0xff]
    %v1922 = vld [vmem:[#allocation11 + $0x58] sm:$0xff]
    %v1923 = vld [vmem:[#allocation11 + $0x60] sm:$0xff]
    %v1924 = vld [vmem:[#allocation11 + $0x68] sm:$0xff]
    %v1925 = vld [vmem:[#allocation11 + $0x70] sm:$0xff]
    %v1926 = vld [vmem:[#allocation11 + $0x78] sm:$0xff]
    %v1927 = vld [vmem:[#allocation11 + $0x80] sm:$0xff]
    %v1928 = vld [vmem:[#allocation11 + $0x88] sm:$0xff]
    %v1929 = vld [vmem:[#allocation11 + $0x90] sm:$0xff]
    %v1930 = vld [vmem:[#allocation11 + $0x98] sm:$0xff]
    %v1931 = vld [vmem:[#allocation11 + $0xa0] sm:$0xff]
    %v1932 = vld [vmem:[#allocation11 + $0xa8] sm:$0xff]
    %v1933 = vld [vmem:[#allocation11 + $0xb0] sm:$0xff]
    %v1934 = vld [vmem:[#allocation11 + $0xb8] sm:$0xff]
    %v1935 = vld [vmem:[#allocation11 + $0xc0] sm:$0xff]
    %v1936 = vld [vmem:[#allocation11 + $0xc8] sm:$0xff]
    %v1937 = vld [vmem:[#allocation11 + $0xd0] sm:$0xff]
    %v1938 = vld [vmem:[#allocation11 + $0xd8] sm:$0xff]
    %v1939 = vld [vmem:[#allocation11 + $0xe0] sm:$0xff]
    %v1940 = vld [vmem:[#allocation11 + $0xe8] sm:$0xff]
    %v1941 = vld [vmem:[#allocation11 + $0xf0] sm:$0xff]
    %v1942 = vld [vmem:[#allocation11 + $0xf8] sm:$0xff]
    %v1943 = vld [vmem:[#allocation11 + $0x100] sm:$0xff]
    %v1944 = vld [vmem:[#allocation11 + $0x108] sm:$0xff]
    %v1945 = vld [vmem:[#allocation11 + $0x110] sm:$0xff]
    %v1946 = vld [vmem:[#allocation11 + $0x118] sm:$0xff]
    %v1947 = vld [vmem:[#allocation11 + $0x120] sm:$0xff]
    %v1948 = vld [vmem:[#allocation11 + $0x128] sm:$0xff]
    %v1949 = vld [vmem:[#allocation11 + $0x130] sm:$0xff]
    %v1950 = vld [vmem:[#allocation11 + $0x138] sm:$0xff]
    %v1951 = vld [vmem:[#allocation11 + $0x140] sm:$0xff]
    %v1952 = vld [vmem:[#allocation11 + $0x148] sm:$0xff]
    %v1953 = vld [vmem:[#allocation11 + $0x150] sm:$0xff]
    %v1954 = vld [vmem:[#allocation11 + $0x158] sm:$0xff]
    %v1955 = vld [vmem:[#allocation11 + $0x160] sm:$0xff]
    %v1956 = vld [vmem:[#allocation11 + $0x168] sm:$0xff]
    %v1957 = vld [vmem:[#allocation11 + $0x170] sm:$0xff]
    %v1958 = vld [vmem:[#allocation11 + $0x178] sm:$0xff]
    %v1959 = vld [vmem:[%s11] sm:$0x7]
    %v1961 = vlaneseq
    %v1962 = vshrl.u32 %v1961, 7
    %v1963 = vsub.s32 0, %v1962
    %v1964 = vrot.slane %v1959, %v1963
    %v1965 = vlaneseq
    %v1966 = vshrl.u32 %v1965, 7
    %v1967 = vsub.s32 1, %v1966
    %v1968 = vrot.slane %v1959, %v1967
    %v1969 = vlaneseq
    %v1970 = vshrl.u32 %v1969, 7
    %v1971 = vsub.s32 2, %v1970
    %v1972 = vrot.slane %v1959, %v1971
    %1976 = vmatprep.subr.mxu0 %v1912
    %1977 = vmatpush1.msra.mxu0 %v1911
    %1978 = vmatprep.subr.mxu0 %v1915
    %1979 = vmatpush1.msra.mxu0 %v1914
    %1980 = vmatprep.subr.mxu0 %v1918
    %1981 = vmatpush1.msra.mxu0 %v1917
    %1982 = vmatprep.subr.mxu0 %v1921
    %1983 = vmatpush1.msra.mxu0 %v1920
    %1984 = vmatprep.subr.mxu0 %v1924
    %1985 = vmatpush1.msra.mxu0 %v1923
    %1986 = vmatprep.subr.mxu0 %v1927
    %1987 = vmatpush1.msra.mxu0 %v1926
    %1988 = vmatprep.subr.mxu0 %v1930
    %1989 = vmatpush1.msra.mxu0 %v1929
    %1990 = vmatprep.subr.mxu0 %v1933
    %1991 = vmatpush1.msra.mxu0 %v1932
    %1992 = vmatprep.subr.mxu0 %v1936
    %1993 = vmatpush1.msra.mxu0 %v1935
    %1994 = vmatprep.subr.mxu0 %v1939
    %1995 = vmatpush1.msra.mxu0 %v1938
    %1996 = vmatprep.subr.mxu0 %v1942
    %1997 = vmatpush1.msra.mxu0 %v1941
    %1998 = vmatprep.subr.mxu0 %v1945
    %1999 = vmatpush1.msra.mxu0 %v1944
    %2000 = vmatprep.subr.mxu0 %v1948
    %2001 = vmatpush1.msra.mxu0 %v1947
    %2002 = vmatprep.subr.mxu0 %v1951
    %2003 = vmatpush1.msra.mxu0 %v1950
    %2004 = vmatprep.subr.mxu0 %v1954
    %2005 = vmatpush1.msra.mxu0 %v1953
    %2006 = vmatprep.subr.mxu0 %v1957
    %2007 = vmatpush1.msra.mxu0 %v1956
    %2008 = vmatprep.subr.mxu0 0.0
    %2009 = vmatpush1.msra.mxu0 0.0
    %2010 = vmatprep.subr.mxu0 0.0
    %2011 = vmatpush1.msra.mxu0 0.0
    %2012 = vmatprep.subr.mxu0 0.0
    %2013 = vmatpush1.msra.mxu0 0.0
    %2014 = vmatprep.subr.mxu0 0.0
    %2015 = vmatpush1.msra.mxu0 0.0
    %2016 = vmatprep.subr.mxu0 0.0
    %2017 = vmatpush1.msra.mxu0 0.0
    %2018 = vmatprep.subr.mxu0 0.0
    %2019 = vmatpush1.msra.mxu0 0.0
    %2020 = vmatprep.subr.mxu0 0.0
    %2021 = vmatpush1.msra.mxu0 0.0
    %2022 = vmatprep.subr.mxu0 0.0
    %2023 = vmatpush1.msra.mxu0 0.0
    %2024 = vmatprep.subr.mxu0 0.0
    %2025 = vmatpush1.msra.mxu0 0.0
    %2026 = vmatprep.subr.mxu0 0.0
    %2027 = vmatpush1.msra.mxu0 0.0
    %2028 = vmatprep.subr.mxu0 0.0
    %2029 = vmatpush1.msra.mxu0 0.0
    %2030 = vmatprep.subr.mxu0 0.0
    %2031 = vmatpush1.msra.mxu0 0.0
    %2032 = vmatprep.subr.mxu0 0.0
    %2033 = vmatpush1.msra.mxu0 0.0
    %2034 = vmatprep.subr.mxu0 0.0
    %2035 = vmatpush1.msra.mxu0 0.0
    %2036 = vmatprep.subr.mxu0 0.0
    %2037 = vmatpush1.msra.mxu0 0.0
    %2038 = vmatprep.subr.mxu0 0.0
    %2039 = vmatpush1.msra.mxu0 0.0
    %2040 = vmatprep.mubr.f32.mxu0 0.0
    %2041 = vmatmul.mubr.f32.gmra.mrb[0].mxu0 %v1909
    %v2042 = vpop.f32.mrb[0].mxu0
    %v2043 = vadd.f32 %v1964, %v2042
    %v2044 = vpop.f32.mrb[0].mxu0
    %v2045 = vadd.f32 %v1968, %v2044
    %2046 = vmatprep.mubr.f32.mxu0 0.0
    %2047 = vmatmul.mubr.f32.gmra.mrb[0].mxu0 %v1910
    %v2048 = vpop.f32.mrb[0].mxu0
    %v2049 = vadd.f32 %v1964, %v2048
    %v2050 = vpop.f32.mrb[0].mxu0
    %v2051 = vadd.f32 %v1968, %v2050
    %2052 = vdwg.mxu0
    %2053 = vmatprep.subr.mxu0 0.0
    %2054 = vmatpush1.msra.mxu0 %v1913
    %2055 = vmatprep.subr.mxu0 0.0
    %2056 = vmatpush1.msra.mxu0 %v1916
    %2057 = vmatprep.subr.mxu0 0.0
    %2058 = vmatpush1.msra.mxu0 %v1919
    %2059 = vmatprep.subr.mxu0 0.0
    %2060 = vmatpush1.msra.mxu0 %v1922
    %2061 = vmatprep.subr.mxu0 0.0
    %2062 = vmatpush1.msra.mxu0 %v1925
    %2063 = vmatprep.subr.mxu0 0.0
    %2064 = vmatpush1.msra.mxu0 %v1928
    %2065 = vmatprep.subr.mxu0 0.0
    %2066 = vmatpush1.msra.mxu0 %v1931
    %2067 = vmatprep.subr.mxu0 0.0
    %2068 = vmatpush1.msra.mxu0 %v1934
    %2069 = vmatprep.subr.mxu0 0.0
    %2070 = vmatpush1.msra.mxu0 %v1937
    %2071 = vmatprep.subr.mxu0 0.0
    %2072 = vmatpush1.msra.mxu0 %v1940
    %2073 = vmatprep.subr.mxu0 0.0
    %2074 = vmatpush1.msra.mxu0 %v1943
    %2075 = vmatprep.subr.mxu0 0.0
    %2076 = vmatpush1.msra.mxu0 %v1946
    %2077 = vmatprep.subr.mxu0 0.0
    %2078 = vmatpush1.msra.mxu0 %v1949
    %2079 = vmatprep.subr.mxu0 0.0
    %2080 = vmatpush1.msra.mxu0 %v1952
    %2081 = vmatprep.subr.mxu0 0.0
    %2082 = vmatpush1.msra.mxu0 %v1955
    %2083 = vmatprep.subr.mxu0 0.0
    %2084 = vmatpush1.msra.mxu0 %v1958
    %2085 = vmatprep.subr.mxu0 0.0
    %2086 = vmatpush1.msra.mxu0 0.0
    %2087 = vmatprep.subr.mxu0 0.0
    %2088 = vmatpush1.msra.mxu0 0.0
    %2089 = vmatprep.subr.mxu0 0.0
    %2090 = vmatpush1.msra.mxu0 0.0
    %2091 = vmatprep.subr.mxu0 0.0
    %2092 = vmatpush1.msra.mxu0 0.0
    %2093 = vmatprep.subr.mxu0 0.0
    %2094 = vmatpush1.msra.mxu0 0.0
    %2095 = vmatprep.subr.mxu0 0.0
    %2096 = vmatpush1.msra.mxu0 0.0
    %2097 = vmatprep.subr.mxu0 0.0
    %2098 = vmatpush1.msra.mxu0 0.0
    %2099 = vmatprep.subr.mxu0 0.0
    %2100 = vmatpush1.msra.mxu0 0.0
    %2101 = vmatprep.subr.mxu0 0.0
    %2102 = vmatpush1.msra.mxu0 0.0
    %2103 = vmatprep.subr.mxu0 0.0
    %2104 = vmatpush1.msra.mxu0 0.0
    %2105 = vmatprep.subr.mxu0 0.0
    %2106 = vmatpush1.msra.mxu0 0.0
    %2107 = vmatprep.subr.mxu0 0.0
    %2108 = vmatpush1.msra.mxu0 0.0
    %2109 = vmatprep.subr.mxu0 0.0
    %2110 = vmatpush1.msra.mxu0 0.0
    %2111 = vmatprep.subr.mxu0 0.0
    %2112 = vmatpush1.msra.mxu0 0.0
    %2113 = vmatprep.subr.mxu0 0.0
    %2114 = vmatpush1.msra.mxu0 0.0
    %2115 = vmatprep.subr.mxu0 0.0
    %2116 = vmatpush1.msra.mxu0 0.0
    %2117 = vmatprep.mubr.f32.mxu0 0.0
    %2118 = vmatmul.mubr.f32.gmra.mrb[0].mxu0 %v1909
    %v2119 = vpop.f32.mrb[0].mxu0
    %v2120 = vadd.f32 %v1972, %v2119
    %v2121 = vpop.f32.mrb[0].mxu0
    %2122 = vmatprep.mubr.f32.mxu0 0.0
    %2123 = vmatmul.mubr.f32.gmra.mrb[0].mxu0 %v1910
    %v2124 = vpop.f32.mrb[0].mxu0
    %v2125 = vadd.f32 %v1972, %v2124
    %v2126 = vpop.f32.mrb[0].mxu0
    %2127 = vdwg.mxu0
    %v2129 = vsel %vm411, %v2043, 0
    %v2132 = vsel %vm411, %v2045, 0
    %2134 = vmatprep.subr.mxu0 0.0
    %2135 = vmatpush1.xpose.msra.mxu0 %v2132
    %2136 = vmatprep.subr.mxu0 0.0
    %2137 = vmatpush1.xpose.msra.mxu0 0.0
    %2138 = vmatprep.subr.mxu0 0.0
    %2139 = vmatpush1.xpose.msra.mxu0 0.0
    %2140 = vmatprep.subr.mxu0 0.0
    %2141 = vmatpush1.xpose.msra.mxu0 0.0
    %2142 = vmatprep.subr.mxu0 0.0
    %2143 = vmatpush1.xpose.msra.mxu0 0.0
    %2144 = vmatprep.subr.mxu0 0.0
    %2145 = vmatpush1.xpose.msra.mxu0 0.0
    %2146 = vmatprep.subr.mxu0 0.0
    %2147 = vmatpush1.xpose.msra.mxu0 0.0
    %2148 = vmatprep.subr.mxu0 0.0
    %2149 = vmatpush1.xpose.msra.mxu0 0.0
    %2150 = vmatprep.subr.mxu0 0.0
    %2151 = vmatpush1.xpose.msra.mxu0 0.0
    %2152 = vmatprep.subr.mxu0 0.0
    %2153 = vmatpush1.xpose.msra.mxu0 0.0
    %2154 = vmatprep.subr.mxu0 0.0
    %2155 = vmatpush1.xpose.msra.mxu0 0.0
    %2156 = vmatprep.subr.mxu0 0.0
    %2157 = vmatpush1.xpose.msra.mxu0 0.0
    %2158 = vmatprep.subr.mxu0 0.0
    %2159 = vmatpush1.xpose.msra.mxu0 0.0
    %2160 = vmatprep.subr.mxu0 0.0
    %2161 = vmatpush1.xpose.msra.mxu0 0.0
    %2162 = vmatprep.subr.mxu0 0.0
    %2163 = vmatpush1.xpose.msra.mxu0 0.0
    %2164 = vmatprep.subr.mxu0 0.0
    %2165 = vmatpush1.xpose.msra.mxu0 0.0
    %2166 = vmatprep.subr.mxu0 0.0
    %2167 = vmatpush1.xpose.msra.mxu0 0.0
    %2168 = vmatprep.subr.mxu0 0.0
    %2169 = vmatpush1.xpose.msra.mxu0 0.0
    %2170 = vmatprep.subr.mxu0 0.0
    %2171 = vmatpush1.xpose.msra.mxu0 0.0
    %2172 = vmatprep.subr.mxu0 0.0
    %2173 = vmatpush1.xpose.msra.mxu0 0.0
    %2174 = vmatprep.subr.mxu0 0.0
    %2175 = vmatpush1.xpose.msra.mxu0 0.0
    %2176 = vmatprep.subr.mxu0 0.0
    %2177 = vmatpush1.xpose.msra.mxu0 0.0
    %2178 = vmatprep.subr.mxu0 0.0
    %2179 = vmatpush1.xpose.msra.mxu0 0.0
    %2180 = vmatprep.subr.mxu0 0.0
    %2181 = vmatpush1.xpose.msra.mxu0 0.0
    %2182 = vmatprep.subr.mxu0 0.0
    %2183 = vmatpush1.xpose.msra.mxu0 0.0
    %2184 = vmatprep.subr.mxu0 0.0
    %2185 = vmatpush1.xpose.msra.mxu0 0.0
    %2186 = vmatprep.subr.mxu0 0.0
    %2187 = vmatpush1.xpose.msra.mxu0 0.0
    %2188 = vmatprep.subr.mxu0 0.0
    %2189 = vmatpush1.xpose.msra.mxu0 0.0
    %2190 = vmatprep.subr.mxu0 0.0
    %2191 = vmatpush1.xpose.msra.mxu0 0.0
    %2192 = vmatprep.subr.mxu0 0.0
    %2193 = vmatpush1.xpose.msra.mxu0 0.0
    %2194 = vmatprep.subr.mxu0 0.0
    %2195 = vmatpush1.xpose.msra.mxu0 0.0
    %2196 = vmatprep.subr.mxu0 0.0
    %2197 = vmatpush1.xpose.msra.mxu0 0.0
    %2198 = vmatprep.mubr.f32.mxu0 0.0
    %2199 = vmatmul.mubr.f32.gmra.mrb[0].mxu0 %v2129
    %v2200 = vpop.f32.mrb[0].mxu0
    %v2201 = vadd.f32 0.0, %v2200
    %v2202 = vpop.f32.mrb[0].mxu0
    %2203 = vdwg.mxu0
    %v2204 = vmul.f32 %v2201, 0.17677669
    %v2205 = vsel %vm490, %v2204, -inf
    %2206 = vmax.xlane.f32.xlu0 %v2205
    %v2207 = vpop.xlane.xlu0 %2206
    %v2208 = vsub.f32 %v2204, %v2207
    %v2209 = vmul.f32 %v2208, 1.442695
    %v2210 = vpow.pop %v2209
    %v2211 = vsel %vm490, %v2210, 0.0
    %2212 = vadd.xlane.f32.xlu0 %v2211
    %v2213 = vpop.xlane.xlu0 %2212
    %v2214 = vrcp.pop %v2213
    %v2215 = vmul.f32 %v2210, %v2214
    %v2217 = vsel %vm490, %v2215, 0
    %2219 = vmatprep.subr.mxu0 0.0
    %2220 = vmatpush1.msra.mxu0 %v2120
    %2221 = vmatprep.subr.mxu0 0.0
    %2222 = vmatpush1.msra.mxu0 0.0
    %2223 = vmatprep.subr.mxu0 0.0
    %2224 = vmatpush1.msra.mxu0 0.0
    %2225 = vmatprep.subr.mxu0 0.0
    %2226 = vmatpush1.msra.mxu0 0.0
    %2227 = vmatprep.subr.mxu0 0.0
    %2228 = vmatpush1.msra.mxu0 0.0
    %2229 = vmatprep.subr.mxu0 0.0
    %2230 = vmatpush1.msra.mxu0 0.0
    %2231 = vmatprep.subr.mxu0 0.0
    %2232 = vmatpush1.msra.mxu0 0.0
    %2233 = vmatprep.subr.mxu0 0.0
    %2234 = vmatpush1.msra.mxu0 0.0
    %2235 = vmatprep.subr.mxu0 0.0
    %2236 = vmatpush1.msra.mxu0 0.0
    %2237 = vmatprep.subr.mxu0 0.0
    %2238 = vmatpush1.msra.mxu0 0.0
    %2239 = vmatprep.subr.mxu0 0.0
    %2240 = vmatpush1.msra.mxu0 0.0
    %2241 = vmatprep.subr.mxu0 0.0
    %2242 = vmatpush1.msra.mxu0 0.0
    %2243 = vmatprep.subr.mxu0 0.0
    %2244 = vmatpush1.msra.mxu0 0.0
    %2245 = vmatprep.subr.mxu0 0.0
    %2246 = vmatpush1.msra.mxu0 0.0
    %2247 = vmatprep.subr.mxu0 0.0
    %2248 = vmatpush1.msra.mxu0 0.0
    %2249 = vmatprep.subr.mxu0 0.0
    %2250 = vmatpush1.msra.mxu0 0.0
    %2251 = vmatprep.subr.mxu0 0.0
    %2252 = vmatpush1.msra.mxu0 0.0
    %2253 = vmatprep.subr.mxu0 0.0
    %2254 = vmatpush1.msra.mxu0 0.0
    %2255 = vmatprep.subr.mxu0 0.0
    %2256 = vmatpush1.msra.mxu0 0.0
    %2257 = vmatprep.subr.mxu0 0.0
    %2258 = vmatpush1.msra.mxu0 0.0
    %2259 = vmatprep.subr.mxu0 0.0
    %2260 = vmatpush1.msra.mxu0 0.0
    %2261 = vmatprep.subr.mxu0 0.0
    %2262 = vmatpush1.msra.mxu0 0.0
    %2263 = vmatprep.subr.mxu0 0.0
    %2264 = vmatpush1.msra.mxu0 0.0
    %2265 = vmatprep.subr.mxu0 0.0
    %2266 = vmatpush1.msra.mxu0 0.0
    %2267 = vmatprep.subr.mxu0 0.0
    %2268 = vmatpush1.msra.mxu0 0.0
    %2269 = vmatprep.subr.mxu0 0.0
    %2270 = vmatpush1.msra.mxu0 0.0
    %2271 = vmatprep.subr.mxu0 0.0
    %2272 = vmatpush1.msra.mxu0 0.0
    %2273 = vmatprep.subr.mxu0 0.0
    %2274 = vmatpush1.msra.mxu0 0.0
    %2275 = vmatprep.subr.mxu0 0.0
    %2276 = vmatpush1.msra.mxu0 0.0
    %2277 = vmatprep.subr.mxu0 0.0
    %2278 = vmatpush1.msra.mxu0 0.0
    %2279 = vmatprep.subr.mxu0 0.0
    %2280 = vmatpush1.msra.mxu0 0.0
    %2281 = vmatprep.subr.mxu0 0.0
    %2282 = vmatpush1.msra.mxu0 0.0
    %2283 = vmatprep.mubr.f32.mxu0 0.0
    %2284 = vmatmul.mubr.f32.gmra.mrb[0].mxu0 %v2217
    %v2285 = vpop.f32.mrb[0].mxu0
    %v2286 = vadd.f32 0.0, %v2285
    %v2287 = vpop.f32.mrb[0].mxu0
    %2288 = vdwg.mxu0
    %2289 = vst.msk [vmem:[#allocation2] sm:$0xff] %vm411, %v2286
    %2290 = vrot.lane.b32.xlu0 %v2043, 96
    %v2291 = vpop.permute.xlu0 %2290
    %2292 = vrot.lane.b32.xlu0 %v2045, 96
    %v2293 = vpop.permute.xlu0 %2292
    %v2294 = vsel %vm411, %v2291, 0
    %v2296 = vsel %vm411, %v2293, 0
    %2298 = vmatprep.subr.mxu0 0.0
    %2299 = vmatpush1.xpose.msra.mxu0 %v2296
    %2300 = vmatprep.subr.mxu0 0.0
    %2301 = vmatpush1.xpose.msra.mxu0 0.0
    %2302 = vmatprep.subr.mxu0 0.0
    %2303 = vmatpush1.xpose.msra.mxu0 0.0
    %2304 = vmatprep.subr.mxu0 0.0
    %2305 = vmatpush1.xpose.msra.mxu0 0.0
    %2306 = vmatprep.subr.mxu0 0.0
    %2307 = vmatpush1.xpose.msra.mxu0 0.0
    %2308 = vmatprep.subr.mxu0 0.0
    %2309 = vmatpush1.xpose.msra.mxu0 0.0
    %2310 = vmatprep.subr.mxu0 0.0
    %2311 = vmatpush1.xpose.msra.mxu0 0.0
    %2312 = vmatprep.subr.mxu0 0.0
    %2313 = vmatpush1.xpose.msra.mxu0 0.0
    %2314 = vmatprep.subr.mxu0 0.0
    %2315 = vmatpush1.xpose.msra.mxu0 0.0
    %2316 = vmatprep.subr.mxu0 0.0
    %2317 = vmatpush1.xpose.msra.mxu0 0.0
    %2318 = vmatprep.subr.mxu0 0.0
    %2319 = vmatpush1.xpose.msra.mxu0 0.0
    %2320 = vmatprep.subr.mxu0 0.0
    %2321 = vmatpush1.xpose.msra.mxu0 0.0
    %2322 = vmatprep.subr.mxu0 0.0
    %2323 = vmatpush1.xpose.msra.mxu0 0.0
    %2324 = vmatprep.subr.mxu0 0.0
    %2325 = vmatpush1.xpose.msra.mxu0 0.0
    %2326 = vmatprep.subr.mxu0 0.0
    %2327 = vmatpush1.xpose.msra.mxu0 0.0
    %2328 = vmatprep.subr.mxu0 0.0
    %2329 = vmatpush1.xpose.msra.mxu0 0.0
    %2330 = vmatprep.subr.mxu0 0.0
    %2331 = vmatpush1.xpose.msra.mxu0 0.0
    %2332 = vmatprep.subr.mxu0 0.0
    %2333 = vmatpush1.xpose.msra.mxu0 0.0
    %2334 = vmatprep.subr.mxu0 0.0
    %2335 = vmatpush1.xpose.msra.mxu0 0.0
    %2336 = vmatprep.subr.mxu0 0.0
    %2337 = vmatpush1.xpose.msra.mxu0 0.0
    %2338 = vmatprep.subr.mxu0 0.0
    %2339 = vmatpush1.xpose.msra.mxu0 0.0
    %2340 = vmatprep.subr.mxu0 0.0
    %2341 = vmatpush1.xpose.msra.mxu0 0.0
    %2342 = vmatprep.subr.mxu0 0.0
    %2343 = vmatpush1.xpose.msra.mxu0 0.0
    %2344 = vmatprep.subr.mxu0 0.0
    %2345 = vmatpush1.xpose.msra.mxu0 0.0
    %2346 = vmatprep.subr.mxu0 0.0
    %2347 = vmatpush1.xpose.msra.mxu0 0.0
    %2348 = vmatprep.subr.mxu0 0.0
    %2349 = vmatpush1.xpose.msra.mxu0 0.0
    %2350 = vmatprep.subr.mxu0 0.0
    %2351 = vmatpush1.xpose.msra.mxu0 0.0
    %2352 = vmatprep.subr.mxu0 0.0
    %2353 = vmatpush1.xpose.msra.mxu0 0.0
    %2354 = vmatprep.subr.mxu0 0.0
    %2355 = vmatpush1.xpose.msra.mxu0 0.0
    %2356 = vmatprep.subr.mxu0 0.0
    %2357 = vmatpush1.xpose.msra.mxu0 0.0
    %2358 = vmatprep.subr.mxu0 0.0
    %2359 = vmatpush1.xpose.msra.mxu0 0.0
    %2360 = vmatprep.subr.mxu0 0.0
    %2361 = vmatpush1.xpose.msra.mxu0 0.0
    %2362 = vmatprep.mubr.f32.mxu0 0.0
    %2363 = vmatmul.mubr.f32.gmra.mrb[0].mxu0 %v2294
    %v2364 = vpop.f32.mrb[0].mxu0
    %v2365 = vadd.f32 0.0, %v2364
    %v2366 = vpop.f32.mrb[0].mxu0
    %2367 = vdwg.mxu0
    %v2368 = vmul.f32 %v2365, 0.17677669
    %v2369 = vsel %vm490, %v2368, -inf
    %2370 = vmax.xlane.f32.xlu0 %v2369
    %v2371 = vpop.xlane.xlu0 %2370
    %v2372 = vsub.f32 %v2368, %v2371
    %v2373 = vmul.f32 %v2372, 1.442695
    %v2374 = vpow.pop %v2373
    %v2375 = vsel %vm490, %v2374, 0.0
    %2376 = vadd.xlane.f32.xlu0 %v2375
    %v2377 = vpop.xlane.xlu0 %2376
    %v2378 = vrcp.pop %v2377
    %v2379 = vmul.f32 %v2374, %v2378
    %2381 = vrot.lane.b32.xlu0 %v2120, 96
    %v2382 = vpop.permute.xlu0 %2381
    %v2385 = vsel %vm490, %v2379, 0
    %2387 = vmatprep.subr.mxu0 0.0
    %2388 = vmatpush1.msra.mxu0 %v2382
    %2389 = vmatprep.subr.mxu0 0.0
    %2390 = vmatpush1.msra.mxu0 0.0
    %2391 = vmatprep.subr.mxu0 0.0
    %2392 = vmatpush1.msra.mxu0 0.0
    %2393 = vmatprep.subr.mxu0 0.0
    %2394 = vmatpush1.msra.mxu0 0.0
    %2395 = vmatprep.subr.mxu0 0.0
    %2396 = vmatpush1.msra.mxu0 0.0
    %2397 = vmatprep.subr.mxu0 0.0
    %2398 = vmatpush1.msra.mxu0 0.0
    %2399 = vmatprep.subr.mxu0 0.0
    %2400 = vmatpush1.msra.mxu0 0.0
    %2401 = vmatprep.subr.mxu0 0.0
    %2402 = vmatpush1.msra.mxu0 0.0
    %2403 = vmatprep.subr.mxu0 0.0
    %2404 = vmatpush1.msra.mxu0 0.0
    %2405 = vmatprep.subr.mxu0 0.0
    %2406 = vmatpush1.msra.mxu0 0.0
    %2407 = vmatprep.subr.mxu0 0.0
    %2408 = vmatpush1.msra.mxu0 0.0
    %2409 = vmatprep.subr.mxu0 0.0
    %2410 = vmatpush1.msra.mxu0 0.0
    %2411 = vmatprep.subr.mxu0 0.0
    %2412 = vmatpush1.msra.mxu0 0.0
    %2413 = vmatprep.subr.mxu0 0.0
    %2414 = vmatpush1.msra.mxu0 0.0
    %2415 = vmatprep.subr.mxu0 0.0
    %2416 = vmatpush1.msra.mxu0 0.0
    %2417 = vmatprep.subr.mxu0 0.0
    %2418 = vmatpush1.msra.mxu0 0.0
    %2419 = vmatprep.subr.mxu0 0.0
    %2420 = vmatpush1.msra.mxu0 0.0
    %2421 = vmatprep.subr.mxu0 0.0
    %2422 = vmatpush1.msra.mxu0 0.0
    %2423 = vmatprep.subr.mxu0 0.0
    %2424 = vmatpush1.msra.mxu0 0.0
    %2425 = vmatprep.subr.mxu0 0.0
    %2426 = vmatpush1.msra.mxu0 0.0
    %2427 = vmatprep.subr.mxu0 0.0
    %2428 = vmatpush1.msra.mxu0 0.0
    %2429 = vmatprep.subr.mxu0 0.0
    %2430 = vmatpush1.msra.mxu0 0.0
    %2431 = vmatprep.subr.mxu0 0.0
    %2432 = vmatpush1.msra.mxu0 0.0
    %2433 = vmatprep.subr.mxu0 0.0
    %2434 = vmatpush1.msra.mxu0 0.0
    %2435 = vmatprep.subr.mxu0 0.0
    %2436 = vmatpush1.msra.mxu0 0.0
    %2437 = vmatprep.subr.mxu0 0.0
    %2438 = vmatpush1.msra.mxu0 0.0
    %2439 = vmatprep.subr.mxu0 0.0
    %2440 = vmatpush1.msra.mxu0 0.0
    %2441 = vmatprep.subr.mxu0 0.0
    %2442 = vmatpush1.msra.mxu0 0.0
    %2443 = vmatprep.subr.mxu0 0.0
    %2444 = vmatpush1.msra.mxu0 0.0
    %2445 = vmatprep.subr.mxu0 0.0
    %2446 = vmatpush1.msra.mxu0 0.0
    %2447 = vmatprep.subr.mxu0 0.0
    %2448 = vmatpush1.msra.mxu0 0.0
    %2449 = vmatprep.subr.mxu0 0.0
    %2450 = vmatpush1.msra.mxu0 0.0
    %2451 = vmatprep.mubr.f32.mxu0 0.0
    %2452 = vmatmul.mubr.f32.gmra.mrb[0].mxu0 %v2385
    %v2453 = vpop.f32.mrb[0].mxu0
    %v2454 = vadd.f32 0.0, %v2453
    %v2455 = vpop.f32.mrb[0].mxu0
    %2456 = vdwg.mxu0
    %2458 = vrot.lane.b32.xlu0 %v2454, 32
    %v2459 = vpop.permute.xlu0 %2458
    %2461 = vst.msk [vmem:[#allocation2] sm:$0xff] %vm748, %v2459
    %2462 = vrot.lane.b32.xlu0 %v2043, 64
    %v2463 = vpop.permute.xlu0 %2462
    %2464 = vrot.lane.b32.xlu0 %v2045, 64
    %v2465 = vpop.permute.xlu0 %2464
    %v2466 = vsel %vm411, %v2463, 0
    %v2468 = vsel %vm411, %v2465, 0
    %2470 = vmatprep.subr.mxu0 0.0
    %2471 = vmatpush1.xpose.msra.mxu0 %v2468
    %2472 = vmatprep.subr.mxu0 0.0
    %2473 = vmatpush1.xpose.msra.mxu0 0.0
    %2474 = vmatprep.subr.mxu0 0.0
    %2475 = vmatpush1.xpose.msra.mxu0 0.0
    %2476 = vmatprep.subr.mxu0 0.0
    %2477 = vmatpush1.xpose.msra.mxu0 0.0
    %2478 = vmatprep.subr.mxu0 0.0
    %2479 = vmatpush1.xpose.msra.mxu0 0.0
    %2480 = vmatprep.subr.mxu0 0.0
    %2481 = vmatpush1.xpose.msra.mxu0 0.0
    %2482 = vmatprep.subr.mxu0 0.0
    %2483 = vmatpush1.xpose.msra.mxu0 0.0
    %2484 = vmatprep.subr.mxu0 0.0
    %2485 = vmatpush1.xpose.msra.mxu0 0.0
    %2486 = vmatprep.subr.mxu0 0.0
    %2487 = vmatpush1.xpose.msra.mxu0 0.0
    %2488 = vmatprep.subr.mxu0 0.0
    %2489 = vmatpush1.xpose.msra.mxu0 0.0
    %2490 = vmatprep.subr.mxu0 0.0
    %2491 = vmatpush1.xpose.msra.mxu0 0.0
    %2492 = vmatprep.subr.mxu0 0.0
    %2493 = vmatpush1.xpose.msra.mxu0 0.0
    %2494 = vmatprep.subr.mxu0 0.0
    %2495 = vmatpush1.xpose.msra.mxu0 0.0
    %2496 = vmatprep.subr.mxu0 0.0
    %2497 = vmatpush1.xpose.msra.mxu0 0.0
    %2498 = vmatprep.subr.mxu0 0.0
    %2499 = vmatpush1.xpose.msra.mxu0 0.0
    %2500 = vmatprep.subr.mxu0 0.0
    %2501 = vmatpush1.xpose.msra.mxu0 0.0
    %2502 = vmatprep.subr.mxu0 0.0
    %2503 = vmatpush1.xpose.msra.mxu0 0.0
    %2504 = vmatprep.subr.mxu0 0.0
    %2505 = vmatpush1.xpose.msra.mxu0 0.0
    %2506 = vmatprep.subr.mxu0 0.0
    %2507 = vmatpush1.xpose.msra.mxu0 0.0
    %2508 = vmatprep.subr.mxu0 0.0
    %2509 = vmatpush1.xpose.msra.mxu0 0.0
    %2510 = vmatprep.subr.mxu0 0.0
    %2511 = vmatpush1.xpose.msra.mxu0 0.0
    %2512 = vmatprep.subr.mxu0 0.0
    %2513 = vmatpush1.xpose.msra.mxu0 0.0
    %2514 = vmatprep.subr.mxu0 0.0
    %2515 = vmatpush1.xpose.msra.mxu0 0.0
    %2516 = vmatprep.subr.mxu0 0.0
    %2517 = vmatpush1.xpose.msra.mxu0 0.0
    %2518 = vmatprep.subr.mxu0 0.0
    %2519 = vmatpush1.xpose.msra.mxu0 0.0
    %2520 = vmatprep.subr.mxu0 0.0
    %2521 = vmatpush1.xpose.msra.mxu0 0.0
    %2522 = vmatprep.subr.mxu0 0.0
    %2523 = vmatpush1.xpose.msra.mxu0 0.0
    %2524 = vmatprep.subr.mxu0 0.0
    %2525 = vmatpush1.xpose.msra.mxu0 0.0
    %2526 = vmatprep.subr.mxu0 0.0
    %2527 = vmatpush1.xpose.msra.mxu0 0.0
    %2528 = vmatprep.subr.mxu0 0.0
    %2529 = vmatpush1.xpose.msra.mxu0 0.0
    %2530 = vmatprep.subr.mxu0 0.0
    %2531 = vmatpush1.xpose.msra.mxu0 0.0
    %2532 = vmatprep.subr.mxu0 0.0
    %2533 = vmatpush1.xpose.msra.mxu0 0.0
    %2534 = vmatprep.mubr.f32.mxu0 0.0
    %2535 = vmatmul.mubr.f32.gmra.mrb[0].mxu0 %v2466
    %v2536 = vpop.f32.mrb[0].mxu0
    %v2537 = vadd.f32 0.0, %v2536
    %v2538 = vpop.f32.mrb[0].mxu0
    %2539 = vdwg.mxu0
    %v2540 = vmul.f32 %v2537, 0.17677669
    %v2541 = vsel %vm490, %v2540, -inf
    %2542 = vmax.xlane.f32.xlu0 %v2541
    %v2543 = vpop.xlane.xlu0 %2542
    %v2544 = vsub.f32 %v2540, %v2543
    %v2545 = vmul.f32 %v2544, 1.442695
    %v2546 = vpow.pop %v2545
    %v2547 = vsel %vm490, %v2546, 0.0
    %2548 = vadd.xlane.f32.xlu0 %v2547
    %v2549 = vpop.xlane.xlu0 %2548
    %v2550 = vrcp.pop %v2549
    %v2551 = vmul.f32 %v2546, %v2550
    %2552 = vrot.lane.b32.xlu0 %v2120, 64
    %v2553 = vpop.permute.xlu0 %2552
    %v2556 = vsel %vm490, %v2551, 0
    %2558 = vmatprep.subr.mxu0 0.0
    %2559 = vmatpush1.msra.mxu0 %v2553
    %2560 = vmatprep.subr.mxu0 0.0
    %2561 = vmatpush1.msra.mxu0 0.0
    %2562 = vmatprep.subr.mxu0 0.0
    %2563 = vmatpush1.msra.mxu0 0.0
    %2564 = vmatprep.subr.mxu0 0.0
    %2565 = vmatpush1.msra.mxu0 0.0
    %2566 = vmatprep.subr.mxu0 0.0
    %2567 = vmatpush1.msra.mxu0 0.0
    %2568 = vmatprep.subr.mxu0 0.0
    %2569 = vmatpush1.msra.mxu0 0.0
    %2570 = vmatprep.subr.mxu0 0.0
    %2571 = vmatpush1.msra.mxu0 0.0
    %2572 = vmatprep.subr.mxu0 0.0
    %2573 = vmatpush1.msra.mxu0 0.0
    %2574 = vmatprep.subr.mxu0 0.0
    %2575 = vmatpush1.msra.mxu0 0.0
    %2576 = vmatprep.subr.mxu0 0.0
    %2577 = vmatpush1.msra.mxu0 0.0
    %2578 = vmatprep.subr.mxu0 0.0
    %2579 = vmatpush1.msra.mxu0 0.0
    %2580 = vmatprep.subr.mxu0 0.0
    %2581 = vmatpush1.msra.mxu0 0.0
    %2582 = vmatprep.subr.mxu0 0.0
    %2583 = vmatpush1.msra.mxu0 0.0
    %2584 = vmatprep.subr.mxu0 0.0
    %2585 = vmatpush1.msra.mxu0 0.0
    %2586 = vmatprep.subr.mxu0 0.0
    %2587 = vmatpush1.msra.mxu0 0.0
    %2588 = vmatprep.subr.mxu0 0.0
    %2589 = vmatpush1.msra.mxu0 0.0
    %2590 = vmatprep.subr.mxu0 0.0
    %2591 = vmatpush1.msra.mxu0 0.0
    %2592 = vmatprep.subr.mxu0 0.0
    %2593 = vmatpush1.msra.mxu0 0.0
    %2594 = vmatprep.subr.mxu0 0.0
    %2595 = vmatpush1.msra.mxu0 0.0
    %2596 = vmatprep.subr.mxu0 0.0
    %2597 = vmatpush1.msra.mxu0 0.0
    %2598 = vmatprep.subr.mxu0 0.0
    %2599 = vmatpush1.msra.mxu0 0.0
    %2600 = vmatprep.subr.mxu0 0.0
    %2601 = vmatpush1.msra.mxu0 0.0
    %2602 = vmatprep.subr.mxu0 0.0
    %2603 = vmatpush1.msra.mxu0 0.0
    %2604 = vmatprep.subr.mxu0 0.0
    %2605 = vmatpush1.msra.mxu0 0.0
    %2606 = vmatprep.subr.mxu0 0.0
    %2607 = vmatpush1.msra.mxu0 0.0
    %2608 = vmatprep.subr.mxu0 0.0
    %2609 = vmatpush1.msra.mxu0 0.0
    %2610 = vmatprep.subr.mxu0 0.0
    %2611 = vmatpush1.msra.mxu0 0.0
    %2612 = vmatprep.subr.mxu0 0.0
    %2613 = vmatpush1.msra.mxu0 0.0
    %2614 = vmatprep.subr.mxu0 0.0
    %2615 = vmatpush1.msra.mxu0 0.0
    %2616 = vmatprep.subr.mxu0 0.0
    %2617 = vmatpush1.msra.mxu0 0.0
    %2618 = vmatprep.subr.mxu0 0.0
    %2619 = vmatpush1.msra.mxu0 0.0
    %2620 = vmatprep.subr.mxu0 0.0
    %2621 = vmatpush1.msra.mxu0 0.0
    %2622 = vmatprep.mubr.f32.mxu0 0.0
    %2623 = vmatmul.mubr.f32.gmra.mrb[0].mxu0 %v2556
    %v2624 = vpop.f32.mrb[0].mxu0
    %v2625 = vadd.f32 0.0, %v2624
    %v2626 = vpop.f32.mrb[0].mxu0
    %2627 = vdwg.mxu0
    %2629 = vrot.lane.b32.xlu0 %v2625, 64
    %v2630 = vpop.permute.xlu0 %2629
    %2632 = vst.msk [vmem:[#allocation2] sm:$0xff] %vm921, %v2630
    %2633 = vrot.lane.b32.xlu0 %v2043, 32
    %v2634 = vpop.permute.xlu0 %2633
    %2635 = vrot.lane.b32.xlu0 %v2045, 32
    %v2636 = vpop.permute.xlu0 %2635
    %v2637 = vsel %vm411, %v2634, 0
    %v2639 = vsel %vm411, %v2636, 0
    %2641 = vmatprep.subr.mxu0 0.0
    %2642 = vmatpush1.xpose.msra.mxu0 %v2639
    %2643 = vmatprep.subr.mxu0 0.0
    %2644 = vmatpush1.xpose.msra.mxu0 0.0
    %2645 = vmatprep.subr.mxu0 0.0
    %2646 = vmatpush1.xpose.msra.mxu0 0.0
    %2647 = vmatprep.subr.mxu0 0.0
    %2648 = vmatpush1.xpose.msra.mxu0 0.0
    %2649 = vmatprep.subr.mxu0 0.0
    %2650 = vmatpush1.xpose.msra.mxu0 0.0
    %2651 = vmatprep.subr.mxu0 0.0
    %2652 = vmatpush1.xpose.msra.mxu0 0.0
    %2653 = vmatprep.subr.mxu0 0.0
    %2654 = vmatpush1.xpose.msra.mxu0 0.0
    %2655 = vmatprep.subr.mxu0 0.0
    %2656 = vmatpush1.xpose.msra.mxu0 0.0
    %2657 = vmatprep.subr.mxu0 0.0
    %2658 = vmatpush1.xpose.msra.mxu0 0.0
    %2659 = vmatprep.subr.mxu0 0.0
    %2660 = vmatpush1.xpose.msra.mxu0 0.0
    %2661 = vmatprep.subr.mxu0 0.0
    %2662 = vmatpush1.xpose.msra.mxu0 0.0
    %2663 = vmatprep.subr.mxu0 0.0
    %2664 = vmatpush1.xpose.msra.mxu0 0.0
    %2665 = vmatprep.subr.mxu0 0.0
    %2666 = vmatpush1.xpose.msra.mxu0 0.0
    %2667 = vmatprep.subr.mxu0 0.0
    %2668 = vmatpush1.xpose.msra.mxu0 0.0
    %2669 = vmatprep.subr.mxu0 0.0
    %2670 = vmatpush1.xpose.msra.mxu0 0.0
    %2671 = vmatprep.subr.mxu0 0.0
    %2672 = vmatpush1.xpose.msra.mxu0 0.0
    %2673 = vmatprep.subr.mxu0 0.0
    %2674 = vmatpush1.xpose.msra.mxu0 0.0
    %2675 = vmatprep.subr.mxu0 0.0
    %2676 = vmatpush1.xpose.msra.mxu0 0.0
    %2677 = vmatprep.subr.mxu0 0.0
    %2678 = vmatpush1.xpose.msra.mxu0 0.0
    %2679 = vmatprep.subr.mxu0 0.0
    %2680 = vmatpush1.xpose.msra.mxu0 0.0
    %2681 = vmatprep.subr.mxu0 0.0
    %2682 = vmatpush1.xpose.msra.mxu0 0.0
    %2683 = vmatprep.subr.mxu0 0.0
    %2684 = vmatpush1.xpose.msra.mxu0 0.0
    %2685 = vmatprep.subr.mxu0 0.0
    %2686 = vmatpush1.xpose.msra.mxu0 0.0
    %2687 = vmatprep.subr.mxu0 0.0
    %2688 = vmatpush1.xpose.msra.mxu0 0.0
    %2689 = vmatprep.subr.mxu0 0.0
    %2690 = vmatpush1.xpose.msra.mxu0 0.0
    %2691 = vmatprep.subr.mxu0 0.0
    %2692 = vmatpush1.xpose.msra.mxu0 0.0
    %2693 = vmatprep.subr.mxu0 0.0
    %2694 = vmatpush1.xpose.msra.mxu0 0.0
    %2695 = vmatprep.subr.mxu0 0.0
    %2696 = vmatpush1.xpose.msra.mxu0 0.0
    %2697 = vmatprep.subr.mxu0 0.0
    %2698 = vmatpush1.xpose.msra.mxu0 0.0
    %2699 = vmatprep.subr.mxu0 0.0
    %2700 = vmatpush1.xpose.msra.mxu0 0.0
    %2701 = vmatprep.subr.mxu0 0.0
    %2702 = vmatpush1.xpose.msra.mxu0 0.0
    %2703 = vmatprep.subr.mxu0 0.0
    %2704 = vmatpush1.xpose.msra.mxu0 0.0
    %2705 = vmatprep.mubr.f32.mxu0 0.0
    %2706 = vmatmul.mubr.f32.gmra.mrb[0].mxu0 %v2637
    %v2707 = vpop.f32.mrb[0].mxu0
    %v2708 = vadd.f32 0.0, %v2707
    %v2709 = vpop.f32.mrb[0].mxu0
    %2710 = vdwg.mxu0
    %v2711 = vmul.f32 %v2708, 0.17677669
    %v2712 = vsel %vm490, %v2711, -inf
    %2713 = vmax.xlane.f32.xlu0 %v2712
    %v2714 = vpop.xlane.xlu0 %2713
    %v2715 = vsub.f32 %v2711, %v2714
    %v2716 = vmul.f32 %v2715, 1.442695
    %v2717 = vpow.pop %v2716
    %v2718 = vsel %vm490, %v2717, 0.0
    %2719 = vadd.xlane.f32.xlu0 %v2718
    %v2720 = vpop.xlane.xlu0 %2719
    %v2721 = vrcp.pop %v2720
    %v2722 = vmul.f32 %v2717, %v2721
    %2723 = vrot.lane.b32.xlu0 %v2120, 32
    %v2724 = vpop.permute.xlu0 %2723
    %v2727 = vsel %vm490, %v2722, 0
    %2729 = vmatprep.subr.mxu0 0.0
    %2730 = vmatpush1.msra.mxu0 %v2724
    %2731 = vmatprep.subr.mxu0 0.0
    %2732 = vmatpush1.msra.mxu0 0.0
    %2733 = vmatprep.subr.mxu0 0.0
    %2734 = vmatpush1.msra.mxu0 0.0
    %2735 = vmatprep.subr.mxu0 0.0
    %2736 = vmatpush1.msra.mxu0 0.0
    %2737 = vmatprep.subr.mxu0 0.0
    %2738 = vmatpush1.msra.mxu0 0.0
    %2739 = vmatprep.subr.mxu0 0.0
    %2740 = vmatpush1.msra.mxu0 0.0
    %2741 = vmatprep.subr.mxu0 0.0
    %2742 = vmatpush1.msra.mxu0 0.0
    %2743 = vmatprep.subr.mxu0 0.0
    %2744 = vmatpush1.msra.mxu0 0.0
    %2745 = vmatprep.subr.mxu0 0.0
    %2746 = vmatpush1.msra.mxu0 0.0
    %2747 = vmatprep.subr.mxu0 0.0
    %2748 = vmatpush1.msra.mxu0 0.0
    %2749 = vmatprep.subr.mxu0 0.0
    %2750 = vmatpush1.msra.mxu0 0.0
    %2751 = vmatprep.subr.mxu0 0.0
    %2752 = vmatpush1.msra.mxu0 0.0
    %2753 = vmatprep.subr.mxu0 0.0
    %2754 = vmatpush1.msra.mxu0 0.0
    %2755 = vmatprep.subr.mxu0 0.0
    %2756 = vmatpush1.msra.mxu0 0.0
    %2757 = vmatprep.subr.mxu0 0.0
    %2758 = vmatpush1.msra.mxu0 0.0
    %2759 = vmatprep.subr.mxu0 0.0
    %2760 = vmatpush1.msra.mxu0 0.0
    %2761 = vmatprep.subr.mxu0 0.0
    %2762 = vmatpush1.msra.mxu0 0.0
    %2763 = vmatprep.subr.mxu0 0.0
    %2764 = vmatpush1.msra.mxu0 0.0
    %2765 = vmatprep.subr.mxu0 0.0
    %2766 = vmatpush1.msra.mxu0 0.0
    %2767 = vmatprep.subr.mxu0 0.0
    %2768 = vmatpush1.msra.mxu0 0.0
    %2769 = vmatprep.subr.mxu0 0.0
    %2770 = vmatpush1.msra.mxu0 0.0
    %2771 = vmatprep.subr.mxu0 0.0
    %2772 = vmatpush1.msra.mxu0 0.0
    %2773 = vmatprep.subr.mxu0 0.0
    %2774 = vmatpush1.msra.mxu0 0.0
    %2775 = vmatprep.subr.mxu0 0.0
    %2776 = vmatpush1.msra.mxu0 0.0
    %2777 = vmatprep.subr.mxu0 0.0
    %2778 = vmatpush1.msra.mxu0 0.0
    %2779 = vmatprep.subr.mxu0 0.0
    %2780 = vmatpush1.msra.mxu0 0.0
    %2781 = vmatprep.subr.mxu0 0.0
    %2782 = vmatpush1.msra.mxu0 0.0
    %2783 = vmatprep.subr.mxu0 0.0
    %2784 = vmatpush1.msra.mxu0 0.0
    %2785 = vmatprep.subr.mxu0 0.0
    %2786 = vmatpush1.msra.mxu0 0.0
    %2787 = vmatprep.subr.mxu0 0.0
    %2788 = vmatpush1.msra.mxu0 0.0
    %2789 = vmatprep.subr.mxu0 0.0
    %2790 = vmatpush1.msra.mxu0 0.0
    %2791 = vmatprep.subr.mxu0 0.0
    %2792 = vmatpush1.msra.mxu0 0.0
    %2793 = vmatprep.mubr.f32.mxu0 0.0
    %2794 = vmatmul.mubr.f32.gmra.mrb[0].mxu0 %v2727
    %v2795 = vpop.f32.mrb[0].mxu0
    %v2796 = vadd.f32 0.0, %v2795
    %v2797 = vpop.f32.mrb[0].mxu0
    %2798 = vdwg.mxu0
    %2800 = vrot.lane.b32.xlu0 %v2796, 96
    %v2801 = vpop.permute.xlu0 %2800
    %2803 = vst.msk [vmem:[#allocation2] sm:$0xff] %vm1094, %v2801
    %v2805 = vsel %vm411, %v2049, 0
    %v2808 = vsel %vm411, %v2051, 0
    %2810 = vmatprep.subr.mxu0 0.0
    %2811 = vmatpush1.xpose.msra.mxu0 %v2808
    %2812 = vmatprep.subr.mxu0 0.0
    %2813 = vmatpush1.xpose.msra.mxu0 0.0
    %2814 = vmatprep.subr.mxu0 0.0
    %2815 = vmatpush1.xpose.msra.mxu0 0.0
    %2816 = vmatprep.subr.mxu0 0.0
    %2817 = vmatpush1.xpose.msra.mxu0 0.0
    %2818 = vmatprep.subr.mxu0 0.0
    %2819 = vmatpush1.xpose.msra.mxu0 0.0
    %2820 = vmatprep.subr.mxu0 0.0
    %2821 = vmatpush1.xpose.msra.mxu0 0.0
    %2822 = vmatprep.subr.mxu0 0.0
    %2823 = vmatpush1.xpose.msra.mxu0 0.0
    %2824 = vmatprep.subr.mxu0 0.0
    %2825 = vmatpush1.xpose.msra.mxu0 0.0
    %2826 = vmatprep.subr.mxu0 0.0
    %2827 = vmatpush1.xpose.msra.mxu0 0.0
    %2828 = vmatprep.subr.mxu0 0.0
    %2829 = vmatpush1.xpose.msra.mxu0 0.0
    %2830 = vmatprep.subr.mxu0 0.0
    %2831 = vmatpush1.xpose.msra.mxu0 0.0
    %2832 = vmatprep.subr.mxu0 0.0
    %2833 = vmatpush1.xpose.msra.mxu0 0.0
    %2834 = vmatprep.subr.mxu0 0.0
    %2835 = vmatpush1.xpose.msra.mxu0 0.0
    %2836 = vmatprep.subr.mxu0 0.0
    %2837 = vmatpush1.xpose.msra.mxu0 0.0
    %2838 = vmatprep.subr.mxu0 0.0
    %2839 = vmatpush1.xpose.msra.mxu0 0.0
    %2840 = vmatprep.subr.mxu0 0.0
    %2841 = vmatpush1.xpose.msra.mxu0 0.0
    %2842 = vmatprep.subr.mxu0 0.0
    %2843 = vmatpush1.xpose.msra.mxu0 0.0
    %2844 = vmatprep.subr.mxu0 0.0
    %2845 = vmatpush1.xpose.msra.mxu0 0.0
    %2846 = vmatprep.subr.mxu0 0.0
    %2847 = vmatpush1.xpose.msra.mxu0 0.0
    %2848 = vmatprep.subr.mxu0 0.0
    %2849 = vmatpush1.xpose.msra.mxu0 0.0
    %2850 = vmatprep.subr.mxu0 0.0
    %2851 = vmatpush1.xpose.msra.mxu0 0.0
    %2852 = vmatprep.subr.mxu0 0.0
    %2853 = vmatpush1.xpose.msra.mxu0 0.0
    %2854 = vmatprep.subr.mxu0 0.0
    %2855 = vmatpush1.xpose.msra.mxu0 0.0
    %2856 = vmatprep.subr.mxu0 0.0
    %2857 = vmatpush1.xpose.msra.mxu0 0.0
    %2858 = vmatprep.subr.mxu0 0.0
    %2859 = vmatpush1.xpose.msra.mxu0 0.0
    %2860 = vmatprep.subr.mxu0 0.0
    %2861 = vmatpush1.xpose.msra.mxu0 0.0
    %2862 = vmatprep.subr.mxu0 0.0
    %2863 = vmatpush1.xpose.msra.mxu0 0.0
    %2864 = vmatprep.subr.mxu0 0.0
    %2865 = vmatpush1.xpose.msra.mxu0 0.0
    %2866 = vmatprep.subr.mxu0 0.0
    %2867 = vmatpush1.xpose.msra.mxu0 0.0
    %2868 = vmatprep.subr.mxu0 0.0
    %2869 = vmatpush1.xpose.msra.mxu0 0.0
    %2870 = vmatprep.subr.mxu0 0.0
    %2871 = vmatpush1.xpose.msra.mxu0 0.0
    %2872 = vmatprep.subr.mxu0 0.0
    %2873 = vmatpush1.xpose.msra.mxu0 0.0
    %2874 = vmatprep.mubr.f32.mxu0 0.0
    %2875 = vmatmul.mubr.f32.gmra.mrb[0].mxu0 %v2805
    %v2876 = vpop.f32.mrb[0].mxu0
    %v2877 = vadd.f32 0.0, %v2876
    %v2878 = vpop.f32.mrb[0].mxu0
    %2879 = vdwg.mxu0
    %v2880 = vmul.f32 %v2877, 0.17677669
    %v2881 = vsel %vm490, %v2880, -inf
    %2882 = vmax.xlane.f32.xlu0 %v2881
    %v2883 = vpop.xlane.xlu0 %2882
    %v2884 = vsub.f32 %v2880, %v2883
    %v2885 = vmul.f32 %v2884, 1.442695
    %v2886 = vpow.pop %v2885
    %v2887 = vsel %vm490, %v2886, 0.0
    %2888 = vadd.xlane.f32.xlu0 %v2887
    %v2889 = vpop.xlane.xlu0 %2888
    %v2890 = vrcp.pop %v2889
    %v2891 = vmul.f32 %v2886, %v2890
    %v2893 = vsel %vm490, %v2891, 0
    %2895 = vmatprep.subr.mxu0 0.0
    %2896 = vmatpush1.msra.mxu0 %v2125
    %2897 = vmatprep.subr.mxu0 0.0
    %2898 = vmatpush1.msra.mxu0 0.0
    %2899 = vmatprep.subr.mxu0 0.0
    %2900 = vmatpush1.msra.mxu0 0.0
    %2901 = vmatprep.subr.mxu0 0.0
    %2902 = vmatpush1.msra.mxu0 0.0
    %2903 = vmatprep.subr.mxu0 0.0
    %2904 = vmatpush1.msra.mxu0 0.0
    %2905 = vmatprep.subr.mxu0 0.0
    %2906 = vmatpush1.msra.mxu0 0.0
    %2907 = vmatprep.subr.mxu0 0.0
    %2908 = vmatpush1.msra.mxu0 0.0
    %2909 = vmatprep.subr.mxu0 0.0
    %2910 = vmatpush1.msra.mxu0 0.0
    %2911 = vmatprep.subr.mxu0 0.0
    %2912 = vmatpush1.msra.mxu0 0.0
    %2913 = vmatprep.subr.mxu0 0.0
    %2914 = vmatpush1.msra.mxu0 0.0
    %2915 = vmatprep.subr.mxu0 0.0
    %2916 = vmatpush1.msra.mxu0 0.0
    %2917 = vmatprep.subr.mxu0 0.0
    %2918 = vmatpush1.msra.mxu0 0.0
    %2919 = vmatprep.subr.mxu0 0.0
    %2920 = vmatpush1.msra.mxu0 0.0
    %2921 = vmatprep.subr.mxu0 0.0
    %2922 = vmatpush1.msra.mxu0 0.0
    %2923 = vmatprep.subr.mxu0 0.0
    %2924 = vmatpush1.msra.mxu0 0.0
    %2925 = vmatprep.subr.mxu0 0.0
    %2926 = vmatpush1.msra.mxu0 0.0
    %2927 = vmatprep.subr.mxu0 0.0
    %2928 = vmatpush1.msra.mxu0 0.0
    %2929 = vmatprep.subr.mxu0 0.0
    %2930 = vmatpush1.msra.mxu0 0.0
    %2931 = vmatprep.subr.mxu0 0.0
    %2932 = vmatpush1.msra.mxu0 0.0
    %2933 = vmatprep.subr.mxu0 0.0
    %2934 = vmatpush1.msra.mxu0 0.0
    %2935 = vmatprep.subr.mxu0 0.0
    %2936 = vmatpush1.msra.mxu0 0.0
    %2937 = vmatprep.subr.mxu0 0.0
    %2938 = vmatpush1.msra.mxu0 0.0
    %2939 = vmatprep.subr.mxu0 0.0
    %2940 = vmatpush1.msra.mxu0 0.0
    %2941 = vmatprep.subr.mxu0 0.0
    %2942 = vmatpush1.msra.mxu0 0.0
    %2943 = vmatprep.subr.mxu0 0.0
    %2944 = vmatpush1.msra.mxu0 0.0
    %2945 = vmatprep.subr.mxu0 0.0
    %2946 = vmatpush1.msra.mxu0 0.0
    %2947 = vmatprep.subr.mxu0 0.0
    %2948 = vmatpush1.msra.mxu0 0.0
    %2949 = vmatprep.subr.mxu0 0.0
    %2950 = vmatpush1.msra.mxu0 0.0
    %2951 = vmatprep.subr.mxu0 0.0
    %2952 = vmatpush1.msra.mxu0 0.0
    %2953 = vmatprep.subr.mxu0 0.0
    %2954 = vmatpush1.msra.mxu0 0.0
    %2955 = vmatprep.subr.mxu0 0.0
    %2956 = vmatpush1.msra.mxu0 0.0
    %2957 = vmatprep.subr.mxu0 0.0
    %2958 = vmatpush1.msra.mxu0 0.0
    %2959 = vmatprep.mubr.f32.mxu0 0.0
    %2960 = vmatmul.mubr.f32.gmra.mrb[0].mxu0 %v2893
    %v2961 = vpop.f32.mrb[0].mxu0
    %v2962 = vadd.f32 0.0, %v2961
    %v2963 = vpop.f32.mrb[0].mxu0
    %2964 = vdwg.mxu0
    %2965 = vst.msk [vmem:[#allocation2 + $0x8] sm:$0xff] %vm411, %v2962
    %2966 = vrot.lane.b32.xlu0 %v2049, 96
    %v2967 = vpop.permute.xlu0 %2966
    %2968 = vrot.lane.b32.xlu0 %v2051, 96
    %v2969 = vpop.permute.xlu0 %2968
    %v2970 = vsel %vm411, %v2967, 0
    %v2972 = vsel %vm411, %v2969, 0
    %2974 = vmatprep.subr.mxu0 0.0
    %2975 = vmatpush1.xpose.msra.mxu0 %v2972
    %2976 = vmatprep.subr.mxu0 0.0
    %2977 = vmatpush1.xpose.msra.mxu0 0.0
    %2978 = vmatprep.subr.mxu0 0.0
    %2979 = vmatpush1.xpose.msra.mxu0 0.0
    %2980 = vmatprep.subr.mxu0 0.0
    %2981 = vmatpush1.xpose.msra.mxu0 0.0
    %2982 = vmatprep.subr.mxu0 0.0
    %2983 = vmatpush1.xpose.msra.mxu0 0.0
    %2984 = vmatprep.subr.mxu0 0.0
    %2985 = vmatpush1.xpose.msra.mxu0 0.0
    %2986 = vmatprep.subr.mxu0 0.0
    %2987 = vmatpush1.xpose.msra.mxu0 0.0
    %2988 = vmatprep.subr.mxu0 0.0
    %2989 = vmatpush1.xpose.msra.mxu0 0.0
    %2990 = vmatprep.subr.mxu0 0.0
    %2991 = vmatpush1.xpose.msra.mxu0 0.0
    %2992 = vmatprep.subr.mxu0 0.0
    %2993 = vmatpush1.xpose.msra.mxu0 0.0
    %2994 = vmatprep.subr.mxu0 0.0
    %2995 = vmatpush1.xpose.msra.mxu0 0.0
    %2996 = vmatprep.subr.mxu0 0.0
    %2997 = vmatpush1.xpose.msra.mxu0 0.0
    %2998 = vmatprep.subr.mxu0 0.0
    %2999 = vmatpush1.xpose.msra.mxu0 0.0
    %3000 = vmatprep.subr.mxu0 0.0
    %3001 = vmatpush1.xpose.msra.mxu0 0.0
    %3002 = vmatprep.subr.mxu0 0.0
    %3003 = vmatpush1.xpose.msra.mxu0 0.0
    %3004 = vmatprep.subr.mxu0 0.0
    %3005 = vmatpush1.xpose.msra.mxu0 0.0
    %3006 = vmatprep.subr.mxu0 0.0
    %3007 = vmatpush1.xpose.msra.mxu0 0.0
    %3008 = vmatprep.subr.mxu0 0.0
    %3009 = vmatpush1.xpose.msra.mxu0 0.0
    %3010 = vmatprep.subr.mxu0 0.0
    %3011 = vmatpush1.xpose.msra.mxu0 0.0
    %3012 = vmatprep.subr.mxu0 0.0
    %3013 = vmatpush1.xpose.msra.mxu0 0.0
    %3014 = vmatprep.subr.mxu0 0.0
    %3015 = vmatpush1.xpose.msra.mxu0 0.0
    %3016 = vmatprep.subr.mxu0 0.0
    %3017 = vmatpush1.xpose.msra.mxu0 0.0
    %3018 = vmatprep.subr.mxu0 0.0
    %3019 = vmatpush1.xpose.msra.mxu0 0.0
    %3020 = vmatprep.subr.mxu0 0.0
    %3021 = vmatpush1.xpose.msra.mxu0 0.0
    %3022 = vmatprep.subr.mxu0 0.0
    %3023 = vmatpush1.xpose.msra.mxu0 0.0
    %3024 = vmatprep.subr.mxu0 0.0
    %3025 = vmatpush1.xpose.msra.mxu0 0.0
    %3026 = vmatprep.subr.mxu0 0.0
    %3027 = vmatpush1.xpose.msra.mxu0 0.0
    %3028 = vmatprep.subr.mxu0 0.0
    %3029 = vmatpush1.xpose.msra.mxu0 0.0
    %3030 = vmatprep.subr.mxu0 0.0
    %3031 = vmatpush1.xpose.msra.mxu0 0.0
    %3032 = vmatprep.subr.mxu0 0.0
    %3033 = vmatpush1.xpose.msra.mxu0 0.0
    %3034 = vmatprep.subr.mxu0 0.0
    %3035 = vmatpush1.xpose.msra.mxu0 0.0
    %3036 = vmatprep.subr.mxu0 0.0
    %3037 = vmatpush1.xpose.msra.mxu0 0.0
    %3038 = vmatprep.mubr.f32.mxu0 0.0
    %3039 = vmatmul.mubr.f32.gmra.mrb[0].mxu0 %v2970
    %v3040 = vpop.f32.mrb[0].mxu0
    %v3041 = vadd.f32 0.0, %v3040
    %v3042 = vpop.f32.mrb[0].mxu0
    %3043 = vdwg.mxu0
    %v3044 = vmul.f32 %v3041, 0.17677669
    %v3045 = vsel %vm490, %v3044, -inf
    %3046 = vmax.xlane.f32.xlu0 %v3045
    %v3047 = vpop.xlane.xlu0 %3046
    %v3048 = vsub.f32 %v3044, %v3047
    %v3049 = vmul.f32 %v3048, 1.442695
    %v3050 = vpow.pop %v3049
    %v3051 = vsel %vm490, %v3050, 0.0
    %3052 = vadd.xlane.f32.xlu0 %v3051
    %v3053 = vpop.xlane.xlu0 %3052
    %v3054 = vrcp.pop %v3053
    %v3055 = vmul.f32 %v3050, %v3054
    %3057 = vrot.lane.b32.xlu0 %v2125, 96
    %v3058 = vpop.permute.xlu0 %3057
    %v3061 = vsel %vm490, %v3055, 0
    %3063 = vmatprep.subr.mxu0 0.0
    %3064 = vmatpush1.msra.mxu0 %v3058
    %3065 = vmatprep.subr.mxu0 0.0
    %3066 = vmatpush1.msra.mxu0 0.0
    %3067 = vmatprep.subr.mxu0 0.0
    %3068 = vmatpush1.msra.mxu0 0.0
    %3069 = vmatprep.subr.mxu0 0.0
    %3070 = vmatpush1.msra.mxu0 0.0
    %3071 = vmatprep.subr.mxu0 0.0
    %3072 = vmatpush1.msra.mxu0 0.0
    %3073 = vmatprep.subr.mxu0 0.0
    %3074 = vmatpush1.msra.mxu0 0.0
    %3075 = vmatprep.subr.mxu0 0.0
    %3076 = vmatpush1.msra.mxu0 0.0
    %3077 = vmatprep.subr.mxu0 0.0
    %3078 = vmatpush1.msra.mxu0 0.0
    %3079 = vmatprep.subr.mxu0 0.0
    %3080 = vmatpush1.msra.mxu0 0.0
    %3081 = vmatprep.subr.mxu0 0.0
    %3082 = vmatpush1.msra.mxu0 0.0
    %3083 = vmatprep.subr.mxu0 0.0
    %3084 = vmatpush1.msra.mxu0 0.0
    %3085 = vmatprep.subr.mxu0 0.0
    %3086 = vmatpush1.msra.mxu0 0.0
    %3087 = vmatprep.subr.mxu0 0.0
    %3088 = vmatpush1.msra.mxu0 0.0
    %3089 = vmatprep.subr.mxu0 0.0
    %3090 = vmatpush1.msra.mxu0 0.0
    %3091 = vmatprep.subr.mxu0 0.0
    %3092 = vmatpush1.msra.mxu0 0.0
    %3093 = vmatprep.subr.mxu0 0.0
    %3094 = vmatpush1.msra.mxu0 0.0
    %3095 = vmatprep.subr.mxu0 0.0
    %3096 = vmatpush1.msra.mxu0 0.0
    %3097 = vmatprep.subr.mxu0 0.0
    %3098 = vmatpush1.msra.mxu0 0.0
    %3099 = vmatprep.subr.mxu0 0.0
    %3100 = vmatpush1.msra.mxu0 0.0
    %3101 = vmatprep.subr.mxu0 0.0
    %3102 = vmatpush1.msra.mxu0 0.0
    %3103 = vmatprep.subr.mxu0 0.0
    %3104 = vmatpush1.msra.mxu0 0.0
    %3105 = vmatprep.subr.mxu0 0.0
    %3106 = vmatpush1.msra.mxu0 0.0
    %3107 = vmatprep.subr.mxu0 0.0
    %3108 = vmatpush1.msra.mxu0 0.0
    %3109 = vmatprep.subr.mxu0 0.0
    %3110 = vmatpush1.msra.mxu0 0.0
    %3111 = vmatprep.subr.mxu0 0.0
    %3112 = vmatpush1.msra.mxu0 0.0
    %3113 = vmatprep.subr.mxu0 0.0
    %3114 = vmatpush1.msra.mxu0 0.0
    %3115 = vmatprep.subr.mxu0 0.0
    %3116 = vmatpush1.msra.mxu0 0.0
    %3117 = vmatprep.subr.mxu0 0.0
    %3118 = vmatpush1.msra.mxu0 0.0
    %3119 = vmatprep.subr.mxu0 0.0
    %3120 = vmatpush1.msra.mxu0 0.0
    %3121 = vmatprep.subr.mxu0 0.0
    %3122 = vmatpush1.msra.mxu0 0.0
    %3123 = vmatprep.subr.mxu0 0.0
    %3124 = vmatpush1.msra.mxu0 0.0
    %3125 = vmatprep.subr.mxu0 0.0
    %3126 = vmatpush1.msra.mxu0 0.0
    %3127 = vmatprep.mubr.f32.mxu0 0.0
    %3128 = vmatmul.mubr.f32.gmra.mrb[0].mxu0 %v3061
    %v3129 = vpop.f32.mrb[0].mxu0
    %v3130 = vadd.f32 0.0, %v3129
    %v3131 = vpop.f32.mrb[0].mxu0
    %3132 = vdwg.mxu0
    %3134 = vrot.lane.b32.xlu0 %v3130, 32
    %v3135 = vpop.permute.xlu0 %3134
    %3137 = vst.msk [vmem:[#allocation2 + $0x8] sm:$0xff] %vm748, %v3135
    %3138 = vrot.lane.b32.xlu0 %v2049, 64
    %v3139 = vpop.permute.xlu0 %3138
    %3140 = vrot.lane.b32.xlu0 %v2051, 64
    %v3141 = vpop.permute.xlu0 %3140
    %v3142 = vsel %vm411, %v3139, 0
    %v3144 = vsel %vm411, %v3141, 0
    %3146 = vmatprep.subr.mxu0 0.0
    %3147 = vmatpush1.xpose.msra.mxu0 %v3144
    %3148 = vmatprep.subr.mxu0 0.0
    %3149 = vmatpush1.xpose.msra.mxu0 0.0
    %3150 = vmatprep.subr.mxu0 0.0
    %3151 = vmatpush1.xpose.msra.mxu0 0.0
    %3152 = vmatprep.subr.mxu0 0.0
    %3153 = vmatpush1.xpose.msra.mxu0 0.0
    %3154 = vmatprep.subr.mxu0 0.0
    %3155 = vmatpush1.xpose.msra.mxu0 0.0
    %3156 = vmatprep.subr.mxu0 0.0
    %3157 = vmatpush1.xpose.msra.mxu0 0.0
    %3158 = vmatprep.subr.mxu0 0.0
    %3159 = vmatpush1.xpose.msra.mxu0 0.0
    %3160 = vmatprep.subr.mxu0 0.0
    %3161 = vmatpush1.xpose.msra.mxu0 0.0
    %3162 = vmatprep.subr.mxu0 0.0
    %3163 = vmatpush1.xpose.msra.mxu0 0.0
    %3164 = vmatprep.subr.mxu0 0.0
    %3165 = vmatpush1.xpose.msra.mxu0 0.0
    %3166 = vmatprep.subr.mxu0 0.0
    %3167 = vmatpush1.xpose.msra.mxu0 0.0
    %3168 = vmatprep.subr.mxu0 0.0
    %3169 = vmatpush1.xpose.msra.mxu0 0.0
    %3170 = vmatprep.subr.mxu0 0.0
    %3171 = vmatpush1.xpose.msra.mxu0 0.0
    %3172 = vmatprep.subr.mxu0 0.0
    %3173 = vmatpush1.xpose.msra.mxu0 0.0
    %3174 = vmatprep.subr.mxu0 0.0
    %3175 = vmatpush1.xpose.msra.mxu0 0.0
    %3176 = vmatprep.subr.mxu0 0.0
    %3177 = vmatpush1.xpose.msra.mxu0 0.0
    %3178 = vmatprep.subr.mxu0 0.0
    %3179 = vmatpush1.xpose.msra.mxu0 0.0
    %3180 = vmatprep.subr.mxu0 0.0
    %3181 = vmatpush1.xpose.msra.mxu0 0.0
    %3182 = vmatprep.subr.mxu0 0.0
    %3183 = vmatpush1.xpose.msra.mxu0 0.0
    %3184 = vmatprep.subr.mxu0 0.0
    %3185 = vmatpush1.xpose.msra.mxu0 0.0
    %3186 = vmatprep.subr.mxu0 0.0
    %3187 = vmatpush1.xpose.msra.mxu0 0.0
    %3188 = vmatprep.subr.mxu0 0.0
    %3189 = vmatpush1.xpose.msra.mxu0 0.0
    %3190 = vmatprep.subr.mxu0 0.0
    %3191 = vmatpush1.xpose.msra.mxu0 0.0
    %3192 = vmatprep.subr.mxu0 0.0
    %3193 = vmatpush1.xpose.msra.mxu0 0.0
    %3194 = vmatprep.subr.mxu0 0.0
    %3195 = vmatpush1.xpose.msra.mxu0 0.0
    %3196 = vmatprep.subr.mxu0 0.0
    %3197 = vmatpush1.xpose.msra.mxu0 0.0
    %3198 = vmatprep.subr.mxu0 0.0
    %3199 = vmatpush1.xpose.msra.mxu0 0.0
    %3200 = vmatprep.subr.mxu0 0.0
    %3201 = vmatpush1.xpose.msra.mxu0 0.0
    %3202 = vmatprep.subr.mxu0 0.0
    %3203 = vmatpush1.xpose.msra.mxu0 0.0
    %3204 = vmatprep.subr.mxu0 0.0
    %3205 = vmatpush1.xpose.msra.mxu0 0.0
    %3206 = vmatprep.subr.mxu0 0.0
    %3207 = vmatpush1.xpose.msra.mxu0 0.0
    %3208 = vmatprep.subr.mxu0 0.0
    %3209 = vmatpush1.xpose.msra.mxu0 0.0
    %3210 = vmatprep.mubr.f32.mxu0 0.0
    %3211 = vmatmul.mubr.f32.gmra.mrb[0].mxu0 %v3142
    %v3212 = vpop.f32.mrb[0].mxu0
    %v3213 = vadd.f32 0.0, %v3212
    %v3214 = vpop.f32.mrb[0].mxu0
    %3215 = vdwg.mxu0
    %v3216 = vmul.f32 %v3213, 0.17677669
    %v3217 = vsel %vm490, %v3216, -inf
    %3218 = vmax.xlane.f32.xlu0 %v3217
    %v3219 = vpop.xlane.xlu0 %3218
    %v3220 = vsub.f32 %v3216, %v3219
    %v3221 = vmul.f32 %v3220, 1.442695
    %v3222 = vpow.pop %v3221
    %v3223 = vsel %vm490, %v3222, 0.0
    %3224 = vadd.xlane.f32.xlu0 %v3223
    %v3225 = vpop.xlane.xlu0 %3224
    %v3226 = vrcp.pop %v3225
    %v3227 = vmul.f32 %v3222, %v3226
    %3228 = vrot.lane.b32.xlu0 %v2125, 64
    %v3229 = vpop.permute.xlu0 %3228
    %v3232 = vsel %vm490, %v3227, 0
    %3234 = vmatprep.subr.mxu0 0.0
    %3235 = vmatpush1.msra.mxu0 %v3229
    %3236 = vmatprep.subr.mxu0 0.0
    %3237 = vmatpush1.msra.mxu0 0.0
    %3238 = vmatprep.subr.mxu0 0.0
    %3239 = vmatpush1.msra.mxu0 0.0
    %3240 = vmatprep.subr.mxu0 0.0
    %3241 = vmatpush1.msra.mxu0 0.0
    %3242 = vmatprep.subr.mxu0 0.0
    %3243 = vmatpush1.msra.mxu0 0.0
    %3244 = vmatprep.subr.mxu0 0.0
    %3245 = vmatpush1.msra.mxu0 0.0
    %3246 = vmatprep.subr.mxu0 0.0
    %3247 = vmatpush1.msra.mxu0 0.0
    %3248 = vmatprep.subr.mxu0 0.0
    %3249 = vmatpush1.msra.mxu0 0.0
    %3250 = vmatprep.subr.mxu0 0.0
    %3251 = vmatpush1.msra.mxu0 0.0
    %3252 = vmatprep.subr.mxu0 0.0
    %3253 = vmatpush1.msra.mxu0 0.0
    %3254 = vmatprep.subr.mxu0 0.0
    %3255 = vmatpush1.msra.mxu0 0.0
    %3256 = vmatprep.subr.mxu0 0.0
    %3257 = vmatpush1.msra.mxu0 0.0
    %3258 = vmatprep.subr.mxu0 0.0
    %3259 = vmatpush1.msra.mxu0 0.0
    %3260 = vmatprep.subr.mxu0 0.0
    %3261 = vmatpush1.msra.mxu0 0.0
    %3262 = vmatprep.subr.mxu0 0.0
    %3263 = vmatpush1.msra.mxu0 0.0
    %3264 = vmatprep.subr.mxu0 0.0
    %3265 = vmatpush1.msra.mxu0 0.0
    %3266 = vmatprep.subr.mxu0 0.0
    %3267 = vmatpush1.msra.mxu0 0.0
    %3268 = vmatprep.subr.mxu0 0.0
    %3269 = vmatpush1.msra.mxu0 0.0
    %3270 = vmatprep.subr.mxu0 0.0
    %3271 = vmatpush1.msra.mxu0 0.0
    %3272 = vmatprep.subr.mxu0 0.0
    %3273 = vmatpush1.msra.mxu0 0.0
    %3274 = vmatprep.subr.mxu0 0.0
    %3275 = vmatpush1.msra.mxu0 0.0
    %3276 = vmatprep.subr.mxu0 0.0
    %3277 = vmatpush1.msra.mxu0 0.0
    %3278 = vmatprep.subr.mxu0 0.0
    %3279 = vmatpush1.msra.mxu0 0.0
    %3280 = vmatprep.subr.mxu0 0.0
    %3281 = vmatpush1.msra.mxu0 0.0
    %3282 = vmatprep.subr.mxu0 0.0
    %3283 = vmatpush1.msra.mxu0 0.0
    %3284 = vmatprep.subr.mxu0 0.0
    %3285 = vmatpush1.msra.mxu0 0.0
    %3286 = vmatprep.subr.mxu0 0.0
    %3287 = vmatpush1.msra.mxu0 0.0
    %3288 = vmatprep.subr.mxu0 0.0
    %3289 = vmatpush1.msra.mxu0 0.0
    %3290 = vmatprep.subr.mxu0 0.0
    %3291 = vmatpush1.msra.mxu0 0.0
    %3292 = vmatprep.subr.mxu0 0.0
    %3293 = vmatpush1.msra.mxu0 0.0
    %3294 = vmatprep.subr.mxu0 0.0
    %3295 = vmatpush1.msra.mxu0 0.0
    %3296 = vmatprep.subr.mxu0 0.0
    %3297 = vmatpush1.msra.mxu0 0.0
    %3298 = vmatprep.mubr.f32.mxu0 0.0
    %3299 = vmatmul.mubr.f32.gmra.mrb[0].mxu0 %v3232
    %v3300 = vpop.f32.mrb[0].mxu0
    %v3301 = vadd.f32 0.0, %v3300
    %v3302 = vpop.f32.mrb[0].mxu0
    %3303 = vdwg.mxu0
    %3305 = vrot.lane.b32.xlu0 %v3301, 64
    %v3306 = vpop.permute.xlu0 %3305
    %3308 = vst.msk [vmem:[#allocation2 + $0x8] sm:$0xff] %vm921, %v3306
    %3309 = vrot.lane.b32.xlu0 %v2049, 32
    %v3310 = vpop.permute.xlu0 %3309
    %3311 = vrot.lane.b32.xlu0 %v2051, 32
    %v3312 = vpop.permute.xlu0 %3311
    %v3313 = vsel %vm411, %v3310, 0
    %v3315 = vsel %vm411, %v3312, 0
    %3317 = vmatprep.subr.mxu0 0.0
    %3318 = vmatpush1.xpose.msra.mxu0 %v3315
    %3319 = vmatprep.subr.mxu0 0.0
    %3320 = vmatpush1.xpose.msra.mxu0 0.0
    %3321 = vmatprep.subr.mxu0 0.0
    %3322 = vmatpush1.xpose.msra.mxu0 0.0
    %3323 = vmatprep.subr.mxu0 0.0
    %3324 = vmatpush1.xpose.msra.mxu0 0.0
    %3325 = vmatprep.subr.mxu0 0.0
    %3326 = vmatpush1.xpose.msra.mxu0 0.0
    %3327 = vmatprep.subr.mxu0 0.0
    %3328 = vmatpush1.xpose.msra.mxu0 0.0
    %3329 = vmatprep.subr.mxu0 0.0
    %3330 = vmatpush1.xpose.msra.mxu0 0.0
    %3331 = vmatprep.subr.mxu0 0.0
    %3332 = vmatpush1.xpose.msra.mxu0 0.0
    %3333 = vmatprep.subr.mxu0 0.0
    %3334 = vmatpush1.xpose.msra.mxu0 0.0
    %3335 = vmatprep.subr.mxu0 0.0
    %3336 = vmatpush1.xpose.msra.mxu0 0.0
    %3337 = vmatprep.subr.mxu0 0.0
    %3338 = vmatpush1.xpose.msra.mxu0 0.0
    %3339 = vmatprep.subr.mxu0 0.0
    %3340 = vmatpush1.xpose.msra.mxu0 0.0
    %3341 = vmatprep.subr.mxu0 0.0
    %3342 = vmatpush1.xpose.msra.mxu0 0.0
    %3343 = vmatprep.subr.mxu0 0.0
    %3344 = vmatpush1.xpose.msra.mxu0 0.0
    %3345 = vmatprep.subr.mxu0 0.0
    %3346 = vmatpush1.xpose.msra.mxu0 0.0
    %3347 = vmatprep.subr.mxu0 0.0
    %3348 = vmatpush1.xpose.msra.mxu0 0.0
    %3349 = vmatprep.subr.mxu0 0.0
    %3350 = vmatpush1.xpose.msra.mxu0 0.0
    %3351 = vmatprep.subr.mxu0 0.0
    %3352 = vmatpush1.xpose.msra.mxu0 0.0
    %3353 = vmatprep.subr.mxu0 0.0
    %3354 = vmatpush1.xpose.msra.mxu0 0.0
    %3355 = vmatprep.subr.mxu0 0.0
    %3356 = vmatpush1.xpose.msra.mxu0 0.0
    %3357 = vmatprep.subr.mxu0 0.0
    %3358 = vmatpush1.xpose.msra.mxu0 0.0
    %3359 = vmatprep.subr.mxu0 0.0
    %3360 = vmatpush1.xpose.msra.mxu0 0.0
    %3361 = vmatprep.subr.mxu0 0.0
    %3362 = vmatpush1.xpose.msra.mxu0 0.0
    %3363 = vmatprep.subr.mxu0 0.0
    %3364 = vmatpush1.xpose.msra.mxu0 0.0
    %3365 = vmatprep.subr.mxu0 0.0
    %3366 = vmatpush1.xpose.msra.mxu0 0.0
    %3367 = vmatprep.subr.mxu0 0.0
    %3368 = vmatpush1.xpose.msra.mxu0 0.0
    %3369 = vmatprep.subr.mxu0 0.0
    %3370 = vmatpush1.xpose.msra.mxu0 0.0
    %3371 = vmatprep.subr.mxu0 0.0
    %3372 = vmatpush1.xpose.msra.mxu0 0.0
    %3373 = vmatprep.subr.mxu0 0.0
    %3374 = vmatpush1.xpose.msra.mxu0 0.0
    %3375 = vmatprep.subr.mxu0 0.0
    %3376 = vmatpush1.xpose.msra.mxu0 0.0
    %3377 = vmatprep.subr.mxu0 0.0
    %3378 = vmatpush1.xpose.msra.mxu0 0.0
    %3379 = vmatprep.subr.mxu0 0.0
    %3380 = vmatpush1.xpose.msra.mxu0 0.0
    %3381 = vmatprep.mubr.f32.mxu0 0.0
    %3382 = vmatmul.mubr.f32.gmra.mrb[0].mxu0 %v3313
    %v3383 = vpop.f32.mrb[0].mxu0
    %v3384 = vadd.f32 0.0, %v3383
    %v3385 = vpop.f32.mrb[0].mxu0
    %3386 = vdwg.mxu0
    %v3387 = vmul.f32 %v3384, 0.17677669
    %v3388 = vsel %vm490, %v3387, -inf
    %3389 = vmax.xlane.f32.xlu0 %v3388
    %v3390 = vpop.xlane.xlu0 %3389
    %v3391 = vsub.f32 %v3387, %v3390
    %v3392 = vmul.f32 %v3391, 1.442695
    %v3393 = vpow.pop %v3392
    %v3394 = vsel %vm490, %v3393, 0.0
    %3395 = vadd.xlane.f32.xlu0 %v3394
    %v3396 = vpop.xlane.xlu0 %3395
    %v3397 = vrcp.pop %v3396
    %v3398 = vmul.f32 %v3393, %v3397
    %3399 = vrot.lane.b32.xlu0 %v2125, 32
    %v3400 = vpop.permute.xlu0 %3399
    %v3403 = vsel %vm490, %v3398, 0
    %3405 = vmatprep.subr.mxu0 0.0
    %3406 = vmatpush1.msra.mxu0 %v3400
    %3407 = vmatprep.subr.mxu0 0.0
    %3408 = vmatpush1.msra.mxu0 0.0
    %3409 = vmatprep.subr.mxu0 0.0
    %3410 = vmatpush1.msra.mxu0 0.0
    %3411 = vmatprep.subr.mxu0 0.0
    %3412 = vmatpush1.msra.mxu0 0.0
    %3413 = vmatprep.subr.mxu0 0.0
    %3414 = vmatpush1.msra.mxu0 0.0
    %3415 = vmatprep.subr.mxu0 0.0
    %3416 = vmatpush1.msra.mxu0 0.0
    %3417 = vmatprep.subr.mxu0 0.0
    %3418 = vmatpush1.msra.mxu0 0.0
    %3419 = vmatprep.subr.mxu0 0.0
    %3420 = vmatpush1.msra.mxu0 0.0
    %3421 = vmatprep.subr.mxu0 0.0
    %3422 = vmatpush1.msra.mxu0 0.0
    %3423 = vmatprep.subr.mxu0 0.0
    %3424 = vmatpush1.msra.mxu0 0.0
    %3425 = vmatprep.subr.mxu0 0.0
    %3426 = vmatpush1.msra.mxu0 0.0
    %3427 = vmatprep.subr.mxu0 0.0
    %3428 = vmatpush1.msra.mxu0 0.0
    %3429 = vmatprep.subr.mxu0 0.0
    %3430 = vmatpush1.msra.mxu0 0.0
    %3431 = vmatprep.subr.mxu0 0.0
    %3432 = vmatpush1.msra.mxu0 0.0
    %3433 = vmatprep.subr.mxu0 0.0
    %3434 = vmatpush1.msra.mxu0 0.0
    %3435 = vmatprep.subr.mxu0 0.0
    %3436 = vmatpush1.msra.mxu0 0.0
    %3437 = vmatprep.subr.mxu0 0.0
    %3438 = vmatpush1.msra.mxu0 0.0
    %3439 = vmatprep.subr.mxu0 0.0
    %3440 = vmatpush1.msra.mxu0 0.0
    %3441 = vmatprep.subr.mxu0 0.0
    %3442 = vmatpush1.msra.mxu0 0.0
    %3443 = vmatprep.subr.mxu0 0.0
    %3444 = vmatpush1.msra.mxu0 0.0
    %3445 = vmatprep.subr.mxu0 0.0
    %3446 = vmatpush1.msra.mxu0 0.0
    %3447 = vmatprep.subr.mxu0 0.0
    %3448 = vmatpush1.msra.mxu0 0.0
    %3449 = vmatprep.subr.mxu0 0.0
    %3450 = vmatpush1.msra.mxu0 0.0
    %3451 = vmatprep.subr.mxu0 0.0
    %3452 = vmatpush1.msra.mxu0 0.0
    %3453 = vmatprep.subr.mxu0 0.0
    %3454 = vmatpush1.msra.mxu0 0.0
    %3455 = vmatprep.subr.mxu0 0.0
    %3456 = vmatpush1.msra.mxu0 0.0
    %3457 = vmatprep.subr.mxu0 0.0
    %3458 = vmatpush1.msra.mxu0 0.0
    %3459 = vmatprep.subr.mxu0 0.0
    %3460 = vmatpush1.msra.mxu0 0.0
    %3461 = vmatprep.subr.mxu0 0.0
    %3462 = vmatpush1.msra.mxu0 0.0
    %3463 = vmatprep.subr.mxu0 0.0
    %3464 = vmatpush1.msra.mxu0 0.0
    %3465 = vmatprep.subr.mxu0 0.0
    %3466 = vmatpush1.msra.mxu0 0.0
    %3467 = vmatprep.subr.mxu0 0.0
    %3468 = vmatpush1.msra.mxu0 0.0
    %3469 = vmatprep.mubr.f32.mxu0 0.0
    %3470 = vmatmul.mubr.f32.gmra.mrb[0].mxu0 %v3403
    %v3471 = vpop.f32.mrb[0].mxu0
    %v3472 = vadd.f32 0.0, %v3471
    %v3473 = vpop.f32.mrb[0].mxu0
    %3474 = vdwg.mxu0
    %3476 = vrot.lane.b32.xlu0 %v3472, 96
    %v3477 = vpop.permute.xlu0 %3476
    %3479 = vst.msk [vmem:[#allocation2 + $0x8] sm:$0xff] %vm1094, %v3477
    %v3480 = vld [vmem:[#allocation2] sm:$0xff]
    %v3481 = vld [vmem:[#allocation2 + $0x8] sm:$0xff]
    %v3482 = vld [vmem:[#allocation12] sm:$0xff]
    %v3483 = vld [vmem:[#allocation12 + $0x8] sm:$0xff]
    %v3484 = vld [vmem:[#allocation12 + $0x10] sm:$0xff]
    %v3485 = vld [vmem:[#allocation12 + $0x18] sm:$0xff]
    %v3486 = vld [vmem:[#allocation12 + $0x20] sm:$0xff]
    %v3487 = vld [vmem:[#allocation12 + $0x28] sm:$0xff]
    %v3488 = vld [vmem:[#allocation12 + $0x30] sm:$0xff]
    %v3489 = vld [vmem:[#allocation12 + $0x38] sm:$0xff]
    %v3490 = vld [vmem:[#allocation12 + $0x40] sm:$0xff]
    %v3491 = vld [vmem:[#allocation12 + $0x48] sm:$0xff]
    %v3492 = vld [vmem:[#allocation12 + $0x50] sm:$0xff]
    %v3493 = vld [vmem:[#allocation12 + $0x58] sm:$0xff]
    %v3494 = vld [vmem:[#allocation12 + $0x60] sm:$0xff]
    %v3495 = vld [vmem:[#allocation12 + $0x68] sm:$0xff]
    %v3496 = vld [vmem:[#allocation12 + $0x70] sm:$0xff]
    %v3497 = vld [vmem:[#allocation12 + $0x78] sm:$0xff]
    %3498 = vmatprep.subr.mxu0 0.0
    %3499 = vmatpush1.msra.mxu0 %v3482
    %3500 = vmatprep.subr.mxu0 0.0
    %3501 = vmatpush1.msra.mxu0 %v3483
    %3502 = vmatprep.subr.mxu0 0.0
    %3503 = vmatpush1.msra.mxu0 %v3484
    %3504 = vmatprep.subr.mxu0 0.0
    %3505 = vmatpush1.msra.mxu0 %v3485
    %3506 = vmatprep.subr.mxu0 0.0
    %3507 = vmatpush1.msra.mxu0 %v3486
    %3508 = vmatprep.subr.mxu0 0.0
    %3509 = vmatpush1.msra.mxu0 %v3487
    %3510 = vmatprep.subr.mxu0 0.0
    %3511 = vmatpush1.msra.mxu0 %v3488
    %3512 = vmatprep.subr.mxu0 0.0
    %3513 = vmatpush1.msra.mxu0 %v3489
    %3514 = vmatprep.subr.mxu0 0.0
    %3515 = vmatpush1.msra.mxu0 %v3490
    %3516 = vmatprep.subr.mxu0 0.0
    %3517 = vmatpush1.msra.mxu0 %v3491
    %3518 = vmatprep.subr.mxu0 0.0
    %3519 = vmatpush1.msra.mxu0 %v3492
    %3520 = vmatprep.subr.mxu0 0.0
    %3521 = vmatpush1.msra.mxu0 %v3493
    %3522 = vmatprep.subr.mxu0 0.0
    %3523 = vmatpush1.msra.mxu0 %v3494
    %3524 = vmatprep.subr.mxu0 0.0
    %3525 = vmatpush1.msra.mxu0 %v3495
    %3526 = vmatprep.subr.mxu0 0.0
    %3527 = vmatpush1.msra.mxu0 %v3496
    %3528 = vmatprep.subr.mxu0 0.0
    %3529 = vmatpush1.msra.mxu0 %v3497
    %3530 = vmatprep.subr.mxu0 0.0
    %3531 = vmatpush1.msra.mxu0 0.0
    %3532 = vmatprep.subr.mxu0 0.0
    %3533 = vmatpush1.msra.mxu0 0.0
    %3534 = vmatprep.subr.mxu0 0.0
    %3535 = vmatpush1.msra.mxu0 0.0
    %3536 = vmatprep.subr.mxu0 0.0
    %3537 = vmatpush1.msra.mxu0 0.0
    %3538 = vmatprep.subr.mxu0 0.0
    %3539 = vmatpush1.msra.mxu0 0.0
    %3540 = vmatprep.subr.mxu0 0.0
    %3541 = vmatpush1.msra.mxu0 0.0
    %3542 = vmatprep.subr.mxu0 0.0
    %3543 = vmatpush1.msra.mxu0 0.0
    %3544 = vmatprep.subr.mxu0 0.0
    %3545 = vmatpush1.msra.mxu0 0.0
    %3546 = vmatprep.subr.mxu0 0.0
    %3547 = vmatpush1.msra.mxu0 0.0
    %3548 = vmatprep.subr.mxu0 0.0
    %3549 = vmatpush1.msra.mxu0 0.0
    %3550 = vmatprep.subr.mxu0 0.0
    %3551 = vmatpush1.msra.mxu0 0.0
    %3552 = vmatprep.subr.mxu0 0.0
    %3553 = vmatpush1.msra.mxu0 0.0
    %3554 = vmatprep.subr.mxu0 0.0
    %3555 = vmatpush1.msra.mxu0 0.0
    %3556 = vmatprep.subr.mxu0 0.0
    %3557 = vmatpush1.msra.mxu0 0.0
    %3558 = vmatprep.subr.mxu0 0.0
    %3559 = vmatpush1.msra.mxu0 0.0
    %3560 = vmatprep.subr.mxu0 0.0
    %3561 = vmatpush1.msra.mxu0 0.0
    %3562 = vmatprep.mubr.f32.mxu0 0.0
    %3563 = vmatmul.mubr.f32.gmra.mrb[0].mxu0 %v3480
    %v3564 = vpop.f32.mrb[0].mxu0
    %v3565 = vadd.f32 0.0, %v3564
    %v3566 = vpop.f32.mrb[0].mxu0
    %3567 = vmatprep.mubr.f32.mxu0 0.0
    %3568 = vmatmul.mubr.f32.gmra.mrb[0].mxu0 %v3481
    %v3569 = vpop.f32.mrb[0].mxu0
    %v3570 = vadd.f32 0.0, %v3569
    %v3571 = vpop.f32.mrb[0].mxu0
    %3572 = vdwg.mxu0
    %v3573 = vadd.f32 %v1869, %v3565
    %v3574 = vadd.f32 %v1870, %v3570
    %v3575 = vld [vmem:[%s13] sm:$0x1]
    %v3577 = vlaneseq
    %v3578 = vshrl.u32 %v3577, 7
    %v3579 = vsub.s32 0, %v3578
    %v3580 = vrot.slane %v3575, %v3579
    %v3582 = vadd.f32 %v3573, %v3580
    %v3583 = vadd.f32 %v3574, %v3580
    %v3584 = vld [vmem:[%s6] sm:$0x1]
    %v3585 = vld [vmem:[%s7] sm:$0x1]
    %3586 = vadd.xlane.f32.xlu0 %v3582
    %v3587 = vpop.xlane.xlu0 %3586
    %3588 = vadd.xlane.f32.xlu0 %v3583
    %v3589 = vpop.xlane.xlu0 %3588
    %v3590 = vmul.f32 %v3587, %v176
    %v3591 = vmul.f32 %v3589, %v176
    %v3592 = vsub.f32 %v3582, %v3590
    %v3593 = vsub.f32 %v3583, %v3591
    %v3594 = vmul.f32 %v3592, %v3592
    %v3595 = vmul.f32 %v3593, %v3593
    %3596 = vadd.xlane.f32.xlu0 %v3594
    %v3597 = vpop.xlane.xlu0 %3596
    %3598 = vadd.xlane.f32.xlu0 %v3595
    %v3599 = vpop.xlane.xlu0 %3598
    %v3600 = vmul.f32 %v3597, %v176
    %v3601 = vmul.f32 %v3599, %v176
    %v3602 = vadd.f32 %v3600, 1e-05
    %v3603 = vadd.f32 %v3601, 1e-05
    %v3604 = vrsqrt.pop %v3602
    %v3605 = vrsqrt.pop %v3603
    %v3606 = vmul.f32 %v3592, %v3604
    %v3607 = vmul.f32 %v3593, %v3605
    %v3609 = vlaneseq
    %v3610 = vshrl.u32 %v3609, 7
    %v3611 = vsub.s32 0, %v3610
    %v3612 = vrot.slane %v3584, %v3611
    %v3614 = vmul.f32 %v3606, %v3612
    %v3615 = vmul.f32 %v3607, %v3612
    %v3617 = vlaneseq
    %v3618 = vshrl.u32 %v3617, 7
    %v3619 = vsub.s32 0, %v3618
    %v3620 = vrot.slane %v3585, %v3619
    %v3622 = vadd.f32 %v3614, %v3620
    %v3623 = vadd.f32 %v3615, %v3620
    %v3624 = vld [vmem:[#allocation14] sm:$0xff]
    %v3625 = vld [vmem:[#allocation14 + $0x8] sm:$0xff]
    %v3626 = vld [vmem:[#allocation14 + $0x10] sm:$0xff]
    %v3627 = vld [vmem:[#allocation14 + $0x18] sm:$0xff]
    %v3628 = vld [vmem:[#allocation14 + $0x20] sm:$0xff]
    %v3629 = vld [vmem:[#allocation14 + $0x28] sm:$0xff]
    %v3630 = vld [vmem:[#allocation14 + $0x30] sm:$0xff]
    %v3631 = vld [vmem:[#allocation14 + $0x38] sm:$0xff]
    %v3632 = vld [vmem:[#allocation14 + $0x40] sm:$0xff]
    %v3633 = vld [vmem:[#allocation14 + $0x48] sm:$0xff]
    %v3634 = vld [vmem:[#allocation14 + $0x50] sm:$0xff]
    %v3635 = vld [vmem:[#allocation14 + $0x58] sm:$0xff]
    %v3636 = vld [vmem:[#allocation14 + $0x60] sm:$0xff]
    %v3637 = vld [vmem:[#allocation14 + $0x68] sm:$0xff]
    %v3638 = vld [vmem:[#allocation14 + $0x70] sm:$0xff]
    %v3639 = vld [vmem:[#allocation14 + $0x78] sm:$0xff]
    %v3640 = vld [vmem:[#allocation14 + $0x80] sm:$0xff]
    %v3641 = vld [vmem:[#allocation14 + $0x88] sm:$0xff]
    %v3642 = vld [vmem:[#allocation14 + $0x90] sm:$0xff]
    %v3643 = vld [vmem:[#allocation14 + $0x98] sm:$0xff]
    %v3644 = vld [vmem:[#allocation14 + $0xa0] sm:$0xff]
    %v3645 = vld [vmem:[#allocation14 + $0xa8] sm:$0xff]
    %v3646 = vld [vmem:[#allocation14 + $0xb0] sm:$0xff]
    %v3647 = vld [vmem:[#allocation14 + $0xb8] sm:$0xff]
    %v3648 = vld [vmem:[#allocation14 + $0xc0] sm:$0xff]
    %v3649 = vld [vmem:[#allocation14 + $0xc8] sm:$0xff]
    %v3650 = vld [vmem:[#allocation14 + $0xd0] sm:$0xff]
    %v3651 = vld [vmem:[#allocation14 + $0xd8] sm:$0xff]
    %v3652 = vld [vmem:[#allocation14 + $0xe0] sm:$0xff]
    %v3653 = vld [vmem:[#allocation14 + $0xe8] sm:$0xff]
    %v3654 = vld [vmem:[#allocation14 + $0xf0] sm:$0xff]
    %v3655 = vld [vmem:[#allocation14 + $0xf8] sm:$0xff]
    %v3656 = vld [vmem:[#allocation14 + $0x100] sm:$0xff]
    %v3657 = vld [vmem:[#allocation14 + $0x108] sm:$0xff]
    %v3658 = vld [vmem:[#allocation14 + $0x110] sm:$0xff]
    %v3659 = vld [vmem:[#allocation14 + $0x118] sm:$0xff]
    %v3660 = vld [vmem:[#allocation14 + $0x120] sm:$0xff]
    %v3661 = vld [vmem:[#allocation14 + $0x128] sm:$0xff]
    %v3662 = vld [vmem:[#allocation14 + $0x130] sm:$0xff]
    %v3663 = vld [vmem:[#allocation14 + $0x138] sm:$0xff]
    %v3664 = vld [vmem:[#allocation14 + $0x140] sm:$0xff]
    %v3665 = vld [vmem:[#allocation14 + $0x148] sm:$0xff]
    %v3666 = vld [vmem:[#allocation14 + $0x150] sm:$0xff]
    %v3667 = vld [vmem:[#allocation14 + $0x158] sm:$0xff]
    %v3668 = vld [vmem:[#allocation14 + $0x160] sm:$0xff]
    %v3669 = vld [vmem:[#allocation14 + $0x168] sm:$0xff]
    %v3670 = vld [vmem:[#allocation14 + $0x170] sm:$0xff]
    %v3671 = vld [vmem:[#allocation14 + $0x178] sm:$0xff]
    %v3672 = vld [vmem:[%s15] sm:$0x7]
    %v3674 = vlaneseq
    %v3675 = vshrl.u32 %v3674, 7
    %v3676 = vsub.s32 0, %v3675
    %v3677 = vrot.slane %v3672, %v3676
    %v3678 = vlaneseq
    %v3679 = vshrl.u32 %v3678, 7
    %v3680 = vsub.s32 1, %v3679
    %v3681 = vrot.slane %v3672, %v3680
    %v3682 = vlaneseq
    %v3683 = vshrl.u32 %v3682, 7
    %v3684 = vsub.s32 2, %v3683
    %v3685 = vrot.slane %v3672, %v3684
    %3689 = vmatprep.subr.mxu0 %v3625
    %3690 = vmatpush1.msra.mxu0 %v3624
    %3691 = vmatprep.subr.mxu0 %v3628
    %3692 = vmatpush1.msra.mxu0 %v3627
    %3693 = vmatprep.subr.mxu0 %v3631
    %3694 = vmatpush1.msra.mxu0 %v3630
    %3695 = vmatprep.subr.mxu0 %v3634
    %3696 = vmatpush1.msra.mxu0 %v3633
    %3697 = vmatprep.subr.mxu0 %v3637
    %3698 = vmatpush1.msra.mxu0 %v3636
    %3699 = vmatprep.subr.mxu0 %v3640
    %3700 = vmatpush1.msra.mxu0 %v3639
    %3701 = vmatprep.subr.mxu0 %v3643
    %3702 = vmatpush1.msra.mxu0 %v3642
    %3703 = vmatprep.subr.mxu0 %v3646
    %3704 = vmatpush1.msra.mxu0 %v3645
    %3705 = vmatprep.subr.mxu0 %v3649
    %3706 = vmatpush1.msra.mxu0 %v3648
    %3707 = vmatprep.subr.mxu0 %v3652
    %3708 = vmatpush1.msra.mxu0 %v3651
    %3709 = vmatprep.subr.mxu0 %v3655
    %3710 = vmatpush1.msra.mxu0 %v3654
    %3711 = vmatprep.subr.mxu0 %v3658
    %3712 = vmatpush1.msra.mxu0 %v3657
    %3713 = vmatprep.subr.mxu0 %v3661
    %3714 = vmatpush1.msra.mxu0 %v3660
    %3715 = vmatprep.subr.mxu0 %v3664
    %3716 = vmatpush1.msra.mxu0 %v3663
    %3717 = vmatprep.subr.mxu0 %v3667
    %3718 = vmatpush1.msra.mxu0 %v3666
    %3719 = vmatprep.subr.mxu0 %v3670
    %3720 = vmatpush1.msra.mxu0 %v3669
    %3721 = vmatprep.subr.mxu0 0.0
    %3722 = vmatpush1.msra.mxu0 0.0
    %3723 = vmatprep.subr.mxu0 0.0
    %3724 = vmatpush1.msra.mxu0 0.0
    %3725 = vmatprep.subr.mxu0 0.0
    %3726 = vmatpush1.msra.mxu0 0.0
    %3727 = vmatprep.subr.mxu0 0.0
    %3728 = vmatpush1.msra.mxu0 0.0
    %3729 = vmatprep.subr.mxu0 0.0
    %3730 = vmatpush1.msra.mxu0 0.0
    %3731 = vmatprep.subr.mxu0 0.0
    %3732 = vmatpush1.msra.mxu0 0.0
    %3733 = vmatprep.subr.mxu0 0.0
    %3734 = vmatpush1.msra.mxu0 0.0
    %3735 = vmatprep.subr.mxu0 0.0
    %3736 = vmatpush1.msra.mxu0 0.0
    %3737 = vmatprep.subr.mxu0 0.0
    %3738 = vmatpush1.msra.mxu0 0.0
    %3739 = vmatprep.subr.mxu0 0.0
    %3740 = vmatpush1.msra.mxu0 0.0
    %3741 = vmatprep.subr.mxu0 0.0
    %3742 = vmatpush1.msra.mxu0 0.0
    %3743 = vmatprep.subr.mxu0 0.0
    %3744 = vmatpush1.msra.mxu0 0.0
    %3745 = vmatprep.subr.mxu0 0.0
    %3746 = vmatpush1.msra.mxu0 0.0
    %3747 = vmatprep.subr.mxu0 0.0
    %3748 = vmatpush1.msra.mxu0 0.0
    %3749 = vmatprep.subr.mxu0 0.0
    %3750 = vmatpush1.msra.mxu0 0.0
    %3751 = vmatprep.subr.mxu0 0.0
    %3752 = vmatpush1.msra.mxu0 0.0
    %3753 = vmatprep.mubr.f32.mxu0 0.0
    %3754 = vmatmul.mubr.f32.gmra.mrb[0].mxu0 %v3622
    %v3755 = vpop.f32.mrb[0].mxu0
    %v3756 = vadd.f32 %v3677, %v3755
    %v3757 = vpop.f32.mrb[0].mxu0
    %v3758 = vadd.f32 %v3681, %v3757
    %3759 = vmatprep.mubr.f32.mxu0 0.0
    %3760 = vmatmul.mubr.f32.gmra.mrb[0].mxu0 %v3623
    %v3761 = vpop.f32.mrb[0].mxu0
    %v3762 = vadd.f32 %v3677, %v3761
    %v3763 = vpop.f32.mrb[0].mxu0
    %v3764 = vadd.f32 %v3681, %v3763
    %3765 = vdwg.mxu0
    %3766 = vmatprep.subr.mxu0 0.0
    %3767 = vmatpush1.msra.mxu0 %v3626
    %3768 = vmatprep.subr.mxu0 0.0
    %3769 = vmatpush1.msra.mxu0 %v3629
    %3770 = vmatprep.subr.mxu0 0.0
    %3771 = vmatpush1.msra.mxu0 %v3632
    %3772 = vmatprep.subr.mxu0 0.0
    %3773 = vmatpush1.msra.mxu0 %v3635
    %3774 = vmatprep.subr.mxu0 0.0
    %3775 = vmatpush1.msra.mxu0 %v3638
    %3776 = vmatprep.subr.mxu0 0.0
    %3777 = vmatpush1.msra.mxu0 %v3641
    %3778 = vmatprep.subr.mxu0 0.0
    %3779 = vmatpush1.msra.mxu0 %v3644
    %3780 = vmatprep.subr.mxu0 0.0
    %3781 = vmatpush1.msra.mxu0 %v3647
    %3782 = vmatprep.subr.mxu0 0.0
    %3783 = vmatpush1.msra.mxu0 %v3650
    %3784 = vmatprep.subr.mxu0 0.0
    %3785 = vmatpush1.msra.mxu0 %v3653
    %3786 = vmatprep.subr.mxu0 0.0
    %3787 = vmatpush1.msra.mxu0 %v3656
    %3788 = vmatprep.subr.mxu0 0.0
    %3789 = vmatpush1.msra.mxu0 %v3659
    %3790 = vmatprep.subr.mxu0 0.0
    %3791 = vmatpush1.msra.mxu0 %v3662
    %3792 = vmatprep.subr.mxu0 0.0
    %3793 = vmatpush1.msra.mxu0 %v3665
    %3794 = vmatprep.subr.mxu0 0.0
    %3795 = vmatpush1.msra.mxu0 %v3668
    %3796 = vmatprep.subr.mxu0 0.0
    %3797 = vmatpush1.msra.mxu0 %v3671
    %3798 = vmatprep.subr.mxu0 0.0
    %3799 = vmatpush1.msra.mxu0 0.0
    %3800 = vmatprep.subr.mxu0 0.0
    %3801 = vmatpush1.msra.mxu0 0.0
    %3802 = vmatprep.subr.mxu0 0.0
    %3803 = vmatpush1.msra.mxu0 0.0
    %3804 = vmatprep.subr.mxu0 0.0
    %3805 = vmatpush1.msra.mxu0 0.0
    %3806 = vmatprep.subr.mxu0 0.0
    %3807 = vmatpush1.msra.mxu0 0.0
    %3808 = vmatprep.subr.mxu0 0.0
    %3809 = vmatpush1.msra.mxu0 0.0
    %3810 = vmatprep.subr.mxu0 0.0
    %3811 = vmatpush1.msra.mxu0 0.0
    %3812 = vmatprep.subr.mxu0 0.0
    %3813 = vmatpush1.msra.mxu0 0.0
    %3814 = vmatprep.subr.mxu0 0.0
    %3815 = vmatpush1.msra.mxu0 0.0
    %3816 = vmatprep.subr.mxu0 0.0
    %3817 = vmatpush1.msra.mxu0 0.0
    %3818 = vmatprep.subr.mxu0 0.0
    %3819 = vmatpush1.msra.mxu0 0.0
    %3820 = vmatprep.subr.mxu0 0.0
    %3821 = vmatpush1.msra.mxu0 0.0
    %3822 = vmatprep.subr.mxu0 0.0
    %3823 = vmatpush1.msra.mxu0 0.0
    %3824 = vmatprep.subr.mxu0 0.0
    %3825 = vmatpush1.msra.mxu0 0.0
    %3826 = vmatprep.subr.mxu0 0.0
    %3827 = vmatpush1.msra.mxu0 0.0
    %3828 = vmatprep.subr.mxu0 0.0
    %3829 = vmatpush1.msra.mxu0 0.0
    %3830 = vmatprep.mubr.f32.mxu0 0.0
    %3831 = vmatmul.mubr.f32.gmra.mrb[0].mxu0 %v3622
    %v3832 = vpop.f32.mrb[0].mxu0
    %v3833 = vadd.f32 %v3685, %v3832
    %v3834 = vpop.f32.mrb[0].mxu0
    %3835 = vmatprep.mubr.f32.mxu0 0.0
    %3836 = vmatmul.mubr.f32.gmra.mrb[0].mxu0 %v3623
    %v3837 = vpop.f32.mrb[0].mxu0
    %v3838 = vadd.f32 %v3685, %v3837
    %v3839 = vpop.f32.mrb[0].mxu0
    %3840 = vdwg.mxu0
    %v3841 = vmul.f32 %v3756, 0.5
    %v3842 = vmul.f32 %v3758, 0.5
    %v3843 = vmul.f32 %v3833, 0.5
    %v3844 = vmul.f32 %v3762, 0.5
    %v3845 = vmul.f32 %v3764, 0.5
    %v3846 = vmul.f32 %v3838, 0.5
    %v3847 = vmul.f32 %v3756, 0.70710677
    %v3848 = vmul.f32 %v3758, 0.70710677
    %v3849 = vmul.f32 %v3833, 0.70710677
    %v3850 = vmul.f32 %v3762, 0.70710677
    %v3851 = vmul.f32 %v3764, 0.70710677
    %v3852 = vmul.f32 %v3838, 0.70710677
    %v3853 = vand.u32 2147483647, %v3847
    %v3854 = vand.u32 2147483647, %v3848
    %v3855 = vand.u32 2147483647, %v3849
    %v3856 = vand.u32 2147483647, %v3850
    %v3857 = vand.u32 2147483647, %v3851
    %v3858 = vand.u32 2147483647, %v3852
    %v3859 = vmul.f32 %v3853, 0.3275911
    %v3860 = vmul.f32 %v3854, 0.3275911
    %v3861 = vmul.f32 %v3855, 0.3275911
    %v3862 = vmul.f32 %v3856, 0.3275911
    %v3863 = vmul.f32 %v3857, 0.3275911
    %v3864 = vmul.f32 %v3858, 0.3275911
    %v3865 = vadd.f32 %v3859, 1.0
    %v3866 = vadd.f32 %v3860, 1.0
    %v3867 = vadd.f32 %v3861, 1.0
    %v3868 = vadd.f32 %v3862, 1.0
    %v3869 = vadd.f32 %v3863, 1.0
    %v3870 = vadd.f32 %v3864, 1.0
    %v3871 = vrcp.pop %v3865
    %v3872 = vmul.f32 1.0, %v3871
    %v3873 = vrcp.pop %v3866
    %v3874 = vmul.f32 1.0, %v3873
    %v3875 = vrcp.pop %v3867
    %v3876 = vmul.f32 1.0, %v3875
    %v3877 = vrcp.pop %v3868
    %v3878 = vmul.f32 1.0, %v3877
    %v3879 = vrcp.pop %v3869
    %v3880 = vmul.f32 1.0, %v3879
    %v3881 = vrcp.pop %v3870
    %v3882 = vmul.f32 1.0, %v3881
    %v3883 = vmul.f32 %v3872, 1.0614054
    %v3884 = vmul.f32 %v3874, 1.0614054
    %v3885 = vmul.f32 %v3876, 1.0614054
    %v3886 = vmul.f32 %v3878, 1.0614054
    %v3887 = vmul.f32 %v3880, 1.0614054
    %v3888 = vmul.f32 %v3882, 1.0614054
    %v3889 = vadd.f32 %v3883, -1.4531521
    %v3890 = vadd.f32 %v3884, -1.4531521
    %v3891 = vadd.f32 %v3885, -1.4531521
    %v3892 = vadd.f32 %v3886, -1.4531521
    %v3893 = vadd.f32 %v3887, -1.4531521
    %v3894 = vadd.f32 %v3888, -1.4531521
    %v3895 = vmul.f32 %v3889, %v3872
    %v3896 = vmul.f32 %v3890, %v3874
    %v3897 = vmul.f32 %v3891, %v3876
    %v3898 = vmul.f32 %v3892, %v3878
    %v3899 = vmul.f32 %v3893, %v3880
    %v3900 = vmul.f32 %v3894, %v3882
    %v3901 = vadd.f32 %v3895, 1.4214138
    %v3902 = vadd.f32 %v3896, 1.4214138
    %v3903 = vadd.f32 %v3897, 1.4214138
    %v3904 = vadd.f32 %v3898, 1.4214138
    %v3905 = vadd.f32 %v3899, 1.4214138
    %v3906 = vadd.f32 %v3900, 1.4214138
    %v3907 = vmul.f32 %v3901, %v3872
    %v3908 = vmul.f32 %v3902, %v3874
    %v3909 = vmul.f32 %v3903, %v3876
    %v3910 = vmul.f32 %v3904, %v3878
    %v3911 = vmul.f32 %v3905, %v3880
    %v3912 = vmul.f32 %v3906, %v3882
    %v3913 = vadd.f32 %v3907, -0.28449672
    %v3914 = vadd.f32 %v3908, -0.28449672
    %v3915 = vadd.f32 %v3909, -0.28449672
    %v3916 = vadd.f32 %v3910, -0.28449672
    %v3917 = vadd.f32 %v3911, -0.28449672
    %v3918 = vadd.f32 %v3912, -0.28449672
    %v3919 = vmul.f32 %v3913, %v3872
    %v3920 = vmul.f32 %v3914, %v3874
    %v3921 = vmul.f32 %v3915, %v3876
    %v3922 = vmul.f32 %v3916, %v3878
    %v3923 = vmul.f32 %v3917, %v3880
    %v3924 = vmul.f32 %v3918, %v3882
    %v3925 = vadd.f32 %v3919, 0.2548296
    %v3926 = vadd.f32 %v3920, 0.2548296
    %v3927 = vadd.f32 %v3921, 0.2548296
    %v3928 = vadd.f32 %v3922, 0.2548296
    %v3929 = vadd.f32 %v3923, 0.2548296
    %v3930 = vadd.f32 %v3924, 0.2548296
    %v3931 = vmul.f32 %v3925, %v3872
    %v3932 = vmul.f32 %v3926, %v3874
    %v3933 = vmul.f32 %v3927, %v3876
    %v3934 = vmul.f32 %v3928, %v3878
    %v3935 = vmul.f32 %v3929, %v3880
    %v3936 = vmul.f32 %v3930, %v3882
    %v3937 = vsub.f32 0.0, %v3853
    %v3938 = vsub.f32 0.0, %v3854
    %v3939 = vsub.f32 0.0, %v3855
    %v3940 = vsub.f32 0.0, %v3856
    %v3941 = vsub.f32 0.0, %v3857
    %v3942 = vsub.f32 0.0, %v3858
    %v3943 = vmul.f32 %v3937, %v3853
    %v3944 = vmul.f32 %v3938, %v3854
    %v3945 = vmul.f32 %v3939, %v3855
    %v3946 = vmul.f32 %v3940, %v3856
    %v3947 = vmul.f32 %v3941, %v3857
    %v3948 = vmul.f32 %v3942, %v3858
    %v3949 = vmul.f32 %v3943, 1.442695
    %v3950 = vpow.pop %v3949
    %v3951 = vmul.f32 %v3944, 1.442695
    %v3952 = vpow.pop %v3951
    %v3953 = vmul.f32 %v3945, 1.442695
    %v3954 = vpow.pop %v3953
    %v3955 = vmul.f32 %v3946, 1.442695
    %v3956 = vpow.pop %v3955
    %v3957 = vmul.f32 %v3947, 1.442695
    %v3958 = vpow.pop %v3957
    %v3959 = vmul.f32 %v3948, 1.442695
    %v3960 = vpow.pop %v3959
    %v3961 = vmul.f32 %v3931, %v3950
    %v3962 = vmul.f32 %v3932, %v3952
    %v3963 = vmul.f32 %v3933, %v3954
    %v3964 = vmul.f32 %v3934, %v3956
    %v3965 = vmul.f32 %v3935, %v3958
    %v3966 = vmul.f32 %v3936, %v3960
    %v3967 = vsub.f32 1.0, %v3961
    %v3968 = vsub.f32 1.0, %v3962
    %v3969 = vsub.f32 1.0, %v3963
    %v3970 = vsub.f32 1.0, %v3964
    %v3971 = vsub.f32 1.0, %v3965
    %v3972 = vsub.f32 1.0, %v3966
    %vm3973 = vcmp.ge.f32.partialorder %v3847, 0.0
    %vm3974 = vcmp.ge.f32.partialorder %v3848, 0.0
    %vm3975 = vcmp.ge.f32.partialorder %v3849, 0.0
    %vm3976 = vcmp.ge.f32.partialorder %v3850, 0.0
    %vm3977 = vcmp.ge.f32.partialorder %v3851, 0.0
    %vm3978 = vcmp.ge.f32.partialorder %v3852, 0.0
    %v3979 = vsub.f32 0.0, %v3967
    %v3980 = vsub.f32 0.0, %v3968
    %v3981 = vsub.f32 0.0, %v3969
    %v3982 = vsub.f32 0.0, %v3970
    %v3983 = vsub.f32 0.0, %v3971
    %v3984 = vsub.f32 0.0, %v3972
    %v3985 = vsel %vm3973, %v3967, %v3979
    %v3986 = vsel %vm3974, %v3968, %v3980
    %v3987 = vsel %vm3975, %v3969, %v3981
    %v3988 = vsel %vm3976, %v3970, %v3982
    %v3989 = vsel %vm3977, %v3971, %v3983
    %v3990 = vsel %vm3978, %v3972, %v3984
    %v3991 = vadd.f32 %v3985, 1.0
    %v3992 = vadd.f32 %v3986, 1.0
    %v3993 = vadd.f32 %v3987, 1.0
    %v3994 = vadd.f32 %v3988, 1.0
    %v3995 = vadd.f32 %v3989, 1.0
    %v3996 = vadd.f32 %v3990, 1.0
    %v3997 = vmul.f32 %v3841, %v3991
    %v3998 = vmul.f32 %v3842, %v3992
    %v3999 = vmul.f32 %v3843, %v3993
    %v4000 = vmul.f32 %v3844, %v3994
    %v4001 = vmul.f32 %v3845, %v3995
    %v4002 = vmul.f32 %v3846, %v3996
    %v4003 = vld [vmem:[#allocation15] sm:$0xff]
    %v4004 = vld [vmem:[#allocation15 + $0x8] sm:$0xff]
    %v4005 = vld [vmem:[#allocation15 + $0x10] sm:$0xff]
    %v4006 = vld [vmem:[#allocation15 + $0x18] sm:$0xff]
    %v4007 = vld [vmem:[#allocation15 + $0x20] sm:$0xff]
    %v4008 = vld [vmem:[#allocation15 + $0x28] sm:$0xff]
    %v4009 = vld [vmem:[#allocation15 + $0x30] sm:$0xff]
    %v4010 = vld [vmem:[#allocation15 + $0x38] sm:$0xff]
    %v4011 = vld [vmem:[#allocation15 + $0x40] sm:$0xff]
    %v4012 = vld [vmem:[#allocation15 + $0x48] sm:$0xff]
    %v4013 = vld [vmem:[#allocation15 + $0x50] sm:$0xff]
    %v4014 = vld [vmem:[#allocation15 + $0x58] sm:$0xff]
    %v4015 = vld [vmem:[#allocation15 + $0x60] sm:$0xff]
    %v4016 = vld [vmem:[#allocation15 + $0x68] sm:$0xff]
    %v4017 = vld [vmem:[#allocation15 + $0x70] sm:$0xff]
    %v4018 = vld [vmem:[#allocation15 + $0x78] sm:$0xff]
    %v4019 = vld [vmem:[#allocation15 + $0x80] sm:$0xff]
    %v4020 = vld [vmem:[#allocation15 + $0x88] sm:$0xff]
    %v4021 = vld [vmem:[#allocation15 + $0x90] sm:$0xff]
    %v4022 = vld [vmem:[#allocation15 + $0x98] sm:$0xff]
    %v4023 = vld [vmem:[#allocation15 + $0xa0] sm:$0xff]
    %v4024 = vld [vmem:[#allocation15 + $0xa8] sm:$0xff]
    %v4025 = vld [vmem:[#allocation15 + $0xb0] sm:$0xff]
    %v4026 = vld [vmem:[#allocation15 + $0xb8] sm:$0xff]
    %v4027 = vld [vmem:[#allocation15 + $0xc0] sm:$0xff]
    %v4028 = vld [vmem:[#allocation15 + $0xc8] sm:$0xff]
    %v4029 = vld [vmem:[#allocation15 + $0xd0] sm:$0xff]
    %v4030 = vld [vmem:[#allocation15 + $0xd8] sm:$0xff]
    %v4031 = vld [vmem:[#allocation15 + $0xe0] sm:$0xff]
    %v4032 = vld [vmem:[#allocation15 + $0xe8] sm:$0xff]
    %v4033 = vld [vmem:[#allocation15 + $0xf0] sm:$0xff]
    %v4034 = vld [vmem:[#allocation15 + $0xf8] sm:$0xff]
    %v4035 = vld [vmem:[#allocation15 + $0x100] sm:$0xff]
    %v4036 = vld [vmem:[#allocation15 + $0x108] sm:$0xff]
    %v4037 = vld [vmem:[#allocation15 + $0x110] sm:$0xff]
    %v4038 = vld [vmem:[#allocation15 + $0x118] sm:$0xff]
    %v4039 = vld [vmem:[#allocation15 + $0x120] sm:$0xff]
    %v4040 = vld [vmem:[#allocation15 + $0x128] sm:$0xff]
    %v4041 = vld [vmem:[#allocation15 + $0x130] sm:$0xff]
    %v4042 = vld [vmem:[#allocation15 + $0x138] sm:$0xff]
    %v4043 = vld [vmem:[#allocation15 + $0x140] sm:$0xff]
    %v4044 = vld [vmem:[#allocation15 + $0x148] sm:$0xff]
    %v4045 = vld [vmem:[#allocation15 + $0x150] sm:$0xff]
    %v4046 = vld [vmem:[#allocation15 + $0x158] sm:$0xff]
    %v4047 = vld [vmem:[#allocation15 + $0x160] sm:$0xff]
    %v4048 = vld [vmem:[#allocation15 + $0x168] sm:$0xff]
    %v4049 = vld [vmem:[#allocation15 + $0x170] sm:$0xff]
    %v4050 = vld [vmem:[#allocation15 + $0x178] sm:$0xff]
    %4051 = vmatprep.subr.mxu0 0.0
    %4052 = vmatpush1.msra.mxu0 %v4003
    %4053 = vmatprep.subr.mxu0 0.0
    %4054 = vmatpush1.msra.mxu0 %v4004
    %4055 = vmatprep.subr.mxu0 0.0
    %4056 = vmatpush1.msra.mxu0 %v4005
    %4057 = vmatprep.subr.mxu0 0.0
    %4058 = vmatpush1.msra.mxu0 %v4006
    %4059 = vmatprep.subr.mxu0 0.0
    %4060 = vmatpush1.msra.mxu0 %v4007
    %4061 = vmatprep.subr.mxu0 0.0
    %4062 = vmatpush1.msra.mxu0 %v4008
    %4063 = vmatprep.subr.mxu0 0.0
    %4064 = vmatpush1.msra.mxu0 %v4009
    %4065 = vmatprep.subr.mxu0 0.0
    %4066 = vmatpush1.msra.mxu0 %v4010
    %4067 = vmatprep.subr.mxu0 0.0
    %4068 = vmatpush1.msra.mxu0 %v4011
    %4069 = vmatprep.subr.mxu0 0.0
    %4070 = vmatpush1.msra.mxu0 %v4012
    %4071 = vmatprep.subr.mxu0 0.0
    %4072 = vmatpush1.msra.mxu0 %v4013
    %4073 = vmatprep.subr.mxu0 0.0
    %4074 = vmatpush1.msra.mxu0 %v4014
    %4075 = vmatprep.subr.mxu0 0.0
    %4076 = vmatpush1.msra.mxu0 %v4015
    %4077 = vmatprep.subr.mxu0 0.0
    %4078 = vmatpush1.msra.mxu0 %v4016
    %4079 = vmatprep.subr.mxu0 0.0
    %4080 = vmatpush1.msra.mxu0 %v4017
    %4081 = vmatprep.subr.mxu0 0.0
    %4082 = vmatpush1.msra.mxu0 %v4018
    %4083 = vmatprep.subr.mxu0 0.0
    %4084 = vmatpush1.msra.mxu0 %v4019
    %4085 = vmatprep.subr.mxu0 0.0
    %4086 = vmatpush1.msra.mxu0 %v4020
    %4087 = vmatprep.subr.mxu0 0.0
    %4088 = vmatpush1.msra.mxu0 %v4021
    %4089 = vmatprep.subr.mxu0 0.0
    %4090 = vmatpush1.msra.mxu0 %v4022
    %4091 = vmatprep.subr.mxu0 0.0
    %4092 = vmatpush1.msra.mxu0 %v4023
    %4093 = vmatprep.subr.mxu0 0.0
    %4094 = vmatpush1.msra.mxu0 %v4024
    %4095 = vmatprep.subr.mxu0 0.0
    %4096 = vmatpush1.msra.mxu0 %v4025
    %4097 = vmatprep.subr.mxu0 0.0
    %4098 = vmatpush1.msra.mxu0 %v4026
    %4099 = vmatprep.subr.mxu0 0.0
    %4100 = vmatpush1.msra.mxu0 %v4027
    %4101 = vmatprep.subr.mxu0 0.0
    %4102 = vmatpush1.msra.mxu0 %v4028
    %4103 = vmatprep.subr.mxu0 0.0
    %4104 = vmatpush1.msra.mxu0 %v4029
    %4105 = vmatprep.subr.mxu0 0.0
    %4106 = vmatpush1.msra.mxu0 %v4030
    %4107 = vmatprep.subr.mxu0 0.0
    %4108 = vmatpush1.msra.mxu0 %v4031
    %4109 = vmatprep.subr.mxu0 0.0
    %4110 = vmatpush1.msra.mxu0 %v4032
    %4111 = vmatprep.subr.mxu0 0.0
    %4112 = vmatpush1.msra.mxu0 %v4033
    %4113 = vmatprep.subr.mxu0 0.0
    %4114 = vmatpush1.msra.mxu0 %v4034
    %4115 = vmatprep.mubr.f32.mxu0 %v3998
    %4116 = vmatmul.mubr.f32.gmra.mrb[0].mxu0 %v3997
    %v4117 = vpop.f32.mrb[0].mxu0
    %v4118 = vadd.f32 0.0, %v4117
    %v4119 = vpop.f32.mrb[0].mxu0
    %4120 = vmatprep.mubr.f32.mxu0 %v4001
    %4121 = vmatmul.mubr.f32.gmra.mrb[0].mxu0 %v4000
    %v4122 = vpop.f32.mrb[0].mxu0
    %v4123 = vadd.f32 0.0, %v4122
    %v4124 = vpop.f32.mrb[0].mxu0
    %4125 = vdwg.mxu0
    %4126 = vmatprep.subr.mxu0 0.0
    %4127 = vmatpush1.msra.mxu0 %v4035
    %4128 = vmatprep.subr.mxu0 0.0
    %4129 = vmatpush1.msra.mxu0 %v4036
    %4130 = vmatprep.subr.mxu0 0.0
    %4131 = vmatpush1.msra.mxu0 %v4037
    %4132 = vmatprep.subr.mxu0 0.0
    %4133 = vmatpush1.msra.mxu0 %v4038
    %4134 = vmatprep.subr.mxu0 0.0
    %4135 = vmatpush1.msra.mxu0 %v4039
    %4136 = vmatprep.subr.mxu0 0.0
    %4137 = vmatpush1.msra.mxu0 %v4040
    %4138 = vmatprep.subr.mxu0 0.0
    %4139 = vmatpush1.msra.mxu0 %v4041
    %4140 = vmatprep.subr.mxu0 0.0
    %4141 = vmatpush1.msra.mxu0 %v4042
    %4142 = vmatprep.subr.mxu0 0.0
    %4143 = vmatpush1.msra.mxu0 %v4043
    %4144 = vmatprep.subr.mxu0 0.0
    %4145 = vmatpush1.msra.mxu0 %v4044
    %4146 = vmatprep.subr.mxu0 0.0
    %4147 = vmatpush1.msra.mxu0 %v4045
    %4148 = vmatprep.subr.mxu0 0.0
    %4149 = vmatpush1.msra.mxu0 %v4046
    %4150 = vmatprep.subr.mxu0 0.0
    %4151 = vmatpush1.msra.mxu0 %v4047
    %4152 = vmatprep.subr.mxu0 0.0
    %4153 = vmatpush1.msra.mxu0 %v4048
    %4154 = vmatprep.subr.mxu0 0.0
    %4155 = vmatpush1.msra.mxu0 %v4049
    %4156 = vmatprep.subr.mxu0 0.0
    %4157 = vmatpush1.msra.mxu0 %v4050
    %4158 = vmatprep.subr.mxu0 0.0
    %4159 = vmatpush1.msra.mxu0 0.0
    %4160 = vmatprep.subr.mxu0 0.0
    %4161 = vmatpush1.msra.mxu0 0.0
    %4162 = vmatprep.subr.mxu0 0.0
    %4163 = vmatpush1.msra.mxu0 0.0
    %4164 = vmatprep.subr.mxu0 0.0
    %4165 = vmatpush1.msra.mxu0 0.0
    %4166 = vmatprep.subr.mxu0 0.0
    %4167 = vmatpush1.msra.mxu0 0.0
    %4168 = vmatprep.subr.mxu0 0.0
    %4169 = vmatpush1.msra.mxu0 0.0
    %4170 = vmatprep.subr.mxu0 0.0
    %4171 = vmatpush1.msra.mxu0 0.0
    %4172 = vmatprep.subr.mxu0 0.0
    %4173 = vmatpush1.msra.mxu0 0.0
    %4174 = vmatprep.subr.mxu0 0.0
    %4175 = vmatpush1.msra.mxu0 0.0
    %4176 = vmatprep.subr.mxu0 0.0
    %4177 = vmatpush1.msra.mxu0 0.0
    %4178 = vmatprep.subr.mxu0 0.0
    %4179 = vmatpush1.msra.mxu0 0.0
    %4180 = vmatprep.subr.mxu0 0.0
    %4181 = vmatpush1.msra.mxu0 0.0
    %4182 = vmatprep.subr.mxu0 0.0
    %4183 = vmatpush1.msra.mxu0 0.0
    %4184 = vmatprep.subr.mxu0 0.0
    %4185 = vmatpush1.msra.mxu0 0.0
    %4186 = vmatprep.subr.mxu0 0.0
    %4187 = vmatpush1.msra.mxu0 0.0
    %4188 = vmatprep.subr.mxu0 0.0
    %4189 = vmatpush1.msra.mxu0 0.0
    %4190 = vmatprep.mubr.f32.mxu0 0.0
    %4191 = vmatmul.mubr.f32.gmra.mrb[0].mxu0 %v3999
    %v4192 = vpop.f32.mrb[0].mxu0
    %v4193 = vadd.f32 %v4118, %v4192
    %v4194 = vpop.f32.mrb[0].mxu0
    %4195 = vmatprep.mubr.f32.mxu0 0.0
    %4196 = vmatmul.mubr.f32.gmra.mrb[0].mxu0 %v4002
    %v4197 = vpop.f32.mrb[0].mxu0
    %v4198 = vadd.f32 %v4123, %v4197
    %v4199 = vpop.f32.mrb[0].mxu0
    %4200 = vdwg.mxu0
    %v4201 = vadd.f32 %v3582, %v4193
    %v4202 = vadd.f32 %v3583, %v4198
    %v4203 = vld [vmem:[%s17] sm:$0x1]
    %v4205 = vlaneseq
    %v4206 = vshrl.u32 %v4205, 7
    %v4207 = vsub.s32 0, %v4206
    %v4208 = vrot.slane %v4203, %v4207
    %v4210 = vadd.f32 %v4201, %v4208
    %v4211 = vadd.f32 %v4202, %v4208
    %4212 = vst [vmem:[#allocation17] sm:$0xff] %v4210
    %4213 = vst [vmem:[#allocation17 + $0x8] sm:$0xff] %v4211
    // Predicated region
    $region106: #{tpu_custom_call.1} parent=1 // pred_check
      _
    $region107: #{tpu_custom_call.1} parent=1 // pred_check_branch
      %4215 = sbr.rel (0) target = $region109
    $region108: #{tpu_custom_call.1} parent=1 // pred_region
      %s4217 = ssub.s32 256, 256
      %4218 = vsyncadd [#allocation5], %s4217
      %s4219 = sshll.u32 [#allocation17], 4
      %s4220 = int_to_ptr.vmem [resolvable:$true] %s4219
      %4225 = dma.vmem_to_hbm [thread:$0]  %s4220, 256, %s18, [#allocation5], 128, 128, 8
    $region109: #{tpu_custom_call.1} parent=1 // pred_fallthru
      _
    // Predicated region
    $region110: #{tpu_custom_call.1} parent=1 // pred_check
      _
    $region111: #{tpu_custom_call.1} parent=1 // pred_check_branch
      %4227 = sbr.rel (0) target = $region113
    $region112: #{tpu_custom_call.1} parent=1 // pred_region
      %4228 = dma.done [#allocation5], 256
    $region113: #{tpu_custom_call.1} parent=1 // pred_fallthru
      _
    %4229 = vsyncpa [#allocation4], 1
    %4230 = vsyncpa [#allocation7], 1
    %4231 = vsyncpa [#allocation10], 1
    %4232 = vsyncpa [#allocation13], 1
    %4233 = vsyncpa [#allocation16], 1
    %4234 = vsyncpa [#allocation5], 1

// kernel: tpu_custom_call.1
$region0: #{tpu_custom_call.1}
  #allocation0 [shape = 'u32[]', space=smem, size = 0x4, offset = 0x4, fixed_abs, tag = 'smem constant byte address 0x4 - core index']
  #allocation1 [shape = 'u32[144,128]{1,0:T(1,128)}', space=vmem, size = 0x12000, scoped, tag = 'internal scratch']
  #allocation2 [shape = 'f32[16,128]{1,0:T(8,128)}', space=vmem, size = 0x2000, scoped, tag = 'scratch operand']
  %s0 = inlined_call_operand.hbm [shape: f32[16,128], index: 0, kind: input, shape index: {}]
  %s1 = inlined_call_operand.hbm [shape: f32[8,8], index: 1, kind: input, shape index: {}]
  %s2 = inlined_call_operand.vmem [shape: f32[1,128], index: 2, kind: input, shape index: {}]
  %s3 = inlined_call_operand.vmem [shape: f32[1,128], index: 3, kind: input, shape index: {}]
  %s4 = inlined_call_operand.vmem [shape: f32[1,128], index: 4, kind: input, shape index: {}]
  %s5 = inlined_call_operand.vmem [shape: f32[1,128], index: 5, kind: input, shape index: {}]
  %s6 = inlined_call_operand.vmem [shape: f32[1,128], index: 6, kind: input, shape index: {}]
  %s7 = inlined_call_operand.vmem [shape: f32[1,128], index: 7, kind: input, shape index: {}]
  %s8 = inlined_call_operand.hbm [shape: f32[128,384], index: 8, kind: input, shape index: {}]
  %s9 = inlined_call_operand.hbm [shape: f32[128,128], index: 9, kind: input, shape index: {}]
  %s10 = inlined_call_operand.hbm [shape: f32[128,384], index: 10, kind: input, shape index: {}]
  %s11 = inlined_call_operand.vmem [shape: f32[1,384], index: 11, kind: input, shape index: {}]
  %s12 = inlined_call_operand.hbm [shape: f32[128,128], index: 12, kind: input, shape index: {}]
  %s13 = inlined_call_operand.vmem [shape: f32[1,128], index: 13, kind: input, shape index: {}]
  %s14 = inlined_call_operand.hbm [shape: f32[128,384], index: 14, kind: input, shape index: {}]
  %s15 = inlined_call_operand.vmem [shape: f32[1,384], index: 15, kind: input, shape index: {}]
  %s16 = inlined_call_operand.hbm [shape: f32[384,128], index: 16, kind: input, shape index: {}]
  %s17 = inlined_call_operand.vmem [shape: f32[1,128], index: 17, kind: input, shape index: {}]
  %s18 = inlined_call_operand.hbm [shape: f32[16,128], index: 18, kind: output, shape index: {}]
  %s19 = sld [smem:[#allocation0]]
  $region114: #{tpu_custom_call.1} parent=0
    _
  %s21 = ssub.s32 1, %s19
  %s22 = scalar_select 0, %s21, %s19
  $region1: #{tpu_custom_call.1} parent=0
    #allocation3 [shape = 'u8[8192]{0}', space=vmem, size = 0x2000, scoped, tag = 'input window, operand 0, single buffered']
    #allocation4 [shape = 's32[1]{0}', space=sflag, size = 0x4, scoped, tag = 'scoped memory for tpu_custom_call.1']
    #allocation5 [shape = 's32[1]{0}', space=sflag, size = 0x4, scoped, tag = 'scoped memory for tpu_custom_call.1']
    #allocation6 [shape = 'u8[4096]{0}', space=vmem, size = 0x1000, scoped, tag = 'input window, operand 1, single buffered']
    #allocation7 [shape = 's32[1]{0}', space=sflag, size = 0x4, scoped, tag = 'scoped memory for tpu_custom_call.1']
    #allocation8 [shape = 'u8[196608]{0}', space=vmem, size = 0x30000, scoped, tag = 'input window, operand 8, single buffered']
    #allocation9 [shape = 'u8[65536]{0}', space=vmem, size = 0x10000, scoped, tag = 'input window, operand 9, single buffered']
    #allocation10 [shape = 's32[1]{0}', space=sflag, size = 0x4, scoped, tag = 'scoped memory for tpu_custom_call.1']
    #allocation11 [shape = 'u8[196608]{0}', space=vmem, size = 0x30000, scoped, tag = 'input window, operand 10, single buffered']
    #allocation12 [shape = 'u8[65536]{0}', space=vmem, size = 0x10000, scoped, tag = 'input window, operand 12, single buffered']
    #allocation13 [shape = 's32[1]{0}', space=sflag, size = 0x4, scoped, tag = 'scoped memory for tpu_custom_call.1']
    #allocation14 [shape = 'u8[196608]{0}', space=vmem, size = 0x30000, scoped, tag = 'input window, operand 14, single buffered']
    #allocation15 [shape = 'u8[196608]{0}', space=vmem, size = 0x30000, scoped, tag = 'input window, operand 16, single buffered']
    #allocation16 [shape = 's32[1]{0}', space=sflag, size = 0x4, scoped, tag = 'scoped memory for tpu_custom_call.1']
    #allocation17 [shape = 'u8[8192]{0}', space=vmem, size = 0x2000, scoped, tag = 'output window, operand 0, single buffered']
    %23 = vsyncpa [#allocation4], 0
    %24 = vsyncpa [#allocation7], 0
    %25 = vsyncpa [#allocation10], 0
    %26 = vsyncpa [#allocation13], 0
    %27 = vsyncpa [#allocation16], 0
    %28 = vsyncpa [#allocation5], 0
    // Predicated region
    $region2: #{tpu_custom_call.1} parent=1 // pred_check
      _
    $region3: #{tpu_custom_call.1} parent=1 // pred_check_branch
      %30 = sbr.rel (0) target = $region5
    $region4: #{tpu_custom_call.1} parent=1 // pred_region
      %s32 = ssub.s32 256, 256
      %33 = vsyncadd [#allocation4], %s32
      %s34 = sshll.u32 [#allocation3], 4
      %s35 = int_to_ptr.vmem [resolvable:$true] %s34
      %40 = dma.hbm_to_vmem [thread:$0]  %s0, 256, %s35, [#allocation4], 128, 128, 8
    $region5: #{tpu_custom_call.1} parent=1 // pred_fallthru
      _
    // Predicated region
    $region6: #{tpu_custom_call.1} parent=1 // pred_check
      _
    $region7: #{tpu_custom_call.1} parent=1 // pred_check_branch
      %42 = sbr.rel (0) target = $region9
    $region8: #{tpu_custom_call.1} parent=1 // pred_region
      %s44 = ssub.s32 128, 128
      %45 = vsyncadd [#allocation7], %s44
      %s47 = sshll.u32 [#allocation6], 4
      %s48 = int_to_ptr.vmem [resolvable:$true] %s47
      %50 = dma.hbm_to_vmem [thread:$0]  %s1, 128, %s48, [#allocation7]
    $region9: #{tpu_custom_call.1} parent=1 // pred_fallthru
      _
    // Predicated region
    $region10: #{tpu_custom_call.1} parent=1 // pred_check
      _
    $region11: #{tpu_custom_call.1} parent=1 // pred_check_branch
      %52 = sbr.rel (0) target = $region13
    $region12: #{tpu_custom_call.1} parent=1 // pred_region
      _
    $region13: #{tpu_custom_call.1} parent=1 // pred_fallthru
      _
    // Predicated region
    $region14: #{tpu_custom_call.1} parent=1 // pred_check
      _
    $region15: #{tpu_custom_call.1} parent=1 // pred_check_branch
      %54 = sbr.rel (0) target = $region17
    $region16: #{tpu_custom_call.1} parent=1 // pred_region
      _
    $region17: #{tpu_custom_call.1} parent=1 // pred_fallthru
      _
    // Predicated region
    $region18: #{tpu_custom_call.1} parent=1 // pred_check
      _
    $region19: #{tpu_custom_call.1} parent=1 // pred_check_branch
      %56 = sbr.rel (0) target = $region21
    $region20: #{tpu_custom_call.1} parent=1 // pred_region
      _
    $region21: #{tpu_custom_call.1} parent=1 // pred_fallthru
      _
    // Predicated region
    $region22: #{tpu_custom_call.1} parent=1 // pred_check
      _
    $region23: #{tpu_custom_call.1} parent=1 // pred_check_branch
      %58 = sbr.rel (0) target = $region25
    $region24: #{tpu_custom_call.1} parent=1 // pred_region
      _
    $region25: #{tpu_custom_call.1} parent=1 // pred_fallthru
      _
    // Predicated region
    $region26: #{tpu_custom_call.1} parent=1 // pred_check
      _
    $region27: #{tpu_custom_call.1} parent=1 // pred_check_branch
      %60 = sbr.rel (0) target = $region29
    $region28: #{tpu_custom_call.1} parent=1 // pred_region
      _
    $region29: #{tpu_custom_call.1} parent=1 // pred_fallthru
      _
    // Predicated region
    $region30: #{tpu_custom_call.1} parent=1 // pred_check
      _
    $region31: #{tpu_custom_call.1} parent=1 // pred_check_branch
      %62 = sbr.rel (0) target = $region33
    $region32: #{tpu_custom_call.1} parent=1 // pred_region
      _
    $region33: #{tpu_custom_call.1} parent=1 // pred_fallthru
      _
    // Predicated region
    $region34: #{tpu_custom_call.1} parent=1 // pred_check
      _
    $region35: #{tpu_custom_call.1} parent=1 // pred_check_branch
      %64 = sbr.rel (0) target = $region37
    $region36: #{tpu_custom_call.1} parent=1 // pred_region
      %s66 = ssub.s32 6144, 6144
      %67 = vsyncadd [#allocation7], %s66
      %s68 = sshll.u32 [#allocation8], 4
      %s69 = int_to_ptr.vmem [resolvable:$true] %s68
      %74 = dma.hbm_to_vmem [thread:$0]  %s8, 6144, %s69, [#allocation7], 384, 384, 24
    $region37: #{tpu_custom_call.1} parent=1 // pred_fallthru
      _
    // Predicated region
    $region38: #{tpu_custom_call.1} parent=1 // pred_check
      _
    $region39: #{tpu_custom_call.1} parent=1 // pred_check_branch
      %76 = sbr.rel (0) target = $region41
    $region40: #{tpu_custom_call.1} parent=1 // pred_region
      %s78 = ssub.s32 2048, 2048
      %79 = vsyncadd [#allocation10], %s78
      %s80 = sshll.u32 [#allocation9], 4
      %s81 = int_to_ptr.vmem [resolvable:$true] %s80
      %86 = dma.hbm_to_vmem [thread:$0]  %s9, 2048, %s81, [#allocation10], 128, 128, 8
    $region41: #{tpu_custom_call.1} parent=1 // pred_fallthru
      _
    // Predicated region
    $region42: #{tpu_custom_call.1} parent=1 // pred_check
      _
    $region43: #{tpu_custom_call.1} parent=1 // pred_check_branch
      %88 = sbr.rel (0) target = $region45
    $region44: #{tpu_custom_call.1} parent=1 // pred_region
      %s90 = ssub.s32 6144, 6144
      %91 = vsyncadd [#allocation10], %s90
      %s92 = sshll.u32 [#allocation11], 4
      %s93 = int_to_ptr.vmem [resolvable:$true] %s92
      %98 = dma.hbm_to_vmem [thread:$0]  %s10, 6144, %s93, [#allocation10], 384, 384, 24
    $region45: #{tpu_custom_call.1} parent=1 // pred_fallthru
      _
    // Predicated region
    $region46: #{tpu_custom_call.1} parent=1 // pred_check
      _
    $region47: #{tpu_custom_call.1} parent=1 // pred_check_branch
      %100 = sbr.rel (0) target = $region49
    $region48: #{tpu_custom_call.1} parent=1 // pred_region
      _
    $region49: #{tpu_custom_call.1} parent=1 // pred_fallthru
      _
    // Predicated region
    $region50: #{tpu_custom_call.1} parent=1 // pred_check
      _
    $region51: #{tpu_custom_call.1} parent=1 // pred_check_branch
      %102 = sbr.rel (0) target = $region53
    $region52: #{tpu_custom_call.1} parent=1 // pred_region
      %s104 = ssub.s32 2048, 2048
      %105 = vsyncadd [#allocation13], %s104
      %s106 = sshll.u32 [#allocation12], 4
      %s107 = int_to_ptr.vmem [resolvable:$true] %s106
      %112 = dma.hbm_to_vmem [thread:$0]  %s12, 2048, %s107, [#allocation13], 128, 128, 8
    $region53: #{tpu_custom_call.1} parent=1 // pred_fallthru
      _
    // Predicated region
    $region54: #{tpu_custom_call.1} parent=1 // pred_check
      _
    $region55: #{tpu_custom_call.1} parent=1 // pred_check_branch
      %114 = sbr.rel (0) target = $region57
    $region56: #{tpu_custom_call.1} parent=1 // pred_region
      _
    $region57: #{tpu_custom_call.1} parent=1 // pred_fallthru
      _
    // Predicated region
    $region58: #{tpu_custom_call.1} parent=1 // pred_check
      _
    $region59: #{tpu_custom_call.1} parent=1 // pred_check_branch
      %116 = sbr.rel (0) target = $region61
    $region60: #{tpu_custom_call.1} parent=1 // pred_region
      %s118 = ssub.s32 6144, 6144
      %119 = vsyncadd [#allocation13], %s118
      %s120 = sshll.u32 [#allocation14], 4
      %s121 = int_to_ptr.vmem [resolvable:$true] %s120
      %126 = dma.hbm_to_vmem [thread:$0]  %s14, 6144, %s121, [#allocation13], 384, 384, 24
    $region61: #{tpu_custom_call.1} parent=1 // pred_fallthru
      _
    // Predicated region
    $region62: #{tpu_custom_call.1} parent=1 // pred_check
      _
    $region63: #{tpu_custom_call.1} parent=1 // pred_check_branch
      %128 = sbr.rel (0) target = $region65
    $region64: #{tpu_custom_call.1} parent=1 // pred_region
      _
    $region65: #{tpu_custom_call.1} parent=1 // pred_fallthru
      _
    // Predicated region
    $region66: #{tpu_custom_call.1} parent=1 // pred_check
      _
    $region67: #{tpu_custom_call.1} parent=1 // pred_check_branch
      %130 = sbr.rel (0) target = $region69
    $region68: #{tpu_custom_call.1} parent=1 // pred_region
      %s132 = ssub.s32 6144, 6144
      %133 = vsyncadd [#allocation16], %s132
      %s134 = sshll.u32 [#allocation15], 4
      %s135 = int_to_ptr.vmem [resolvable:$true] %s134
      %140 = dma.hbm_to_vmem [thread:$0]  %s16, 6144, %s135, [#allocation16], 128, 128, 8
    $region69: #{tpu_custom_call.1} parent=1 // pred_fallthru
      _
    // Predicated region
    $region70: #{tpu_custom_call.1} parent=1 // pred_check
      _
    $region71: #{tpu_custom_call.1} parent=1 // pred_check_branch
      %142 = sbr.rel (0) target = $region73
    $region72: #{tpu_custom_call.1} parent=1 // pred_region
      _
    $region73: #{tpu_custom_call.1} parent=1 // pred_fallthru
      _
    // Predicated region
    $region74: #{tpu_custom_call.1} parent=1 // pred_check
      _
    $region75: #{tpu_custom_call.1} parent=1 // pred_check_branch
      %144 = sbr.rel (0) target = $region77
    $region76: #{tpu_custom_call.1} parent=1 // pred_region
      %145 = dma.done [#allocation4], 256
    $region77: #{tpu_custom_call.1} parent=1 // pred_fallthru
      _
    // Predicated region
    $region78: #{tpu_custom_call.1} parent=1 // pred_check
      _
    $region79: #{tpu_custom_call.1} parent=1 // pred_check_branch
      %147 = sbr.rel (0) target = $region81
    $region80: #{tpu_custom_call.1} parent=1 // pred_region
      %148 = dma.done [#allocation7], 128
    $region81: #{tpu_custom_call.1} parent=1 // pred_fallthru
      _
    // Predicated region
    $region82: #{tpu_custom_call.1} parent=1 // pred_check
      _
    $region83: #{tpu_custom_call.1} parent=1 // pred_check_branch
      %150 = sbr.rel (0) target = $region85
    $region84: #{tpu_custom_call.1} parent=1 // pred_region
      %151 = dma.done [#allocation7], 6144
    $region85: #{tpu_custom_call.1} parent=1 // pred_fallthru
      _
    // Predicated region
    $region86: #{tpu_custom_call.1} parent=1 // pred_check
      _
    $region87: #{tpu_custom_call.1} parent=1 // pred_check_branch
      %153 = sbr.rel (0) target = $region89
    $region88: #{tpu_custom_call.1} parent=1 // pred_region
      %154 = dma.done [#allocation10], 2048
    $region89: #{tpu_custom_call.1} parent=1 // pred_fallthru
      _
    // Predicated region
    $region90: #{tpu_custom_call.1} parent=1 // pred_check
      _
    $region91: #{tpu_custom_call.1} parent=1 // pred_check_branch
      %156 = sbr.rel (0) target = $region93
    $region92: #{tpu_custom_call.1} parent=1 // pred_region
      %157 = dma.done [#allocation10], 6144
    $region93: #{tpu_custom_call.1} parent=1 // pred_fallthru
      _
    // Predicated region
    $region94: #{tpu_custom_call.1} parent=1 // pred_check
      _
    $region95: #{tpu_custom_call.1} parent=1 // pred_check_branch
      %159 = sbr.rel (0) target = $region97
    $region96: #{tpu_custom_call.1} parent=1 // pred_region
      %160 = dma.done [#allocation13], 2048
    $region97: #{tpu_custom_call.1} parent=1 // pred_fallthru
      _
    // Predicated region
    $region98: #{tpu_custom_call.1} parent=1 // pred_check
      _
    $region99: #{tpu_custom_call.1} parent=1 // pred_check_branch
      %162 = sbr.rel (0) target = $region101
    $region100: #{tpu_custom_call.1} parent=1 // pred_region
      %163 = dma.done [#allocation13], 6144
    $region101: #{tpu_custom_call.1} parent=1 // pred_fallthru
      _
    // Predicated region
    $region102: #{tpu_custom_call.1} parent=1 // pred_check
      _
    $region103: #{tpu_custom_call.1} parent=1 // pred_check_branch
      %165 = sbr.rel (0) target = $region105
    $region104: #{tpu_custom_call.1} parent=1 // pred_region
      %166 = dma.done [#allocation16], 6144
    $region105: #{tpu_custom_call.1} parent=1 // pred_fallthru
      _
    %v167 = vld [vmem:[#allocation3] sm:$0xff]
    %v168 = vld [vmem:[#allocation3 + $0x8] sm:$0xff]
    %v169 = vld [vmem:[#allocation6] sm:$0xff]
    %v170 = vld [vmem:[%s2] sm:$0x1]
    %v171 = vld [vmem:[%s3] sm:$0x1]
    %172 = vadd.xlane.f32.xlu0 %v167
    %v173 = vpop.xlane.xlu0 %172
    %174 = vadd.xlane.f32.xlu0 %v168
    %v175 = vpop.xlane.xlu0 %174
    %v176 = vrcp.pop 128.0
    %v177 = vmul.f32 %v173, %v176
    %v178 = vmul.f32 %v175, %v176
    %v179 = vsub.f32 %v167, %v177
    %v180 = vsub.f32 %v168, %v178
    %v181 = vmul.f32 %v179, %v179
    %v182 = vmul.f32 %v180, %v180
    %183 = vadd.xlane.f32.xlu0 %v181
    %v184 = vpop.xlane.xlu0 %183
    %185 = vadd.xlane.f32.xlu0 %v182
    %v186 = vpop.xlane.xlu0 %185
    %v187 = vmul.f32 %v184, %v176
    %v188 = vmul.f32 %v186, %v176
    %v189 = vadd.f32 %v187, 1e-05
    %v190 = vadd.f32 %v188, 1e-05
    %v191 = vrsqrt.pop %v189
    %v192 = vrsqrt.pop %v190
    %v193 = vmul.f32 %v179, %v191
    %v194 = vmul.f32 %v180, %v192
    %v196 = vlaneseq
    %v197 = vshrl.u32 %v196, 7
    %v198 = vsub.s32 0, %v197
    %v199 = vrot.slane %v170, %v198
    %v201 = vmul.f32 %v193, %v199
    %v202 = vmul.f32 %v194, %v199
    %v204 = vlaneseq
    %v205 = vshrl.u32 %v204, 7
    %v206 = vsub.s32 0, %v205
    %v207 = vrot.slane %v171, %v206
    %v209 = vadd.f32 %v201, %v207
    %v210 = vadd.f32 %v202, %v207
    %v211 = vld [vmem:[#allocation8] sm:$0xff]
    %v212 = vld [vmem:[#allocation8 + $0x8] sm:$0xff]
    %v213 = vld [vmem:[#allocation8 + $0x10] sm:$0xff]
    %v214 = vld [vmem:[#allocation8 + $0x18] sm:$0xff]
    %v215 = vld [vmem:[#allocation8 + $0x20] sm:$0xff]
    %v216 = vld [vmem:[#allocation8 + $0x28] sm:$0xff]
    %v217 = vld [vmem:[#allocation8 + $0x30] sm:$0xff]
    %v218 = vld [vmem:[#allocation8 + $0x38] sm:$0xff]
    %v219 = vld [vmem:[#allocation8 + $0x40] sm:$0xff]
    %v220 = vld [vmem:[#allocation8 + $0x48] sm:$0xff]
    %v221 = vld [vmem:[#allocation8 + $0x50] sm:$0xff]
    %v222 = vld [vmem:[#allocation8 + $0x58] sm:$0xff]
    %v223 = vld [vmem:[#allocation8 + $0x60] sm:$0xff]
    %v224 = vld [vmem:[#allocation8 + $0x68] sm:$0xff]
    %v225 = vld [vmem:[#allocation8 + $0x70] sm:$0xff]
    %v226 = vld [vmem:[#allocation8 + $0x78] sm:$0xff]
    %v227 = vld [vmem:[#allocation8 + $0x80] sm:$0xff]
    %v228 = vld [vmem:[#allocation8 + $0x88] sm:$0xff]
    %v229 = vld [vmem:[#allocation8 + $0x90] sm:$0xff]
    %v230 = vld [vmem:[#allocation8 + $0x98] sm:$0xff]
    %v231 = vld [vmem:[#allocation8 + $0xa0] sm:$0xff]
    %v232 = vld [vmem:[#allocation8 + $0xa8] sm:$0xff]
    %v233 = vld [vmem:[#allocation8 + $0xb0] sm:$0xff]
    %v234 = vld [vmem:[#allocation8 + $0xb8] sm:$0xff]
    %v235 = vld [vmem:[#allocation8 + $0xc0] sm:$0xff]
    %v236 = vld [vmem:[#allocation8 + $0xc8] sm:$0xff]
    %v237 = vld [vmem:[#allocation8 + $0xd0] sm:$0xff]
    %v238 = vld [vmem:[#allocation8 + $0xd8] sm:$0xff]
    %v239 = vld [vmem:[#allocation8 + $0xe0] sm:$0xff]
    %v240 = vld [vmem:[#allocation8 + $0xe8] sm:$0xff]
    %v241 = vld [vmem:[#allocation8 + $0xf0] sm:$0xff]
    %v242 = vld [vmem:[#allocation8 + $0xf8] sm:$0xff]
    %v243 = vld [vmem:[#allocation8 + $0x100] sm:$0xff]
    %v244 = vld [vmem:[#allocation8 + $0x108] sm:$0xff]
    %v245 = vld [vmem:[#allocation8 + $0x110] sm:$0xff]
    %v246 = vld [vmem:[#allocation8 + $0x118] sm:$0xff]
    %v247 = vld [vmem:[#allocation8 + $0x120] sm:$0xff]
    %v248 = vld [vmem:[#allocation8 + $0x128] sm:$0xff]
    %v249 = vld [vmem:[#allocation8 + $0x130] sm:$0xff]
    %v250 = vld [vmem:[#allocation8 + $0x138] sm:$0xff]
    %v251 = vld [vmem:[#allocation8 + $0x140] sm:$0xff]
    %v252 = vld [vmem:[#allocation8 + $0x148] sm:$0xff]
    %v253 = vld [vmem:[#allocation8 + $0x150] sm:$0xff]
    %v254 = vld [vmem:[#allocation8 + $0x158] sm:$0xff]
    %v255 = vld [vmem:[#allocation8 + $0x160] sm:$0xff]
    %v256 = vld [vmem:[#allocation8 + $0x168] sm:$0xff]
    %v257 = vld [vmem:[#allocation8 + $0x170] sm:$0xff]
    %v258 = vld [vmem:[#allocation8 + $0x178] sm:$0xff]
    %259 = vmatprep.subr.mxu0 %v212
    %260 = vmatpush1.msra.mxu0 %v211
    %261 = vmatprep.subr.mxu0 %v215
    %262 = vmatpush1.msra.mxu0 %v214
    %263 = vmatprep.subr.mxu0 %v218
    %264 = vmatpush1.msra.mxu0 %v217
    %265 = vmatprep.subr.mxu0 %v221
    %266 = vmatpush1.msra.mxu0 %v220
    %267 = vmatprep.subr.mxu0 %v224
    %268 = vmatpush1.msra.mxu0 %v223
    %269 = vmatprep.subr.mxu0 %v227
    %270 = vmatpush1.msra.mxu0 %v226
    %271 = vmatprep.subr.mxu0 %v230
    %272 = vmatpush1.msra.mxu0 %v229
    %273 = vmatprep.subr.mxu0 %v233
    %274 = vmatpush1.msra.mxu0 %v232
    %275 = vmatprep.subr.mxu0 %v236
    %276 = vmatpush1.msra.mxu0 %v235
    %277 = vmatprep.subr.mxu0 %v239
    %278 = vmatpush1.msra.mxu0 %v238
    %279 = vmatprep.subr.mxu0 %v242
    %280 = vmatpush1.msra.mxu0 %v241
    %281 = vmatprep.subr.mxu0 %v245
    %282 = vmatpush1.msra.mxu0 %v244
    %283 = vmatprep.subr.mxu0 %v248
    %284 = vmatpush1.msra.mxu0 %v247
    %285 = vmatprep.subr.mxu0 %v251
    %286 = vmatpush1.msra.mxu0 %v250
    %287 = vmatprep.subr.mxu0 %v254
    %288 = vmatpush1.msra.mxu0 %v253
    %289 = vmatprep.subr.mxu0 %v257
    %290 = vmatpush1.msra.mxu0 %v256
    %291 = vmatprep.subr.mxu0 0.0
    %292 = vmatpush1.msra.mxu0 0.0
    %293 = vmatprep.subr.mxu0 0.0
    %294 = vmatpush1.msra.mxu0 0.0
    %295 = vmatprep.subr.mxu0 0.0
    %296 = vmatpush1.msra.mxu0 0.0
    %297 = vmatprep.subr.mxu0 0.0
    %298 = vmatpush1.msra.mxu0 0.0
    %299 = vmatprep.subr.mxu0 0.0
    %300 = vmatpush1.msra.mxu0 0.0
    %301 = vmatprep.subr.mxu0 0.0
    %302 = vmatpush1.msra.mxu0 0.0
    %303 = vmatprep.subr.mxu0 0.0
    %304 = vmatpush1.msra.mxu0 0.0
    %305 = vmatprep.subr.mxu0 0.0
    %306 = vmatpush1.msra.mxu0 0.0
    %307 = vmatprep.subr.mxu0 0.0
    %308 = vmatpush1.msra.mxu0 0.0
    %309 = vmatprep.subr.mxu0 0.0
    %310 = vmatpush1.msra.mxu0 0.0
    %311 = vmatprep.subr.mxu0 0.0
    %312 = vmatpush1.msra.mxu0 0.0
    %313 = vmatprep.subr.mxu0 0.0
    %314 = vmatpush1.msra.mxu0 0.0
    %315 = vmatprep.subr.mxu0 0.0
    %316 = vmatpush1.msra.mxu0 0.0
    %317 = vmatprep.subr.mxu0 0.0
    %318 = vmatpush1.msra.mxu0 0.0
    %319 = vmatprep.subr.mxu0 0.0
    %320 = vmatpush1.msra.mxu0 0.0
    %321 = vmatprep.subr.mxu0 0.0
    %322 = vmatpush1.msra.mxu0 0.0
    %323 = vmatprep.mubr.f32.mxu0 0.0
    %324 = vmatmul.mubr.f32.gmra.mrb[0].mxu0 %v209
    %v325 = vpop.f32.mrb[0].mxu0
    %v326 = vadd.f32 0.0, %v325
    %v327 = vpop.f32.mrb[0].mxu0
    %v328 = vadd.f32 0.0, %v327
    %329 = vmatprep.mubr.f32.mxu0 0.0
    %330 = vmatmul.mubr.f32.gmra.mrb[0].mxu0 %v210
    %v331 = vpop.f32.mrb[0].mxu0
    %v332 = vadd.f32 0.0, %v331
    %v333 = vpop.f32.mrb[0].mxu0
    %v334 = vadd.f32 0.0, %v333
    %335 = vdwg.mxu0
    %336 = vmatprep.subr.mxu0 0.0
    %337 = vmatpush1.msra.mxu0 %v213
    %338 = vmatprep.subr.mxu0 0.0
    %339 = vmatpush1.msra.mxu0 %v216
    %340 = vmatprep.subr.mxu0 0.0
    %341 = vmatpush1.msra.mxu0 %v219
    %342 = vmatprep.subr.mxu0 0.0
    %343 = vmatpush1.msra.mxu0 %v222
    %344 = vmatprep.subr.mxu0 0.0
    %345 = vmatpush1.msra.mxu0 %v225
    %346 = vmatprep.subr.mxu0 0.0
    %347 = vmatpush1.msra.mxu0 %v228
    %348 = vmatprep.subr.mxu0 0.0
    %349 = vmatpush1.msra.mxu0 %v231
    %350 = vmatprep.subr.mxu0 0.0
    %351 = vmatpush1.msra.mxu0 %v234
    %352 = vmatprep.subr.mxu0 0.0
    %353 = vmatpush1.msra.mxu0 %v237
    %354 = vmatprep.subr.mxu0 0.0
    %355 = vmatpush1.msra.mxu0 %v240
    %356 = vmatprep.subr.mxu0 0.0
    %357 = vmatpush1.msra.mxu0 %v243
    %358 = vmatprep.subr.mxu0 0.0
    %359 = vmatpush1.msra.mxu0 %v246
    %360 = vmatprep.subr.mxu0 0.0
    %361 = vmatpush1.msra.mxu0 %v249
    %362 = vmatprep.subr.mxu0 0.0
    %363 = vmatpush1.msra.mxu0 %v252
    %364 = vmatprep.subr.mxu0 0.0
    %365 = vmatpush1.msra.mxu0 %v255
    %366 = vmatprep.subr.mxu0 0.0
    %367 = vmatpush1.msra.mxu0 %v258
    %368 = vmatprep.subr.mxu0 0.0
    %369 = vmatpush1.msra.mxu0 0.0
    %370 = vmatprep.subr.mxu0 0.0
    %371 = vmatpush1.msra.mxu0 0.0
    %372 = vmatprep.subr.mxu0 0.0
    %373 = vmatpush1.msra.mxu0 0.0
    %374 = vmatprep.subr.mxu0 0.0
    %375 = vmatpush1.msra.mxu0 0.0
    %376 = vmatprep.subr.mxu0 0.0
    %377 = vmatpush1.msra.mxu0 0.0
    %378 = vmatprep.subr.mxu0 0.0
    %379 = vmatpush1.msra.mxu0 0.0
    %380 = vmatprep.subr.mxu0 0.0
    %381 = vmatpush1.msra.mxu0 0.0
    %382 = vmatprep.subr.mxu0 0.0
    %383 = vmatpush1.msra.mxu0 0.0
    %384 = vmatprep.subr.mxu0 0.0
    %385 = vmatpush1.msra.mxu0 0.0
    %386 = vmatprep.subr.mxu0 0.0
    %387 = vmatpush1.msra.mxu0 0.0
    %388 = vmatprep.subr.mxu0 0.0
    %389 = vmatpush1.msra.mxu0 0.0
    %390 = vmatprep.subr.mxu0 0.0
    %391 = vmatpush1.msra.mxu0 0.0
    %392 = vmatprep.subr.mxu0 0.0
    %393 = vmatpush1.msra.mxu0 0.0
    %394 = vmatprep.subr.mxu0 0.0
    %395 = vmatpush1.msra.mxu0 0.0
    %396 = vmatprep.subr.mxu0 0.0
    %397 = vmatpush1.msra.mxu0 0.0
    %398 = vmatprep.subr.mxu0 0.0
    %399 = vmatpush1.msra.mxu0 0.0
    %400 = vmatprep.mubr.f32.mxu0 0.0
    %401 = vmatmul.mubr.f32.gmra.mrb[0].mxu0 %v209
    %v402 = vpop.f32.mrb[0].mxu0
    %v403 = vadd.f32 0.0, %v402
    %v404 = vpop.f32.mrb[0].mxu0
    %405 = vmatprep.mubr.f32.mxu0 0.0
    %406 = vmatmul.mubr.f32.gmra.mrb[0].mxu0 %v210
    %v407 = vpop.f32.mrb[0].mxu0
    %v408 = vadd.f32 0.0, %v407
    %v409 = vpop.f32.mrb[0].mxu0
    %410 = vdwg.mxu0
    %vm411 = vcmask 261120
    %v413 = vsel %vm411, %v326, 0
    %v416 = vsel %vm411, %v328, 0
    %418 = vmatprep.subr.mxu0 0.0
    %419 = vmatpush1.xpose.msra.mxu0 %v416
    %420 = vmatprep.subr.mxu0 0.0
    %421 = vmatpush1.xpose.msra.mxu0 0.0
    %422 = vmatprep.subr.mxu0 0.0
    %423 = vmatpush1.xpose.msra.mxu0 0.0
    %424 = vmatprep.subr.mxu0 0.0
    %425 = vmatpush1.xpose.msra.mxu0 0.0
    %426 = vmatprep.subr.mxu0 0.0
    %427 = vmatpush1.xpose.msra.mxu0 0.0
    %428 = vmatprep.subr.mxu0 0.0
    %429 = vmatpush1.xpose.msra.mxu0 0.0
    %430 = vmatprep.subr.mxu0 0.0
    %431 = vmatpush1.xpose.msra.mxu0 0.0
    %432 = vmatprep.subr.mxu0 0.0
    %433 = vmatpush1.xpose.msra.mxu0 0.0
    %434 = vmatprep.subr.mxu0 0.0
    %435 = vmatpush1.xpose.msra.mxu0 0.0
    %436 = vmatprep.subr.mxu0 0.0
    %437 = vmatpush1.xpose.msra.mxu0 0.0
    %438 = vmatprep.subr.mxu0 0.0
    %439 = vmatpush1.xpose.msra.mxu0 0.0
    %440 = vmatprep.subr.mxu0 0.0
    %441 = vmatpush1.xpose.msra.mxu0 0.0
    %442 = vmatprep.subr.mxu0 0.0
    %443 = vmatpush1.xpose.msra.mxu0 0.0
    %444 = vmatprep.subr.mxu0 0.0
    %445 = vmatpush1.xpose.msra.mxu0 0.0
    %446 = vmatprep.subr.mxu0 0.0
    %447 = vmatpush1.xpose.msra.mxu0 0.0
    %448 = vmatprep.subr.mxu0 0.0
    %449 = vmatpush1.xpose.msra.mxu0 0.0
    %450 = vmatprep.subr.mxu0 0.0
    %451 = vmatpush1.xpose.msra.mxu0 0.0
    %452 = vmatprep.subr.mxu0 0.0
    %453 = vmatpush1.xpose.msra.mxu0 0.0
    %454 = vmatprep.subr.mxu0 0.0
    %455 = vmatpush1.xpose.msra.mxu0 0.0
    %456 = vmatprep.subr.mxu0 0.0
    %457 = vmatpush1.xpose.msra.mxu0 0.0
    %458 = vmatprep.subr.mxu0 0.0
    %459 = vmatpush1.xpose.msra.mxu0 0.0
    %460 = vmatprep.subr.mxu0 0.0
    %461 = vmatpush1.xpose.msra.mxu0 0.0
    %462 = vmatprep.subr.mxu0 0.0
    %463 = vmatpush1.xpose.msra.mxu0 0.0
    %464 = vmatprep.subr.mxu0 0.0
    %465 = vmatpush1.xpose.msra.mxu0 0.0
    %466 = vmatprep.subr.mxu0 0.0
    %467 = vmatpush1.xpose.msra.mxu0 0.0
    %468 = vmatprep.subr.mxu0 0.0
    %469 = vmatpush1.xpose.msra.mxu0 0.0
    %470 = vmatprep.subr.mxu0 0.0
    %471 = vmatpush1.xpose.msra.mxu0 0.0
    %472 = vmatprep.subr.mxu0 0.0
    %473 = vmatpush1.xpose.msra.mxu0 0.0
    %474 = vmatprep.subr.mxu0 0.0
    %475 = vmatpush1.xpose.msra.mxu0 0.0
    %476 = vmatprep.subr.mxu0 0.0
    %477 = vmatpush1.xpose.msra.mxu0 0.0
    %478 = vmatprep.subr.mxu0 0.0
    %479 = vmatpush1.xpose.msra.mxu0 0.0
    %480 = vmatprep.subr.mxu0 0.0
    %481 = vmatpush1.xpose.msra.mxu0 0.0
    %482 = vmatprep.mubr.f32.mxu0 0.0
    %483 = vmatmul.mubr.f32.gmra.mrb[0].mxu0 %v413
    %v484 = vpop.f32.mrb[0].mxu0
    %v485 = vadd.f32 0.0, %v484
    %v486 = vpop.f32.mrb[0].mxu0
    %487 = vdwg.mxu0
    %v488 = vmul.f32 %v485, 0.17677669
    %v489 = vadd.f32 %v488, %v169
    %vm490 = vcmask 64512
    %v491 = vsel %vm490, %v489, -inf
    %492 = vmax.xlane.f32.xlu0 %v491
    %v493 = vpop.xlane.xlu0 %492
    %v494 = vsub.f32 %v489, %v493
    %v495 = vmul.f32 %v494, 1.442695
    %v496 = vpow.pop %v495
    %v497 = vsel %vm490, %v496, 0.0
    %498 = vadd.xlane.f32.xlu0 %v497
    %v499 = vpop.xlane.xlu0 %498
    %v500 = vrcp.pop %v499
    %v501 = vmul.f32 %v496, %v500
    %v503 = vsel %vm490, %v501, 0
    %505 = vmatprep.subr.mxu0 0.0
    %506 = vmatpush1.msra.mxu0 %v403
    %507 = vmatprep.subr.mxu0 0.0
    %508 = vmatpush1.msra.mxu0 0.0
    %509 = vmatprep.subr.mxu0 0.0
    %510 = vmatpush1.msra.mxu0 0.0
    %511 = vmatprep.subr.mxu0 0.0
    %512 = vmatpush1.msra.mxu0 0.0
    %513 = vmatprep.subr.mxu0 0.0
    %514 = vmatpush1.msra.mxu0 0.0
    %515 = vmatprep.subr.mxu0 0.0
    %516 = vmatpush1.msra.mxu0 0.0
    %517 = vmatprep.subr.mxu0 0.0
    %518 = vmatpush1.msra.mxu0 0.0
    %519 = vmatprep.subr.mxu0 0.0
    %520 = vmatpush1.msra.mxu0 0.0
    %521 = vmatprep.subr.mxu0 0.0
    %522 = vmatpush1.msra.mxu0 0.0
    %523 = vmatprep.subr.mxu0 0.0
    %524 = vmatpush1.msra.mxu0 0.0
    %525 = vmatprep.subr.mxu0 0.0
    %526 = vmatpush1.msra.mxu0 0.0
    %527 = vmatprep.subr.mxu0 0.0
    %528 = vmatpush1.msra.mxu0 0.0
    %529 = vmatprep.subr.mxu0 0.0
    %530 = vmatpush1.msra.mxu0 0.0
    %531 = vmatprep.subr.mxu0 0.0
    %532 = vmatpush1.msra.mxu0 0.0
    %533 = vmatprep.subr.mxu0 0.0
    %534 = vmatpush1.msra.mxu0 0.0
    %535 = vmatprep.subr.mxu0 0.0
    %536 = vmatpush1.msra.mxu0 0.0
    %537 = vmatprep.subr.mxu0 0.0
    %538 = vmatpush1.msra.mxu0 0.0
    %539 = vmatprep.subr.mxu0 0.0
    %540 = vmatpush1.msra.mxu0 0.0
    %541 = vmatprep.subr.mxu0 0.0
    %542 = vmatpush1.msra.mxu0 0.0
    %543 = vmatprep.subr.mxu0 0.0
    %544 = vmatpush1.msra.mxu0 0.0
    %545 = vmatprep.subr.mxu0 0.0
    %546 = vmatpush1.msra.mxu0 0.0
    %547 = vmatprep.subr.mxu0 0.0
    %548 = vmatpush1.msra.mxu0 0.0
    %549 = vmatprep.subr.mxu0 0.0
    %550 = vmatpush1.msra.mxu0 0.0
    %551 = vmatprep.subr.mxu0 0.0
    %552 = vmatpush1.msra.mxu0 0.0
    %553 = vmatprep.subr.mxu0 0.0
    %554 = vmatpush1.msra.mxu0 0.0
    %555 = vmatprep.subr.mxu0 0.0
    %556 = vmatpush1.msra.mxu0 0.0
    %557 = vmatprep.subr.mxu0 0.0
    %558 = vmatpush1.msra.mxu0 0.0
    %559 = vmatprep.subr.mxu0 0.0
    %560 = vmatpush1.msra.mxu0 0.0
    %561 = vmatprep.subr.mxu0 0.0
    %562 = vmatpush1.msra.mxu0 0.0
    %563 = vmatprep.subr.mxu0 0.0
    %564 = vmatpush1.msra.mxu0 0.0
    %565 = vmatprep.subr.mxu0 0.0
    %566 = vmatpush1.msra.mxu0 0.0
    %567 = vmatprep.subr.mxu0 0.0
    %568 = vmatpush1.msra.mxu0 0.0
    %569 = vmatprep.mubr.f32.mxu0 0.0
    %570 = vmatmul.mubr.f32.gmra.mrb[0].mxu0 %v503
    %v571 = vpop.f32.mrb[0].mxu0
    %v572 = vadd.f32 0.0, %v571
    %v573 = vpop.f32.mrb[0].mxu0
    %574 = vdwg.mxu0
    %575 = vst.msk [vmem:[#allocation2] sm:$0xff] %vm411, %v572
    %576 = vrot.lane.b32.xlu0 %v326, 96
    %v577 = vpop.permute.xlu0 %576
    %578 = vrot.lane.b32.xlu0 %v328, 96
    %v579 = vpop.permute.xlu0 %578
    %v580 = vsel %vm411, %v577, 0
    %v582 = vsel %vm411, %v579, 0
    %584 = vmatprep.subr.mxu0 0.0
    %585 = vmatpush1.xpose.msra.mxu0 %v582
    %586 = vmatprep.subr.mxu0 0.0
    %587 = vmatpush1.xpose.msra.mxu0 0.0
    %588 = vmatprep.subr.mxu0 0.0
    %589 = vmatpush1.xpose.msra.mxu0 0.0
    %590 = vmatprep.subr.mxu0 0.0
    %591 = vmatpush1.xpose.msra.mxu0 0.0
    %592 = vmatprep.subr.mxu0 0.0
    %593 = vmatpush1.xpose.msra.mxu0 0.0
    %594 = vmatprep.subr.mxu0 0.0
    %595 = vmatpush1.xpose.msra.mxu0 0.0
    %596 = vmatprep.subr.mxu0 0.0
    %597 = vmatpush1.xpose.msra.mxu0 0.0
    %598 = vmatprep.subr.mxu0 0.0
    %599 = vmatpush1.xpose.msra.mxu0 0.0
    %600 = vmatprep.subr.mxu0 0.0
    %601 = vmatpush1.xpose.msra.mxu0 0.0
    %602 = vmatprep.subr.mxu0 0.0
    %603 = vmatpush1.xpose.msra.mxu0 0.0
    %604 = vmatprep.subr.mxu0 0.0
    %605 = vmatpush1.xpose.msra.mxu0 0.0
    %606 = vmatprep.subr.mxu0 0.0
    %607 = vmatpush1.xpose.msra.mxu0 0.0
    %608 = vmatprep.subr.mxu0 0.0
    %609 = vmatpush1.xpose.msra.mxu0 0.0
    %610 = vmatprep.subr.mxu0 0.0
    %611 = vmatpush1.xpose.msra.mxu0 0.0
    %612 = vmatprep.subr.mxu0 0.0
    %613 = vmatpush1.xpose.msra.mxu0 0.0
    %614 = vmatprep.subr.mxu0 0.0
    %615 = vmatpush1.xpose.msra.mxu0 0.0
    %616 = vmatprep.subr.mxu0 0.0
    %617 = vmatpush1.xpose.msra.mxu0 0.0
    %618 = vmatprep.subr.mxu0 0.0
    %619 = vmatpush1.xpose.msra.mxu0 0.0
    %620 = vmatprep.subr.mxu0 0.0
    %621 = vmatpush1.xpose.msra.mxu0 0.0
    %622 = vmatprep.subr.mxu0 0.0
    %623 = vmatpush1.xpose.msra.mxu0 0.0
    %624 = vmatprep.subr.mxu0 0.0
    %625 = vmatpush1.xpose.msra.mxu0 0.0
    %626 = vmatprep.subr.mxu0 0.0
    %627 = vmatpush1.xpose.msra.mxu0 0.0
    %628 = vmatprep.subr.mxu0 0.0
    %629 = vmatpush1.xpose.msra.mxu0 0.0
    %630 = vmatprep.subr.mxu0 0.0
    %631 = vmatpush1.xpose.msra.mxu0 0.0
    %632 = vmatprep.subr.mxu0 0.0
    %633 = vmatpush1.xpose.msra.mxu0 0.0
    %634 = vmatprep.subr.mxu0 0.0
    %635 = vmatpush1.xpose.msra.mxu0 0.0
    %636 = vmatprep.subr.mxu0 0.0
    %637 = vmatpush1.xpose.msra.mxu0 0.0
    %638 = vmatprep.subr.mxu0 0.0
    %639 = vmatpush1.xpose.msra.mxu0 0.0
    %640 = vmatprep.subr.mxu0 0.0
    %641 = vmatpush1.xpose.msra.mxu0 0.0
    %642 = vmatprep.subr.mxu0 0.0
    %643 = vmatpush1.xpose.msra.mxu0 0.0
    %644 = vmatprep.subr.mxu0 0.0
    %645 = vmatpush1.xpose.msra.mxu0 0.0
    %646 = vmatprep.subr.mxu0 0.0
    %647 = vmatpush1.xpose.msra.mxu0 0.0
    %648 = vmatprep.mubr.f32.mxu0 0.0
    %649 = vmatmul.mubr.f32.gmra.mrb[0].mxu0 %v580
    %v650 = vpop.f32.mrb[0].mxu0
    %v651 = vadd.f32 0.0, %v650
    %v652 = vpop.f32.mrb[0].mxu0
    %653 = vdwg.mxu0
    %v654 = vmul.f32 %v651, 0.17677669
    %v655 = vadd.f32 %v654, %v169
    %v656 = vsel %vm490, %v655, -inf
    %657 = vmax.xlane.f32.xlu0 %v656
    %v658 = vpop.xlane.xlu0 %657
    %v659 = vsub.f32 %v655, %v658
    %v660 = vmul.f32 %v659, 1.442695
    %v661 = vpow.pop %v660
    %v662 = vsel %vm490, %v661, 0.0
    %663 = vadd.xlane.f32.xlu0 %v662
    %v664 = vpop.xlane.xlu0 %663
    %v665 = vrcp.pop %v664
    %v666 = vmul.f32 %v661, %v665
    %668 = vrot.lane.b32.xlu0 %v403, 96
    %v669 = vpop.permute.xlu0 %668
    %v672 = vsel %vm490, %v666, 0
    %674 = vmatprep.subr.mxu0 0.0
    %675 = vmatpush1.msra.mxu0 %v669
    %676 = vmatprep.subr.mxu0 0.0
    %677 = vmatpush1.msra.mxu0 0.0
    %678 = vmatprep.subr.mxu0 0.0
    %679 = vmatpush1.msra.mxu0 0.0
    %680 = vmatprep.subr.mxu0 0.0
    %681 = vmatpush1.msra.mxu0 0.0
    %682 = vmatprep.subr.mxu0 0.0
    %683 = vmatpush1.msra.mxu0 0.0
    %684 = vmatprep.subr.mxu0 0.0
    %685 = vmatpush1.msra.mxu0 0.0
    %686 = vmatprep.subr.mxu0 0.0
    %687 = vmatpush1.msra.mxu0 0.0
    %688 = vmatprep.subr.mxu0 0.0
    %689 = vmatpush1.msra.mxu0 0.0
    %690 = vmatprep.subr.mxu0 0.0
    %691 = vmatpush1.msra.mxu0 0.0
    %692 = vmatprep.subr.mxu0 0.0
    %693 = vmatpush1.msra.mxu0 0.0
    %694 = vmatprep.subr.mxu0 0.0
    %695 = vmatpush1.msra.mxu0 0.0
    %696 = vmatprep.subr.mxu0 0.0
    %697 = vmatpush1.msra.mxu0 0.0
    %698 = vmatprep.subr.mxu0 0.0
    %699 = vmatpush1.msra.mxu0 0.0
    %700 = vmatprep.subr.mxu0 0.0
    %701 = vmatpush1.msra.mxu0 0.0
    %702 = vmatprep.subr.mxu0 0.0
    %703 = vmatpush1.msra.mxu0 0.0
    %704 = vmatprep.subr.mxu0 0.0
    %705 = vmatpush1.msra.mxu0 0.0
    %706 = vmatprep.subr.mxu0 0.0
    %707 = vmatpush1.msra.mxu0 0.0
    %708 = vmatprep.subr.mxu0 0.0
    %709 = vmatpush1.msra.mxu0 0.0
    %710 = vmatprep.subr.mxu0 0.0
    %711 = vmatpush1.msra.mxu0 0.0
    %712 = vmatprep.subr.mxu0 0.0
    %713 = vmatpush1.msra.mxu0 0.0
    %714 = vmatprep.subr.mxu0 0.0
    %715 = vmatpush1.msra.mxu0 0.0
    %716 = vmatprep.subr.mxu0 0.0
    %717 = vmatpush1.msra.mxu0 0.0
    %718 = vmatprep.subr.mxu0 0.0
    %719 = vmatpush1.msra.mxu0 0.0
    %720 = vmatprep.subr.mxu0 0.0
    %721 = vmatpush1.msra.mxu0 0.0
    %722 = vmatprep.subr.mxu0 0.0
    %723 = vmatpush1.msra.mxu0 0.0
    %724 = vmatprep.subr.mxu0 0.0
    %725 = vmatpush1.msra.mxu0 0.0
    %726 = vmatprep.subr.mxu0 0.0
    %727 = vmatpush1.msra.mxu0 0.0
    %728 = vmatprep.subr.mxu0 0.0
    %729 = vmatpush1.msra.mxu0 0.0
    %730 = vmatprep.subr.mxu0 0.0
    %731 = vmatpush1.msra.mxu0 0.0
    %732 = vmatprep.subr.mxu0 0.0
    %733 = vmatpush1.msra.mxu0 0.0
    %734 = vmatprep.subr.mxu0 0.0
    %735 = vmatpush1.msra.mxu0 0.0
    %736 = vmatprep.subr.mxu0 0.0
    %737 = vmatpush1.msra.mxu0 0.0
    %738 = vmatprep.mubr.f32.mxu0 0.0
    %739 = vmatmul.mubr.f32.gmra.mrb[0].mxu0 %v672
    %v740 = vpop.f32.mrb[0].mxu0
    %v741 = vadd.f32 0.0, %v740
    %v742 = vpop.f32.mrb[0].mxu0
    %743 = vdwg.mxu0
    %745 = vrot.lane.b32.xlu0 %v741, 32
    %v746 = vpop.permute.xlu0 %745
    %vm748 = vcmask 523520
    %749 = vst.msk [vmem:[#allocation2] sm:$0xff] %vm748, %v746
    %750 = vrot.lane.b32.xlu0 %v326, 64
    %v751 = vpop.permute.xlu0 %750
    %752 = vrot.lane.b32.xlu0 %v328, 64
    %v753 = vpop.permute.xlu0 %752
    %v754 = vsel %vm411, %v751, 0
    %v756 = vsel %vm411, %v753, 0
    %758 = vmatprep.subr.mxu0 0.0
    %759 = vmatpush1.xpose.msra.mxu0 %v756
    %760 = vmatprep.subr.mxu0 0.0
    %761 = vmatpush1.xpose.msra.mxu0 0.0
    %762 = vmatprep.subr.mxu0 0.0
    %763 = vmatpush1.xpose.msra.mxu0 0.0
    %764 = vmatprep.subr.mxu0 0.0
    %765 = vmatpush1.xpose.msra.mxu0 0.0
    %766 = vmatprep.subr.mxu0 0.0
    %767 = vmatpush1.xpose.msra.mxu0 0.0
    %768 = vmatprep.subr.mxu0 0.0
    %769 = vmatpush1.xpose.msra.mxu0 0.0
    %770 = vmatprep.subr.mxu0 0.0
    %771 = vmatpush1.xpose.msra.mxu0 0.0
    %772 = vmatprep.subr.mxu0 0.0
    %773 = vmatpush1.xpose.msra.mxu0 0.0
    %774 = vmatprep.subr.mxu0 0.0
    %775 = vmatpush1.xpose.msra.mxu0 0.0
    %776 = vmatprep.subr.mxu0 0.0
    %777 = vmatpush1.xpose.msra.mxu0 0.0
    %778 = vmatprep.subr.mxu0 0.0
    %779 = vmatpush1.xpose.msra.mxu0 0.0
    %780 = vmatprep.subr.mxu0 0.0
    %781 = vmatpush1.xpose.msra.mxu0 0.0
    %782 = vmatprep.subr.mxu0 0.0
    %783 = vmatpush1.xpose.msra.mxu0 0.0
    %784 = vmatprep.subr.mxu0 0.0
    %785 = vmatpush1.xpose.msra.mxu0 0.0
    %786 = vmatprep.subr.mxu0 0.0
    %787 = vmatpush1.xpose.msra.mxu0 0.0
    %788 = vmatprep.subr.mxu0 0.0
    %789 = vmatpush1.xpose.msra.mxu0 0.0
    %790 = vmatprep.subr.mxu0 0.0
    %791 = vmatpush1.xpose.msra.mxu0 0.0
    %792 = vmatprep.subr.mxu0 0.0
    %793 = vmatpush1.xpose.msra.mxu0 0.0
    %794 = vmatprep.subr.mxu0 0.0
    %795 = vmatpush1.xpose.msra.mxu0 0.0
    %796 = vmatprep.subr.mxu0 0.0
    %797 = vmatpush1.xpose.msra.mxu0 0.0
    %798 = vmatprep.subr.mxu0 0.0
    %799 = vmatpush1.xpose.msra.mxu0 0.0
    %800 = vmatprep.subr.mxu0 0.0
    %801 = vmatpush1.xpose.msra.mxu0 0.0
    %802 = vmatprep.subr.mxu0 0.0
    %803 = vmatpush1.xpose.msra.mxu0 0.0
    %804 = vmatprep.subr.mxu0 0.0
    %805 = vmatpush1.xpose.msra.mxu0 0.0
    %806 = vmatprep.subr.mxu0 0.0
    %807 = vmatpush1.xpose.msra.mxu0 0.0
    %808 = vmatprep.subr.mxu0 0.0
    %809 = vmatpush1.xpose.msra.mxu0 0.0
    %810 = vmatprep.subr.mxu0 0.0
    %811 = vmatpush1.xpose.msra.mxu0 0.0
    %812 = vmatprep.subr.mxu0 0.0
    %813 = vmatpush1.xpose.msra.mxu0 0.0
    %814 = vmatprep.subr.mxu0 0.0
    %815 = vmatpush1.xpose.msra.mxu0 0.0
    %816 = vmatprep.subr.mxu0 0.0
    %817 = vmatpush1.xpose.msra.mxu0 0.0
    %818 = vmatprep.subr.mxu0 0.0
    %819 = vmatpush1.xpose.msra.mxu0 0.0
    %820 = vmatprep.subr.mxu0 0.0
    %821 = vmatpush1.xpose.msra.mxu0 0.0
    %822 = vmatprep.mubr.f32.mxu0 0.0
    %823 = vmatmul.mubr.f32.gmra.mrb[0].mxu0 %v754
    %v824 = vpop.f32.mrb[0].mxu0
    %v825 = vadd.f32 0.0, %v824
    %v826 = vpop.f32.mrb[0].mxu0
    %827 = vdwg.mxu0
    %v828 = vmul.f32 %v825, 0.17677669
    %v829 = vadd.f32 %v828, %v169
    %v830 = vsel %vm490, %v829, -inf
    %831 = vmax.xlane.f32.xlu0 %v830
    %v832 = vpop.xlane.xlu0 %831
    %v833 = vsub.f32 %v829, %v832
    %v834 = vmul.f32 %v833, 1.442695
    %v835 = vpow.pop %v834
    %v836 = vsel %vm490, %v835, 0.0
    %837 = vadd.xlane.f32.xlu0 %v836
    %v838 = vpop.xlane.xlu0 %837
    %v839 = vrcp.pop %v838
    %v840 = vmul.f32 %v835, %v839
    %841 = vrot.lane.b32.xlu0 %v403, 64
    %v842 = vpop.permute.xlu0 %841
    %v845 = vsel %vm490, %v840, 0
    %847 = vmatprep.subr.mxu0 0.0
    %848 = vmatpush1.msra.mxu0 %v842
    %849 = vmatprep.subr.mxu0 0.0
    %850 = vmatpush1.msra.mxu0 0.0
    %851 = vmatprep.subr.mxu0 0.0
    %852 = vmatpush1.msra.mxu0 0.0
    %853 = vmatprep.subr.mxu0 0.0
    %854 = vmatpush1.msra.mxu0 0.0
    %855 = vmatprep.subr.mxu0 0.0
    %856 = vmatpush1.msra.mxu0 0.0
    %857 = vmatprep.subr.mxu0 0.0
    %858 = vmatpush1.msra.mxu0 0.0
    %859 = vmatprep.subr.mxu0 0.0
    %860 = vmatpush1.msra.mxu0 0.0
    %861 = vmatprep.subr.mxu0 0.0
    %862 = vmatpush1.msra.mxu0 0.0
    %863 = vmatprep.subr.mxu0 0.0
    %864 = vmatpush1.msra.mxu0 0.0
    %865 = vmatprep.subr.mxu0 0.0
    %866 = vmatpush1.msra.mxu0 0.0
    %867 = vmatprep.subr.mxu0 0.0
    %868 = vmatpush1.msra.mxu0 0.0
    %869 = vmatprep.subr.mxu0 0.0
    %870 = vmatpush1.msra.mxu0 0.0
    %871 = vmatprep.subr.mxu0 0.0
    %872 = vmatpush1.msra.mxu0 0.0
    %873 = vmatprep.subr.mxu0 0.0
    %874 = vmatpush1.msra.mxu0 0.0
    %875 = vmatprep.subr.mxu0 0.0
    %876 = vmatpush1.msra.mxu0 0.0
    %877 = vmatprep.subr.mxu0 0.0
    %878 = vmatpush1.msra.mxu0 0.0
    %879 = vmatprep.subr.mxu0 0.0
    %880 = vmatpush1.msra.mxu0 0.0
    %881 = vmatprep.subr.mxu0 0.0
    %882 = vmatpush1.msra.mxu0 0.0
    %883 = vmatprep.subr.mxu0 0.0
    %884 = vmatpush1.msra.mxu0 0.0
    %885 = vmatprep.subr.mxu0 0.0
    %886 = vmatpush1.msra.mxu0 0.0
    %887 = vmatprep.subr.mxu0 0.0
    %888 = vmatpush1.msra.mxu0 0.0
    %889 = vmatprep.subr.mxu0 0.0
    %890 = vmatpush1.msra.mxu0 0.0
    %891 = vmatprep.subr.mxu0 0.0
    %892 = vmatpush1.msra.mxu0 0.0
    %893 = vmatprep.subr.mxu0 0.0
    %894 = vmatpush1.msra.mxu0 0.0
    %895 = vmatprep.subr.mxu0 0.0
    %896 = vmatpush1.msra.mxu0 0.0
    %897 = vmatprep.subr.mxu0 0.0
    %898 = vmatpush1.msra.mxu0 0.0
    %899 = vmatprep.subr.mxu0 0.0
    %900 = vmatpush1.msra.mxu0 0.0
    %901 = vmatprep.subr.mxu0 0.0
    %902 = vmatpush1.msra.mxu0 0.0
    %903 = vmatprep.subr.mxu0 0.0
    %904 = vmatpush1.msra.mxu0 0.0
    %905 = vmatprep.subr.mxu0 0.0
    %906 = vmatpush1.msra.mxu0 0.0
    %907 = vmatprep.subr.mxu0 0.0
    %908 = vmatpush1.msra.mxu0 0.0
    %909 = vmatprep.subr.mxu0 0.0
    %910 = vmatpush1.msra.mxu0 0.0
    %911 = vmatprep.mubr.f32.mxu0 0.0
    %912 = vmatmul.mubr.f32.gmra.mrb[0].mxu0 %v845
    %v913 = vpop.f32.mrb[0].mxu0
    %v914 = vadd.f32 0.0, %v913
    %v915 = vpop.f32.mrb[0].mxu0
    %916 = vdwg.mxu0
    %918 = vrot.lane.b32.xlu0 %v914, 64
    %v919 = vpop.permute.xlu0 %918
    %vm921 = vcmask 785920
    %922 = vst.msk [vmem:[#allocation2] sm:$0xff] %vm921, %v919
    %923 = vrot.lane.b32.xlu0 %v326, 32
    %v924 = vpop.permute.xlu0 %923
    %925 = vrot.lane.b32.xlu0 %v328, 32
    %v926 = vpop.permute.xlu0 %925
    %v927 = vsel %vm411, %v924, 0
    %v929 = vsel %vm411, %v926, 0
    %931 = vmatprep.subr.mxu0 0.0
    %932 = vmatpush1.xpose.msra.mxu0 %v929
    %933 = vmatprep.subr.mxu0 0.0
    %934 = vmatpush1.xpose.msra.mxu0 0.0
    %935 = vmatprep.subr.mxu0 0.0
    %936 = vmatpush1.xpose.msra.mxu0 0.0
    %937 = vmatprep.subr.mxu0 0.0
    %938 = vmatpush1.xpose.msra.mxu0 0.0
    %939 = vmatprep.subr.mxu0 0.0
    %940 = vmatpush1.xpose.msra.mxu0 0.0
    %941 = vmatprep.subr.mxu0 0.0
    %942 = vmatpush1.xpose.msra.mxu0 0.0
    %943 = vmatprep.subr.mxu0 0.0
    %944 = vmatpush1.xpose.msra.mxu0 0.0
    %945 = vmatprep.subr.mxu0 0.0
    %946 = vmatpush1.xpose.msra.mxu0 0.0
    %947 = vmatprep.subr.mxu0 0.0
    %948 = vmatpush1.xpose.msra.mxu0 0.0
    %949 = vmatprep.subr.mxu0 0.0
    %950 = vmatpush1.xpose.msra.mxu0 0.0
    %951 = vmatprep.subr.mxu0 0.0
    %952 = vmatpush1.xpose.msra.mxu0 0.0
    %953 = vmatprep.subr.mxu0 0.0
    %954 = vmatpush1.xpose.msra.mxu0 0.0
    %955 = vmatprep.subr.mxu0 0.0
    %956 = vmatpush1.xpose.msra.mxu0 0.0
    %957 = vmatprep.subr.mxu0 0.0
    %958 = vmatpush1.xpose.msra.mxu0 0.0
    %959 = vmatprep.subr.mxu0 0.0
    %960 = vmatpush1.xpose.msra.mxu0 0.0
    %961 = vmatprep.subr.mxu0 0.0
    %962 = vmatpush1.xpose.msra.mxu0 0.0
    %963 = vmatprep.subr.mxu0 0.0
    %964 = vmatpush1.xpose.msra.mxu0 0.0
    %965 = vmatprep.subr.mxu0 0.0
    %966 = vmatpush1.xpose.msra.mxu0 0.0
    %967 = vmatprep.subr.mxu0 0.0
    %968 = vmatpush1.xpose.msra.mxu0 0.0
    %969 = vmatprep.subr.mxu0 0.0
    %970 = vmatpush1.xpose.msra.mxu0 0.0
    %971 = vmatprep.subr.mxu0 0.0
    %972 = vmatpush1.xpose.msra.mxu0 0.0
    %973 = vmatprep.subr.mxu0 0.0
    %974 = vmatpush1.xpose.msra.mxu0 0.0
    %975 = vmatprep.subr.mxu0 0.0
    %976 = vmatpush1.xpose.msra.mxu0 0.0
    %977 = vmatprep.subr.mxu0 0.0
    %978 = vmatpush1.xpose.msra.mxu0 0.0
    %979 = vmatprep.subr.mxu0 0.0
    %980 = vmatpush1.xpose.msra.mxu0 0.0
    %981 = vmatprep.subr.mxu0 0.0
    %982 = vmatpush1.xpose.msra.mxu0 0.0
    %983 = vmatprep.subr.mxu0 0.0
    %984 = vmatpush1.xpose.msra.mxu0 0.0
    %985 = vmatprep.subr.mxu0 0.0
    %986 = vmatpush1.xpose.msra.mxu0 0.0
    %987 = vmatprep.subr.mxu0 0.0
    %988 = vmatpush1.xpose.msra.mxu0 0.0
    %989 = vmatprep.subr.mxu0 0.0
    %990 = vmatpush1.xpose.msra.mxu0 0.0
    %991 = vmatprep.subr.mxu0 0.0
    %992 = vmatpush1.xpose.msra.mxu0 0.0
    %993 = vmatprep.subr.mxu0 0.0
    %994 = vmatpush1.xpose.msra.mxu0 0.0
    %995 = vmatprep.mubr.f32.mxu0 0.0
    %996 = vmatmul.mubr.f32.gmra.mrb[0].mxu0 %v927
    %v997 = vpop.f32.mrb[0].mxu0
    %v998 = vadd.f32 0.0, %v997
    %v999 = vpop.f32.mrb[0].mxu0
    %1000 = vdwg.mxu0
    %v1001 = vmul.f32 %v998, 0.17677669
    %v1002 = vadd.f32 %v1001, %v169
    %v1003 = vsel %vm490, %v1002, -inf
    %1004 = vmax.xlane.f32.xlu0 %v1003
    %v1005 = vpop.xlane.xlu0 %1004
    %v1006 = vsub.f32 %v1002, %v1005
    %v1007 = vmul.f32 %v1006, 1.442695
    %v1008 = vpow.pop %v1007
    %v1009 = vsel %vm490, %v1008, 0.0
    %1010 = vadd.xlane.f32.xlu0 %v1009
    %v1011 = vpop.xlane.xlu0 %1010
    %v1012 = vrcp.pop %v1011
    %v1013 = vmul.f32 %v1008, %v1012
    %1014 = vrot.lane.b32.xlu0 %v403, 32
    %v1015 = vpop.permute.xlu0 %1014
    %v1018 = vsel %vm490, %v1013, 0
    %1020 = vmatprep.subr.mxu0 0.0
    %1021 = vmatpush1.msra.mxu0 %v1015
    %1022 = vmatprep.subr.mxu0 0.0
    %1023 = vmatpush1.msra.mxu0 0.0
    %1024 = vmatprep.subr.mxu0 0.0
    %1025 = vmatpush1.msra.mxu0 0.0
    %1026 = vmatprep.subr.mxu0 0.0
    %1027 = vmatpush1.msra.mxu0 0.0
    %1028 = vmatprep.subr.mxu0 0.0
    %1029 = vmatpush1.msra.mxu0 0.0
    %1030 = vmatprep.subr.mxu0 0.0
    %1031 = vmatpush1.msra.mxu0 0.0
    %1032 = vmatprep.subr.mxu0 0.0
    %1033 = vmatpush1.msra.mxu0 0.0
    %1034 = vmatprep.subr.mxu0 0.0
    %1035 = vmatpush1.msra.mxu0 0.0
    %1036 = vmatprep.subr.mxu0 0.0
    %1037 = vmatpush1.msra.mxu0 0.0
    %1038 = vmatprep.subr.mxu0 0.0
    %1039 = vmatpush1.msra.mxu0 0.0
    %1040 = vmatprep.subr.mxu0 0.0
    %1041 = vmatpush1.msra.mxu0 0.0
    %1042 = vmatprep.subr.mxu0 0.0
    %1043 = vmatpush1.msra.mxu0 0.0
    %1044 = vmatprep.subr.mxu0 0.0
    %1045 = vmatpush1.msra.mxu0 0.0
    %1046 = vmatprep.subr.mxu0 0.0
    %1047 = vmatpush1.msra.mxu0 0.0
    %1048 = vmatprep.subr.mxu0 0.0
    %1049 = vmatpush1.msra.mxu0 0.0
    %1050 = vmatprep.subr.mxu0 0.0
    %1051 = vmatpush1.msra.mxu0 0.0
    %1052 = vmatprep.subr.mxu0 0.0
    %1053 = vmatpush1.msra.mxu0 0.0
    %1054 = vmatprep.subr.mxu0 0.0
    %1055 = vmatpush1.msra.mxu0 0.0
    %1056 = vmatprep.subr.mxu0 0.0
    %1057 = vmatpush1.msra.mxu0 0.0
    %1058 = vmatprep.subr.mxu0 0.0
    %1059 = vmatpush1.msra.mxu0 0.0
    %1060 = vmatprep.subr.mxu0 0.0
    %1061 = vmatpush1.msra.mxu0 0.0
    %1062 = vmatprep.subr.mxu0 0.0
    %1063 = vmatpush1.msra.mxu0 0.0
    %1064 = vmatprep.subr.mxu0 0.0
    %1065 = vmatpush1.msra.mxu0 0.0
    %1066 = vmatprep.subr.mxu0 0.0
    %1067 = vmatpush1.msra.mxu0 0.0
    %1068 = vmatprep.subr.mxu0 0.0
    %1069 = vmatpush1.msra.mxu0 0.0
    %1070 = vmatprep.subr.mxu0 0.0
    %1071 = vmatpush1.msra.mxu0 0.0
    %1072 = vmatprep.subr.mxu0 0.0
    %1073 = vmatpush1.msra.mxu0 0.0
    %1074 = vmatprep.subr.mxu0 0.0
    %1075 = vmatpush1.msra.mxu0 0.0
    %1076 = vmatprep.subr.mxu0 0.0
    %1077 = vmatpush1.msra.mxu0 0.0
    %1078 = vmatprep.subr.mxu0 0.0
    %1079 = vmatpush1.msra.mxu0 0.0
    %1080 = vmatprep.subr.mxu0 0.0
    %1081 = vmatpush1.msra.mxu0 0.0
    %1082 = vmatprep.subr.mxu0 0.0
    %1083 = vmatpush1.msra.mxu0 0.0
    %1084 = vmatprep.mubr.f32.mxu0 0.0
    %1085 = vmatmul.mubr.f32.gmra.mrb[0].mxu0 %v1018
    %v1086 = vpop.f32.mrb[0].mxu0
    %v1087 = vadd.f32 0.0, %v1086
    %v1088 = vpop.f32.mrb[0].mxu0
    %1089 = vdwg.mxu0
    %1091 = vrot.lane.b32.xlu0 %v1087, 96
    %v1092 = vpop.permute.xlu0 %1091
    %vm1094 = vcmask 1048320
    %1095 = vst.msk [vmem:[#allocation2] sm:$0xff] %vm1094, %v1092
    %v1097 = vsel %vm411, %v332, 0
    %v1100 = vsel %vm411, %v334, 0
    %1102 = vmatprep.subr.mxu0 0.0
    %1103 = vmatpush1.xpose.msra.mxu0 %v1100
    %1104 = vmatprep.subr.mxu0 0.0
    %1105 = vmatpush1.xpose.msra.mxu0 0.0
    %1106 = vmatprep.subr.mxu0 0.0
    %1107 = vmatpush1.xpose.msra.mxu0 0.0
    %1108 = vmatprep.subr.mxu0 0.0
    %1109 = vmatpush1.xpose.msra.mxu0 0.0
    %1110 = vmatprep.subr.mxu0 0.0
    %1111 = vmatpush1.xpose.msra.mxu0 0.0
    %1112 = vmatprep.subr.mxu0 0.0
    %1113 = vmatpush1.xpose.msra.mxu0 0.0
    %1114 = vmatprep.subr.mxu0 0.0
    %1115 = vmatpush1.xpose.msra.mxu0 0.0
    %1116 = vmatprep.subr.mxu0 0.0
    %1117 = vmatpush1.xpose.msra.mxu0 0.0
    %1118 = vmatprep.subr.mxu0 0.0
    %1119 = vmatpush1.xpose.msra.mxu0 0.0
    %1120 = vmatprep.subr.mxu0 0.0
    %1121 = vmatpush1.xpose.msra.mxu0 0.0
    %1122 = vmatprep.subr.mxu0 0.0
    %1123 = vmatpush1.xpose.msra.mxu0 0.0
    %1124 = vmatprep.subr.mxu0 0.0
    %1125 = vmatpush1.xpose.msra.mxu0 0.0
    %1126 = vmatprep.subr.mxu0 0.0
    %1127 = vmatpush1.xpose.msra.mxu0 0.0
    %1128 = vmatprep.subr.mxu0 0.0
    %1129 = vmatpush1.xpose.msra.mxu0 0.0
    %1130 = vmatprep.subr.mxu0 0.0
    %1131 = vmatpush1.xpose.msra.mxu0 0.0
    %1132 = vmatprep.subr.mxu0 0.0
    %1133 = vmatpush1.xpose.msra.mxu0 0.0
    %1134 = vmatprep.subr.mxu0 0.0
    %1135 = vmatpush1.xpose.msra.mxu0 0.0
    %1136 = vmatprep.subr.mxu0 0.0
    %1137 = vmatpush1.xpose.msra.mxu0 0.0
    %1138 = vmatprep.subr.mxu0 0.0
    %1139 = vmatpush1.xpose.msra.mxu0 0.0
    %1140 = vmatprep.subr.mxu0 0.0
    %1141 = vmatpush1.xpose.msra.mxu0 0.0
    %1142 = vmatprep.subr.mxu0 0.0
    %1143 = vmatpush1.xpose.msra.mxu0 0.0
    %1144 = vmatprep.subr.mxu0 0.0
    %1145 = vmatpush1.xpose.msra.mxu0 0.0
    %1146 = vmatprep.subr.mxu0 0.0
    %1147 = vmatpush1.xpose.msra.mxu0 0.0
    %1148 = vmatprep.subr.mxu0 0.0
    %1149 = vmatpush1.xpose.msra.mxu0 0.0
    %1150 = vmatprep.subr.mxu0 0.0
    %1151 = vmatpush1.xpose.msra.mxu0 0.0
    %1152 = vmatprep.subr.mxu0 0.0
    %1153 = vmatpush1.xpose.msra.mxu0 0.0
    %1154 = vmatprep.subr.mxu0 0.0
    %1155 = vmatpush1.xpose.msra.mxu0 0.0
    %1156 = vmatprep.subr.mxu0 0.0
    %1157 = vmatpush1.xpose.msra.mxu0 0.0
    %1158 = vmatprep.subr.mxu0 0.0
    %1159 = vmatpush1.xpose.msra.mxu0 0.0
    %1160 = vmatprep.subr.mxu0 0.0
    %1161 = vmatpush1.xpose.msra.mxu0 0.0
    %1162 = vmatprep.subr.mxu0 0.0
    %1163 = vmatpush1.xpose.msra.mxu0 0.0
    %1164 = vmatprep.subr.mxu0 0.0
    %1165 = vmatpush1.xpose.msra.mxu0 0.0
    %1166 = vmatprep.mubr.f32.mxu0 0.0
    %1167 = vmatmul.mubr.f32.gmra.mrb[0].mxu0 %v1097
    %v1168 = vpop.f32.mrb[0].mxu0
    %v1169 = vadd.f32 0.0, %v1168
    %v1170 = vpop.f32.mrb[0].mxu0
    %1171 = vdwg.mxu0
    %v1172 = vmul.f32 %v1169, 0.17677669
    %v1173 = vadd.f32 %v1172, %v169
    %v1174 = vsel %vm490, %v1173, -inf
    %1175 = vmax.xlane.f32.xlu0 %v1174
    %v1176 = vpop.xlane.xlu0 %1175
    %v1177 = vsub.f32 %v1173, %v1176
    %v1178 = vmul.f32 %v1177, 1.442695
    %v1179 = vpow.pop %v1178
    %v1180 = vsel %vm490, %v1179, 0.0
    %1181 = vadd.xlane.f32.xlu0 %v1180
    %v1182 = vpop.xlane.xlu0 %1181
    %v1183 = vrcp.pop %v1182
    %v1184 = vmul.f32 %v1179, %v1183
    %v1186 = vsel %vm490, %v1184, 0
    %1188 = vmatprep.subr.mxu0 0.0
    %1189 = vmatpush1.msra.mxu0 %v408
    %1190 = vmatprep.subr.mxu0 0.0
    %1191 = vmatpush1.msra.mxu0 0.0
    %1192 = vmatprep.subr.mxu0 0.0
    %1193 = vmatpush1.msra.mxu0 0.0
    %1194 = vmatprep.subr.mxu0 0.0
    %1195 = vmatpush1.msra.mxu0 0.0
    %1196 = vmatprep.subr.mxu0 0.0
    %1197 = vmatpush1.msra.mxu0 0.0
    %1198 = vmatprep.subr.mxu0 0.0
    %1199 = vmatpush1.msra.mxu0 0.0
    %1200 = vmatprep.subr.mxu0 0.0
    %1201 = vmatpush1.msra.mxu0 0.0
    %1202 = vmatprep.subr.mxu0 0.0
    %1203 = vmatpush1.msra.mxu0 0.0
    %1204 = vmatprep.subr.mxu0 0.0
    %1205 = vmatpush1.msra.mxu0 0.0
    %1206 = vmatprep.subr.mxu0 0.0
    %1207 = vmatpush1.msra.mxu0 0.0
    %1208 = vmatprep.subr.mxu0 0.0
    %1209 = vmatpush1.msra.mxu0 0.0
    %1210 = vmatprep.subr.mxu0 0.0
    %1211 = vmatpush1.msra.mxu0 0.0
    %1212 = vmatprep.subr.mxu0 0.0
    %1213 = vmatpush1.msra.mxu0 0.0
    %1214 = vmatprep.subr.mxu0 0.0
    %1215 = vmatpush1.msra.mxu0 0.0
    %1216 = vmatprep.subr.mxu0 0.0
    %1217 = vmatpush1.msra.mxu0 0.0
    %1218 = vmatprep.subr.mxu0 0.0
    %1219 = vmatpush1.msra.mxu0 0.0
    %1220 = vmatprep.subr.mxu0 0.0
    %1221 = vmatpush1.msra.mxu0 0.0
    %1222 = vmatprep.subr.mxu0 0.0
    %1223 = vmatpush1.msra.mxu0 0.0
    %1224 = vmatprep.subr.mxu0 0.0
    %1225 = vmatpush1.msra.mxu0 0.0
    %1226 = vmatprep.subr.mxu0 0.0
    %1227 = vmatpush1.msra.mxu0 0.0
    %1228 = vmatprep.subr.mxu0 0.0
    %1229 = vmatpush1.msra.mxu0 0.0
    %1230 = vmatprep.subr.mxu0 0.0
    %1231 = vmatpush1.msra.mxu0 0.0
    %1232 = vmatprep.subr.mxu0 0.0
    %1233 = vmatpush1.msra.mxu0 0.0
    %1234 = vmatprep.subr.mxu0 0.0
    %1235 = vmatpush1.msra.mxu0 0.0
    %1236 = vmatprep.subr.mxu0 0.0
    %1237 = vmatpush1.msra.mxu0 0.0
    %1238 = vmatprep.subr.mxu0 0.0
    %1239 = vmatpush1.msra.mxu0 0.0
    %1240 = vmatprep.subr.mxu0 0.0
    %1241 = vmatpush1.msra.mxu0 0.0
    %1242 = vmatprep.subr.mxu0 0.0
    %1243 = vmatpush1.msra.mxu0 0.0
    %1244 = vmatprep.subr.mxu0 0.0
    %1245 = vmatpush1.msra.mxu0 0.0
    %1246 = vmatprep.subr.mxu0 0.0
    %1247 = vmatpush1.msra.mxu0 0.0
    %1248 = vmatprep.subr.mxu0 0.0
    %1249 = vmatpush1.msra.mxu0 0.0
    %1250 = vmatprep.subr.mxu0 0.0
    %1251 = vmatpush1.msra.mxu0 0.0
    %1252 = vmatprep.mubr.f32.mxu0 0.0
    %1253 = vmatmul.mubr.f32.gmra.mrb[0].mxu0 %v1186
    %v1254 = vpop.f32.mrb[0].mxu0
    %v1255 = vadd.f32 0.0, %v1254
    %v1256 = vpop.f32.mrb[0].mxu0
    %1257 = vdwg.mxu0
    %1258 = vst.msk [vmem:[#allocation2 + $0x8] sm:$0xff] %vm411, %v1255
    %1259 = vrot.lane.b32.xlu0 %v332, 96
    %v1260 = vpop.permute.xlu0 %1259
    %1261 = vrot.lane.b32.xlu0 %v334, 96
    %v1262 = vpop.permute.xlu0 %1261
    %v1263 = vsel %vm411, %v1260, 0
    %v1265 = vsel %vm411, %v1262, 0
    %1267 = vmatprep.subr.mxu0 0.0
    %1268 = vmatpush1.xpose.msra.mxu0 %v1265
    %1269 = vmatprep.subr.mxu0 0.0
    %1270 = vmatpush1.xpose.msra.mxu0 0.0
    %1271 = vmatprep.subr.mxu0 0.0
    %1272 = vmatpush1.xpose.msra.mxu0 0.0
    %1273 = vmatprep.subr.mxu0 0.0
    %1274 = vmatpush1.xpose.msra.mxu0 0.0
    %1275 = vmatprep.subr.mxu0 0.0
    %1276 = vmatpush1.xpose.msra.mxu0 0.0
    %1277 = vmatprep.subr.mxu0 0.0
    %1278 = vmatpush1.xpose.msra.mxu0 0.0
    %1279 = vmatprep.subr.mxu0 0.0
    %1280 = vmatpush1.xpose.msra.mxu0 0.0
    %1281 = vmatprep.subr.mxu0 0.0
    %1282 = vmatpush1.xpose.msra.mxu0 0.0
    %1283 = vmatprep.subr.mxu0 0.0
    %1284 = vmatpush1.xpose.msra.mxu0 0.0
    %1285 = vmatprep.subr.mxu0 0.0
    %1286 = vmatpush1.xpose.msra.mxu0 0.0
    %1287 = vmatprep.subr.mxu0 0.0
    %1288 = vmatpush1.xpose.msra.mxu0 0.0
    %1289 = vmatprep.subr.mxu0 0.0
    %1290 = vmatpush1.xpose.msra.mxu0 0.0
    %1291 = vmatprep.subr.mxu0 0.0
    %1292 = vmatpush1.xpose.msra.mxu0 0.0
    %1293 = vmatprep.subr.mxu0 0.0
    %1294 = vmatpush1.xpose.msra.mxu0 0.0
    %1295 = vmatprep.subr.mxu0 0.0
    %1296 = vmatpush1.xpose.msra.mxu0 0.0
    %1297 = vmatprep.subr.mxu0 0.0
    %1298 = vmatpush1.xpose.msra.mxu0 0.0
    %1299 = vmatprep.subr.mxu0 0.0
    %1300 = vmatpush1.xpose.msra.mxu0 0.0
    %1301 = vmatprep.subr.mxu0 0.0
    %1302 = vmatpush1.xpose.msra.mxu0 0.0
    %1303 = vmatprep.subr.mxu0 0.0
    %1304 = vmatpush1.xpose.msra.mxu0 0.0
    %1305 = vmatprep.subr.mxu0 0.0
    %1306 = vmatpush1.xpose.msra.mxu0 0.0
    %1307 = vmatprep.subr.mxu0 0.0
    %1308 = vmatpush1.xpose.msra.mxu0 0.0
    %1309 = vmatprep.subr.mxu0 0.0
    %1310 = vmatpush1.xpose.msra.mxu0 0.0
    %1311 = vmatprep.subr.mxu0 0.0
    %1312 = vmatpush1.xpose.msra.mxu0 0.0
    %1313 = vmatprep.subr.mxu0 0.0
    %1314 = vmatpush1.xpose.msra.mxu0 0.0
    %1315 = vmatprep.subr.mxu0 0.0
    %1316 = vmatpush1.xpose.msra.mxu0 0.0
    %1317 = vmatprep.subr.mxu0 0.0
    %1318 = vmatpush1.xpose.msra.mxu0 0.0
    %1319 = vmatprep.subr.mxu0 0.0
    %1320 = vmatpush1.xpose.msra.mxu0 0.0
    %1321 = vmatprep.subr.mxu0 0.0
    %1322 = vmatpush1.xpose.msra.mxu0 0.0
    %1323 = vmatprep.subr.mxu0 0.0
    %1324 = vmatpush1.xpose.msra.mxu0 0.0
    %1325 = vmatprep.subr.mxu0 0.0
    %1326 = vmatpush1.xpose.msra.mxu0 0.0
    %1327 = vmatprep.subr.mxu0 0.0
    %1328 = vmatpush1.xpose.msra.mxu0 0.0
    %1329 = vmatprep.subr.mxu0 0.0
    %1330 = vmatpush1.xpose.msra.mxu0 0.0
    %1331 = vmatprep.mubr.f32.mxu0 0.0
    %1332 = vmatmul.mubr.f32.gmra.mrb[0].mxu0 %v1263
    %v1333 = vpop.f32.mrb[0].mxu0
    %v1334 = vadd.f32 0.0, %v1333
    %v1335 = vpop.f32.mrb[0].mxu0
    %1336 = vdwg.mxu0
    %v1337 = vmul.f32 %v1334, 0.17677669
    %v1338 = vadd.f32 %v1337, %v169
    %v1339 = vsel %vm490, %v1338, -inf
    %1340 = vmax.xlane.f32.xlu0 %v1339
    %v1341 = vpop.xlane.xlu0 %1340
    %v1342 = vsub.f32 %v1338, %v1341
    %v1343 = vmul.f32 %v1342, 1.442695
    %v1344 = vpow.pop %v1343
    %v1345 = vsel %vm490, %v1344, 0.0
    %1346 = vadd.xlane.f32.xlu0 %v1345
    %v1347 = vpop.xlane.xlu0 %1346
    %v1348 = vrcp.pop %v1347
    %v1349 = vmul.f32 %v1344, %v1348
    %1351 = vrot.lane.b32.xlu0 %v408, 96
    %v1352 = vpop.permute.xlu0 %1351
    %v1355 = vsel %vm490, %v1349, 0
    %1357 = vmatprep.subr.mxu0 0.0
    %1358 = vmatpush1.msra.mxu0 %v1352
    %1359 = vmatprep.subr.mxu0 0.0
    %1360 = vmatpush1.msra.mxu0 0.0
    %1361 = vmatprep.subr.mxu0 0.0
    %1362 = vmatpush1.msra.mxu0 0.0
    %1363 = vmatprep.subr.mxu0 0.0
    %1364 = vmatpush1.msra.mxu0 0.0
    %1365 = vmatprep.subr.mxu0 0.0
    %1366 = vmatpush1.msra.mxu0 0.0
    %1367 = vmatprep.subr.mxu0 0.0
    %1368 = vmatpush1.msra.mxu0 0.0
    %1369 = vmatprep.subr.mxu0 0.0
    %1370 = vmatpush1.msra.mxu0 0.0
    %1371 = vmatprep.subr.mxu0 0.0
    %1372 = vmatpush1.msra.mxu0 0.0
    %1373 = vmatprep.subr.mxu0 0.0
    %1374 = vmatpush1.msra.mxu0 0.0
    %1375 = vmatprep.subr.mxu0 0.0
    %1376 = vmatpush1.msra.mxu0 0.0
    %1377 = vmatprep.subr.mxu0 0.0
    %1378 = vmatpush1.msra.mxu0 0.0
    %1379 = vmatprep.subr.mxu0 0.0
    %1380 = vmatpush1.msra.mxu0 0.0
    %1381 = vmatprep.subr.mxu0 0.0
    %1382 = vmatpush1.msra.mxu0 0.0
    %1383 = vmatprep.subr.mxu0 0.0
    %1384 = vmatpush1.msra.mxu0 0.0
    %1385 = vmatprep.subr.mxu0 0.0
    %1386 = vmatpush1.msra.mxu0 0.0
    %1387 = vmatprep.subr.mxu0 0.0
    %1388 = vmatpush1.msra.mxu0 0.0
    %1389 = vmatprep.subr.mxu0 0.0
    %1390 = vmatpush1.msra.mxu0 0.0
    %1391 = vmatprep.subr.mxu0 0.0
    %1392 = vmatpush1.msra.mxu0 0.0
    %1393 = vmatprep.subr.mxu0 0.0
    %1394 = vmatpush1.msra.mxu0 0.0
    %1395 = vmatprep.subr.mxu0 0.0
    %1396 = vmatpush1.msra.mxu0 0.0
    %1397 = vmatprep.subr.mxu0 0.0
    %1398 = vmatpush1.msra.mxu0 0.0
    %1399 = vmatprep.subr.mxu0 0.0
    %1400 = vmatpush1.msra.mxu0 0.0
    %1401 = vmatprep.subr.mxu0 0.0
    %1402 = vmatpush1.msra.mxu0 0.0
    %1403 = vmatprep.subr.mxu0 0.0
    %1404 = vmatpush1.msra.mxu0 0.0
    %1405 = vmatprep.subr.mxu0 0.0
    %1406 = vmatpush1.msra.mxu0 0.0
    %1407 = vmatprep.subr.mxu0 0.0
    %1408 = vmatpush1.msra.mxu0 0.0
    %1409 = vmatprep.subr.mxu0 0.0
    %1410 = vmatpush1.msra.mxu0 0.0
    %1411 = vmatprep.subr.mxu0 0.0
    %1412 = vmatpush1.msra.mxu0 0.0
    %1413 = vmatprep.subr.mxu0 0.0
    %1414 = vmatpush1.msra.mxu0 0.0
    %1415 = vmatprep.subr.mxu0 0.0
    %1416 = vmatpush1.msra.mxu0 0.0
    %1417 = vmatprep.subr.mxu0 0.0
    %1418 = vmatpush1.msra.mxu0 0.0
    %1419 = vmatprep.subr.mxu0 0.0
    %1420 = vmatpush1.msra.mxu0 0.0
    %1421 = vmatprep.mubr.f32.mxu0 0.0
    %1422 = vmatmul.mubr.f32.gmra.mrb[0].mxu0 %v1355
    %v1423 = vpop.f32.mrb[0].mxu0
    %v1424 = vadd.f32 0.0, %v1423
    %v1425 = vpop.f32.mrb[0].mxu0
    %1426 = vdwg.mxu0
    %1428 = vrot.lane.b32.xlu0 %v1424, 32
    %v1429 = vpop.permute.xlu0 %1428
    %1431 = vst.msk [vmem:[#allocation2 + $0x8] sm:$0xff] %vm748, %v1429
    %1432 = vrot.lane.b32.xlu0 %v332, 64
    %v1433 = vpop.permute.xlu0 %1432
    %1434 = vrot.lane.b32.xlu0 %v334, 64
    %v1435 = vpop.permute.xlu0 %1434
    %v1436 = vsel %vm411, %v1433, 0
    %v1438 = vsel %vm411, %v1435, 0
    %1440 = vmatprep.subr.mxu0 0.0
    %1441 = vmatpush1.xpose.msra.mxu0 %v1438
    %1442 = vmatprep.subr.mxu0 0.0
    %1443 = vmatpush1.xpose.msra.mxu0 0.0
    %1444 = vmatprep.subr.mxu0 0.0
    %1445 = vmatpush1.xpose.msra.mxu0 0.0
    %1446 = vmatprep.subr.mxu0 0.0
    %1447 = vmatpush1.xpose.msra.mxu0 0.0
    %1448 = vmatprep.subr.mxu0 0.0
    %1449 = vmatpush1.xpose.msra.mxu0 0.0
    %1450 = vmatprep.subr.mxu0 0.0
    %1451 = vmatpush1.xpose.msra.mxu0 0.0
    %1452 = vmatprep.subr.mxu0 0.0
    %1453 = vmatpush1.xpose.msra.mxu0 0.0
    %1454 = vmatprep.subr.mxu0 0.0
    %1455 = vmatpush1.xpose.msra.mxu0 0.0
    %1456 = vmatprep.subr.mxu0 0.0
    %1457 = vmatpush1.xpose.msra.mxu0 0.0
    %1458 = vmatprep.subr.mxu0 0.0
    %1459 = vmatpush1.xpose.msra.mxu0 0.0
    %1460 = vmatprep.subr.mxu0 0.0
    %1461 = vmatpush1.xpose.msra.mxu0 0.0
    %1462 = vmatprep.subr.mxu0 0.0
    %1463 = vmatpush1.xpose.msra.mxu0 0.0
    %1464 = vmatprep.subr.mxu0 0.0
    %1465 = vmatpush1.xpose.msra.mxu0 0.0
    %1466 = vmatprep.subr.mxu0 0.0
    %1467 = vmatpush1.xpose.msra.mxu0 0.0
    %1468 = vmatprep.subr.mxu0 0.0
    %1469 = vmatpush1.xpose.msra.mxu0 0.0
    %1470 = vmatprep.subr.mxu0 0.0
    %1471 = vmatpush1.xpose.msra.mxu0 0.0
    %1472 = vmatprep.subr.mxu0 0.0
    %1473 = vmatpush1.xpose.msra.mxu0 0.0
    %1474 = vmatprep.subr.mxu0 0.0
    %1475 = vmatpush1.xpose.msra.mxu0 0.0
    %1476 = vmatprep.subr.mxu0 0.0
    %1477 = vmatpush1.xpose.msra.mxu0 0.0
    %1478 = vmatprep.subr.mxu0 0.0
    %1479 = vmatpush1.xpose.msra.mxu0 0.0
    %1480 = vmatprep.subr.mxu0 0.0
    %1481 = vmatpush1.xpose.msra.mxu0 0.0
    %1482 = vmatprep.subr.mxu0 0.0
    %1483 = vmatpush1.xpose.msra.mxu0 0.0
    %1484 = vmatprep.subr.mxu0 0.0
    %1485 = vmatpush1.xpose.msra.mxu0 0.0
    %1486 = vmatprep.subr.mxu0 0.0
    %1487 = vmatpush1.xpose.msra.mxu0 0.0
    %1488 = vmatprep.subr.mxu0 0.0
    %1489 = vmatpush1.xpose.msra.mxu0 0.0
    %1490 = vmatprep.subr.mxu0 0.0
    %1491 = vmatpush1.xpose.msra.mxu0 0.0
    %1492 = vmatprep.subr.mxu0 0.0
    %1493 = vmatpush1.xpose.msra.mxu0 0.0
    %1494 = vmatprep.subr.mxu0 0.0
    %1495 = vmatpush1.xpose.msra.mxu0 0.0
    %1496 = vmatprep.subr.mxu0 0.0
    %1497 = vmatpush1.xpose.msra.mxu0 0.0
    %1498 = vmatprep.subr.mxu0 0.0
    %1499 = vmatpush1.xpose.msra.mxu0 0.0
    %1500 = vmatprep.subr.mxu0 0.0
    %1501 = vmatpush1.xpose.msra.mxu0 0.0
    %1502 = vmatprep.subr.mxu0 0.0
    %1503 = vmatpush1.xpose.msra.mxu0 0.0
    %1504 = vmatprep.mubr.f32.mxu0 0.0
    %1505 = vmatmul.mubr.f32.gmra.mrb[0].mxu0 %v1436
    %v1506 = vpop.f32.mrb[0].mxu0
    %v1507 = vadd.f32 0.0, %v1506
    %v1508 = vpop.f32.mrb[0].mxu0
    %1509 = vdwg.mxu0
    %v1510 = vmul.f32 %v1507, 0.17677669
    %v1511 = vadd.f32 %v1510, %v169
    %v1512 = vsel %vm490, %v1511, -inf
    %1513 = vmax.xlane.f32.xlu0 %v1512
    %v1514 = vpop.xlane.xlu0 %1513
    %v1515 = vsub.f32 %v1511, %v1514
    %v1516 = vmul.f32 %v1515, 1.442695
    %v1517 = vpow.pop %v1516
    %v1518 = vsel %vm490, %v1517, 0.0
    %1519 = vadd.xlane.f32.xlu0 %v1518
    %v1520 = vpop.xlane.xlu0 %1519
    %v1521 = vrcp.pop %v1520
    %v1522 = vmul.f32 %v1517, %v1521
    %1523 = vrot.lane.b32.xlu0 %v408, 64
    %v1524 = vpop.permute.xlu0 %1523
    %v1527 = vsel %vm490, %v1522, 0
    %1529 = vmatprep.subr.mxu0 0.0
    %1530 = vmatpush1.msra.mxu0 %v1524
    %1531 = vmatprep.subr.mxu0 0.0
    %1532 = vmatpush1.msra.mxu0 0.0
    %1533 = vmatprep.subr.mxu0 0.0
    %1534 = vmatpush1.msra.mxu0 0.0
    %1535 = vmatprep.subr.mxu0 0.0
    %1536 = vmatpush1.msra.mxu0 0.0
    %1537 = vmatprep.subr.mxu0 0.0
    %1538 = vmatpush1.msra.mxu0 0.0
    %1539 = vmatprep.subr.mxu0 0.0
    %1540 = vmatpush1.msra.mxu0 0.0
    %1541 = vmatprep.subr.mxu0 0.0
    %1542 = vmatpush1.msra.mxu0 0.0
    %1543 = vmatprep.subr.mxu0 0.0
    %1544 = vmatpush1.msra.mxu0 0.0
    %1545 = vmatprep.subr.mxu0 0.0
    %1546 = vmatpush1.msra.mxu0 0.0
    %1547 = vmatprep.subr.mxu0 0.0
    %1548 = vmatpush1.msra.mxu0 0.0
    %1549 = vmatprep.subr.mxu0 0.0
    %1550 = vmatpush1.msra.mxu0 0.0
    %1551 = vmatprep.subr.mxu0 0.0
    %1552 = vmatpush1.msra.mxu0 0.0
    %1553 = vmatprep.subr.mxu0 0.0
    %1554 = vmatpush1.msra.mxu0 0.0
    %1555 = vmatprep.subr.mxu0 0.0
    %1556 = vmatpush1.msra.mxu0 0.0
    %1557 = vmatprep.subr.mxu0 0.0
    %1558 = vmatpush1.msra.mxu0 0.0
    %1559 = vmatprep.subr.mxu0 0.0
    %1560 = vmatpush1.msra.mxu0 0.0
    %1561 = vmatprep.subr.mxu0 0.0
    %1562 = vmatpush1.msra.mxu0 0.0
    %1563 = vmatprep.subr.mxu0 0.0
    %1564 = vmatpush1.msra.mxu0 0.0
    %1565 = vmatprep.subr.mxu0 0.0
    %1566 = vmatpush1.msra.mxu0 0.0
    %1567 = vmatprep.subr.mxu0 0.0
    %1568 = vmatpush1.msra.mxu0 0.0
    %1569 = vmatprep.subr.mxu0 0.0
    %1570 = vmatpush1.msra.mxu0 0.0
    %1571 = vmatprep.subr.mxu0 0.0
    %1572 = vmatpush1.msra.mxu0 0.0
    %1573 = vmatprep.subr.mxu0 0.0
    %1574 = vmatpush1.msra.mxu0 0.0
    %1575 = vmatprep.subr.mxu0 0.0
    %1576 = vmatpush1.msra.mxu0 0.0
    %1577 = vmatprep.subr.mxu0 0.0
    %1578 = vmatpush1.msra.mxu0 0.0
    %1579 = vmatprep.subr.mxu0 0.0
    %1580 = vmatpush1.msra.mxu0 0.0
    %1581 = vmatprep.subr.mxu0 0.0
    %1582 = vmatpush1.msra.mxu0 0.0
    %1583 = vmatprep.subr.mxu0 0.0
    %1584 = vmatpush1.msra.mxu0 0.0
    %1585 = vmatprep.subr.mxu0 0.0
    %1586 = vmatpush1.msra.mxu0 0.0
    %1587 = vmatprep.subr.mxu0 0.0
    %1588 = vmatpush1.msra.mxu0 0.0
    %1589 = vmatprep.subr.mxu0 0.0
    %1590 = vmatpush1.msra.mxu0 0.0
    %1591 = vmatprep.subr.mxu0 0.0
    %1592 = vmatpush1.msra.mxu0 0.0
    %1593 = vmatprep.mubr.f32.mxu0 0.0
    %1594 = vmatmul.mubr.f32.gmra.mrb[0].mxu0 %v1527
    %v1595 = vpop.f32.mrb[0].mxu0
    %v1596 = vadd.f32 0.0, %v1595
    %v1597 = vpop.f32.mrb[0].mxu0
    %1598 = vdwg.mxu0
    %1600 = vrot.lane.b32.xlu0 %v1596, 64
    %v1601 = vpop.permute.xlu0 %1600
    %1603 = vst.msk [vmem:[#allocation2 + $0x8] sm:$0xff] %vm921, %v1601
    %1604 = vrot.lane.b32.xlu0 %v332, 32
    %v1605 = vpop.permute.xlu0 %1604
    %1606 = vrot.lane.b32.xlu0 %v334, 32
    %v1607 = vpop.permute.xlu0 %1606
    %v1608 = vsel %vm411, %v1605, 0
    %v1610 = vsel %vm411, %v1607, 0
    %1612 = vmatprep.subr.mxu0 0.0
    %1613 = vmatpush1.xpose.msra.mxu0 %v1610
    %1614 = vmatprep.subr.mxu0 0.0
    %1615 = vmatpush1.xpose.msra.mxu0 0.0
    %1616 = vmatprep.subr.mxu0 0.0
    %1617 = vmatpush1.xpose.msra.mxu0 0.0
    %1618 = vmatprep.subr.mxu0 0.0
    %1619 = vmatpush1.xpose.msra.mxu0 0.0
    %1620 = vmatprep.subr.mxu0 0.0
    %1621 = vmatpush1.xpose.msra.mxu0 0.0
    %1622 = vmatprep.subr.mxu0 0.0
    %1623 = vmatpush1.xpose.msra.mxu0 0.0
    %1624 = vmatprep.subr.mxu0 0.0
    %1625 = vmatpush1.xpose.msra.mxu0 0.0
    %1626 = vmatprep.subr.mxu0 0.0
    %1627 = vmatpush1.xpose.msra.mxu0 0.0
    %1628 = vmatprep.subr.mxu0 0.0
    %1629 = vmatpush1.xpose.msra.mxu0 0.0
    %1630 = vmatprep.subr.mxu0 0.0
    %1631 = vmatpush1.xpose.msra.mxu0 0.0
    %1632 = vmatprep.subr.mxu0 0.0
    %1633 = vmatpush1.xpose.msra.mxu0 0.0
    %1634 = vmatprep.subr.mxu0 0.0
    %1635 = vmatpush1.xpose.msra.mxu0 0.0
    %1636 = vmatprep.subr.mxu0 0.0
    %1637 = vmatpush1.xpose.msra.mxu0 0.0
    %1638 = vmatprep.subr.mxu0 0.0
    %1639 = vmatpush1.xpose.msra.mxu0 0.0
    %1640 = vmatprep.subr.mxu0 0.0
    %1641 = vmatpush1.xpose.msra.mxu0 0.0
    %1642 = vmatprep.subr.mxu0 0.0
    %1643 = vmatpush1.xpose.msra.mxu0 0.0
    %1644 = vmatprep.subr.mxu0 0.0
    %1645 = vmatpush1.xpose.msra.mxu0 0.0
    %1646 = vmatprep.subr.mxu0 0.0
    %1647 = vmatpush1.xpose.msra.mxu0 0.0
    %1648 = vmatprep.subr.mxu0 0.0
    %1649 = vmatpush1.xpose.msra.mxu0 0.0
    %1650 = vmatprep.subr.mxu0 0.0
    %1651 = vmatpush1.xpose.msra.mxu0 0.0
    %1652 = vmatprep.subr.mxu0 0.0
    %1653 = vmatpush1.xpose.msra.mxu0 0.0
    %1654 = vmatprep.subr.mxu0 0.0
    %1655 = vmatpush1.xpose.msra.mxu0 0.0
    %1656 = vmatprep.subr.mxu0 0.0
    %1657 = vmatpush1.xpose.msra.mxu0 0.0
    %1658 = vmatprep.subr.mxu0 0.0
    %1659 = vmatpush1.xpose.msra.mxu0 0.0
    %1660 = vmatprep.subr.mxu0 0.0
    %1661 = vmatpush1.xpose.msra.mxu0 0.0
    %1662 = vmatprep.subr.mxu0 0.0
    %1663 = vmatpush1.xpose.msra.mxu0 0.0
    %1664 = vmatprep.subr.mxu0 0.0
    %1665 = vmatpush1.xpose.msra.mxu0 0.0
    %1666 = vmatprep.subr.mxu0 0.0
    %1667 = vmatpush1.xpose.msra.mxu0 0.0
    %1668 = vmatprep.subr.mxu0 0.0
    %1669 = vmatpush1.xpose.msra.mxu0 0.0
    %1670 = vmatprep.subr.mxu0 0.0
    %1671 = vmatpush1.xpose.msra.mxu0 0.0
    %1672 = vmatprep.subr.mxu0 0.0
    %1673 = vmatpush1.xpose.msra.mxu0 0.0
    %1674 = vmatprep.subr.mxu0 0.0
    %1675 = vmatpush1.xpose.msra.mxu0 0.0
    %1676 = vmatprep.mubr.f32.mxu0 0.0
    %1677 = vmatmul.mubr.f32.gmra.mrb[0].mxu0 %v1608
    %v1678 = vpop.f32.mrb[0].mxu0
    %v1679 = vadd.f32 0.0, %v1678
    %v1680 = vpop.f32.mrb[0].mxu0
    %1681 = vdwg.mxu0
    %v1682 = vmul.f32 %v1679, 0.17677669
    %v1683 = vadd.f32 %v1682, %v169
    %v1684 = vsel %vm490, %v1683, -inf
    %1685 = vmax.xlane.f32.xlu0 %v1684
    %v1686 = vpop.xlane.xlu0 %1685
    %v1687 = vsub.f32 %v1683, %v1686
    %v1688 = vmul.f32 %v1687, 1.442695
    %v1689 = vpow.pop %v1688
    %v1690 = vsel %vm490, %v1689, 0.0
    %1691 = vadd.xlane.f32.xlu0 %v1690
    %v1692 = vpop.xlane.xlu0 %1691
    %v1693 = vrcp.pop %v1692
    %v1694 = vmul.f32 %v1689, %v1693
    %1695 = vrot.lane.b32.xlu0 %v408, 32
    %v1696 = vpop.permute.xlu0 %1695
    %v1699 = vsel %vm490, %v1694, 0
    %1701 = vmatprep.subr.mxu0 0.0
    %1702 = vmatpush1.msra.mxu0 %v1696
    %1703 = vmatprep.subr.mxu0 0.0
    %1704 = vmatpush1.msra.mxu0 0.0
    %1705 = vmatprep.subr.mxu0 0.0
    %1706 = vmatpush1.msra.mxu0 0.0
    %1707 = vmatprep.subr.mxu0 0.0
    %1708 = vmatpush1.msra.mxu0 0.0
    %1709 = vmatprep.subr.mxu0 0.0
    %1710 = vmatpush1.msra.mxu0 0.0
    %1711 = vmatprep.subr.mxu0 0.0
    %1712 = vmatpush1.msra.mxu0 0.0
    %1713 = vmatprep.subr.mxu0 0.0
    %1714 = vmatpush1.msra.mxu0 0.0
    %1715 = vmatprep.subr.mxu0 0.0
    %1716 = vmatpush1.msra.mxu0 0.0
    %1717 = vmatprep.subr.mxu0 0.0
    %1718 = vmatpush1.msra.mxu0 0.0
    %1719 = vmatprep.subr.mxu0 0.0
    %1720 = vmatpush1.msra.mxu0 0.0
    %1721 = vmatprep.subr.mxu0 0.0
    %1722 = vmatpush1.msra.mxu0 0.0
    %1723 = vmatprep.subr.mxu0 0.0
    %1724 = vmatpush1.msra.mxu0 0.0
    %1725 = vmatprep.subr.mxu0 0.0
    %1726 = vmatpush1.msra.mxu0 0.0
    %1727 = vmatprep.subr.mxu0 0.0
    %1728 = vmatpush1.msra.mxu0 0.0
    %1729 = vmatprep.subr.mxu0 0.0
    %1730 = vmatpush1.msra.mxu0 0.0
    %1731 = vmatprep.subr.mxu0 0.0
    %1732 = vmatpush1.msra.mxu0 0.0
    %1733 = vmatprep.subr.mxu0 0.0
    %1734 = vmatpush1.msra.mxu0 0.0
    %1735 = vmatprep.subr.mxu0 0.0
    %1736 = vmatpush1.msra.mxu0 0.0
    %1737 = vmatprep.subr.mxu0 0.0
    %1738 = vmatpush1.msra.mxu0 0.0
    %1739 = vmatprep.subr.mxu0 0.0
    %1740 = vmatpush1.msra.mxu0 0.0
    %1741 = vmatprep.subr.mxu0 0.0
    %1742 = vmatpush1.msra.mxu0 0.0
    %1743 = vmatprep.subr.mxu0 0.0
    %1744 = vmatpush1.msra.mxu0 0.0
    %1745 = vmatprep.subr.mxu0 0.0
    %1746 = vmatpush1.msra.mxu0 0.0
    %1747 = vmatprep.subr.mxu0 0.0
    %1748 = vmatpush1.msra.mxu0 0.0
    %1749 = vmatprep.subr.mxu0 0.0
    %1750 = vmatpush1.msra.mxu0 0.0
    %1751 = vmatprep.subr.mxu0 0.0
    %1752 = vmatpush1.msra.mxu0 0.0
    %1753 = vmatprep.subr.mxu0 0.0
    %1754 = vmatpush1.msra.mxu0 0.0
    %1755 = vmatprep.subr.mxu0 0.0
    %1756 = vmatpush1.msra.mxu0 0.0
    %1757 = vmatprep.subr.mxu0 0.0
    %1758 = vmatpush1.msra.mxu0 0.0
    %1759 = vmatprep.subr.mxu0 0.0
    %1760 = vmatpush1.msra.mxu0 0.0
    %1761 = vmatprep.subr.mxu0 0.0
    %1762 = vmatpush1.msra.mxu0 0.0
    %1763 = vmatprep.subr.mxu0 0.0
    %1764 = vmatpush1.msra.mxu0 0.0
    %1765 = vmatprep.mubr.f32.mxu0 0.0
    %1766 = vmatmul.mubr.f32.gmra.mrb[0].mxu0 %v1699
    %v1767 = vpop.f32.mrb[0].mxu0
    %v1768 = vadd.f32 0.0, %v1767
    %v1769 = vpop.f32.mrb[0].mxu0
    %1770 = vdwg.mxu0
    %1772 = vrot.lane.b32.xlu0 %v1768, 96
    %v1773 = vpop.permute.xlu0 %1772
    %1775 = vst.msk [vmem:[#allocation2 + $0x8] sm:$0xff] %vm1094, %v1773
    %v1776 = vld [vmem:[#allocation2] sm:$0xff]
    %v1777 = vld [vmem:[#allocation2 + $0x8] sm:$0xff]
    %v1778 = vld [vmem:[#allocation9] sm:$0xff]
    %v1779 = vld [vmem:[#allocation9 + $0x8] sm:$0xff]
    %v1780 = vld [vmem:[#allocation9 + $0x10] sm:$0xff]
    %v1781 = vld [vmem:[#allocation9 + $0x18] sm:$0xff]
    %v1782 = vld [vmem:[#allocation9 + $0x20] sm:$0xff]
    %v1783 = vld [vmem:[#allocation9 + $0x28] sm:$0xff]
    %v1784 = vld [vmem:[#allocation9 + $0x30] sm:$0xff]
    %v1785 = vld [vmem:[#allocation9 + $0x38] sm:$0xff]
    %v1786 = vld [vmem:[#allocation9 + $0x40] sm:$0xff]
    %v1787 = vld [vmem:[#allocation9 + $0x48] sm:$0xff]
    %v1788 = vld [vmem:[#allocation9 + $0x50] sm:$0xff]
    %v1789 = vld [vmem:[#allocation9 + $0x58] sm:$0xff]
    %v1790 = vld [vmem:[#allocation9 + $0x60] sm:$0xff]
    %v1791 = vld [vmem:[#allocation9 + $0x68] sm:$0xff]
    %v1792 = vld [vmem:[#allocation9 + $0x70] sm:$0xff]
    %v1793 = vld [vmem:[#allocation9 + $0x78] sm:$0xff]
    %1794 = vmatprep.subr.mxu0 0.0
    %1795 = vmatpush1.msra.mxu0 %v1778
    %1796 = vmatprep.subr.mxu0 0.0
    %1797 = vmatpush1.msra.mxu0 %v1779
    %1798 = vmatprep.subr.mxu0 0.0
    %1799 = vmatpush1.msra.mxu0 %v1780
    %1800 = vmatprep.subr.mxu0 0.0
    %1801 = vmatpush1.msra.mxu0 %v1781
    %1802 = vmatprep.subr.mxu0 0.0
    %1803 = vmatpush1.msra.mxu0 %v1782
    %1804 = vmatprep.subr.mxu0 0.0
    %1805 = vmatpush1.msra.mxu0 %v1783
    %1806 = vmatprep.subr.mxu0 0.0
    %1807 = vmatpush1.msra.mxu0 %v1784
    %1808 = vmatprep.subr.mxu0 0.0
    %1809 = vmatpush1.msra.mxu0 %v1785
    %1810 = vmatprep.subr.mxu0 0.0
    %1811 = vmatpush1.msra.mxu0 %v1786
    %1812 = vmatprep.subr.mxu0 0.0
    %1813 = vmatpush1.msra.mxu0 %v1787
    %1814 = vmatprep.subr.mxu0 0.0
    %1815 = vmatpush1.msra.mxu0 %v1788
    %1816 = vmatprep.subr.mxu0 0.0
    %1817 = vmatpush1.msra.mxu0 %v1789
    %1818 = vmatprep.subr.mxu0 0.0
    %1819 = vmatpush1.msra.mxu0 %v1790
    %1820 = vmatprep.subr.mxu0 0.0
    %1821 = vmatpush1.msra.mxu0 %v1791
    %1822 = vmatprep.subr.mxu0 0.0
    %1823 = vmatpush1.msra.mxu0 %v1792
    %1824 = vmatprep.subr.mxu0 0.0
    %1825 = vmatpush1.msra.mxu0 %v1793
    %1826 = vmatprep.subr.mxu0 0.0
    %1827 = vmatpush1.msra.mxu0 0.0
    %1828 = vmatprep.subr.mxu0 0.0
    %1829 = vmatpush1.msra.mxu0 0.0
    %1830 = vmatprep.subr.mxu0 0.0
    %1831 = vmatpush1.msra.mxu0 0.0
    %1832 = vmatprep.subr.mxu0 0.0
    %1833 = vmatpush1.msra.mxu0 0.0
    %1834 = vmatprep.subr.mxu0 0.0
    %1835 = vmatpush1.msra.mxu0 0.0
    %1836 = vmatprep.subr.mxu0 0.0
    %1837 = vmatpush1.msra.mxu0 0.0
    %1838 = vmatprep.subr.mxu0 0.0
    %1839 = vmatpush1.msra.mxu0 0.0
    %1840 = vmatprep.subr.mxu0 0.0
    %1841 = vmatpush1.msra.mxu0 0.0
    %1842 = vmatprep.subr.mxu0 0.0
    %1843 = vmatpush1.msra.mxu0 0.0
    %1844 = vmatprep.subr.mxu0 0.0
    %1845 = vmatpush1.msra.mxu0 0.0
    %1846 = vmatprep.subr.mxu0 0.0
    %1847 = vmatpush1.msra.mxu0 0.0
    %1848 = vmatprep.subr.mxu0 0.0
    %1849 = vmatpush1.msra.mxu0 0.0
    %1850 = vmatprep.subr.mxu0 0.0
    %1851 = vmatpush1.msra.mxu0 0.0
    %1852 = vmatprep.subr.mxu0 0.0
    %1853 = vmatpush1.msra.mxu0 0.0
    %1854 = vmatprep.subr.mxu0 0.0
    %1855 = vmatpush1.msra.mxu0 0.0
    %1856 = vmatprep.subr.mxu0 0.0
    %1857 = vmatpush1.msra.mxu0 0.0
    %1858 = vmatprep.mubr.f32.mxu0 0.0
    %1859 = vmatmul.mubr.f32.gmra.mrb[0].mxu0 %v1776
    %v1860 = vpop.f32.mrb[0].mxu0
    %v1861 = vadd.f32 0.0, %v1860
    %v1862 = vpop.f32.mrb[0].mxu0
    %1863 = vmatprep.mubr.f32.mxu0 0.0
    %1864 = vmatmul.mubr.f32.gmra.mrb[0].mxu0 %v1777
    %v1865 = vpop.f32.mrb[0].mxu0
    %v1866 = vadd.f32 0.0, %v1865
    %v1867 = vpop.f32.mrb[0].mxu0
    %1868 = vdwg.mxu0
    %v1869 = vadd.f32 %v167, %v1861
    %v1870 = vadd.f32 %v168, %v1866
    %v1871 = vld [vmem:[%s4] sm:$0x1]
    %v1872 = vld [vmem:[%s5] sm:$0x1]
    %1873 = vadd.xlane.f32.xlu0 %v1869
    %v1874 = vpop.xlane.xlu0 %1873
    %1875 = vadd.xlane.f32.xlu0 %v1870
    %v1876 = vpop.xlane.xlu0 %1875
    %v1877 = vmul.f32 %v1874, %v176
    %v1878 = vmul.f32 %v1876, %v176
    %v1879 = vsub.f32 %v1869, %v1877
    %v1880 = vsub.f32 %v1870, %v1878
    %v1881 = vmul.f32 %v1879, %v1879
    %v1882 = vmul.f32 %v1880, %v1880
    %1883 = vadd.xlane.f32.xlu0 %v1881
    %v1884 = vpop.xlane.xlu0 %1883
    %1885 = vadd.xlane.f32.xlu0 %v1882
    %v1886 = vpop.xlane.xlu0 %1885
    %v1887 = vmul.f32 %v1884, %v176
    %v1888 = vmul.f32 %v1886, %v176
    %v1889 = vadd.f32 %v1887, 1e-05
    %v1890 = vadd.f32 %v1888, 1e-05
    %v1891 = vrsqrt.pop %v1889
    %v1892 = vrsqrt.pop %v1890
    %v1893 = vmul.f32 %v1879, %v1891
    %v1894 = vmul.f32 %v1880, %v1892
    %v1896 = vlaneseq
    %v1897 = vshrl.u32 %v1896, 7
    %v1898 = vsub.s32 0, %v1897
    %v1899 = vrot.slane %v1871, %v1898
    %v1901 = vmul.f32 %v1893, %v1899
    %v1902 = vmul.f32 %v1894, %v1899
    %v1904 = vlaneseq
    %v1905 = vshrl.u32 %v1904, 7
    %v1906 = vsub.s32 0, %v1905
    %v1907 = vrot.slane %v1872, %v1906
    %v1909 = vadd.f32 %v1901, %v1907
    %v1910 = vadd.f32 %v1902, %v1907
    %v1911 = vld [vmem:[#allocation11] sm:$0xff]
    %v1912 = vld [vmem:[#allocation11 + $0x8] sm:$0xff]
    %v1913 = vld [vmem:[#allocation11 + $0x10] sm:$0xff]
    %v1914 = vld [vmem:[#allocation11 + $0x18] sm:$0xff]
    %v1915 = vld [vmem:[#allocation11 + $0x20] sm:$0xff]
    %v1916 = vld [vmem:[#allocation11 + $0x28] sm:$0xff]
    %v1917 = vld [vmem:[#allocation11 + $0x30] sm:$0xff]
    %v1918 = vld [vmem:[#allocation11 + $0x38] sm:$0xff]
    %v1919 = vld [vmem:[#allocation11 + $0x40] sm:$0xff]
    %v1920 = vld [vmem:[#allocation11 + $0x48] sm:$0xff]
    %v1921 = vld [vmem:[#allocation11 + $0x50] sm:$0xff]
    %v1922 = vld [vmem:[#allocation11 + $0x58] sm:$0xff]
    %v1923 = vld [vmem:[#allocation11 + $0x60] sm:$0xff]
    %v1924 = vld [vmem:[#allocation11 + $0x68] sm:$0xff]
    %v1925 = vld [vmem:[#allocation11 + $0x70] sm:$0xff]
    %v1926 = vld [vmem:[#allocation11 + $0x78] sm:$0xff]
    %v1927 = vld [vmem:[#allocation11 + $0x80] sm:$0xff]
    %v1928 = vld [vmem:[#allocation11 + $0x88] sm:$0xff]
    %v1929 = vld [vmem:[#allocation11 + $0x90] sm:$0xff]
    %v1930 = vld [vmem:[#allocation11 + $0x98] sm:$0xff]
    %v1931 = vld [vmem:[#allocation11 + $0xa0] sm:$0xff]
    %v1932 = vld [vmem:[#allocation11 + $0xa8] sm:$0xff]
    %v1933 = vld [vmem:[#allocation11 + $0xb0] sm:$0xff]
    %v1934 = vld [vmem:[#allocation11 + $0xb8] sm:$0xff]
    %v1935 = vld [vmem:[#allocation11 + $0xc0] sm:$0xff]
    %v1936 = vld [vmem:[#allocation11 + $0xc8] sm:$0xff]
    %v1937 = vld [vmem:[#allocation11 + $0xd0] sm:$0xff]
    %v1938 = vld [vmem:[#allocation11 + $0xd8] sm:$0xff]
    %v1939 = vld [vmem:[#allocation11 + $0xe0] sm:$0xff]
    %v1940 = vld [vmem:[#allocation11 + $0xe8] sm:$0xff]
    %v1941 = vld [vmem:[#allocation11 + $0xf0] sm:$0xff]
    %v1942 = vld [vmem:[#allocation11 + $0xf8] sm:$0xff]
    %v1943 = vld [vmem:[#allocation11 + $0x100] sm:$0xff]
    %v1944 = vld [vmem:[#allocation11 + $0x108] sm:$0xff]
    %v1945 = vld [vmem:[#allocation11 + $0x110] sm:$0xff]
    %v1946 = vld [vmem:[#allocation11 + $0x118] sm:$0xff]
    %v1947 = vld [vmem:[#allocation11 + $0x120] sm:$0xff]
    %v1948 = vld [vmem:[#allocation11 + $0x128] sm:$0xff]
    %v1949 = vld [vmem:[#allocation11 + $0x130] sm:$0xff]
    %v1950 = vld [vmem:[#allocation11 + $0x138] sm:$0xff]
    %v1951 = vld [vmem:[#allocation11 + $0x140] sm:$0xff]
    %v1952 = vld [vmem:[#allocation11 + $0x148] sm:$0xff]
    %v1953 = vld [vmem:[#allocation11 + $0x150] sm:$0xff]
    %v1954 = vld [vmem:[#allocation11 + $0x158] sm:$0xff]
    %v1955 = vld [vmem:[#allocation11 + $0x160] sm:$0xff]
    %v1956 = vld [vmem:[#allocation11 + $0x168] sm:$0xff]
    %v1957 = vld [vmem:[#allocation11 + $0x170] sm:$0xff]
    %v1958 = vld [vmem:[#allocation11 + $0x178] sm:$0xff]
    %v1959 = vld [vmem:[%s11] sm:$0x7]
    %v1961 = vlaneseq
    %v1962 = vshrl.u32 %v1961, 7
    %v1963 = vsub.s32 0, %v1962
    %v1964 = vrot.slane %v1959, %v1963
    %v1965 = vlaneseq
    %v1966 = vshrl.u32 %v1965, 7
    %v1967 = vsub.s32 1, %v1966
    %v1968 = vrot.slane %v1959, %v1967
    %v1969 = vlaneseq
    %v1970 = vshrl.u32 %v1969, 7
    %v1971 = vsub.s32 2, %v1970
    %v1972 = vrot.slane %v1959, %v1971
    %1976 = vmatprep.subr.mxu0 %v1912
    %1977 = vmatpush1.msra.mxu0 %v1911
    %1978 = vmatprep.subr.mxu0 %v1915
    %1979 = vmatpush1.msra.mxu0 %v1914
    %1980 = vmatprep.subr.mxu0 %v1918
    %1981 = vmatpush1.msra.mxu0 %v1917
    %1982 = vmatprep.subr.mxu0 %v1921
    %1983 = vmatpush1.msra.mxu0 %v1920
    %1984 = vmatprep.subr.mxu0 %v1924
    %1985 = vmatpush1.msra.mxu0 %v1923
    %1986 = vmatprep.subr.mxu0 %v1927
    %1987 = vmatpush1.msra.mxu0 %v1926
    %1988 = vmatprep.subr.mxu0 %v1930
    %1989 = vmatpush1.msra.mxu0 %v1929
    %1990 = vmatprep.subr.mxu0 %v1933
    %1991 = vmatpush1.msra.mxu0 %v1932
    %1992 = vmatprep.subr.mxu0 %v1936
    %1993 = vmatpush1.msra.mxu0 %v1935
    %1994 = vmatprep.subr.mxu0 %v1939
    %1995 = vmatpush1.msra.mxu0 %v1938
    %1996 = vmatprep.subr.mxu0 %v1942
    %1997 = vmatpush1.msra.mxu0 %v1941
    %1998 = vmatprep.subr.mxu0 %v1945
    %1999 = vmatpush1.msra.mxu0 %v1944
    %2000 = vmatprep.subr.mxu0 %v1948
    %2001 = vmatpush1.msra.mxu0 %v1947
    %2002 = vmatprep.subr.mxu0 %v1951
    %2003 = vmatpush1.msra.mxu0 %v1950
    %2004 = vmatprep.subr.mxu0 %v1954
    %2005 = vmatpush1.msra.mxu0 %v1953
    %2006 = vmatprep.subr.mxu0 %v1957
    %2007 = vmatpush1.msra.mxu0 %v1956
    %2008 = vmatprep.subr.mxu0 0.0
    %2009 = vmatpush1.msra.mxu0 0.0
    %2010 = vmatprep.subr.mxu0 0.0
    %2011 = vmatpush1.msra.mxu0 0.0
    %2012 = vmatprep.subr.mxu0 0.0
    %2013 = vmatpush1.msra.mxu0 0.0
    %2014 = vmatprep.subr.mxu0 0.0
    %2015 = vmatpush1.msra.mxu0 0.0
    %2016 = vmatprep.subr.mxu0 0.0
    %2017 = vmatpush1.msra.mxu0 0.0
    %2018 = vmatprep.subr.mxu0 0.0
    %2019 = vmatpush1.msra.mxu0 0.0
    %2020 = vmatprep.subr.mxu0 0.0
    %2021 = vmatpush1.msra.mxu0 0.0
    %2022 = vmatprep.subr.mxu0 0.0
    %2023 = vmatpush1.msra.mxu0 0.0
    %2024 = vmatprep.subr.mxu0 0.0
    %2025 = vmatpush1.msra.mxu0 0.0
    %2026 = vmatprep.subr.mxu0 0.0
    %2027 = vmatpush1.msra.mxu0 0.0
    %2028 = vmatprep.subr.mxu0 0.0
    %2029 = vmatpush1.msra.mxu0 0.0
    %2030 = vmatprep.subr.mxu0 0.0
    %2031 = vmatpush1.msra.mxu0 0.0
    %2032 = vmatprep.subr.mxu0 0.0
    %2033 = vmatpush1.msra.mxu0 0.0
    %2034 = vmatprep.subr.mxu0 0.0
    %2035 = vmatpush1.msra.mxu0 0.0
    %2036 = vmatprep.subr.mxu0 0.0
    %2037 = vmatpush1.msra.mxu0 0.0
    %2038 = vmatprep.subr.mxu0 0.0
    %2039 = vmatpush1.msra.mxu0 0.0
    %2040 = vmatprep.mubr.f32.mxu0 0.0
    %2041 = vmatmul.mubr.f32.gmra.mrb[0].mxu0 %v1909
    %v2042 = vpop.f32.mrb[0].mxu0
    %v2043 = vadd.f32 %v1964, %v2042
    %v2044 = vpop.f32.mrb[0].mxu0
    %v2045 = vadd.f32 %v1968, %v2044
    %2046 = vmatprep.mubr.f32.mxu0 0.0
    %2047 = vmatmul.mubr.f32.gmra.mrb[0].mxu0 %v1910
    %v2048 = vpop.f32.mrb[0].mxu0
    %v2049 = vadd.f32 %v1964, %v2048
    %v2050 = vpop.f32.mrb[0].mxu0
    %v2051 = vadd.f32 %v1968, %v2050
    %2052 = vdwg.mxu0
    %2053 = vmatprep.subr.mxu0 0.0
    %2054 = vmatpush1.msra.mxu0 %v1913
    %2055 = vmatprep.subr.mxu0 0.0
    %2056 = vmatpush1.msra.mxu0 %v1916
    %2057 = vmatprep.subr.mxu0 0.0
    %2058 = vmatpush1.msra.mxu0 %v1919
    %2059 = vmatprep.subr.mxu0 0.0
    %2060 = vmatpush1.msra.mxu0 %v1922
    %2061 = vmatprep.subr.mxu0 0.0
    %2062 = vmatpush1.msra.mxu0 %v1925
    %2063 = vmatprep.subr.mxu0 0.0
    %2064 = vmatpush1.msra.mxu0 %v1928
    %2065 = vmatprep.subr.mxu0 0.0
    %2066 = vmatpush1.msra.mxu0 %v1931
    %2067 = vmatprep.subr.mxu0 0.0
    %2068 = vmatpush1.msra.mxu0 %v1934
    %2069 = vmatprep.subr.mxu0 0.0
    %2070 = vmatpush1.msra.mxu0 %v1937
    %2071 = vmatprep.subr.mxu0 0.0
    %2072 = vmatpush1.msra.mxu0 %v1940
    %2073 = vmatprep.subr.mxu0 0.0
    %2074 = vmatpush1.msra.mxu0 %v1943
    %2075 = vmatprep.subr.mxu0 0.0
    %2076 = vmatpush1.msra.mxu0 %v1946
    %2077 = vmatprep.subr.mxu0 0.0
    %2078 = vmatpush1.msra.mxu0 %v1949
    %2079 = vmatprep.subr.mxu0 0.0
    %2080 = vmatpush1.msra.mxu0 %v1952
    %2081 = vmatprep.subr.mxu0 0.0
    %2082 = vmatpush1.msra.mxu0 %v1955
    %2083 = vmatprep.subr.mxu0 0.0
    %2084 = vmatpush1.msra.mxu0 %v1958
    %2085 = vmatprep.subr.mxu0 0.0
    %2086 = vmatpush1.msra.mxu0 0.0
    %2087 = vmatprep.subr.mxu0 0.0
    %2088 = vmatpush1.msra.mxu0 0.0
    %2089 = vmatprep.subr.mxu0 0.0
    %2090 = vmatpush1.msra.mxu0 0.0
    %2091 = vmatprep.subr.mxu0 0.0
    %2092 = vmatpush1.msra.mxu0 0.0
    %2093 = vmatprep.subr.mxu0 0.0
    %2094 = vmatpush1.msra.mxu0 0.0
    %2095 = vmatprep.subr.mxu0 0.0
    %2096 = vmatpush1.msra.mxu0 0.0
    %2097 = vmatprep.subr.mxu0 0.0
    %2098 = vmatpush1.msra.mxu0 0.0
    %2099 = vmatprep.subr.mxu0 0.0
    %2100 = vmatpush1.msra.mxu0 0.0
    %2101 = vmatprep.subr.mxu0 0.0
    %2102 = vmatpush1.msra.mxu0 0.0
    %2103 = vmatprep.subr.mxu0 0.0
    %2104 = vmatpush1.msra.mxu0 0.0
    %2105 = vmatprep.subr.mxu0 0.0
    %2106 = vmatpush1.msra.mxu0 0.0
    %2107 = vmatprep.subr.mxu0 0.0
    %2108 = vmatpush1.msra.mxu0 0.0
    %2109 = vmatprep.subr.mxu0 0.0
    %2110 = vmatpush1.msra.mxu0 0.0
    %2111 = vmatprep.subr.mxu0 0.0
    %2112 = vmatpush1.msra.mxu0 0.0
    %2113 = vmatprep.subr.mxu0 0.0
    %2114 = vmatpush1.msra.mxu0 0.0
    %2115 = vmatprep.subr.mxu0 0.0
    %2116 = vmatpush1.msra.mxu0 0.0
    %2117 = vmatprep.mubr.f32.mxu0 0.0
    %2118 = vmatmul.mubr.f32.gmra.mrb[0].mxu0 %v1909
    %v2119 = vpop.f32.mrb[0].mxu0
    %v2120 = vadd.f32 %v1972, %v2119
    %v2121 = vpop.f32.mrb[0].mxu0
    %2122 = vmatprep.mubr.f32.mxu0 0.0
    %2123 = vmatmul.mubr.f32.gmra.mrb[0].mxu0 %v1910
    %v2124 = vpop.f32.mrb[0].mxu0
    %v2125 = vadd.f32 %v1972, %v2124
    %v2126 = vpop.f32.mrb[0].mxu0
    %2127 = vdwg.mxu0
    %v2129 = vsel %vm411, %v2043, 0
    %v2132 = vsel %vm411, %v2045, 0
    %2134 = vmatprep.subr.mxu0 0.0
    %2135 = vmatpush1.xpose.msra.mxu0 %v2132
    %2136 = vmatprep.subr.mxu0 0.0
    %2137 = vmatpush1.xpose.msra.mxu0 0.0
    %2138 = vmatprep.subr.mxu0 0.0
    %2139 = vmatpush1.xpose.msra.mxu0 0.0
    %2140 = vmatprep.subr.mxu0 0.0
    %2141 = vmatpush1.xpose.msra.mxu0 0.0
    %2142 = vmatprep.subr.mxu0 0.0
    %2143 = vmatpush1.xpose.msra.mxu0 0.0
    %2144 = vmatprep.subr.mxu0 0.0
    %2145 = vmatpush1.xpose.msra.mxu0 0.0
    %2146 = vmatprep.subr.mxu0 0.0
    %2147 = vmatpush1.xpose.msra.mxu0 0.0
    %2148 = vmatprep.subr.mxu0 0.0
    %2149 = vmatpush1.xpose.msra.mxu0 0.0
    %2150 = vmatprep.subr.mxu0 0.0
    %2151 = vmatpush1.xpose.msra.mxu0 0.0
    %2152 = vmatprep.subr.mxu0 0.0
    %2153 = vmatpush1.xpose.msra.mxu0 0.0
    %2154 = vmatprep.subr.mxu0 0.0
    %2155 = vmatpush1.xpose.msra.mxu0 0.0
    %2156 = vmatprep.subr.mxu0 0.0
    %2157 = vmatpush1.xpose.msra.mxu0 0.0
    %2158 = vmatprep.subr.mxu0 0.0
    %2159 = vmatpush1.xpose.msra.mxu0 0.0
    %2160 = vmatprep.subr.mxu0 0.0
    %2161 = vmatpush1.xpose.msra.mxu0 0.0
    %2162 = vmatprep.subr.mxu0 0.0
    %2163 = vmatpush1.xpose.msra.mxu0 0.0
    %2164 = vmatprep.subr.mxu0 0.0
    %2165 = vmatpush1.xpose.msra.mxu0 0.0
    %2166 = vmatprep.subr.mxu0 0.0
    %2167 = vmatpush1.xpose.msra.mxu0 0.0
    %2168 = vmatprep.subr.mxu0 0.0
    %2169 = vmatpush1.xpose.msra.mxu0 0.0
    %2170 = vmatprep.subr.mxu0 0.0
    %2171 = vmatpush1.xpose.msra.mxu0 0.0
    %2172 = vmatprep.subr.mxu0 0.0
    %2173 = vmatpush1.xpose.msra.mxu0 0.0
    %2174 = vmatprep.subr.mxu0 0.0
    %2175 = vmatpush1.xpose.msra.mxu0 0.0
    %2176 = vmatprep.subr.mxu0 0.0
    %2177 = vmatpush1.xpose.msra.mxu0 0.0
    %2178 = vmatprep.subr.mxu0 0.0
    %2179 = vmatpush1.xpose.msra.mxu0 0.0
    %2180 = vmatprep.subr.mxu0 0.0
    %2181 = vmatpush1.xpose.msra.mxu0 0.0
    %2182 = vmatprep.subr.mxu0 0.0
    %2183 = vmatpush1.xpose.msra.mxu0 0.0
    %2184 = vmatprep.subr.mxu0 0.0
    %2185 = vmatpush1.xpose.msra.mxu0 0.0
    %2186 = vmatprep.subr.mxu0 0.0
    %2187 = vmatpush1.xpose.msra.mxu0 0.0
    %2188 = vmatprep.subr.mxu0 0.0
    %2189 = vmatpush1.xpose.msra.mxu0 0.0
    %2190 = vmatprep.subr.mxu0 0.0
    %2191 = vmatpush1.xpose.msra.mxu0 0.0
    %2192 = vmatprep.subr.mxu0 0.0
    %2193 = vmatpush1.xpose.msra.mxu0 0.0
    %2194 = vmatprep.subr.mxu0 0.0
    %2195 = vmatpush1.xpose.msra.mxu0 0.0
    %2196 = vmatprep.subr.mxu0 0.0
    %2197 = vmatpush1.xpose.msra.mxu0 0.0
    %2198 = vmatprep.mubr.f32.mxu0 0.0
    %2199 = vmatmul.mubr.f32.gmra.mrb[0].mxu0 %v2129
    %v2200 = vpop.f32.mrb[0].mxu0
    %v2201 = vadd.f32 0.0, %v2200
    %v2202 = vpop.f32.mrb[0].mxu0
    %2203 = vdwg.mxu0
    %v2204 = vmul.f32 %v2201, 0.17677669
    %v2205 = vsel %vm490, %v2204, -inf
    %2206 = vmax.xlane.f32.xlu0 %v2205
    %v2207 = vpop.xlane.xlu0 %2206
    %v2208 = vsub.f32 %v2204, %v2207
    %v2209 = vmul.f32 %v2208, 1.442695
    %v2210 = vpow.pop %v2209
    %v2211 = vsel %vm490, %v2210, 0.0
    %2212 = vadd.xlane.f32.xlu0 %v2211
    %v2213 = vpop.xlane.xlu0 %2212
    %v2214 = vrcp.pop %v2213
    %v2215 = vmul.f32 %v2210, %v2214
    %v2217 = vsel %vm490, %v2215, 0
    %2219 = vmatprep.subr.mxu0 0.0
    %2220 = vmatpush1.msra.mxu0 %v2120
    %2221 = vmatprep.subr.mxu0 0.0
    %2222 = vmatpush1.msra.mxu0 0.0
    %2223 = vmatprep.subr.mxu0 0.0
    %2224 = vmatpush1.msra.mxu0 0.0
    %2225 = vmatprep.subr.mxu0 0.0
    %2226 = vmatpush1.msra.mxu0 0.0
    %2227 = vmatprep.subr.mxu0 0.0
    %2228 = vmatpush1.msra.mxu0 0.0
    %2229 = vmatprep.subr.mxu0 0.0
    %2230 = vmatpush1.msra.mxu0 0.0
    %2231 = vmatprep.subr.mxu0 0.0
    %2232 = vmatpush1.msra.mxu0 0.0
    %2233 = vmatprep.subr.mxu0 0.0
    %2234 = vmatpush1.msra.mxu0 0.0
    %2235 = vmatprep.subr.mxu0 0.0
    %2236 = vmatpush1.msra.mxu0 0.0
    %2237 = vmatprep.subr.mxu0 0.0
    %2238 = vmatpush1.msra.mxu0 0.0
    %2239 = vmatprep.subr.mxu0 0.0
    %2240 = vmatpush1.msra.mxu0 0.0
    %2241 = vmatprep.subr.mxu0 0.0
    %2242 = vmatpush1.msra.mxu0 0.0
    %2243 = vmatprep.subr.mxu0 0.0
    %2244 = vmatpush1.msra.mxu0 0.0
    %2245 = vmatprep.subr.mxu0 0.0
    %2246 = vmatpush1.msra.mxu0 0.0
    %2247 = vmatprep.subr.mxu0 0.0
    %2248 = vmatpush1.msra.mxu0 0.0
    %2249 = vmatprep.subr.mxu0 0.0
    %2250 = vmatpush1.msra.mxu0 0.0
    %2251 = vmatprep.subr.mxu0 0.0
    %2252 = vmatpush1.msra.mxu0 0.0
    %2253 = vmatprep.subr.mxu0 0.0
    %2254 = vmatpush1.msra.mxu0 0.0
    %2255 = vmatprep.subr.mxu0 0.0
    %2256 = vmatpush1.msra.mxu0 0.0
    %2257 = vmatprep.subr.mxu0 0.0
    %2258 = vmatpush1.msra.mxu0 0.0
    %2259 = vmatprep.subr.mxu0 0.0
    %2260 = vmatpush1.msra.mxu0 0.0
    %2261 = vmatprep.subr.mxu0 0.0
    %2262 = vmatpush1.msra.mxu0 0.0
    %2263 = vmatprep.subr.mxu0 0.0
    %2264 = vmatpush1.msra.mxu0 0.0
    %2265 = vmatprep.subr.mxu0 0.0
    %2266 = vmatpush1.msra.mxu0 0.0
    %2267 = vmatprep.subr.mxu0 0.0
    %2268 = vmatpush1.msra.mxu0 0.0
    %2269 = vmatprep.subr.mxu0 0.0
    %2270 = vmatpush1.msra.mxu0 0.0
    %2271 = vmatprep.subr.mxu0 0.0
    %2272 = vmatpush1.msra.mxu0 0.0
    %2273 = vmatprep.subr.mxu0 0.0
    %2274 = vmatpush1.msra.mxu0 0.0
    %2275 = vmatprep.subr.mxu0 0.0
    %2276 = vmatpush1.msra.mxu0 0.0
    %2277 = vmatprep.subr.mxu0 0.0
    %2278 = vmatpush1.msra.mxu0 0.0
    %2279 = vmatprep.subr.mxu0 0.0
    %2280 = vmatpush1.msra.mxu0 0.0
    %2281 = vmatprep.subr.mxu0 0.0
    %2282 = vmatpush1.msra.mxu0 0.0
    %2283 = vmatprep.mubr.f32.mxu0 0.0
    %2284 = vmatmul.mubr.f32.gmra.mrb[0].mxu0 %v2217
    %v2285 = vpop.f32.mrb[0].mxu0
    %v2286 = vadd.f32 0.0, %v2285
    %v2287 = vpop.f32.mrb[0].mxu0
    %2288 = vdwg.mxu0
    %2289 = vst.msk [vmem:[#allocation2] sm:$0xff] %vm411, %v2286
    %2290 = vrot.lane.b32.xlu0 %v2043, 96
    %v2291 = vpop.permute.xlu0 %2290
    %2292 = vrot.lane.b32.xlu0 %v2045, 96
    %v2293 = vpop.permute.xlu0 %2292
    %v2294 = vsel %vm411, %v2291, 0
    %v2296 = vsel %vm411, %v2293, 0
    %2298 = vmatprep.subr.mxu0 0.0
    %2299 = vmatpush1.xpose.msra.mxu0 %v2296
    %2300 = vmatprep.subr.mxu0 0.0
    %2301 = vmatpush1.xpose.msra.mxu0 0.0
    %2302 = vmatprep.subr.mxu0 0.0
    %2303 = vmatpush1.xpose.msra.mxu0 0.0
    %2304 = vmatprep.subr.mxu0 0.0
    %2305 = vmatpush1.xpose.msra.mxu0 0.0
    %2306 = vmatprep.subr.mxu0 0.0
    %2307 = vmatpush1.xpose.msra.mxu0 0.0
    %2308 = vmatprep.subr.mxu0 0.0
    %2309 = vmatpush1.xpose.msra.mxu0 0.0
    %2310 = vmatprep.subr.mxu0 0.0
    %2311 = vmatpush1.xpose.msra.mxu0 0.0
    %2312 = vmatprep.subr.mxu0 0.0
    %2313 = vmatpush1.xpose.msra.mxu0 0.0
    %2314 = vmatprep.subr.mxu0 0.0
    %2315 = vmatpush1.xpose.msra.mxu0 0.0
    %2316 = vmatprep.subr.mxu0 0.0
    %2317 = vmatpush1.xpose.msra.mxu0 0.0
    %2318 = vmatprep.subr.mxu0 0.0
    %2319 = vmatpush1.xpose.msra.mxu0 0.0
    %2320 = vmatprep.subr.mxu0 0.0
    %2321 = vmatpush1.xpose.msra.mxu0 0.0
    %2322 = vmatprep.subr.mxu0 0.0
    %2323 = vmatpush1.xpose.msra.mxu0 0.0
    %2324 = vmatprep.subr.mxu0 0.0
    %2325 = vmatpush1.xpose.msra.mxu0 0.0
    %2326 = vmatprep.subr.mxu0 0.0
    %2327 = vmatpush1.xpose.msra.mxu0 0.0
    %2328 = vmatprep.subr.mxu0 0.0
    %2329 = vmatpush1.xpose.msra.mxu0 0.0
    %2330 = vmatprep.subr.mxu0 0.0
    %2331 = vmatpush1.xpose.msra.mxu0 0.0
    %2332 = vmatprep.subr.mxu0 0.0
    %2333 = vmatpush1.xpose.msra.mxu0 0.0
    %2334 = vmatprep.subr.mxu0 0.0
    %2335 = vmatpush1.xpose.msra.mxu0 0.0
    %2336 = vmatprep.subr.mxu0 0.0
    %2337 = vmatpush1.xpose.msra.mxu0 0.0
    %2338 = vmatprep.subr.mxu0 0.0
    %2339 = vmatpush1.xpose.msra.mxu0 0.0
    %2340 = vmatprep.subr.mxu0 0.0
    %2341 = vmatpush1.xpose.msra.mxu0 0.0
    %2342 = vmatprep.subr.mxu0 0.0
    %2343 = vmatpush1.xpose.msra.mxu0 0.0
    %2344 = vmatprep.subr.mxu0 0.0
    %2345 = vmatpush1.xpose.msra.mxu0 0.0
    %2346 = vmatprep.subr.mxu0 0.0
    %2347 = vmatpush1.xpose.msra.mxu0 0.0
    %2348 = vmatprep.subr.mxu0 0.0
    %2349 = vmatpush1.xpose.msra.mxu0 0.0
    %2350 = vmatprep.subr.mxu0 0.0
    %2351 = vmatpush1.xpose.msra.mxu0 0.0
    %2352 = vmatprep.subr.mxu0 0.0
    %2353 = vmatpush1.xpose.msra.mxu0 0.0
    %2354 = vmatprep.subr.mxu0 0.0
    %2355 = vmatpush1.xpose.msra.mxu0 0.0
    %2356 = vmatprep.subr.mxu0 0.0
    %2357 = vmatpush1.xpose.msra.mxu0 0.0
    %2358 = vmatprep.subr.mxu0 0.0
    %2359 = vmatpush1.xpose.msra.mxu0 0.0
    %2360 = vmatprep.subr.mxu0 0.0
    %2361 = vmatpush1.xpose.msra.mxu0 0.0
    %2362 = vmatprep.mubr.f32.mxu0 0.0
    %2363 = vmatmul.mubr.f32.gmra.mrb[0].mxu0 %v2294
    %v2364 = vpop.f32.mrb[0].mxu0
    %v2365 = vadd.f32 0.0, %v2364
    %v2366 = vpop.f32.mrb[0].mxu0
    %2367 = vdwg.mxu0
    %v2368 = vmul.f32 %v2365, 0.17677669
    %v2369 = vsel %vm490, %v2368, -inf
    %2370 = vmax.xlane.f32.xlu0 %v2369
    %v2371 = vpop.xlane.xlu0 %2370
    %v2372 = vsub.f32 %v2368, %v2371
    %v2373 = vmul.f32 %v2372, 1.442695
    %v2374 = vpow.pop %v2373
    %v2375 = vsel %vm490, %v2374, 0.0
    %2376 = vadd.xlane.f32.xlu0 %v2375
    %v2377 = vpop.xlane.xlu0 %2376
    %v2378 = vrcp.pop %v2377
    %v2379 = vmul.f32 %v2374, %v2378
    %2381 = vrot.lane.b32.xlu0 %v2120, 96
    %v2382 = vpop.permute.xlu0 %2381
    %v2385 = vsel %vm490, %v2379, 0
    %2387 = vmatprep.subr.mxu0 0.0
    %2388 = vmatpush1.msra.mxu0 %v2382
    %2389 = vmatprep.subr.mxu0 0.0
    %2390 = vmatpush1.msra.mxu0 0.0
    %2391 = vmatprep.subr.mxu0 0.0
    %2392 = vmatpush1.msra.mxu0 0.0
    %2393 = vmatprep.subr.mxu0 0.0
    %2394 = vmatpush1.msra.mxu0 0.0
    %2395 = vmatprep.subr.mxu0 0.0
    %2396 = vmatpush1.msra.mxu0 0.0
    %2397 = vmatprep.subr.mxu0 0.0
    %2398 = vmatpush1.msra.mxu0 0.0
    %2399 = vmatprep.subr.mxu0 0.0
    %2400 = vmatpush1.msra.mxu0 0.0
    %2401 = vmatprep.subr.mxu0 0.0
    %2402 = vmatpush1.msra.mxu0 0.0
    %2403 = vmatprep.subr.mxu0 0.0
    %2404 = vmatpush1.msra.mxu0 0.0
    %2405 = vmatprep.subr.mxu0 0.0
    %2406 = vmatpush1.msra.mxu0 0.0
    %2407 = vmatprep.subr.mxu0 0.0
    %2408 = vmatpush1.msra.mxu0 0.0
    %2409 = vmatprep.subr.mxu0 0.0
    %2410 = vmatpush1.msra.mxu0 0.0
    %2411 = vmatprep.subr.mxu0 0.0
    %2412 = vmatpush1.msra.mxu0 0.0
    %2413 = vmatprep.subr.mxu0 0.0
    %2414 = vmatpush1.msra.mxu0 0.0
    %2415 = vmatprep.subr.mxu0 0.0
    %2416 = vmatpush1.msra.mxu0 0.0
    %2417 = vmatprep.subr.mxu0 0.0
    %2418 = vmatpush1.msra.mxu0 0.0
    %2419 = vmatprep.subr.mxu0 0.0
    %2420 = vmatpush1.msra.mxu0 0.0
    %2421 = vmatprep.subr.mxu0 0.0
    %2422 = vmatpush1.msra.mxu0 0.0
    %2423 = vmatprep.subr.mxu0 0.0
    %2424 = vmatpush1.msra.mxu0 0.0
    %2425 = vmatprep.subr.mxu0 0.0
    %2426 = vmatpush1.msra.mxu0 0.0
    %2427 = vmatprep.subr.mxu0 0.0
    %2428 = vmatpush1.msra.mxu0 0.0
    %2429 = vmatprep.subr.mxu0 0.0
    %2430 = vmatpush1.msra.mxu0 0.0
    %2431 = vmatprep.subr.mxu0 0.0
    %2432 = vmatpush1.msra.mxu0 0.0
    %2433 = vmatprep.subr.mxu0 0.0
    %2434 = vmatpush1.msra.mxu0 0.0
    %2435 = vmatprep.subr.mxu0 0.0
    %2436 = vmatpush1.msra.mxu0 0.0
    %2437 = vmatprep.subr.mxu0 0.0
    %2438 = vmatpush1.msra.mxu0 0.0
    %2439 = vmatprep.subr.mxu0 0.0
    %2440 = vmatpush1.msra.mxu0 0.0
    %2441 = vmatprep.subr.mxu0 0.0
    %2442 = vmatpush1.msra.mxu0 0.0
    %2443 = vmatprep.subr.mxu0 0.0
    %2444 = vmatpush1.msra.mxu0 0.0
    %2445 = vmatprep.subr.mxu0 0.0
    %2446 = vmatpush1.msra.mxu0 0.0
    %2447 = vmatprep.subr.mxu0 0.0
    %2448 = vmatpush1.msra.mxu0 0.0
    %2449 = vmatprep.subr.mxu0 0.0
    %2450 = vmatpush1.msra.mxu0 0.0
    %2451 = vmatprep.mubr.f32.mxu0 0.0
    %2452 = vmatmul.mubr.f32.gmra.mrb[0].mxu0 %v2385
    %v2453 = vpop.f32.mrb[0].mxu0
    %v2454 = vadd.f32 0.0, %v2453
    %v2455 = vpop.f32.mrb[0].mxu0
    %2456 = vdwg.mxu0
    %2458 = vrot.lane.b32.xlu0 %v2454, 32
    %v2459 = vpop.permute.xlu0 %2458
    %2461 = vst.msk [vmem:[#allocation2] sm:$0xff] %vm748, %v2459
    %2462 = vrot.lane.b32.xlu0 %v2043, 64
    %v2463 = vpop.permute.xlu0 %2462
    %2464 = vrot.lane.b32.xlu0 %v2045, 64
    %v2465 = vpop.permute.xlu0 %2464
    %v2466 = vsel %vm411, %v2463, 0
    %v2468 = vsel %vm411, %v2465, 0
    %2470 = vmatprep.subr.mxu0 0.0
    %2471 = vmatpush1.xpose.msra.mxu0 %v2468
    %2472 = vmatprep.subr.mxu0 0.0
    %2473 = vmatpush1.xpose.msra.mxu0 0.0
    %2474 = vmatprep.subr.mxu0 0.0
    %2475 = vmatpush1.xpose.msra.mxu0 0.0
    %2476 = vmatprep.subr.mxu0 0.0
    %2477 = vmatpush1.xpose.msra.mxu0 0.0
    %2478 = vmatprep.subr.mxu0 0.0
    %2479 = vmatpush1.xpose.msra.mxu0 0.0
    %2480 = vmatprep.subr.mxu0 0.0
    %2481 = vmatpush1.xpose.msra.mxu0 0.0
    %2482 = vmatprep.subr.mxu0 0.0
    %2483 = vmatpush1.xpose.msra.mxu0 0.0
    %2484 = vmatprep.subr.mxu0 0.0
    %2485 = vmatpush1.xpose.msra.mxu0 0.0
    %2486 = vmatprep.subr.mxu0 0.0
    %2487 = vmatpush1.xpose.msra.mxu0 0.0
    %2488 = vmatprep.subr.mxu0 0.0
    %2489 = vmatpush1.xpose.msra.mxu0 0.0
    %2490 = vmatprep.subr.mxu0 0.0
    %2491 = vmatpush1.xpose.msra.mxu0 0.0
    %2492 = vmatprep.subr.mxu0 0.0
    %2493 = vmatpush1.xpose.msra.mxu0 0.0
    %2494 = vmatprep.subr.mxu0 0.0
    %2495 = vmatpush1.xpose.msra.mxu0 0.0
    %2496 = vmatprep.subr.mxu0 0.0
    %2497 = vmatpush1.xpose.msra.mxu0 0.0
    %2498 = vmatprep.subr.mxu0 0.0
    %2499 = vmatpush1.xpose.msra.mxu0 0.0
    %2500 = vmatprep.subr.mxu0 0.0
    %2501 = vmatpush1.xpose.msra.mxu0 0.0
    %2502 = vmatprep.subr.mxu0 0.0
    %2503 = vmatpush1.xpose.msra.mxu0 0.0
    %2504 = vmatprep.subr.mxu0 0.0
    %2505 = vmatpush1.xpose.msra.mxu0 0.0
    %2506 = vmatprep.subr.mxu0 0.0
    %2507 = vmatpush1.xpose.msra.mxu0 0.0
    %2508 = vmatprep.subr.mxu0 0.0
    %2509 = vmatpush1.xpose.msra.mxu0 0.0
    %2510 = vmatprep.subr.mxu0 0.0
    %2511 = vmatpush1.xpose.msra.mxu0 0.0
    %2512 = vmatprep.subr.mxu0 0.0
    %2513 = vmatpush1.xpose.msra.mxu0 0.0
    %2514 = vmatprep.subr.mxu0 0.0
    %2515 = vmatpush1.xpose.msra.mxu0 0.0
    %2516 = vmatprep.subr.mxu0 0.0
    %2517 = vmatpush1.xpose.msra.mxu0 0.0
    %2518 = vmatprep.subr.mxu0 0.0
    %2519 = vmatpush1.xpose.msra.mxu0 0.0
    %2520 = vmatprep.subr.mxu0 0.0
    %2521 = vmatpush1.xpose.msra.mxu0 0.0
    %2522 = vmatprep.subr.mxu0 0.0
    %2523 = vmatpush1.xpose.msra.mxu0 0.0
    %2524 = vmatprep.subr.mxu0 0.0
    %2525 = vmatpush1.xpose.msra.mxu0 0.0
    %2526 = vmatprep.subr.mxu0 0.0
    %2527 = vmatpush1.xpose.msra.mxu0 0.0
    %2528 = vmatprep.subr.mxu0 0.0
    %2529 = vmatpush1.xpose.msra.mxu0 0.0
    %2530 = vmatprep.subr.mxu0 0.0
    %2531 = vmatpush1.xpose.msra.mxu0 0.0
    %2532 = vmatprep.subr.mxu0 0.0
    %2533 = vmatpush1.xpose.msra.mxu0 0.0
    %2534 = vmatprep.mubr.f32.mxu0 0.0
    %2535 = vmatmul.mubr.f32.gmra.mrb[0].mxu0 %v2466
    %v2536 = vpop.f32.mrb[0].mxu0
    %v2537 = vadd.f32 0.0, %v2536
    %v2538 = vpop.f32.mrb[0].mxu0
    %2539 = vdwg.mxu0
    %v2540 = vmul.f32 %v2537, 0.17677669
    %v2541 = vsel %vm490, %v2540, -inf
    %2542 = vmax.xlane.f32.xlu0 %v2541
    %v2543 = vpop.xlane.xlu0 %2542
    %v2544 = vsub.f32 %v2540, %v2543
    %v2545 = vmul.f32 %v2544, 1.442695
    %v2546 = vpow.pop %v2545
    %v2547 = vsel %vm490, %v2546, 0.0
    %2548 = vadd.xlane.f32.xlu0 %v2547
    %v2549 = vpop.xlane.xlu0 %2548
    %v2550 = vrcp.pop %v2549
    %v2551 = vmul.f32 %v2546, %v2550
    %2552 = vrot.lane.b32.xlu0 %v2120, 64
    %v2553 = vpop.permute.xlu0 %2552
    %v2556 = vsel %vm490, %v2551, 0
    %2558 = vmatprep.subr.mxu0 0.0
    %2559 = vmatpush1.msra.mxu0 %v2553
    %2560 = vmatprep.subr.mxu0 0.0
    %2561 = vmatpush1.msra.mxu0 0.0
    %2562 = vmatprep.subr.mxu0 0.0
    %2563 = vmatpush1.msra.mxu0 0.0
    %2564 = vmatprep.subr.mxu0 0.0
    %2565 = vmatpush1.msra.mxu0 0.0
    %2566 = vmatprep.subr.mxu0 0.0
    %2567 = vmatpush1.msra.mxu0 0.0
    %2568 = vmatprep.subr.mxu0 0.0
    %2569 = vmatpush1.msra.mxu0 0.0
    %2570 = vmatprep.subr.mxu0 0.0
    %2571 = vmatpush1.msra.mxu0 0.0
    %2572 = vmatprep.subr.mxu0 0.0
    %2573 = vmatpush1.msra.mxu0 0.0
    %2574 = vmatprep.subr.mxu0 0.0
    %2575 = vmatpush1.msra.mxu0 0.0
    %2576 = vmatprep.subr.mxu0 0.0
    %2577 = vmatpush1.msra.mxu0 0.0
    %2578 = vmatprep.subr.mxu0 0.0
    %2579 = vmatpush1.msra.mxu0 0.0
    %2580 = vmatprep.subr.mxu0 0.0
    %2581 = vmatpush1.msra.mxu0 0.0
    %2582 = vmatprep.subr.mxu0 0.0
    %2583 = vmatpush1.msra.mxu0 0.0
    %2584 = vmatprep.subr.mxu0 0.0
    %2585 = vmatpush1.msra.mxu0 0.0
    %2586 = vmatprep.subr.mxu0 0.0
    %2587 = vmatpush1.msra.mxu0 0.0
    %2588 = vmatprep.subr.mxu0 0.0
    %2589 = vmatpush1.msra.mxu0 0.0
    %2590 = vmatprep.subr.mxu0 0.0
    %2591 = vmatpush1.msra.mxu0 0.0
    %2592 = vmatprep.subr.mxu0 0.0
    %2593 = vmatpush1.msra.mxu0 0.0
    %2594 = vmatprep.subr.mxu0 0.0
    %2595 = vmatpush1.msra.mxu0 0.0
    %2596 = vmatprep.subr.mxu0 0.0
    %2597 = vmatpush1.msra.mxu0 0.0
    %2598 = vmatprep.subr.mxu0 0.0
    %2599 = vmatpush1.msra.mxu0 0.0
    %2600 = vmatprep.subr.mxu0 0.0
    %2601 = vmatpush1.msra.mxu0 0.0
    %2602 = vmatprep.subr.mxu0 0.0
    %2603 = vmatpush1.msra.mxu0 0.0
    %2604 = vmatprep.subr.mxu0 0.0
    %2605 = vmatpush1.msra.mxu0 0.0
    %2606 = vmatprep.subr.mxu0 0.0
    %2607 = vmatpush1.msra.mxu0 0.0
    %2608 = vmatprep.subr.mxu0 0.0
    %2609 = vmatpush1.msra.mxu0 0.0
    %2610 = vmatprep.subr.mxu0 0.0
    %2611 = vmatpush1.msra.mxu0 0.0
    %2612 = vmatprep.subr.mxu0 0.0
    %2613 = vmatpush1.msra.mxu0 0.0
    %2614 = vmatprep.subr.mxu0 0.0
    %2615 = vmatpush1.msra.mxu0 0.0
    %2616 = vmatprep.subr.mxu0 0.0
    %2617 = vmatpush1.msra.mxu0 0.0
    %2618 = vmatprep.subr.mxu0 0.0
    %2619 = vmatpush1.msra.mxu0 0.0
    %2620 = vmatprep.subr.mxu0 0.0
    %2621 = vmatpush1.msra.mxu0 0.0
    %2622 = vmatprep.mubr.f32.mxu0 0.0
    %2623 = vmatmul.mubr.f32.gmra.mrb[0].mxu0 %v2556
    %v2624 = vpop.f32.mrb[0].mxu0
    %v2625 = vadd.f32 0.0, %v2624
    %v2626 = vpop.f32.mrb[0].mxu0
    %2627 = vdwg.mxu0
    %2629 = vrot.lane.b32.xlu0 %v2625, 64
    %v2630 = vpop.permute.xlu0 %2629
    %2632 = vst.msk [vmem:[#allocation2] sm:$0xff] %vm921, %v2630
    %2633 = vrot.lane.b32.xlu0 %v2043, 32
    %v2634 = vpop.permute.xlu0 %2633
    %2635 = vrot.lane.b32.xlu0 %v2045, 32
    %v2636 = vpop.permute.xlu0 %2635
    %v2637 = vsel %vm411, %v2634, 0
    %v2639 = vsel %vm411, %v2636, 0
    %2641 = vmatprep.subr.mxu0 0.0
    %2642 = vmatpush1.xpose.msra.mxu0 %v2639
    %2643 = vmatprep.subr.mxu0 0.0
    %2644 = vmatpush1.xpose.msra.mxu0 0.0
    %2645 = vmatprep.subr.mxu0 0.0
    %2646 = vmatpush1.xpose.msra.mxu0 0.0
    %2647 = vmatprep.subr.mxu0 0.0
    %2648 = vmatpush1.xpose.msra.mxu0 0.0
    %2649 = vmatprep.subr.mxu0 0.0
    %2650 = vmatpush1.xpose.msra.mxu0 0.0
    %2651 = vmatprep.subr.mxu0 0.0
    %2652 = vmatpush1.xpose.msra.mxu0 0.0
    %2653 = vmatprep.subr.mxu0 0.0
    %2654 = vmatpush1.xpose.msra.mxu0 0.0
    %2655 = vmatprep.subr.mxu0 0.0
    %2656 = vmatpush1.xpose.msra.mxu0 0.0
    %2657 = vmatprep.subr.mxu0 0.0
    %2658 = vmatpush1.xpose.msra.mxu0 0.0
    %2659 = vmatprep.subr.mxu0 0.0
    %2660 = vmatpush1.xpose.msra.mxu0 0.0
    %2661 = vmatprep.subr.mxu0 0.0
    %2662 = vmatpush1.xpose.msra.mxu0 0.0
    %2663 = vmatprep.subr.mxu0 0.0
    %2664 = vmatpush1.xpose.msra.mxu0 0.0
    %2665 = vmatprep.subr.mxu0 0.0
    %2666 = vmatpush1.xpose.msra.mxu0 0.0
    %2667 = vmatprep.subr.mxu0 0.0
    %2668 = vmatpush1.xpose.msra.mxu0 0.0
    %2669 = vmatprep.subr.mxu0 0.0
    %2670 = vmatpush1.xpose.msra.mxu0 0.0
    %2671 = vmatprep.subr.mxu0 0.0
    %2672 = vmatpush1.xpose.msra.mxu0 0.0
    %2673 = vmatprep.subr.mxu0 0.0
    %2674 = vmatpush1.xpose.msra.mxu0 0.0
    %2675 = vmatprep.subr.mxu0 0.0
    %2676 = vmatpush1.xpose.msra.mxu0 0.0
    %2677 = vmatprep.subr.mxu0 0.0
    %2678 = vmatpush1.xpose.msra.mxu0 0.0
    %2679 = vmatprep.subr.mxu0 0.0
    %2680 = vmatpush1.xpose.msra.mxu0 0.0
    %2681 = vmatprep.subr.mxu0 0.0
    %2682 = vmatpush1.xpose.msra.mxu0 0.0
    %2683 = vmatprep.subr.mxu0 0.0
    %2684 = vmatpush1.xpose.msra.mxu0 0.0
    %2685 = vmatprep.subr.mxu0 0.0
    %2686 = vmatpush1.xpose.msra.mxu0 0.0
    %2687 = vmatprep.subr.mxu0 0.0
    %2688 = vmatpush1.xpose.msra.mxu0 0.0
    %2689 = vmatprep.subr.mxu0 0.0
    %2690 = vmatpush1.xpose.msra.mxu0 0.0
    %2691 = vmatprep.subr.mxu0 0.0
    %2692 = vmatpush1.xpose.msra.mxu0 0.0
    %2693 = vmatprep.subr.mxu0 0.0
    %2694 = vmatpush1.xpose.msra.mxu0 0.0
    %2695 = vmatprep.subr.mxu0 0.0
    %2696 = vmatpush1.xpose.msra.mxu0 0.0
    %2697 = vmatprep.subr.mxu0 0.0
    %2698 = vmatpush1.xpose.msra.mxu0 0.0
    %2699 = vmatprep.subr.mxu0 0.0
    %2700 = vmatpush1.xpose.msra.mxu0 0.0
    %2701 = vmatprep.subr.mxu0 0.0
    %2702 = vmatpush1.xpose.msra.mxu0 0.0
    %2703 = vmatprep.subr.mxu0 0.0
    %2704 = vmatpush1.xpose.msra.mxu0 0.0
    %2705 = vmatprep.mubr.f32.mxu0 0.0
    %2706 = vmatmul.mubr.f32.gmra.mrb[0].mxu0 %v2637
    %v2707 = vpop.f32.mrb[0].mxu0
    %v2708 = vadd.f32 0.0, %v2707
    %v2709 = vpop.f32.mrb[0].mxu0
    %2710 = vdwg.mxu0
    %v2711 = vmul.f32 %v2708, 0.17677669
    %v2712 = vsel %vm490, %v2711, -inf
    %2713 = vmax.xlane.f32.xlu0 %v2712
    %v2714 = vpop.xlane.xlu0 %2713
    %v2715 = vsub.f32 %v2711, %v2714
    %v2716 = vmul.f32 %v2715, 1.442695
    %v2717 = vpow.pop %v2716
    %v2718 = vsel %vm490, %v2717, 0.0
    %2719 = vadd.xlane.f32.xlu0 %v2718
    %v2720 = vpop.xlane.xlu0 %2719
    %v2721 = vrcp.pop %v2720
    %v2722 = vmul.f32 %v2717, %v2721
    %2723 = vrot.lane.b32.xlu0 %v2120, 32
    %v2724 = vpop.permute.xlu0 %2723
    %v2727 = vsel %vm490, %v2722, 0
    %2729 = vmatprep.subr.mxu0 0.0
    %2730 = vmatpush1.msra.mxu0 %v2724
    %2731 = vmatprep.subr.mxu0 0.0
    %2732 = vmatpush1.msra.mxu0 0.0
    %2733 = vmatprep.subr.mxu0 0.0
    %2734 = vmatpush1.msra.mxu0 0.0
    %2735 = vmatprep.subr.mxu0 0.0
    %2736 = vmatpush1.msra.mxu0 0.0
    %2737 = vmatprep.subr.mxu0 0.0
    %2738 = vmatpush1.msra.mxu0 0.0
    %2739 = vmatprep.subr.mxu0 0.0
    %2740 = vmatpush1.msra.mxu0 0.0
    %2741 = vmatprep.subr.mxu0 0.0
    %2742 = vmatpush1.msra.mxu0 0.0
    %2743 = vmatprep.subr.mxu0 0.0
    %2744 = vmatpush1.msra.mxu0 0.0
    %2745 = vmatprep.subr.mxu0 0.0
    %2746 = vmatpush1.msra.mxu0 0.0
    %2747 = vmatprep.subr.mxu0 0.0
    %2748 = vmatpush1.msra.mxu0 0.0
    %2749 = vmatprep.subr.mxu0 0.0
    %2750 = vmatpush1.msra.mxu0 0.0
    %2751 = vmatprep.subr.mxu0 0.0
    %2752 = vmatpush1.msra.mxu0 0.0
    %2753 = vmatprep.subr.mxu0 0.0
    %2754 = vmatpush1.msra.mxu0 0.0
    %2755 = vmatprep.subr.mxu0 0.0
    %2756 = vmatpush1.msra.mxu0 0.0
    %2757 = vmatprep.subr.mxu0 0.0
    %2758 = vmatpush1.msra.mxu0 0.0
    %2759 = vmatprep.subr.mxu0 0.0
    %2760 = vmatpush1.msra.mxu0 0.0
    %2761 = vmatprep.subr.mxu0 0.0
    %2762 = vmatpush1.msra.mxu0 0.0
    %2763 = vmatprep.subr.mxu0 0.0
    %2764 = vmatpush1.msra.mxu0 0.0
    %2765 = vmatprep.subr.mxu0 0.0
    %2766 = vmatpush1.msra.mxu0 0.0
    %2767 = vmatprep.subr.mxu0 0.0
    %2768 = vmatpush1.msra.mxu0 0.0
    %2769 = vmatprep.subr.mxu0 0.0
    %2770 = vmatpush1.msra.mxu0 0.0
    %2771 = vmatprep.subr.mxu0 0.0
    %2772 = vmatpush1.msra.mxu0 0.0
    %2773 = vmatprep.subr.mxu0 0.0
    %2774 = vmatpush1.msra.mxu0 0.0
    %2775 = vmatprep.subr.mxu0 0.0
    %2776 = vmatpush1.msra.mxu0 0.0
    %2777 = vmatprep.subr.mxu0 0.0
    %2778 = vmatpush1.msra.mxu0 0.0
    %2779 = vmatprep.subr.mxu0 0.0
    %2780 = vmatpush1.msra.mxu0 0.0
    %2781 = vmatprep.subr.mxu0 0.0
    %2782 = vmatpush1.msra.mxu0 0.0
    %2783 = vmatprep.subr.mxu0 0.0
    %2784 = vmatpush1.msra.mxu0 0.0
    %2785 = vmatprep.subr.mxu0 0.0
    %2786 = vmatpush1.msra.mxu0 0.0
    %2787 = vmatprep.subr.mxu0 0.0
    %2788 = vmatpush1.msra.mxu0 0.0
    %2789 = vmatprep.subr.mxu0 0.0
    %2790 = vmatpush1.msra.mxu0 0.0
    %2791 = vmatprep.subr.mxu0 0.0
    %2792 = vmatpush1.msra.mxu0 0.0
    %2793 = vmatprep.mubr.f32.mxu0 0.0
    %2794 = vmatmul.mubr.f32.gmra.mrb[0].mxu0 %v2727
    %v2795 = vpop.f32.mrb[0].mxu0
    %v2796 = vadd.f32 0.0, %v2795
    %v2797 = vpop.f32.mrb[0].mxu0
    %2798 = vdwg.mxu0
    %2800 = vrot.lane.b32.xlu0 %v2796, 96
    %v2801 = vpop.permute.xlu0 %2800
    %2803 = vst.msk [vmem:[#allocation2] sm:$0xff] %vm1094, %v2801
    %v2805 = vsel %vm411, %v2049, 0
    %v2808 = vsel %vm411, %v2051, 0
    %2810 = vmatprep.subr.mxu0 0.0
    %2811 = vmatpush1.xpose.msra.mxu0 %v2808
    %2812 = vmatprep.subr.mxu0 0.0
    %2813 = vmatpush1.xpose.msra.mxu0 0.0
    %2814 = vmatprep.subr.mxu0 0.0
    %2815 = vmatpush1.xpose.msra.mxu0 0.0
    %2816 = vmatprep.subr.mxu0 0.0
    %2817 = vmatpush1.xpose.msra.mxu0 0.0
    %2818 = vmatprep.subr.mxu0 0.0
    %2819 = vmatpush1.xpose.msra.mxu0 0.0
    %2820 = vmatprep.subr.mxu0 0.0
    %2821 = vmatpush1.xpose.msra.mxu0 0.0
    %2822 = vmatprep.subr.mxu0 0.0
    %2823 = vmatpush1.xpose.msra.mxu0 0.0
    %2824 = vmatprep.subr.mxu0 0.0
    %2825 = vmatpush1.xpose.msra.mxu0 0.0
    %2826 = vmatprep.subr.mxu0 0.0
    %2827 = vmatpush1.xpose.msra.mxu0 0.0
    %2828 = vmatprep.subr.mxu0 0.0
    %2829 = vmatpush1.xpose.msra.mxu0 0.0
    %2830 = vmatprep.subr.mxu0 0.0
    %2831 = vmatpush1.xpose.msra.mxu0 0.0
    %2832 = vmatprep.subr.mxu0 0.0
    %2833 = vmatpush1.xpose.msra.mxu0 0.0
    %2834 = vmatprep.subr.mxu0 0.0
    %2835 = vmatpush1.xpose.msra.mxu0 0.0
    %2836 = vmatprep.subr.mxu0 0.0
    %2837 = vmatpush1.xpose.msra.mxu0 0.0
    %2838 = vmatprep.subr.mxu0 0.0
    %2839 = vmatpush1.xpose.msra.mxu0 0.0
    %2840 = vmatprep.subr.mxu0 0.0
    %2841 = vmatpush1.xpose.msra.mxu0 0.0
    %2842 = vmatprep.subr.mxu0 0.0
    %2843 = vmatpush1.xpose.msra.mxu0 0.0
    %2844 = vmatprep.subr.mxu0 0.0
    %2845 = vmatpush1.xpose.msra.mxu0 0.0
    %2846 = vmatprep.subr.mxu0 0.0
    %2847 = vmatpush1.xpose.msra.mxu0 0.0
    %2848 = vmatprep.subr.mxu0 0.0
    %2849 = vmatpush1.xpose.msra.mxu0 0.0
    %2850 = vmatprep.subr.mxu0 0.0
    %2851 = vmatpush1.xpose.msra.mxu0 0.0
    %2852 = vmatprep.subr.mxu0 0.0
    %2853 = vmatpush1.xpose.msra.mxu0 0.0
    %2854 = vmatprep.subr.mxu0 0.0
    %2855 = vmatpush1.xpose.msra.mxu0 0.0
    %2856 = vmatprep.subr.mxu0 0.0
    %2857 = vmatpush1.xpose.msra.mxu0 0.0
    %2858 = vmatprep.subr.mxu0 0.0
    %2859 = vmatpush1.xpose.msra.mxu0 0.0
    %2860 = vmatprep.subr.mxu0 0.0
    %2861 = vmatpush1.xpose.msra.mxu0 0.0
    %2862 = vmatprep.subr.mxu0 0.0
    %2863 = vmatpush1.xpose.msra.mxu0 0.0
    %2864 = vmatprep.subr.mxu0 0.0
    %2865 = vmatpush1.xpose.msra.mxu0 0.0
    %2866 = vmatprep.subr.mxu0 0.0
    %2867 = vmatpush1.xpose.msra.mxu0 0.0
    %2868 = vmatprep.subr.mxu0 0.0
    %2869 = vmatpush1.xpose.msra.mxu0 0.0
    %2870 = vmatprep.subr.mxu0 0.0
    %2871 = vmatpush1.xpose.msra.mxu0 0.0
    %2872 = vmatprep.subr.mxu0 0.0
    %2873 = vmatpush1.xpose.msra.mxu0 0.0
    %2874 = vmatprep.mubr.f32.mxu0 0.0
    %2875 = vmatmul.mubr.f32.gmra.mrb[0].mxu0 %v2805
    %v2876 = vpop.f32.mrb[0].mxu0
    %v2877 = vadd.f32 0.0, %v2876
    %v2878 = vpop.f32.mrb[0].mxu0
    %2879 = vdwg.mxu0
    %v2880 = vmul.f32 %v2877, 0.17677669
    %v2881 = vsel %vm490, %v2880, -inf
    %2882 = vmax.xlane.f32.xlu0 %v2881
    %v2883 = vpop.xlane.xlu0 %2882
    %v2884 = vsub.f32 %v2880, %v2883
    %v2885 = vmul.f32 %v2884, 1.442695
    %v2886 = vpow.pop %v2885
    %v2887 = vsel %vm490, %v2886, 0.0
    %2888 = vadd.xlane.f32.xlu0 %v2887
    %v2889 = vpop.xlane.xlu0 %2888
    %v2890 = vrcp.pop %v2889
    %v2891 = vmul.f32 %v2886, %v2890
    %v2893 = vsel %vm490, %v2891, 0
    %2895 = vmatprep.subr.mxu0 0.0
    %2896 = vmatpush1.msra.mxu0 %v2125
    %2897 = vmatprep.subr.mxu0 0.0
    %2898 = vmatpush1.msra.mxu0 0.0
    %2899 = vmatprep.subr.mxu0 0.0
    %2900 = vmatpush1.msra.mxu0 0.0
    %2901 = vmatprep.subr.mxu0 0.0
    %2902 = vmatpush1.msra.mxu0 0.0
    %2903 = vmatprep.subr.mxu0 0.0
    %2904 = vmatpush1.msra.mxu0 0.0
    %2905 = vmatprep.subr.mxu0 0.0
    %2906 = vmatpush1.msra.mxu0 0.0
    %2907 = vmatprep.subr.mxu0 0.0
    %2908 = vmatpush1.msra.mxu0 0.0
    %2909 = vmatprep.subr.mxu0 0.0
    %2910 = vmatpush1.msra.mxu0 0.0
    %2911 = vmatprep.subr.mxu0 0.0
    %2912 = vmatpush1.msra.mxu0 0.0
    %2913 = vmatprep.subr.mxu0 0.0
    %2914 = vmatpush1.msra.mxu0 0.0
    %2915 = vmatprep.subr.mxu0 0.0
    %2916 = vmatpush1.msra.mxu0 0.0
    %2917 = vmatprep.subr.mxu0 0.0
    %2918 = vmatpush1.msra.mxu0 0.0
    %2919 = vmatprep.subr.mxu0 0.0
    %2920 = vmatpush1.msra.mxu0 0.0
    %2921 = vmatprep.subr.mxu0 0.0
    %2922 = vmatpush1.msra.mxu0 0.0
    %2923 = vmatprep.subr.mxu0 0.0
    %2924 = vmatpush1.msra.mxu0 0.0
    %2925 = vmatprep.subr.mxu0 0.0
    %2926 = vmatpush1.msra.mxu0 0.0
    %2927 = vmatprep.subr.mxu0 0.0
    %2928 = vmatpush1.msra.mxu0 0.0
    %2929 = vmatprep.subr.mxu0 0.0
    %2930 = vmatpush1.msra.mxu0 0.0
    %2931 = vmatprep.subr.mxu0 0.0
    %2932 = vmatpush1.msra.mxu0 0.0
    %2933 = vmatprep.subr.mxu0 0.0
    %2934 = vmatpush1.msra.mxu0 0.0
    %2935 = vmatprep.subr.mxu0 0.0
    %2936 = vmatpush1.msra.mxu0 0.0
    %2937 = vmatprep.subr.mxu0 0.0
    %2938 = vmatpush1.msra.mxu0 0.0
    %2939 = vmatprep.subr.mxu0 0.0
    %2940 = vmatpush1.msra.mxu0 0.0
    %2941 = vmatprep.subr.mxu0 0.0
    %2942 = vmatpush1.msra.mxu0 0.0
    %2943 = vmatprep.subr.mxu0 0.0
    %2944 = vmatpush1.msra.mxu0 0.0
    %2945 = vmatprep.subr.mxu0 0.0
    %2946 = vmatpush1.msra.mxu0 0.0
    %2947 = vmatprep.subr.mxu0 0.0
    %2948 = vmatpush1.msra.mxu0 0.0
    %2949 = vmatprep.subr.mxu0 0.0
    %2950 = vmatpush1.msra.mxu0 0.0
    %2951 = vmatprep.subr.mxu0 0.0
    %2952 = vmatpush1.msra.mxu0 0.0
    %2953 = vmatprep.subr.mxu0 0.0
    %2954 = vmatpush1.msra.mxu0 0.0
    %2955 = vmatprep.subr.mxu0 0.0
    %2956 = vmatpush1.msra.mxu0 0.0
    %2957 = vmatprep.subr.mxu0 0.0
    %2958 = vmatpush1.msra.mxu0 0.0
    %2959 = vmatprep.mubr.f32.mxu0 0.0
    %2960 = vmatmul.mubr.f32.gmra.mrb[0].mxu0 %v2893
    %v2961 = vpop.f32.mrb[0].mxu0
    %v2962 = vadd.f32 0.0, %v2961
    %v2963 = vpop.f32.mrb[0].mxu0
    %2964 = vdwg.mxu0
    %2965 = vst.msk [vmem:[#allocation2 + $0x8] sm:$0xff] %vm411, %v2962
    %2966 = vrot.lane.b32.xlu0 %v2049, 96
    %v2967 = vpop.permute.xlu0 %2966
    %2968 = vrot.lane.b32.xlu0 %v2051, 96
    %v2969 = vpop.permute.xlu0 %2968
    %v2970 = vsel %vm411, %v2967, 0
    %v2972 = vsel %vm411, %v2969, 0
    %2974 = vmatprep.subr.mxu0 0.0
    %2975 = vmatpush1.xpose.msra.mxu0 %v2972
    %2976 = vmatprep.subr.mxu0 0.0
    %2977 = vmatpush1.xpose.msra.mxu0 0.0
    %2978 = vmatprep.subr.mxu0 0.0
    %2979 = vmatpush1.xpose.msra.mxu0 0.0
    %2980 = vmatprep.subr.mxu0 0.0
    %2981 = vmatpush1.xpose.msra.mxu0 0.0
    %2982 = vmatprep.subr.mxu0 0.0
    %2983 = vmatpush1.xpose.msra.mxu0 0.0
    %2984 = vmatprep.subr.mxu0 0.0
    %2985 = vmatpush1.xpose.msra.mxu0 0.0
    %2986 = vmatprep.subr.mxu0 0.0
    %2987 = vmatpush1.xpose.msra.mxu0 0.0
    %2988 = vmatprep.subr.mxu0 0.0
    %2989 = vmatpush1.xpose.msra.mxu0 0.0
    %2990 = vmatprep.subr.mxu0 0.0
    %2991 = vmatpush1.xpose.msra.mxu0 0.0
    %2992 = vmatprep.subr.mxu0 0.0
    %2993 = vmatpush1.xpose.msra.mxu0 0.0
    %2994 = vmatprep.subr.mxu0 0.0
    %2995 = vmatpush1.xpose.msra.mxu0 0.0
    %2996 = vmatprep.subr.mxu0 0.0
    %2997 = vmatpush1.xpose.msra.mxu0 0.0
    %2998 = vmatprep.subr.mxu0 0.0
    %2999 = vmatpush1.xpose.msra.mxu0 0.0
    %3000 = vmatprep.subr.mxu0 0.0
    %3001 = vmatpush1.xpose.msra.mxu0 0.0
    %3002 = vmatprep.subr.mxu0 0.0
    %3003 = vmatpush1.xpose.msra.mxu0 0.0
    %3004 = vmatprep.subr.mxu0 0.0
    %3005 = vmatpush1.xpose.msra.mxu0 0.0
    %3006 = vmatprep.subr.mxu0 0.0
    %3007 = vmatpush1.xpose.msra.mxu0 0.0
    %3008 = vmatprep.subr.mxu0 0.0
    %3009 = vmatpush1.xpose.msra.mxu0 0.0
    %3010 = vmatprep.subr.mxu0 0.0
    %3011 = vmatpush1.xpose.msra.mxu0 0.0
    %3012 = vmatprep.subr.mxu0 0.0
    %3013 = vmatpush1.xpose.msra.mxu0 0.0
    %3014 = vmatprep.subr.mxu0 0.0
    %3015 = vmatpush1.xpose.msra.mxu0 0.0
    %3016 = vmatprep.subr.mxu0 0.0
    %3017 = vmatpush1.xpose.msra.mxu0 0.0
    %3018 = vmatprep.subr.mxu0 0.0
    %3019 = vmatpush1.xpose.msra.mxu0 0.0
    %3020 = vmatprep.subr.mxu0 0.0
    %3021 = vmatpush1.xpose.msra.mxu0 0.0
    %3022 = vmatprep.subr.mxu0 0.0
    %3023 = vmatpush1.xpose.msra.mxu0 0.0
    %3024 = vmatprep.subr.mxu0 0.0
    %3025 = vmatpush1.xpose.msra.mxu0 0.0
    %3026 = vmatprep.subr.mxu0 0.0
    %3027 = vmatpush1.xpose.msra.mxu0 0.0
    %3028 = vmatprep.subr.mxu0 0.0
    %3029 = vmatpush1.xpose.msra.mxu0 0.0
    %3030 = vmatprep.subr.mxu0 0.0
    %3031 = vmatpush1.xpose.msra.mxu0 0.0
    %3032 = vmatprep.subr.mxu0 0.0
    %3033 = vmatpush1.xpose.msra.mxu0 0.0
    %3034 = vmatprep.subr.mxu0 0.0
    %3035 = vmatpush1.xpose.msra.mxu0 0.0
    %3036 = vmatprep.subr.mxu0 0.0
    %3037 = vmatpush1.xpose.msra.mxu0 0.0
    %3038 = vmatprep.mubr.f32.mxu0 0.0
    %3039 = vmatmul.mubr.f32.gmra.mrb[0].mxu0 %v2970
    %v3040 = vpop.f32.mrb[0].mxu0
    %v3041 = vadd.f32 0.0, %v3040
    %v3042 = vpop.f32.mrb[0].mxu0
    %3043 = vdwg.mxu0
    %v3044 = vmul.f32 %v3041, 0.17677669
    %v3045 = vsel %vm490, %v3044, -inf
    %3046 = vmax.xlane.f32.xlu0 %v3045
    %v3047 = vpop.xlane.xlu0 %3046
    %v3048 = vsub.f32 %v3044, %v3047
    %v3049 = vmul.f32 %v3048, 1.442695
    %v3050 = vpow.pop %v3049
    %v3051 = vsel %vm490, %v3050, 0.0
    %3052 = vadd.xlane.f32.xlu0 %v3051
    %v3053 = vpop.xlane.xlu0 %3052
    %v3054 = vrcp.pop %v3053
    %v3055 = vmul.f32 %v3050, %v3054
    %3057 = vrot.lane.b32.xlu0 %v2125, 96
    %v3058 = vpop.permute.xlu0 %3057
    %v3061 = vsel %vm490, %v3055, 0
    %3063 = vmatprep.subr.mxu0 0.0
    %3064 = vmatpush1.msra.mxu0 %v3058
    %3065 = vmatprep.subr.mxu0 0.0
    %3066 = vmatpush1.msra.mxu0 0.0
    %3067 = vmatprep.subr.mxu0 0.0
    %3068 = vmatpush1.msra.mxu0 0.0
    %3069 = vmatprep.subr.mxu0 0.0
    %3070 = vmatpush1.msra.mxu0 0.0
    %3071 = vmatprep.subr.mxu0 0.0
    %3072 = vmatpush1.msra.mxu0 0.0
    %3073 = vmatprep.subr.mxu0 0.0
    %3074 = vmatpush1.msra.mxu0 0.0
    %3075 = vmatprep.subr.mxu0 0.0
    %3076 = vmatpush1.msra.mxu0 0.0
    %3077 = vmatprep.subr.mxu0 0.0
    %3078 = vmatpush1.msra.mxu0 0.0
    %3079 = vmatprep.subr.mxu0 0.0
    %3080 = vmatpush1.msra.mxu0 0.0
    %3081 = vmatprep.subr.mxu0 0.0
    %3082 = vmatpush1.msra.mxu0 0.0
    %3083 = vmatprep.subr.mxu0 0.0
    %3084 = vmatpush1.msra.mxu0 0.0
    %3085 = vmatprep.subr.mxu0 0.0
    %3086 = vmatpush1.msra.mxu0 0.0
    %3087 = vmatprep.subr.mxu0 0.0
    %3088 = vmatpush1.msra.mxu0 0.0
    %3089 = vmatprep.subr.mxu0 0.0
    %3090 = vmatpush1.msra.mxu0 0.0
    %3091 = vmatprep.subr.mxu0 0.0
    %3092 = vmatpush1.msra.mxu0 0.0
    %3093 = vmatprep.subr.mxu0 0.0
    %3094 = vmatpush1.msra.mxu0 0.0
    %3095 = vmatprep.subr.mxu0 0.0
    %3096 = vmatpush1.msra.mxu0 0.0
    %3097 = vmatprep.subr.mxu0 0.0
    %3098 = vmatpush1.msra.mxu0 0.0
    %3099 = vmatprep.subr.mxu0 0.0
    %3100 = vmatpush1.msra.mxu0 0.0
    %3101 = vmatprep.subr.mxu0 0.0
    %3102 = vmatpush1.msra.mxu0 0.0
    %3103 = vmatprep.subr.mxu0 0.0
    %3104 = vmatpush1.msra.mxu0 0.0
    %3105 = vmatprep.subr.mxu0 0.0
    %3106 = vmatpush1.msra.mxu0 0.0
    %3107 = vmatprep.subr.mxu0 0.0
    %3108 = vmatpush1.msra.mxu0 0.0
    %3109 = vmatprep.subr.mxu0 0.0
    %3110 = vmatpush1.msra.mxu0 0.0
    %3111 = vmatprep.subr.mxu0 0.0
    %3112 = vmatpush1.msra.mxu0 0.0
    %3113 = vmatprep.subr.mxu0 0.0
    %3114 = vmatpush1.msra.mxu0 0.0
    %3115 = vmatprep.subr.mxu0 0.0
    %3116 = vmatpush1.msra.mxu0 0.0
    %3117 = vmatprep.subr.mxu0 0.0
    %3118 = vmatpush1.msra.mxu0 0.0
    %3119 = vmatprep.subr.mxu0 0.0
    %3120 = vmatpush1.msra.mxu0 0.0
    %3121 = vmatprep.subr.mxu0 0.0
    %3122 = vmatpush1.msra.mxu0 0.0
    %3123 = vmatprep.subr.mxu0 0.0
    %3124 = vmatpush1.msra.mxu0 0.0
    %3125 = vmatprep.subr.mxu0 0.0
    %3126 = vmatpush1.msra.mxu0 0.0
    %3127 = vmatprep.mubr.f32.mxu0 0.0
    %3128 = vmatmul.mubr.f32.gmra.mrb[0].mxu0 %v3061
    %v3129 = vpop.f32.mrb[0].mxu0
    %v3130 = vadd.f32 0.0, %v3129
    %v3131 = vpop.f32.mrb[0].mxu0
    %3132 = vdwg.mxu0
    %3134 = vrot.lane.b32.xlu0 %v3130, 32
    %v3135 = vpop.permute.xlu0 %3134
    %3137 = vst.msk [vmem:[#allocation2 + $0x8] sm:$0xff] %vm748, %v3135
    %3138 = vrot.lane.b32.xlu0 %v2049, 64
    %v3139 = vpop.permute.xlu0 %3138
    %3140 = vrot.lane.b32.xlu0 %v2051, 64
    %v3141 = vpop.permute.xlu0 %3140
    %v3142 = vsel %vm411, %v3139, 0
    %v3144 = vsel %vm411, %v3141, 0
    %3146 = vmatprep.subr.mxu0 0.0
    %3147 = vmatpush1.xpose.msra.mxu0 %v3144
    %3148 = vmatprep.subr.mxu0 0.0
    %3149 = vmatpush1.xpose.msra.mxu0 0.0
    %3150 = vmatprep.subr.mxu0 0.0
    %3151 = vmatpush1.xpose.msra.mxu0 0.0
    %3152 = vmatprep.subr.mxu0 0.0
    %3153 = vmatpush1.xpose.msra.mxu0 0.0
    %3154 = vmatprep.subr.mxu0 0.0
    %3155 = vmatpush1.xpose.msra.mxu0 0.0
    %3156 = vmatprep.subr.mxu0 0.0
    %3157 = vmatpush1.xpose.msra.mxu0 0.0
    %3158 = vmatprep.subr.mxu0 0.0
    %3159 = vmatpush1.xpose.msra.mxu0 0.0
    %3160 = vmatprep.subr.mxu0 0.0
    %3161 = vmatpush1.xpose.msra.mxu0 0.0
    %3162 = vmatprep.subr.mxu0 0.0
    %3163 = vmatpush1.xpose.msra.mxu0 0.0
    %3164 = vmatprep.subr.mxu0 0.0
    %3165 = vmatpush1.xpose.msra.mxu0 0.0
    %3166 = vmatprep.subr.mxu0 0.0
    %3167 = vmatpush1.xpose.msra.mxu0 0.0
    %3168 = vmatprep.subr.mxu0 0.0
    %3169 = vmatpush1.xpose.msra.mxu0 0.0
    %3170 = vmatprep.subr.mxu0 0.0
    %3171 = vmatpush1.xpose.msra.mxu0 0.0
    %3172 = vmatprep.subr.mxu0 0.0
    %3173 = vmatpush1.xpose.msra.mxu0 0.0
    %3174 = vmatprep.subr.mxu0 0.0
    %3175 = vmatpush1.xpose.msra.mxu0 0.0
    %3176 = vmatprep.subr.mxu0 0.0
    %3177 = vmatpush1.xpose.msra.mxu0 0.0
    %3178 = vmatprep.subr.mxu0 0.0
    %3179 = vmatpush1.xpose.msra.mxu0 0.0
    %3180 = vmatprep.subr.mxu0 0.0
    %3181 = vmatpush1.xpose.msra.mxu0 0.0
    %3182 = vmatprep.subr.mxu0 0.0
    %3183 = vmatpush1.xpose.msra.mxu0 0.0
    %3184 = vmatprep.subr.mxu0 0.0
    %3185 = vmatpush1.xpose.msra.mxu0 0.0
    %3186 = vmatprep.subr.mxu0 0.0
    %3187 = vmatpush1.xpose.msra.mxu0 0.0
    %3188 = vmatprep.subr.mxu0 0.0
    %3189 = vmatpush1.xpose.msra.mxu0 0.0
    %3190 = vmatprep.subr.mxu0 0.0
    %3191 = vmatpush1.xpose.msra.mxu0 0.0
    %3192 = vmatprep.subr.mxu0 0.0
    %3193 = vmatpush1.xpose.msra.mxu0 0.0
    %3194 = vmatprep.subr.mxu0 0.0
    %3195 = vmatpush1.xpose.msra.mxu0 0.0
    %3196 = vmatprep.subr.mxu0 0.0
    %3197 = vmatpush1.xpose.msra.mxu0 0.0
    %3198 = vmatprep.subr.mxu0 0.0
    %3199 = vmatpush1.xpose.msra.mxu0 0.0
    %3200 = vmatprep.subr.mxu0 0.0
    %3201 = vmatpush1.xpose.msra.mxu0 0.0
    %3202 = vmatprep.subr.mxu0 0.0
    %3203 = vmatpush1.xpose.msra.mxu0 0.0
    %3204 = vmatprep.subr.mxu0 0.0
    %3205 = vmatpush1.xpose.msra.mxu0 0.0
    %3206 = vmatprep.subr.mxu0 0.0
    %3207 = vmatpush1.xpose.msra.mxu0 0.0
    %3208 = vmatprep.subr.mxu0 0.0
    %3209 = vmatpush1.xpose.msra.mxu0 0.0
    %3210 = vmatprep.mubr.f32.mxu0 0.0
    %3211 = vmatmul.mubr.f32.gmra.mrb[0].mxu0 %v3142
    %v3212 = vpop.f32.mrb[0].mxu0
    %v3213 = vadd.f32 0.0, %v3212
    %v3214 = vpop.f32.mrb[0].mxu0
    %3215 = vdwg.mxu0
    %v3216 = vmul.f32 %v3213, 0.17677669
    %v3217 = vsel %vm490, %v3216, -inf
    %3218 = vmax.xlane.f32.xlu0 %v3217
    %v3219 = vpop.xlane.xlu0 %3218
    %v3220 = vsub.f32 %v3216, %v3219
    %v3221 = vmul.f32 %v3220, 1.442695
    %v3222 = vpow.pop %v3221
    %v3223 = vsel %vm490, %v3222, 0.0
    %3224 = vadd.xlane.f32.xlu0 %v3223
    %v3225 = vpop.xlane.xlu0 %3224
    %v3226 = vrcp.pop %v3225
    %v3227 = vmul.f32 %v3222, %v3226
    %3228 = vrot.lane.b32.xlu0 %v2125, 64
    %v3229 = vpop.permute.xlu0 %3228
    %v3232 = vsel %vm490, %v3227, 0
    %3234 = vmatprep.subr.mxu0 0.0
    %3235 = vmatpush1.msra.mxu0 %v3229
    %3236 = vmatprep.subr.mxu0 0.0
    %3237 = vmatpush1.msra.mxu0 0.0
    %3238 = vmatprep.subr.mxu0 0.0
    %3239 = vmatpush1.msra.mxu0 0.0
    %3240 = vmatprep.subr.mxu0 0.0
    %3241 = vmatpush1.msra.mxu0 0.0
    %3242 = vmatprep.subr.mxu0 0.0
    %3243 = vmatpush1.msra.mxu0 0.0
    %3244 = vmatprep.subr.mxu0 0.0
    %3245 = vmatpush1.msra.mxu0 0.0
    %3246 = vmatprep.subr.mxu0 0.0
    %3247 = vmatpush1.msra.mxu0 0.0
    %3248 = vmatprep.subr.mxu0 0.0
    %3249 = vmatpush1.msra.mxu0 0.0
    %3250 = vmatprep.subr.mxu0 0.0
    %3251 = vmatpush1.msra.mxu0 0.0
    %3252 = vmatprep.subr.mxu0 0.0
    %3253 = vmatpush1.msra.mxu0 0.0
    %3254 = vmatprep.subr.mxu0 0.0
    %3255 = vmatpush1.msra.mxu0 0.0
    %3256 = vmatprep.subr.mxu0 0.0
    %3257 = vmatpush1.msra.mxu0 0.0
    %3258 = vmatprep.subr.mxu0 0.0
    %3259 = vmatpush1.msra.mxu0 0.0
    %3260 = vmatprep.subr.mxu0 0.0
    %3261 = vmatpush1.msra.mxu0 0.0
    %3262 = vmatprep.subr.mxu0 0.0
    %3263 = vmatpush1.msra.mxu0 0.0
    %3264 = vmatprep.subr.mxu0 0.0
    %3265 = vmatpush1.msra.mxu0 0.0
    %3266 = vmatprep.subr.mxu0 0.0
    %3267 = vmatpush1.msra.mxu0 0.0
    %3268 = vmatprep.subr.mxu0 0.0
    %3269 = vmatpush1.msra.mxu0 0.0
    %3270 = vmatprep.subr.mxu0 0.0
    %3271 = vmatpush1.msra.mxu0 0.0
    %3272 = vmatprep.subr.mxu0 0.0
    %3273 = vmatpush1.msra.mxu0 0.0
    %3274 = vmatprep.subr.mxu0 0.0
    %3275 = vmatpush1.msra.mxu0 0.0
    %3276 = vmatprep.subr.mxu0 0.0
    %3277 = vmatpush1.msra.mxu0 0.0
    %3278 = vmatprep.subr.mxu0 0.0
    %3279 = vmatpush1.msra.mxu0 0.0
    %3280 = vmatprep.subr.mxu0 0.0
    %3281 = vmatpush1.msra.mxu0 0.0
    %3282 = vmatprep.subr.mxu0 0.0
    %3283 = vmatpush1.msra.mxu0 0.0
    %3284 = vmatprep.subr.mxu0 0.0
    %3285 = vmatpush1.msra.mxu0 0.0
    %3286 = vmatprep.subr.mxu0 0.0
    %3287 = vmatpush1.msra.mxu0 0.0
    %3288 = vmatprep.subr.mxu0 0.0
    %3289 = vmatpush1.msra.mxu0 0.0
    %3290 = vmatprep.subr.mxu0 0.0
    %3291 = vmatpush1.msra.mxu0 0.0
    %3292 = vmatprep.subr.mxu0 0.0
    %3293 = vmatpush1.msra.mxu0 0.0
    %3294 = vmatprep.subr.mxu0 0.0
    %3295 = vmatpush1.msra.mxu0 0.0
    %3296 = vmatprep.subr.mxu0 0.0
    %3297 = vmatpush1.msra.mxu0 0.0
    %3298 = vmatprep.mubr.f32.mxu0 0.0
    %3299 = vmatmul.mubr.f32.gmra.mrb[0].mxu0 %v3232
    %v3300 = vpop.f32.mrb[0].mxu0
    %v3301 = vadd.f32 0.0, %v3300
    %v3302 = vpop.f32.mrb[0].mxu0
    %3303 = vdwg.mxu0
    %3305 = vrot.lane.b32.xlu0 %v3301, 64
    %v3306 = vpop.permute.xlu0 %3305
    %3308 = vst.msk [vmem:[#allocation2 + $0x8] sm:$0xff] %vm921, %v3306
    %3309 = vrot.lane.b32.xlu0 %v2049, 32
    %v3310 = vpop.permute.xlu0 %3309
    %3311 = vrot.lane.b32.xlu0 %v2051, 32
    %v3312 = vpop.permute.xlu0 %3311
    %v3313 = vsel %vm411, %v3310, 0
    %v3315 = vsel %vm411, %v3312, 0
    %3317 = vmatprep.subr.mxu0 0.0
    %3318 = vmatpush1.xpose.msra.mxu0 %v3315
    %3319 = vmatprep.subr.mxu0 0.0
    %3320 = vmatpush1.xpose.msra.mxu0 0.0
    %3321 = vmatprep.subr.mxu0 0.0
    %3322 = vmatpush1.xpose.msra.mxu0 0.0
    %3323 = vmatprep.subr.mxu0 0.0
    %3324 = vmatpush1.xpose.msra.mxu0 0.0
    %3325 = vmatprep.subr.mxu0 0.0
    %3326 = vmatpush1.xpose.msra.mxu0 0.0
    %3327 = vmatprep.subr.mxu0 0.0
    %3328 = vmatpush1.xpose.msra.mxu0 0.0
    %3329 = vmatprep.subr.mxu0 0.0
    %3330 = vmatpush1.xpose.msra.mxu0 0.0
    %3331 = vmatprep.subr.mxu0 0.0
    %3332 = vmatpush1.xpose.msra.mxu0 0.0
    %3333 = vmatprep.subr.mxu0 0.0
    %3334 = vmatpush1.xpose.msra.mxu0 0.0
    %3335 = vmatprep.subr.mxu0 0.0
    %3336 = vmatpush1.xpose.msra.mxu0 0.0
    %3337 = vmatprep.subr.mxu0 0.0
    %3338 = vmatpush1.xpose.msra.mxu0 0.0
    %3339 = vmatprep.subr.mxu0 0.0
    %3340 = vmatpush1.xpose.msra.mxu0 0.0
    %3341 = vmatprep.subr.mxu0 0.0
    %3342 = vmatpush1.xpose.msra.mxu0 0.0
    %3343 = vmatprep.subr.mxu0 0.0
    %3344 = vmatpush1.xpose.msra.mxu0 0.0
    %3345 = vmatprep.subr.mxu0 0.0
    %3346 = vmatpush1.xpose.msra.mxu0 0.0
    %3347 = vmatprep.subr.mxu0 0.0
    %3348 = vmatpush1.xpose.msra.mxu0 0.0
    %3349 = vmatprep.subr.mxu0 0.0
    %3350 = vmatpush1.xpose.msra.mxu0 0.0
    %3351 = vmatprep.subr.mxu0 0.0
    %3352 = vmatpush1.xpose.msra.mxu0 0.0
    %3353 = vmatprep.subr.mxu0 0.0
    %3354 = vmatpush1.xpose.msra.mxu0 0.0
    %3355 = vmatprep.subr.mxu0 0.0
    %3356 = vmatpush1.xpose.msra.mxu0 0.0
    %3357 = vmatprep.subr.mxu0 0.0
    %3358 = vmatpush1.xpose.msra.mxu0 0.0
    %3359 = vmatprep.subr.mxu0 0.0
    %3360 = vmatpush1.xpose.msra.mxu0 0.0
    %3361 = vmatprep.subr.mxu0 0.0
    %3362 = vmatpush1.xpose.msra.mxu0 0.0
    %3363 = vmatprep.subr.mxu0 0.0
    %3364 = vmatpush1.xpose.msra.mxu0 0.0
    %3365 = vmatprep.subr.mxu0 0.0
    %3366 = vmatpush1.xpose.msra.mxu0 0.0
    %3367 = vmatprep.subr.mxu0 0.0
    %3368 = vmatpush1.xpose.msra.mxu0 0.0
    %3369 = vmatprep.subr.mxu0 0.0
    %3370 = vmatpush1.xpose.msra.mxu0 0.0
    %3371 = vmatprep.subr.mxu0 0.0
    %3372 = vmatpush1.xpose.msra.mxu0 0.0
    %3373 = vmatprep.subr.mxu0 0.0
    %3374 = vmatpush1.xpose.msra.mxu0 0.0
    %3375 = vmatprep.subr.mxu0 0.0
    %3376 = vmatpush1.xpose.msra.mxu0 0.0
    %3377 = vmatprep.subr.mxu0 0.0
    %3378 = vmatpush1.xpose.msra.mxu0 0.0
    %3379 = vmatprep.subr.mxu0 0.0
    %3380 = vmatpush1.xpose.msra.mxu0 0.0
    %3381 = vmatprep.mubr.f32.mxu0 0.0
    %3382 = vmatmul.mubr.f32.gmra.mrb[0].mxu0 %v3313
    %v3383 = vpop.f32.mrb[0].mxu0
    %v3384 = vadd.f32 0.0, %v3383
    %v3385 = vpop.f32.mrb[0].mxu0
    %3386 = vdwg.mxu0
    %v3387 = vmul.f32 %v3384, 0.17677669
    %v3388 = vsel %vm490, %v3387, -inf
    %3389 = vmax.xlane.f32.xlu0 %v3388
    %v3390 = vpop.xlane.xlu0 %3389
    %v3391 = vsub.f32 %v3387, %v3390
    %v3392 = vmul.f32 %v3391, 1.442695
    %v3393 = vpow.pop %v3392
    %v3394 = vsel %vm490, %v3393, 0.0
    %3395 = vadd.xlane.f32.xlu0 %v3394
    %v3396 = vpop.xlane.xlu0 %3395
    %v3397 = vrcp.pop %v3396
    %v3398 = vmul.f32 %v3393, %v3397
    %3399 = vrot.lane.b32.xlu0 %v2125, 32
    %v3400 = vpop.permute.xlu0 %3399
    %v3403 = vsel %vm490, %v3398, 0
    %3405 = vmatprep.subr.mxu0 0.0
    %3406 = vmatpush1.msra.mxu0 %v3400
    %3407 = vmatprep.subr.mxu0 0.0
    %3408 = vmatpush1.msra.mxu0 0.0
    %3409 = vmatprep.subr.mxu0 0.0
    %3410 = vmatpush1.msra.mxu0 0.0
    %3411 = vmatprep.subr.mxu0 0.0
    %3412 = vmatpush1.msra.mxu0 0.0
    %3413 = vmatprep.subr.mxu0 0.0
    %3414 = vmatpush1.msra.mxu0 0.0
    %3415 = vmatprep.subr.mxu0 0.0
    %3416 = vmatpush1.msra.mxu0 0.0
    %3417 = vmatprep.subr.mxu0 0.0
    %3418 = vmatpush1.msra.mxu0 0.0
    %3419 = vmatprep.subr.mxu0 0.0
    %3420 = vmatpush1.msra.mxu0 0.0
    %3421 = vmatprep.subr.mxu0 0.0
    %3422 = vmatpush1.msra.mxu0 0.0
    %3423 = vmatprep.subr.mxu0 0.0
    %3424 = vmatpush1.msra.mxu0 0.0
    %3425 = vmatprep.subr.mxu0 0.0
    %3426 = vmatpush1.msra.mxu0 0.0
    %3427 = vmatprep.subr.mxu0 0.0
    %3428 = vmatpush1.msra.mxu0 0.0
    %3429 = vmatprep.subr.mxu0 0.0
    %3430 = vmatpush1.msra.mxu0 0.0
    %3431 = vmatprep.subr.mxu0 0.0
    %3432 = vmatpush1.msra.mxu0 0.0
    %3433 = vmatprep.subr.mxu0 0.0
    %3434 = vmatpush1.msra.mxu0 0.0
    %3435 = vmatprep.subr.mxu0 0.0
    %3436 = vmatpush1.msra.mxu0 0.0
    %3437 = vmatprep.subr.mxu0 0.0
    %3438 = vmatpush1.msra.mxu0 0.0
    %3439 = vmatprep.subr.mxu0 0.0
    %3440 = vmatpush1.msra.mxu0 0.0
    %3441 = vmatprep.subr.mxu0 0.0
    %3442 = vmatpush1.msra.mxu0 0.0
    %3443 = vmatprep.subr.mxu0 0.0
    %3444 = vmatpush1.msra.mxu0 0.0
    %3445 = vmatprep.subr.mxu0 0.0
    %3446 = vmatpush1.msra.mxu0 0.0
    %3447 = vmatprep.subr.mxu0 0.0
    %3448 = vmatpush1.msra.mxu0 0.0
    %3449 = vmatprep.subr.mxu0 0.0
    %3450 = vmatpush1.msra.mxu0 0.0
    %3451 = vmatprep.subr.mxu0 0.0
    %3452 = vmatpush1.msra.mxu0 0.0
    %3453 = vmatprep.subr.mxu0 0.0
    %3454 = vmatpush1.msra.mxu0 0.0
    %3455 = vmatprep.subr.mxu0 0.0
    %3456 = vmatpush1.msra.mxu0 0.0
    %3457 = vmatprep.subr.mxu0 0.0
    %3458 = vmatpush1.msra.mxu0 0.0
    %3459 = vmatprep.subr.mxu0 0.0
    %3460 = vmatpush1.msra.mxu0 0.0
    %3461 = vmatprep.subr.mxu0 0.0
    %3462 = vmatpush1.msra.mxu0 0.0
    %3463 = vmatprep.subr.mxu0 0.0
    %3464 = vmatpush1.msra.mxu0 0.0
    %3465 = vmatprep.subr.mxu0 0.0
    %3466 = vmatpush1.msra.mxu0 0.0
    %3467 = vmatprep.subr.mxu0 0.0
    %3468 = vmatpush1.msra.mxu0 0.0
    %3469 = vmatprep.mubr.f32.mxu0 0.0
    %3470 = vmatmul.mubr.f32.gmra.mrb[0].mxu0 %v3403
    %v3471 = vpop.f32.mrb[0].mxu0
    %v3472 = vadd.f32 0.0, %v3471
    %v3473 = vpop.f32.mrb[0].mxu0
    %3474 = vdwg.mxu0
    %3476 = vrot.lane.b32.xlu0 %v3472, 96
    %v3477 = vpop.permute.xlu0 %3476
    %3479 = vst.msk [vmem:[#allocation2 + $0x8] sm:$0xff] %vm1094, %v3477
    %v3480 = vld [vmem:[#allocation2] sm:$0xff]
    %v3481 = vld [vmem:[#allocation2 + $0x8] sm:$0xff]
    %v3482 = vld [vmem:[#allocation12] sm:$0xff]
    %v3483 = vld [vmem:[#allocation12 + $0x8] sm:$0xff]
    %v3484 = vld [vmem:[#allocation12 + $0x10] sm:$0xff]
    %v3485 = vld [vmem:[#allocation12 + $0x18] sm:$0xff]
    %v3486 = vld [vmem:[#allocation12 + $0x20] sm:$0xff]
    %v3487 = vld [vmem:[#allocation12 + $0x28] sm:$0xff]
    %v3488 = vld [vmem:[#allocation12 + $0x30] sm:$0xff]
    %v3489 = vld [vmem:[#allocation12 + $0x38] sm:$0xff]
    %v3490 = vld [vmem:[#allocation12 + $0x40] sm:$0xff]
    %v3491 = vld [vmem:[#allocation12 + $0x48] sm:$0xff]
    %v3492 = vld [vmem:[#allocation12 + $0x50] sm:$0xff]
    %v3493 = vld [vmem:[#allocation12 + $0x58] sm:$0xff]
    %v3494 = vld [vmem:[#allocation12 + $0x60] sm:$0xff]
    %v3495 = vld [vmem:[#allocation12 + $0x68] sm:$0xff]
    %v3496 = vld [vmem:[#allocation12 + $0x70] sm:$0xff]
    %v3497 = vld [vmem:[#allocation12 + $0x78] sm:$0xff]
    %3498 = vmatprep.subr.mxu0 0.0
    %3499 = vmatpush1.msra.mxu0 %v3482
    %3500 = vmatprep.subr.mxu0 0.0
    %3501 = vmatpush1.msra.mxu0 %v3483
    %3502 = vmatprep.subr.mxu0 0.0
    %3503 = vmatpush1.msra.mxu0 %v3484
    %3504 = vmatprep.subr.mxu0 0.0
    %3505 = vmatpush1.msra.mxu0 %v3485
    %3506 = vmatprep.subr.mxu0 0.0
    %3507 = vmatpush1.msra.mxu0 %v3486
    %3508 = vmatprep.subr.mxu0 0.0
    %3509 = vmatpush1.msra.mxu0 %v3487
    %3510 = vmatprep.subr.mxu0 0.0
    %3511 = vmatpush1.msra.mxu0 %v3488
    %3512 = vmatprep.subr.mxu0 0.0
    %3513 = vmatpush1.msra.mxu0 %v3489
    %3514 = vmatprep.subr.mxu0 0.0
    %3515 = vmatpush1.msra.mxu0 %v3490
    %3516 = vmatprep.subr.mxu0 0.0
    %3517 = vmatpush1.msra.mxu0 %v3491
    %3518 = vmatprep.subr.mxu0 0.0
    %3519 = vmatpush1.msra.mxu0 %v3492
    %3520 = vmatprep.subr.mxu0 0.0
    %3521 = vmatpush1.msra.mxu0 %v3493
    %3522 = vmatprep.subr.mxu0 0.0
    %3523 = vmatpush1.msra.mxu0 %v3494
    %3524 = vmatprep.subr.mxu0 0.0
    %3525 = vmatpush1.msra.mxu0 %v3495
    %3526 = vmatprep.subr.mxu0 0.0
    %3527 = vmatpush1.msra.mxu0 %v3496
    %3528 = vmatprep.subr.mxu0 0.0
    %3529 = vmatpush1.msra.mxu0 %v3497
    %3530 = vmatprep.subr.mxu0 0.0
    %3531 = vmatpush1.msra.mxu0 0.0
    %3532 = vmatprep.subr.mxu0 0.0
    %3533 = vmatpush1.msra.mxu0 0.0
    %3534 = vmatprep.subr.mxu0 0.0
    %3535 = vmatpush1.msra.mxu0 0.0
    %3536 = vmatprep.subr.mxu0 0.0
    %3537 = vmatpush1.msra.mxu0 0.0
    %3538 = vmatprep.subr.mxu0 0.0
    %3539 = vmatpush1.msra.mxu0 0.0
    %3540 = vmatprep.subr.mxu0 0.0
    %3541 = vmatpush1.msra.mxu0 0.0
    %3542 = vmatprep.subr.mxu0 0.0
    %3543 = vmatpush1.msra.mxu0 0.0
    %3544 = vmatprep.subr.mxu0 0.0
    %3545 = vmatpush1.msra.mxu0 0.0
    %3546 = vmatprep.subr.mxu0 0.0
    %3547 = vmatpush1.msra.mxu0 0.0
    %3548 = vmatprep.subr.mxu0 0.0
    %3549 = vmatpush1.msra.mxu0 0.0
    %3550 = vmatprep.subr.mxu0 0.0
    %3551 = vmatpush1.msra.mxu0 0.0
    %3552 = vmatprep.subr.mxu0 0.0
    %3553 = vmatpush1.msra.mxu0 0.0
    %3554 = vmatprep.subr.mxu0 0.0
    %3555 = vmatpush1.msra.mxu0 0.0
    %3556 = vmatprep.subr.mxu0 0.0
    %3557 = vmatpush1.msra.mxu0 0.0
    %3558 = vmatprep.subr.mxu0 0.0
    %3559 = vmatpush1.msra.mxu0 0.0
    %3560 = vmatprep.subr.mxu0 0.0
    %3561 = vmatpush1.msra.mxu0 0.0
    %3562 = vmatprep.mubr.f32.mxu0 0.0
    %3563 = vmatmul.mubr.f32.gmra.mrb[0].mxu0 %v3480
    %v3564 = vpop.f32.mrb[0].mxu0
    %v3565 = vadd.f32 0.0, %v3564
    %v3566 = vpop.f32.mrb[0].mxu0
    %3567 = vmatprep.mubr.f32.mxu0 0.0
    %3568 = vmatmul.mubr.f32.gmra.mrb[0].mxu0 %v3481
    %v3569 = vpop.f32.mrb[0].mxu0
    %v3570 = vadd.f32 0.0, %v3569
    %v3571 = vpop.f32.mrb[0].mxu0
    %3572 = vdwg.mxu0
    %v3573 = vadd.f32 %v1869, %v3565
    %v3574 = vadd.f32 %v1870, %v3570
    %v3575 = vld [vmem:[%s13] sm:$0x1]
    %v3577 = vlaneseq
    %v3578 = vshrl.u32 %v3577, 7
    %v3579 = vsub.s32 0, %v3578
    %v3580 = vrot.slane %v3575, %v3579
    %v3582 = vadd.f32 %v3573, %v3580
    %v3583 = vadd.f32 %v3574, %v3580
    %v3584 = vld [vmem:[%s6] sm:$0x1]
    %v3585 = vld [vmem:[%s7] sm:$0x1]
    %3586 = vadd.xlane.f32.xlu0 %v3582
    %v3587 = vpop.xlane.xlu0 %3586
    %3588 = vadd.xlane.f32.xlu0 %v3583
    %v3589 = vpop.xlane.xlu0 %3588
    %v3590 = vmul.f32 %v3587, %v176
    %v3591 = vmul.f32 %v3589, %v176
    %v3592 = vsub.f32 %v3582, %v3590
    %v3593 = vsub.f32 %v3583, %v3591
    %v3594 = vmul.f32 %v3592, %v3592
    %v3595 = vmul.f32 %v3593, %v3593
    %3596 = vadd.xlane.f32.xlu0 %v3594
    %v3597 = vpop.xlane.xlu0 %3596
    %3598 = vadd.xlane.f32.xlu0 %v3595
    %v3599 = vpop.xlane.xlu0 %3598
    %v3600 = vmul.f32 %v3597, %v176
    %v3601 = vmul.f32 %v3599, %v176
    %v3602 = vadd.f32 %v3600, 1e-05
    %v3603 = vadd.f32 %v3601, 1e-05
    %v3604 = vrsqrt.pop %v3602
    %v3605 = vrsqrt.pop %v3603
    %v3606 = vmul.f32 %v3592, %v3604
    %v3607 = vmul.f32 %v3593, %v3605
    %v3609 = vlaneseq
    %v3610 = vshrl.u32 %v3609, 7
    %v3611 = vsub.s32 0, %v3610
    %v3612 = vrot.slane %v3584, %v3611
    %v3614 = vmul.f32 %v3606, %v3612
    %v3615 = vmul.f32 %v3607, %v3612
    %v3617 = vlaneseq
    %v3618 = vshrl.u32 %v3617, 7
    %v3619 = vsub.s32 0, %v3618
    %v3620 = vrot.slane %v3585, %v3619
    %v3622 = vadd.f32 %v3614, %v3620
    %v3623 = vadd.f32 %v3615, %v3620
    %v3624 = vld [vmem:[#allocation14] sm:$0xff]
    %v3625 = vld [vmem:[#allocation14 + $0x8] sm:$0xff]
    %v3626 = vld [vmem:[#allocation14 + $0x10] sm:$0xff]
    %v3627 = vld [vmem:[#allocation14 + $0x18] sm:$0xff]
    %v3628 = vld [vmem:[#allocation14 + $0x20] sm:$0xff]
    %v3629 = vld [vmem:[#allocation14 + $0x28] sm:$0xff]
    %v3630 = vld [vmem:[#allocation14 + $0x30] sm:$0xff]
    %v3631 = vld [vmem:[#allocation14 + $0x38] sm:$0xff]
    %v3632 = vld [vmem:[#allocation14 + $0x40] sm:$0xff]
    %v3633 = vld [vmem:[#allocation14 + $0x48] sm:$0xff]
    %v3634 = vld [vmem:[#allocation14 + $0x50] sm:$0xff]
    %v3635 = vld [vmem:[#allocation14 + $0x58] sm:$0xff]
    %v3636 = vld [vmem:[#allocation14 + $0x60] sm:$0xff]
    %v3637 = vld [vmem:[#allocation14 + $0x68] sm:$0xff]
    %v3638 = vld [vmem:[#allocation14 + $0x70] sm:$0xff]
    %v3639 = vld [vmem:[#allocation14 + $0x78] sm:$0xff]
    %v3640 = vld [vmem:[#allocation14 + $0x80] sm:$0xff]
    %v3641 = vld [vmem:[#allocation14 + $0x88] sm:$0xff]
    %v3642 = vld [vmem:[#allocation14 + $0x90] sm:$0xff]
    %v3643 = vld [vmem:[#allocation14 + $0x98] sm:$0xff]
    %v3644 = vld [vmem:[#allocation14 + $0xa0] sm:$0xff]
    %v3645 = vld [vmem:[#allocation14 + $0xa8] sm:$0xff]
    %v3646 = vld [vmem:[#allocation14 + $0xb0] sm:$0xff]
    %v3647 = vld [vmem:[#allocation14 + $0xb8] sm:$0xff]
    %v3648 = vld [vmem:[#allocation14 + $0xc0] sm:$0xff]
    %v3649 = vld [vmem:[#allocation14 + $0xc8] sm:$0xff]
    %v3650 = vld [vmem:[#allocation14 + $0xd0] sm:$0xff]
    %v3651 = vld [vmem:[#allocation14 + $0xd8] sm:$0xff]
    %v3652 = vld [vmem:[#allocation14 + $0xe0] sm:$0xff]
    %v3653 = vld [vmem:[#allocation14 + $0xe8] sm:$0xff]
    %v3654 = vld [vmem:[#allocation14 + $0xf0] sm:$0xff]
    %v3655 = vld [vmem:[#allocation14 + $0xf8] sm:$0xff]
    %v3656 = vld [vmem:[#allocation14 + $0x100] sm:$0xff]
    %v3657 = vld [vmem:[#allocation14 + $0x108] sm:$0xff]
    %v3658 = vld [vmem:[#allocation14 + $0x110] sm:$0xff]
    %v3659 = vld [vmem:[#allocation14 + $0x118] sm:$0xff]
    %v3660 = vld [vmem:[#allocation14 + $0x120] sm:$0xff]
    %v3661 = vld [vmem:[#allocation14 + $0x128] sm:$0xff]
    %v3662 = vld [vmem:[#allocation14 + $0x130] sm:$0xff]
    %v3663 = vld [vmem:[#allocation14 + $0x138] sm:$0xff]
    %v3664 = vld [vmem:[#allocation14 + $0x140] sm:$0xff]
    %v3665 = vld [vmem:[#allocation14 + $0x148] sm:$0xff]
    %v3666 = vld [vmem:[#allocation14 + $0x150] sm:$0xff]
    %v3667 = vld [vmem:[#allocation14 + $0x158] sm:$0xff]
    %v3668 = vld [vmem:[#allocation14 + $0x160] sm:$0xff]
    %v3669 = vld [vmem:[#allocation14 + $0x168] sm:$0xff]
    %v3670 = vld [vmem:[#allocation14 + $0x170] sm:$0xff]
    %v3671 = vld [vmem:[#allocation14 + $0x178] sm:$0xff]
    %v3672 = vld [vmem:[%s15] sm:$0x7]
    %v3674 = vlaneseq
    %v3675 = vshrl.u32 %v3674, 7
    %v3676 = vsub.s32 0, %v3675
    %v3677 = vrot.slane %v3672, %v3676
    %v3678 = vlaneseq
    %v3679 = vshrl.u32 %v3678, 7
    %v3680 = vsub.s32 1, %v3679
    %v3681 = vrot.slane %v3672, %v3680
    %v3682 = vlaneseq
    %v3683 = vshrl.u32 %v3682, 7
    %v3684 = vsub.s32 2, %v3683
    %v3685 = vrot.slane %v3672, %v3684
    %3689 = vmatprep.subr.mxu0 %v3625
    %3690 = vmatpush1.msra.mxu0 %v3624
    %3691 = vmatprep.subr.mxu0 %v3628
    %3692 = vmatpush1.msra.mxu0 %v3627
    %3693 = vmatprep.subr.mxu0 %v3631
    %3694 = vmatpush1.msra.mxu0 %v3630
    %3695 = vmatprep.subr.mxu0 %v3634
    %3696 = vmatpush1.msra.mxu0 %v3633
    %3697 = vmatprep.subr.mxu0 %v3637
    %3698 = vmatpush1.msra.mxu0 %v3636
    %3699 = vmatprep.subr.mxu0 %v3640
    %3700 = vmatpush1.msra.mxu0 %v3639
    %3701 = vmatprep.subr.mxu0 %v3643
    %3702 = vmatpush1.msra.mxu0 %v3642
    %3703 = vmatprep.subr.mxu0 %v3646
    %3704 = vmatpush1.msra.mxu0 %v3645
    %3705 = vmatprep.subr.mxu0 %v3649
    %3706 = vmatpush1.msra.mxu0 %v3648
    %3707 = vmatprep.subr.mxu0 %v3652
    %3708 = vmatpush1.msra.mxu0 %v3651
    %3709 = vmatprep.subr.mxu0 %v3655
    %3710 = vmatpush1.msra.mxu0 %v3654
    %3711 = vmatprep.subr.mxu0 %v3658
    %3712 = vmatpush1.msra.mxu0 %v3657
    %3713 = vmatprep.subr.mxu0 %v3661
    %3714 = vmatpush1.msra.mxu0 %v3660
    %3715 = vmatprep.subr.mxu0 %v3664
    %3716 = vmatpush1.msra.mxu0 %v3663
    %3717 = vmatprep.subr.mxu0 %v3667
    %3718 = vmatpush1.msra.mxu0 %v3666
    %3719 = vmatprep.subr.mxu0 %v3670
    %3720 = vmatpush1.msra.mxu0 %v3669
    %3721 = vmatprep.subr.mxu0 0.0
    %3722 = vmatpush1.msra.mxu0 0.0
    %3723 = vmatprep.subr.mxu0 0.0
    %3724 = vmatpush1.msra.mxu0 0.0
    %3725 = vmatprep.subr.mxu0 0.0
    %3726 = vmatpush1.msra.mxu0 0.0
    %3727 = vmatprep.subr.mxu0 0.0
    %3728 = vmatpush1.msra.mxu0 0.0
    %3729 = vmatprep.subr.mxu0 0.0
    %3730 = vmatpush1.msra.mxu0 0.0
    %3731 = vmatprep.subr.mxu0 0.0
    %3732 = vmatpush1.msra.mxu0 0.0
    %3733 = vmatprep.subr.mxu0 0.0
    %3734 = vmatpush1.msra.mxu0 0.0
    %3735 = vmatprep.subr.mxu0 0.0
    %3736 = vmatpush1.msra.mxu0 0.0
    %3737 = vmatprep.subr.mxu0 0.0
    %3738 = vmatpush1.msra.mxu0 0.0
    %3739 = vmatprep.subr.mxu0 0.0
    %3740 = vmatpush1.msra.mxu0 0.0
    %3741 = vmatprep.subr.mxu0 0.0
    %3742 = vmatpush1.msra.mxu0 0.0
    %3743 = vmatprep.subr.mxu0 0.0
    %3744 = vmatpush1.msra.mxu0 0.0
    %3745 = vmatprep.subr.mxu0 0.0
    %3746 = vmatpush1.msra.mxu0 0.0
    %3747 = vmatprep.subr.mxu0 0.0
    %3748 = vmatpush1.msra.mxu0 0.0
    %3749 = vmatprep.subr.mxu0 0.0
    %3750 = vmatpush1.msra.mxu0 0.0
    %3751 = vmatprep.subr.mxu0 0.0
    %3752 = vmatpush1.msra.mxu0 0.0
    %3753 = vmatprep.mubr.f32.mxu0 0.0
    %3754 = vmatmul.mubr.f32.gmra.mrb[0].mxu0 %v3622
    %v3755 = vpop.f32.mrb[0].mxu0
    %v3756 = vadd.f32 %v3677, %v3755
    %v3757 = vpop.f32.mrb[0].mxu0
    %v3758 = vadd.f32 %v3681, %v3757
    %3759 = vmatprep.mubr.f32.mxu0 0.0
    %3760 = vmatmul.mubr.f32.gmra.mrb[0].mxu0 %v3623
    %v3761 = vpop.f32.mrb[0].mxu0
    %v3762 = vadd.f32 %v3677, %v3761
    %v3763 = vpop.f32.mrb[0].mxu0
    %v3764 = vadd.f32 %v3681, %v3763
    %3765 = vdwg.mxu0
    %3766 = vmatprep.subr.mxu0 0.0
    %3767 = vmatpush1.msra.mxu0 %v3626
    %3768 = vmatprep.subr.mxu0 0.0
    %3769 = vmatpush1.msra.mxu0 %v3629
    %3770 = vmatprep.subr.mxu0 0.0
    %3771 = vmatpush1.msra.mxu0 %v3632
    %3772 = vmatprep.subr.mxu0 0.0
    %3773 = vmatpush1.msra.mxu0 %v3635
    %3774 = vmatprep.subr.mxu0 0.0
    %3775 = vmatpush1.msra.mxu0 %v3638
    %3776 = vmatprep.subr.mxu0 0.0
    %3777 = vmatpush1.msra.mxu0 %v3641
    %3778 = vmatprep.subr.mxu0 0.0
    %3779 = vmatpush1.msra.mxu0 %v3644
    %3780 = vmatprep.subr.mxu0 0.0
    %3781 = vmatpush1.msra.mxu0 %v3647
    %3782 = vmatprep.subr.mxu0 0.0
    %3783 = vmatpush1.msra.mxu0 %v3650
    %3784 = vmatprep.subr.mxu0 0.0
    %3785 = vmatpush1.msra.mxu0 %v3653
    %3786 = vmatprep.subr.mxu0 0.0
    %3787 = vmatpush1.msra.mxu0 %v3656
    %3788 = vmatprep.subr.mxu0 0.0
    %3789 = vmatpush1.msra.mxu0 %v3659
    %3790 = vmatprep.subr.mxu0 0.0
    %3791 = vmatpush1.msra.mxu0 %v3662
    %3792 = vmatprep.subr.mxu0 0.0
    %3793 = vmatpush1.msra.mxu0 %v3665
    %3794 = vmatprep.subr.mxu0 0.0
    %3795 = vmatpush1.msra.mxu0 %v3668
    %3796 = vmatprep.subr.mxu0 0.0
    %3797 = vmatpush1.msra.mxu0 %v3671
    %3798 = vmatprep.subr.mxu0 0.0
    %3799 = vmatpush1.msra.mxu0 0.0
    %3800 = vmatprep.subr.mxu0 0.0
    %3801 = vmatpush1.msra.mxu0 0.0
    %3802 = vmatprep.subr.mxu0 0.0
    %3803 = vmatpush1.msra.mxu0 0.0
    %3804 = vmatprep.subr.mxu0 0.0
    %3805 = vmatpush1.msra.mxu0 0.0
    %3806 = vmatprep.subr.mxu0 0.0
    %3807 = vmatpush1.msra.mxu0 0.0
    %3808 = vmatprep.subr.mxu0 0.0
    %3809 = vmatpush1.msra.mxu0 0.0
    %3810 = vmatprep.subr.mxu0 0.0
    %3811 = vmatpush1.msra.mxu0 0.0
    %3812 = vmatprep.subr.mxu0 0.0
    %3813 = vmatpush1.msra.mxu0 0.0
    %3814 = vmatprep.subr.mxu0 0.0
    %3815 = vmatpush1.msra.mxu0 0.0
    %3816 = vmatprep.subr.mxu0 0.0
    %3817 = vmatpush1.msra.mxu0 0.0
    %3818 = vmatprep.subr.mxu0 0.0
    %3819 = vmatpush1.msra.mxu0 0.0
    %3820 = vmatprep.subr.mxu0 0.0
    %3821 = vmatpush1.msra.mxu0 0.0
    %3822 = vmatprep.subr.mxu0 0.0
    %3823 = vmatpush1.msra.mxu0 0.0
    %3824 = vmatprep.subr.mxu0 0.0
    %3825 = vmatpush1.msra.mxu0 0.0
    %3826 = vmatprep.subr.mxu0 0.0
    %3827 = vmatpush1.msra.mxu0 0.0
    %3828 = vmatprep.subr.mxu0 0.0
    %3829 = vmatpush1.msra.mxu0 0.0
    %3830 = vmatprep.mubr.f32.mxu0 0.0
    %3831 = vmatmul.mubr.f32.gmra.mrb[0].mxu0 %v3622
    %v3832 = vpop.f32.mrb[0].mxu0
    %v3833 = vadd.f32 %v3685, %v3832
    %v3834 = vpop.f32.mrb[0].mxu0
    %3835 = vmatprep.mubr.f32.mxu0 0.0
    %3836 = vmatmul.mubr.f32.gmra.mrb[0].mxu0 %v3623
    %v3837 = vpop.f32.mrb[0].mxu0
    %v3838 = vadd.f32 %v3685, %v3837
    %v3839 = vpop.f32.mrb[0].mxu0
    %3840 = vdwg.mxu0
    %v3841 = vmul.f32 %v3756, 0.5
    %v3842 = vmul.f32 %v3758, 0.5
    %v3843 = vmul.f32 %v3833, 0.5
    %v3844 = vmul.f32 %v3762, 0.5
    %v3845 = vmul.f32 %v3764, 0.5
    %v3846 = vmul.f32 %v3838, 0.5
    %v3847 = vmul.f32 %v3756, 0.70710677
    %v3848 = vmul.f32 %v3758, 0.70710677
    %v3849 = vmul.f32 %v3833, 0.70710677
    %v3850 = vmul.f32 %v3762, 0.70710677
    %v3851 = vmul.f32 %v3764, 0.70710677
    %v3852 = vmul.f32 %v3838, 0.70710677
    %v3853 = vand.u32 2147483647, %v3847
    %v3854 = vand.u32 2147483647, %v3848
    %v3855 = vand.u32 2147483647, %v3849
    %v3856 = vand.u32 2147483647, %v3850
    %v3857 = vand.u32 2147483647, %v3851
    %v3858 = vand.u32 2147483647, %v3852
    %v3859 = vmul.f32 %v3853, 0.3275911
    %v3860 = vmul.f32 %v3854, 0.3275911
    %v3861 = vmul.f32 %v3855, 0.3275911
    %v3862 = vmul.f32 %v3856, 0.3275911
    %v3863 = vmul.f32 %v3857, 0.3275911
    %v3864 = vmul.f32 %v3858, 0.3275911
    %v3865 = vadd.f32 %v3859, 1.0
    %v3866 = vadd.f32 %v3860, 1.0
    %v3867 = vadd.f32 %v3861, 1.0
    %v3868 = vadd.f32 %v3862, 1.0
    %v3869 = vadd.f32 %v3863, 1.0
    %v3870 = vadd.f32 %v3864, 1.0
    %v3871 = vrcp.pop %v3865
    %v3872 = vmul.f32 1.0, %v3871
    %v3873 = vrcp.pop %v3866
    %v3874 = vmul.f32 1.0, %v3873
    %v3875 = vrcp.pop %v3867
    %v3876 = vmul.f32 1.0, %v3875
    %v3877 = vrcp.pop %v3868
    %v3878 = vmul.f32 1.0, %v3877
    %v3879 = vrcp.pop %v3869
    %v3880 = vmul.f32 1.0, %v3879
    %v3881 = vrcp.pop %v3870
    %v3882 = vmul.f32 1.0, %v3881
    %v3883 = vmul.f32 %v3872, 1.0614054
    %v3884 = vmul.f32 %v3874, 1.0614054
    %v3885 = vmul.f32 %v3876, 1.0614054
    %v3886 = vmul.f32 %v3878, 1.0614054
    %v3887 = vmul.f32 %v3880, 1.0614054
    %v3888 = vmul.f32 %v3882, 1.0614054
    %v3889 = vadd.f32 %v3883, -1.4531521
    %v3890 = vadd.f32 %v3884, -1.4531521
    %v3891 = vadd.f32 %v3885, -1.4531521
    %v3892 = vadd.f32 %v3886, -1.4531521
    %v3893 = vadd.f32 %v3887, -1.4531521
    %v3894 = vadd.f32 %v3888, -1.4531521
    %v3895 = vmul.f32 %v3889, %v3872
    %v3896 = vmul.f32 %v3890, %v3874
    %v3897 = vmul.f32 %v3891, %v3876
    %v3898 = vmul.f32 %v3892, %v3878
    %v3899 = vmul.f32 %v3893, %v3880
    %v3900 = vmul.f32 %v3894, %v3882
    %v3901 = vadd.f32 %v3895, 1.4214138
    %v3902 = vadd.f32 %v3896, 1.4214138
    %v3903 = vadd.f32 %v3897, 1.4214138
    %v3904 = vadd.f32 %v3898, 1.4214138
    %v3905 = vadd.f32 %v3899, 1.4214138
    %v3906 = vadd.f32 %v3900, 1.4214138
    %v3907 = vmul.f32 %v3901, %v3872
    %v3908 = vmul.f32 %v3902, %v3874
    %v3909 = vmul.f32 %v3903, %v3876
    %v3910 = vmul.f32 %v3904, %v3878
    %v3911 = vmul.f32 %v3905, %v3880
    %v3912 = vmul.f32 %v3906, %v3882
    %v3913 = vadd.f32 %v3907, -0.28449672
    %v3914 = vadd.f32 %v3908, -0.28449672
    %v3915 = vadd.f32 %v3909, -0.28449672
    %v3916 = vadd.f32 %v3910, -0.28449672
    %v3917 = vadd.f32 %v3911, -0.28449672
    %v3918 = vadd.f32 %v3912, -0.28449672
    %v3919 = vmul.f32 %v3913, %v3872
    %v3920 = vmul.f32 %v3914, %v3874
    %v3921 = vmul.f32 %v3915, %v3876
    %v3922 = vmul.f32 %v3916, %v3878
    %v3923 = vmul.f32 %v3917, %v3880
    %v3924 = vmul.f32 %v3918, %v3882
    %v3925 = vadd.f32 %v3919, 0.2548296
    %v3926 = vadd.f32 %v3920, 0.2548296
    %v3927 = vadd.f32 %v3921, 0.2548296
    %v3928 = vadd.f32 %v3922, 0.2548296
    %v3929 = vadd.f32 %v3923, 0.2548296
    %v3930 = vadd.f32 %v3924, 0.2548296
    %v3931 = vmul.f32 %v3925, %v3872
    %v3932 = vmul.f32 %v3926, %v3874
    %v3933 = vmul.f32 %v3927, %v3876
    %v3934 = vmul.f32 %v3928, %v3878
    %v3935 = vmul.f32 %v3929, %v3880
    %v3936 = vmul.f32 %v3930, %v3882
    %v3937 = vsub.f32 0.0, %v3853
    %v3938 = vsub.f32 0.0, %v3854
    %v3939 = vsub.f32 0.0, %v3855
    %v3940 = vsub.f32 0.0, %v3856
    %v3941 = vsub.f32 0.0, %v3857
    %v3942 = vsub.f32 0.0, %v3858
    %v3943 = vmul.f32 %v3937, %v3853
    %v3944 = vmul.f32 %v3938, %v3854
    %v3945 = vmul.f32 %v3939, %v3855
    %v3946 = vmul.f32 %v3940, %v3856
    %v3947 = vmul.f32 %v3941, %v3857
    %v3948 = vmul.f32 %v3942, %v3858
    %v3949 = vmul.f32 %v3943, 1.442695
    %v3950 = vpow.pop %v3949
    %v3951 = vmul.f32 %v3944, 1.442695
    %v3952 = vpow.pop %v3951
    %v3953 = vmul.f32 %v3945, 1.442695
    %v3954 = vpow.pop %v3953
    %v3955 = vmul.f32 %v3946, 1.442695
    %v3956 = vpow.pop %v3955
    %v3957 = vmul.f32 %v3947, 1.442695
    %v3958 = vpow.pop %v3957
    %v3959 = vmul.f32 %v3948, 1.442695
    %v3960 = vpow.pop %v3959
    %v3961 = vmul.f32 %v3931, %v3950
    %v3962 = vmul.f32 %v3932, %v3952
    %v3963 = vmul.f32 %v3933, %v3954
    %v3964 = vmul.f32 %v3934, %v3956
    %v3965 = vmul.f32 %v3935, %v3958
    %v3966 = vmul.f32 %v3936, %v3960
    %v3967 = vsub.f32 1.0, %v3961
    %v3968 = vsub.f32 1.0, %v3962
    %v3969 = vsub.f32 1.0, %v3963
    %v3970 = vsub.f32 1.0, %v3964
    %v3971 = vsub.f32 1.0, %v3965
    %v3972 = vsub.f32 1.0, %v3966
    %vm3973 = vcmp.ge.f32.partialorder %v3847, 0.0
    %vm3974 = vcmp.ge.f32.partialorder %v3848, 0.0
    %vm3975 = vcmp.ge.f32.partialorder %v3849, 0.0
    %vm3976 = vcmp.ge.f32.partialorder %v3850, 0.0
    %vm3977 = vcmp.ge.f32.partialorder %v3851, 0.0
    %vm3978 = vcmp.ge.f32.partialorder %v3852, 0.0
    %v3979 = vsub.f32 0.0, %v3967
    %v3980 = vsub.f32 0.0, %v3968
    %v3981 = vsub.f32 0.0, %v3969
    %v3982 = vsub.f32 0.0, %v3970
    %v3983 = vsub.f32 0.0, %v3971
    %v3984 = vsub.f32 0.0, %v3972
    %v3985 = vsel %vm3973, %v3967, %v3979
    %v3986 = vsel %vm3974, %v3968, %v3980
    %v3987 = vsel %vm3975, %v3969, %v3981
    %v3988 = vsel %vm3976, %v3970, %v3982
    %v3989 = vsel %vm3977, %v3971, %v3983
    %v3990 = vsel %vm3978, %v3972, %v3984
    %v3991 = vadd.f32 %v3985, 1.0
    %v3992 = vadd.f32 %v3986, 1.0
    %v3993 = vadd.f32 %v3987, 1.0
    %v3994 = vadd.f32 %v3988, 1.0
    %v3995 = vadd.f32 %v3989, 1.0
    %v3996 = vadd.f32 %v3990, 1.0
    %v3997 = vmul.f32 %v3841, %v3991
    %v3998 = vmul.f32 %v3842, %v3992
    %v3999 = vmul.f32 %v3843, %v3993
    %v4000 = vmul.f32 %v3844, %v3994
    %v4001 = vmul.f32 %v3845, %v3995
    %v4002 = vmul.f32 %v3846, %v3996
    %v4003 = vld [vmem:[#allocation15] sm:$0xff]
    %v4004 = vld [vmem:[#allocation15 + $0x8] sm:$0xff]
    %v4005 = vld [vmem:[#allocation15 + $0x10] sm:$0xff]
    %v4006 = vld [vmem:[#allocation15 + $0x18] sm:$0xff]
    %v4007 = vld [vmem:[#allocation15 + $0x20] sm:$0xff]
    %v4008 = vld [vmem:[#allocation15 + $0x28] sm:$0xff]
    %v4009 = vld [vmem:[#allocation15 + $0x30] sm:$0xff]
    %v4010 = vld [vmem:[#allocation15 + $0x38] sm:$0xff]
    %v4011 = vld [vmem:[#allocation15 + $0x40] sm:$0xff]
    %v4012 = vld [vmem:[#allocation15 + $0x48] sm:$0xff]
    %v4013 = vld [vmem:[#allocation15 + $0x50] sm:$0xff]
    %v4014 = vld [vmem:[#allocation15 + $0x58] sm:$0xff]
    %v4015 = vld [vmem:[#allocation15 + $0x60] sm:$0xff]
    %v4016 = vld [vmem:[#allocation15 + $0x68] sm:$0xff]
    %v4017 = vld [vmem:[#allocation15 + $0x70] sm:$0xff]
    %v4018 = vld [vmem:[#allocation15 + $0x78] sm:$0xff]
    %v4019 = vld [vmem:[#allocation15 + $0x80] sm:$0xff]
    %v4020 = vld [vmem:[#allocation15 + $0x88] sm:$0xff]
    %v4021 = vld [vmem:[#allocation15 + $0x90] sm:$0xff]
    %v4022 = vld [vmem:[#allocation15 + $0x98] sm:$0xff]
    %v4023 = vld [vmem:[#allocation15 + $0xa0] sm:$0xff]
    %v4024 = vld [vmem:[#allocation15 + $0xa8] sm:$0xff]
    %v4025 = vld [vmem:[#allocation15 + $0xb0] sm:$0xff]
    %v4026 = vld [vmem:[#allocation15 + $0xb8] sm:$0xff]
    %v4027 = vld [vmem:[#allocation15 + $0xc0] sm:$0xff]
    %v4028 = vld [vmem:[#allocation15 + $0xc8] sm:$0xff]
    %v4029 = vld [vmem:[#allocation15 + $0xd0] sm:$0xff]
    %v4030 = vld [vmem:[#allocation15 + $0xd8] sm:$0xff]
    %v4031 = vld [vmem:[#allocation15 + $0xe0] sm:$0xff]
    %v4032 = vld [vmem:[#allocation15 + $0xe8] sm:$0xff]
    %v4033 = vld [vmem:[#allocation15 + $0xf0] sm:$0xff]
    %v4034 = vld [vmem:[#allocation15 + $0xf8] sm:$0xff]
    %v4035 = vld [vmem:[#allocation15 + $0x100] sm:$0xff]
    %v4036 = vld [vmem:[#allocation15 + $0x108] sm:$0xff]
    %v4037 = vld [vmem:[#allocation15 + $0x110] sm:$0xff]
    %v4038 = vld [vmem:[#allocation15 + $0x118] sm:$0xff]
    %v4039 = vld [vmem:[#allocation15 + $0x120] sm:$0xff]
    %v4040 = vld [vmem:[#allocation15 + $0x128] sm:$0xff]
    %v4041 = vld [vmem:[#allocation15 + $0x130] sm:$0xff]
    %v4042 = vld [vmem:[#allocation15 + $0x138] sm:$0xff]
    %v4043 = vld [vmem:[#allocation15 + $0x140] sm:$0xff]
    %v4044 = vld [vmem:[#allocation15 + $0x148] sm:$0xff]
    %v4045 = vld [vmem:[#allocation15 + $0x150] sm:$0xff]
    %v4046 = vld [vmem:[#allocation15 + $0x158] sm:$0xff]
    %v4047 = vld [vmem:[#allocation15 + $0x160] sm:$0xff]
    %v4048 = vld [vmem:[#allocation15 + $0x168] sm:$0xff]
    %v4049 = vld [vmem:[#allocation15 + $0x170] sm:$0xff]
    %v4050 = vld [vmem:[#allocation15 + $0x178] sm:$0xff]
    %4051 = vmatprep.subr.mxu0 0.0
    %4052 = vmatpush1.msra.mxu0 %v4003
    %4053 = vmatprep.subr.mxu0 0.0
    %4054 = vmatpush1.msra.mxu0 %v4004
    %4055 = vmatprep.subr.mxu0 0.0
    %4056 = vmatpush1.msra.mxu0 %v4005
    %4057 = vmatprep.subr.mxu0 0.0
    %4058 = vmatpush1.msra.mxu0 %v4006
    %4059 = vmatprep.subr.mxu0 0.0
    %4060 = vmatpush1.msra.mxu0 %v4007
    %4061 = vmatprep.subr.mxu0 0.0
    %4062 = vmatpush1.msra.mxu0 %v4008
    %4063 = vmatprep.subr.mxu0 0.0
    %4064 = vmatpush1.msra.mxu0 %v4009
    %4065 = vmatprep.subr.mxu0 0.0
    %4066 = vmatpush1.msra.mxu0 %v4010
    %4067 = vmatprep.subr.mxu0 0.0
    %4068 = vmatpush1.msra.mxu0 %v4011
    %4069 = vmatprep.subr.mxu0 0.0
    %4070 = vmatpush1.msra.mxu0 %v4012
    %4071 = vmatprep.subr.mxu0 0.0
    %4072 = vmatpush1.msra.mxu0 %v4013
    %4073 = vmatprep.subr.mxu0 0.0
    %4074 = vmatpush1.msra.mxu0 %v4014
    %4075 = vmatprep.subr.mxu0 0.0
    %4076 = vmatpush1.msra.mxu0 %v4015
    %4077 = vmatprep.subr.mxu0 0.0
    %4078 = vmatpush1.msra.mxu0 %v4016
    %4079 = vmatprep.subr.mxu0 0.0
    %4080 = vmatpush1.msra.mxu0 %v4017
    %4081 = vmatprep.subr.mxu0 0.0
    %4082 = vmatpush1.msra.mxu0 %v4018
    %4083 = vmatprep.subr.mxu0 0.0
    %4084 = vmatpush1.msra.mxu0 %v4019
    %4085 = vmatprep.subr.mxu0 0.0
    %4086 = vmatpush1.msra.mxu0 %v4020
    %4087 = vmatprep.subr.mxu0 0.0
    %4088 = vmatpush1.msra.mxu0 %v4021
    %4089 = vmatprep.subr.mxu0 0.0
    %4090 = vmatpush1.msra.mxu0 %v4022
    %4091 = vmatprep.subr.mxu0 0.0
    %4092 = vmatpush1.msra.mxu0 %v4023
    %4093 = vmatprep.subr.mxu0 0.0
    %4094 = vmatpush1.msra.mxu0 %v4024
    %4095 = vmatprep.subr.mxu0 0.0
    %4096 = vmatpush1.msra.mxu0 %v4025
    %4097 = vmatprep.subr.mxu0 0.0
    %4098 = vmatpush1.msra.mxu0 %v4026
    %4099 = vmatprep.subr.mxu0 0.0
    %4100 = vmatpush1.msra.mxu0 %v4027
    %4101 = vmatprep.subr.mxu0 0.0
    %4102 = vmatpush1.msra.mxu0 %v4028
    %4103 = vmatprep.subr.mxu0 0.0
    %4104 = vmatpush1.msra.mxu0 %v4029
    %4105 = vmatprep.subr.mxu0 0.0
    %4106 = vmatpush1.msra.mxu0 %v4030
    %4107 = vmatprep.subr.mxu0 0.0
    %4108 = vmatpush1.msra.mxu0 %v4031
    %4109 = vmatprep.subr.mxu0 0.0
    %4110 = vmatpush1.msra.mxu0 %v4032
    %4111 = vmatprep.subr.mxu0 0.0
    %4112 = vmatpush1.msra.mxu0 %v4033
    %4113 = vmatprep.subr.mxu0 0.0
    %4114 = vmatpush1.msra.mxu0 %v4034
    %4115 = vmatprep.mubr.f32.mxu0 %v3998
    %4116 = vmatmul.mubr.f32.gmra.mrb[0].mxu0 %v3997
    %v4117 = vpop.f32.mrb[0].mxu0
    %v4118 = vadd.f32 0.0, %v4117
    %v4119 = vpop.f32.mrb[0].mxu0
    %4120 = vmatprep.mubr.f32.mxu0 %v4001
    %4121 = vmatmul.mubr.f32.gmra.mrb[0].mxu0 %v4000
    %v4122 = vpop.f32.mrb[0].mxu0
    %v4123 = vadd.f32 0.0, %v4122
    %v4124 = vpop.f32.mrb[0].mxu0
    %4125 = vdwg.mxu0
    %4126 = vmatprep.subr.mxu0 0.0
    %4127 = vmatpush1.msra.mxu0 %v4035
    %4128 = vmatprep.subr.mxu0 0.0
    %4129 = vmatpush1.msra.mxu0 %v4036
    %4130 = vmatprep.subr.mxu0 0.0
    %4131 = vmatpush1.msra.mxu0 %v4037
    %4132 = vmatprep.subr.mxu0 0.0
    %4133 = vmatpush1.msra.mxu0 %v4038
    %4134 = vmatprep.subr.mxu0 0.0
    %4135 = vmatpush1.msra.mxu0 %v4039
    %4136 = vmatprep.subr.mxu0 0.0
    %4137 = vmatpush1.msra.mxu0 %v4040
    %4138 = vmatprep.subr.mxu0 0.0
    %4139 = vmatpush1.msra.mxu0 %v4041
    %4140 = vmatprep.subr.mxu0 0.0
    %4141 = vmatpush1.msra.mxu0 %v4042
    %4142 = vmatprep.subr.mxu0 0.0
    %4143 = vmatpush1.msra.mxu0 %v4043
    %4144 = vmatprep.subr.mxu0 0.0
    %4145 = vmatpush1.msra.mxu0 %v4044
    %4146 = vmatprep.subr.mxu0 0.0
    %4147 = vmatpush1.msra.mxu0 %v4045
    %4148 = vmatprep.subr.mxu0 0.0
    %4149 = vmatpush1.msra.mxu0 %v4046
    %4150 = vmatprep.subr.mxu0 0.0
    %4151 = vmatpush1.msra.mxu0 %v4047
    %4152 = vmatprep.subr.mxu0 0.0
    %4153 = vmatpush1.msra.mxu0 %v4048
    %4154 = vmatprep.subr.mxu0 0.0
    %4155 = vmatpush1.msra.mxu0 %v4049
    %4156 = vmatprep.subr.mxu0 0.0
    %4157 = vmatpush1.msra.mxu0 %v4050
    %4158 = vmatprep.subr.mxu0 0.0
    %4159 = vmatpush1.msra.mxu0 0.0
    %4160 = vmatprep.subr.mxu0 0.0
    %4161 = vmatpush1.msra.mxu0 0.0
    %4162 = vmatprep.subr.mxu0 0.0
    %4163 = vmatpush1.msra.mxu0 0.0
    %4164 = vmatprep.subr.mxu0 0.0
    %4165 = vmatpush1.msra.mxu0 0.0
    %4166 = vmatprep.subr.mxu0 0.0
    %4167 = vmatpush1.msra.mxu0 0.0
    %4168 = vmatprep.subr.mxu0 0.0
    %4169 = vmatpush1.msra.mxu0 0.0
    %4170 = vmatprep.subr.mxu0 0.0
    %4171 = vmatpush1.msra.mxu0 0.0
    %4172 = vmatprep.subr.mxu0 0.0
    %4173 = vmatpush1.msra.mxu0 0.0
    %4174 = vmatprep.subr.mxu0 0.0
    %4175 = vmatpush1.msra.mxu0 0.0
    %4176 = vmatprep.subr.mxu0 0.0
    %4177 = vmatpush1.msra.mxu0 0.0
    %4178 = vmatprep.subr.mxu0 0.0
    %4179 = vmatpush1.msra.mxu0 0.0
    %4180 = vmatprep.subr.mxu0 0.0
    %4181 = vmatpush1.msra.mxu0 0.0
    %4182 = vmatprep.subr.mxu0 0.0
    %4183 = vmatpush1.msra.mxu0 0.0
    %4184 = vmatprep.subr.mxu0 0.0
    %4185 = vmatpush1.msra.mxu0 0.0
    %4186 = vmatprep.subr.mxu0 0.0
    %4187 = vmatpush1.msra.mxu0 0.0
    %4188 = vmatprep.subr.mxu0 0.0
    %4189 = vmatpush1.msra.mxu0 0.0
    %4190 = vmatprep.mubr.f32.mxu0 0.0
    %4191 = vmatmul.mubr.f32.gmra.mrb[0].mxu0 %v3999
    %v4192 = vpop.f32.mrb[0].mxu0
    %v4193 = vadd.f32 %v4118, %v4192
    %v4194 = vpop.f32.mrb[0].mxu0
    %4195 = vmatprep.mubr.f32.mxu0 0.0
    %4196 = vmatmul.mubr.f32.gmra.mrb[0].mxu0 %v4002
    %v4197 = vpop.f32.mrb[0].mxu0
    %v4198 = vadd.f32 %v4123, %v4197
    %v4199 = vpop.f32.mrb[0].mxu0
    %4200 = vdwg.mxu0
    %v4201 = vadd.f32 %v3582, %v4193
    %v4202 = vadd.f32 %v3583, %v4198
    %v4203 = vld [vmem:[%s17] sm:$0x1]
    %v4205 = vlaneseq
    %v4206 = vshrl.u32 %v4205, 7
    %v4207 = vsub.s32 0, %v4206
    %v4208 = vrot.slane %v4203, %v4207
    %v4210 = vadd.f32 %v4201, %v4208
    %v4211 = vadd.f32 %v4202, %v4208
    %4212 = vst [vmem:[#allocation17] sm:$0xff] %v4210
    %4213 = vst [vmem:[#allocation17 + $0x8] sm:$0xff] %v4211
    // Predicated region
    $region106: #{tpu_custom_call.1} parent=1 // pred_check
      _
    $region107: #{tpu_custom_call.1} parent=1 // pred_check_branch
      %4215 = sbr.rel (0) target = $region109
    $region108: #{tpu_custom_call.1} parent=1 // pred_region
      %s4217 = ssub.s32 256, 256
      %4218 = vsyncadd [#allocation5], %s4217
      %s4219 = sshll.u32 [#allocation17], 4
      %s4220 = int_to_ptr.vmem [resolvable:$true] %s4219
      %4225 = dma.vmem_to_hbm [thread:$0]  %s4220, 256, %s18, [#allocation5], 128, 128, 8
    $region109: #{tpu_custom_call.1} parent=1 // pred_fallthru
      _
    // Predicated region
    $region110: #{tpu_custom_call.1} parent=1 // pred_check
      _
    $region111: #{tpu_custom_call.1} parent=1 // pred_check_branch
      %4227 = sbr.rel (0) target = $region113
    $region112: #{tpu_custom_call.1} parent=1 // pred_region
      %4228 = dma.done [#allocation5], 256
    $region113: #{tpu_custom_call.1} parent=1 // pred_fallthru
      _
    %4229 = vsyncpa [#allocation4], 1
    %4230 = vsyncpa [#allocation7], 1
    %4231 = vsyncpa [#allocation10], 1
    %4232 = vsyncpa [#allocation13], 1
    %4233 = vsyncpa [#allocation16], 1
    %4234 = vsyncpa [#allocation5], 1

</llo_original>
